<compile_context>
chip_gen: v5e
topology: v5e:2x2
jax: 0.10.0
libtpu: 0.0.40
codegen_flags: <defaults>
</compile_context>

<pallas_src>
import jax
import jax.numpy as jnp
from jax.experimental import pallas as pl
from jax.experimental.pallas import tpu as pltpu


def _mlp_kernel(x_ref, w1t_ref, b1_ref, w2t_ref, b2_ref, w3c_ref, b3_ref, o_ref):
    # Feature-major layout:
    #   x    (2, TB)  compute_dtype      w1t (64, 2)  compute_dtype   b1 (64,1) compute_dtype
    #   w2t  (64, 64) compute_dtype      b2  (64, 1)  f32
    #   w3c  (64, 1)  f32                b3  (1, 1)   f32
    #   out  (1, TB)  f32
    x = x_ref[...]                                       # (2, TB)
    w1t = w1t_ref[...]                                   # (64, 2)

    # ---- Layer 1 (in=2): VPU broadcast multiply-adds, MXU skipped entirely. ----
    # Done in the compute dtype (bf16 by default) so h1 is already an MXU operand.
    h1 = w1t[:, 0:1] * x[0:1, :] + w1t[:, 1:2] * x[1:2, :] + b1_ref[...]
    h1 = jnp.maximum(h1, 0.0)                            # ReLU, (64, TB)

    # ---- Layer 2 (64x64) on the MXU, f32 accumulation; epilogue stays f32. ----
    h2 = jnp.dot(w2t_ref[...], h1,
                 preferred_element_type=jnp.float32) + b2_ref[...]
    h2 = jnp.maximum(h2, 0.0)                            # ReLU, (64, TB) f32

    # ---- Layer 3 (64 -> 1): VPU multiply + cross-sublane (XLU) reduce. ----------
    # Keeps the hopeless M=1 matmul off the MXU and drops the h2 bf16 pack.
    logit = jnp.sum(w3c_ref[...] * h2, axis=0, keepdims=True) + b3_ref[...]  # (1,TB)

    # ---- Sigmoid: clamp so exp never hits inf; exp + approx reciprocal on EUP. --
    logit = jnp.maximum(logit, -30.0)
    o_ref[...] = pl.reciprocal(1.0 + jnp.exp(-logit), approx=True).astype(o_ref.dtype)


def good_model_forward(x, params, *, tb=8192, compute_dtype=jnp.bfloat16,
                       x_is_feature_major=False):
    """Forward pass of GoodModel.

    x: (N, 2) float32 (batch-major, PyTorch-style) or (2, N) if
       x_is_feature_major=True (skips one transpose HBM pass).
    Returns (N, 1) float32.
    compute_dtype: bf16 by default (v6e/v7x); use jnp.float32 on v5e / for validation.
    """
    assert tb % 128 == 0, "batch tile must be lane-aligned (multiple of 128)"

    if x_is_feature_major:
        assert x.shape[0] == 2
        xt = jnp.asarray(x, compute_dtype)               # (2, N)
    else:
        assert x.shape[1] == 2
        xt = jnp.asarray(x, compute_dtype).T             # (2, N) feature-major
    n = xt.shape[1]

    n_pad = pl.cdiv(n, tb) * tb
    if n_pad != n:
        xt = jnp.pad(xt, ((0, 0), (0, n_pad - n)))       # zero-pad ragged batch

    # Weights pre-transposed / pre-cast once in the wrapper (resident across steps).
    w1t = params["w1"].T.astype(compute_dtype)           # (64, 2)   VPU layer
    b1 = params["b1"].reshape(64, 1).astype(compute_dtype)
    w2t = params["w2"].T.astype(compute_dtype)           # (64, 64)  MXU operand
    b2 = params["b2"].reshape(64, 1).astype(jnp.float32)
    w3c = params["w3"].reshape(64, 1).astype(jnp.float32)  # (64, 1) VPU layer (f32)
    b3 = params["b3"].reshape(1, 1).astype(jnp.float32)

    full = lambda arr: pl.BlockSpec(arr.shape, lambda i: (0, 0))

    out = pl.pallas_call(
        _mlp_kernel,
        out_shape=jax.ShapeDtypeStruct((1, n_pad), jnp.float32),
        grid_spec=pltpu.PrefetchScalarGridSpec(
            num_scalar_prefetch=0,
            grid=(n_pad // tb,),
            in_specs=[
                pl.BlockSpec((2, tb), lambda i: (0, i)),     # x tile: batch on lanes
                full(w1t), full(b1),
                full(w2t), full(b2),
                full(w3c), full(b3),
            ],
            out_specs=pl.BlockSpec((1, tb), lambda i: (0, i)),  # lane-dense output
        ),
        compiler_params=pltpu.CompilerParams(
            dimension_semantics=("parallel",),
            vmem_limit_bytes=32 * 1024 * 1024,            # big tiles OK on v5e too
        ),
    )(xt, w1t, b1, w2t, b2, w3c, b3)

    return out[:, :n].T                                   # back to (N, 1) batch-major


def init_params(key):
    """Deterministic init. Weights kept in (in_features, out_features) layout so the
    reference computes x @ W + b, matching PyTorch's x @ W_pt.T + b semantics."""
    k1, k2, k3, k4, k5, k6 = jax.random.split(key, 6)

    def linear(kw, kb, fan_in, fan_out):
        bound = 1.0 / jnp.sqrt(fan_in)                    # torch.nn.Linear default
        w = jax.random.uniform(kw, (fan_in, fan_out), jnp.float32, -bound, bound)
        b = jax.random.uniform(kb, (1, fan_out), jnp.float32, -bound, bound)
        return w, b

    w1, b1 = linear(k1, k2, 2, 64)
    w2, b2 = linear(k3, k4, 64, 64)
    w3, b3 = linear(k5, k6, 64, 1)
    return {"w1": w1, "b1": b1, "w2": w2, "b2": b2, "w3": w3, "b3": b3}


def reference_forward(x, p):
    h1 = jnp.maximum(x @ p["w1"] + p["b1"], 0.0)
    h2 = jnp.maximum(h1 @ p["w2"] + p["b2"], 0.0)
    return jax.nn.sigmoid(h2 @ p["w3"] + p["b3"])


if __name__ == "__main__":
    key = jax.random.PRNGKey(0)
    kx, kp = jax.random.split(key)

    n = 1000                                              # ragged -> exercises padding
    x = jax.random.normal(kx, (n, 2), jnp.float32)
    params = init_params(kp)

    # Default optimized path (bf16 compute, tb=8192 -> single grid step here).
    out_default = jax.block_until_ready(good_model_forward(x, params))
    # Small-tile bf16 path (multi-step grid) and full-f32 validation path.
    out_bf16 = jax.block_until_ready(good_model_forward(x, params, tb=512))
    out_f32 = jax.block_until_ready(
        good_model_forward(x, params, tb=512, compute_dtype=jnp.float32))

    ref = reference_forward(x, params)
    assert out_default.shape == (n, 1)
    assert jnp.allclose(out_f32, ref, atol=1e-2), "f32 kernel mismatch vs reference"
    assert jnp.allclose(out_bf16, ref, atol=2e-2), "bf16 kernel mismatch vs reference"
    assert jnp.allclose(out_default, ref, atol=2e-2), "default kernel mismatch vs reference"

    print("KERNEL_OK")
</pallas_src>

<mosaic_0001>
module attributes {stable_mosaic.version = 11 : i64} {
  func.func @_mlp_kernel(%arg0: i32, %arg1: memref<2x8192xbf16, #tpu.memory_space<vmem>>, %arg2: memref<64x2xbf16, #tpu.memory_space<vmem>>, %arg3: memref<64x1xbf16, #tpu.memory_space<vmem>>, %arg4: memref<64x64xbf16, #tpu.memory_space<vmem>>, %arg5: memref<64x1xf32, #tpu.memory_space<vmem>>, %arg6: memref<64x1xf32, #tpu.memory_space<vmem>>, %arg7: memref<1x1xf32, #tpu.memory_space<vmem>>, %arg8: memref<1x8192xf32, #tpu.memory_space<vmem>>) attributes {dimension_semantics = [#tpu.dimension_semantics<parallel>], iteration_bounds = array<i64: 1>, scalar_prefetch = 0 : i64, scratch_operands = 0 : i64, tpu.core_type = #tpu.core_type<tc>, window_params = [{transform_indices = @transform_0, window_bounds = array<i64: 2, 8192>}, {pipeline_mode = #tpu.pipeline_mode<synchronous>, transform_indices = @transform_1, window_bounds = array<i64: 64, 2>}, {pipeline_mode = #tpu.pipeline_mode<synchronous>, transform_indices = @transform_2, window_bounds = array<i64: 64, 1>}, {pipeline_mode = #tpu.pipeline_mode<synchronous>, transform_indices = @transform_3, window_bounds = array<i64: 64, 64>}, {pipeline_mode = #tpu.pipeline_mode<synchronous>, transform_indices = @transform_4, window_bounds = array<i64: 64, 1>}, {pipeline_mode = #tpu.pipeline_mode<synchronous>, transform_indices = @transform_5, window_bounds = array<i64: 64, 1>}, {pipeline_mode = #tpu.pipeline_mode<synchronous>, transform_indices = @transform_6, window_bounds = array<i64: 1, 1>}, {transform_indices = @transform_7, window_bounds = array<i64: 1, 8192>}]} {
    %c0 = arith.constant 0 : index
    %c0_0 = arith.constant 0 : index
    %0 = vector.load %arg1[%c0, %c0_0] : memref<2x8192xbf16, #tpu.memory_space<vmem>>, vector<2x8192xbf16>
    %c0_1 = arith.constant 0 : index
    %c0_2 = arith.constant 0 : index
    %1 = vector.load %arg2[%c0_1, %c0_2] : memref<64x2xbf16, #tpu.memory_space<vmem>>, vector<64x2xbf16>
    %2 = vector.extract_strided_slice %1 {offsets = [0, 0], sizes = [64, 1], strides = [1, 1]} : vector<64x2xbf16> to vector<64x1xbf16>
    %3 = vector.extract_strided_slice %0 {offsets = [0, 0], sizes = [1, 8192], strides = [1, 1]} : vector<2x8192xbf16> to vector<1x8192xbf16>
    %4 = vector.broadcast %2 : vector<64x1xbf16> to vector<64x8192xbf16>
    %5 = vector.broadcast %3 : vector<1x8192xbf16> to vector<64x8192xbf16>
    %6 = arith.mulf %4, %5 : vector<64x8192xbf16>
    %7 = vector.extract_strided_slice %1 {offsets = [0, 1], sizes = [64, 1], strides = [1, 1]} : vector<64x2xbf16> to vector<64x1xbf16>
    %8 = vector.extract_strided_slice %0 {offsets = [1, 0], sizes = [1, 8192], strides = [1, 1]} : vector<2x8192xbf16> to vector<1x8192xbf16>
    %9 = vector.broadcast %7 : vector<64x1xbf16> to vector<64x8192xbf16>
    %10 = vector.broadcast %8 : vector<1x8192xbf16> to vector<64x8192xbf16>
    %11 = arith.mulf %9, %10 : vector<64x8192xbf16>
    %12 = arith.addf %6, %11 : vector<64x8192xbf16>
    %c0_3 = arith.constant 0 : index
    %c0_4 = arith.constant 0 : index
    %13 = vector.load %arg3[%c0_3, %c0_4] : memref<64x1xbf16, #tpu.memory_space<vmem>>, vector<64x1xbf16>
    %14 = vector.broadcast %13 : vector<64x1xbf16> to vector<64x8192xbf16>
    %15 = arith.addf %12, %14 : vector<64x8192xbf16>
    %cst = arith.constant 0.000000e+00 : bf16
    %16 = vector.broadcast %cst : bf16 to vector<64x8192xbf16>
    %17 = arith.maximumf %15, %16 : vector<64x8192xbf16>
    %c0_5 = arith.constant 0 : index
    %c0_6 = arith.constant 0 : index
    %18 = vector.load %arg4[%c0_5, %c0_6] : memref<64x64xbf16, #tpu.memory_space<vmem>>, vector<64x64xbf16>
    %cst_7 = arith.constant dense<0.000000e+00> : vector<64x8192xf32>
    %19 = tpu.matmul %18, %17, %cst_7 {dimension_numbers = #tpu.dot_dimension_numbers<[1], [0], [0], [1], [0, 0, 1, 1], [], []>} : vector<64x64xbf16>, vector<64x8192xbf16>, vector<64x8192xf32> -> vector<64x8192xf32>
    %c0_8 = arith.constant 0 : index
    %c0_9 = arith.constant 0 : index
    %20 = vector.load %arg5[%c0_8, %c0_9] : memref<64x1xf32, #tpu.memory_space<vmem>>, vector<64x1xf32>
    %21 = vector.broadcast %20 : vector<64x1xf32> to vector<64x8192xf32>
    %22 = arith.addf %19, %21 : vector<64x8192xf32>
    %cst_10 = arith.constant 0.000000e+00 : f32
    %23 = vector.broadcast %cst_10 : f32 to vector<64x8192xf32>
    %24 = arith.maximumf %22, %23 : vector<64x8192xf32>
    %c0_11 = arith.constant 0 : index
    %c0_12 = arith.constant 0 : index
    %25 = vector.load %arg6[%c0_11, %c0_12] : memref<64x1xf32, #tpu.memory_space<vmem>>, vector<64x1xf32>
    %26 = vector.broadcast %25 : vector<64x1xf32> to vector<64x8192xf32>
    %27 = arith.mulf %26, %24 : vector<64x8192xf32>
    %cst_13 = arith.constant dense<0.000000e+00> : vector<8192xf32>
    %28 = vector.multi_reduction <add>, %27, %cst_13 [0] : vector<64x8192xf32> to vector<8192xf32>
    %29 = vector.shape_cast %28 : vector<8192xf32> to vector<1x8192xf32>
    %c0_14 = arith.constant 0 : index
    %c0_15 = arith.constant 0 : index
    %30 = vector.load %arg7[%c0_14, %c0_15] : memref<1x1xf32, #tpu.memory_space<vmem>>, vector<1x1xf32>
    %31 = vector.broadcast %30 : vector<1x1xf32> to vector<1x8192xf32>
    %32 = arith.addf %29, %31 : vector<1x8192xf32>
    %cst_16 = arith.constant -3.000000e+01 : f32
    %33 = vector.broadcast %cst_16 : f32 to vector<1x8192xf32>
    %34 = arith.maximumf %32, %33 : vector<1x8192xf32>
    %cst_17 = arith.constant 0.000000e+00 : f32
    %35 = vector.broadcast %cst_17 : f32 to vector<1x8192xf32>
    %36 = arith.subf %35, %34 : vector<1x8192xf32>
    %37 = math.exp %36 : vector<1x8192xf32>
    %cst_18 = arith.constant 1.000000e+00 : f32
    %38 = vector.broadcast %cst_18 : f32 to vector<1x8192xf32>
    %39 = arith.addf %38, %37 : vector<1x8192xf32>
    %40 = tpu.reciprocal %39 {approx = true} : vector<1x8192xf32> -> vector<1x8192xf32>
    %c0_19 = arith.constant 0 : index
    %c0_20 = arith.constant 0 : index
    %41 = vector.load %arg8[%c0_19, %c0_20] : memref<1x8192xf32, #tpu.memory_space<vmem>>, vector<1x8192xf32>
    tpu.vector_store %arg8[%c0_19, %c0_20], %40 {strides = array<i32>} : memref<1x8192xf32, #tpu.memory_space<vmem>>, vector<1x8192xf32>,
    return
  }
  func.func @transform_0(%arg0: i32) -> (i32, i32) {
    %c0_i32 = arith.constant 0 : i32
    %c0_i32_0 = arith.constant 0 : i32
    return %c0_i32, %arg0 : i32, i32
  }
  func.func @transform_1(%arg0: i32) -> (i32, i32) {
    %c0_i32 = arith.constant 0 : i32
    %c0_i32_0 = arith.constant 0 : i32
    %c0_i32_1 = arith.constant 0 : i32
    return %c0_i32, %c0_i32_0 : i32, i32
  }
  func.func @transform_2(%arg0: i32) -> (i32, i32) {
    %c0_i32 = arith.constant 0 : i32
    %c0_i32_0 = arith.constant 0 : i32
    %c0_i32_1 = arith.constant 0 : i32
    return %c0_i32, %c0_i32_0 : i32, i32
  }
  func.func @transform_3(%arg0: i32) -> (i32, i32) {
    %c0_i32 = arith.constant 0 : i32
    %c0_i32_0 = arith.constant 0 : i32
    %c0_i32_1 = arith.constant 0 : i32
    return %c0_i32, %c0_i32_0 : i32, i32
  }
  func.func @transform_4(%arg0: i32) -> (i32, i32) {
    %c0_i32 = arith.constant 0 : i32
    %c0_i32_0 = arith.constant 0 : i32
    %c0_i32_1 = arith.constant 0 : i32
    return %c0_i32, %c0_i32_0 : i32, i32
  }
  func.func @transform_5(%arg0: i32) -> (i32, i32) {
    %c0_i32 = arith.constant 0 : i32
    %c0_i32_0 = arith.constant 0 : i32
    %c0_i32_1 = arith.constant 0 : i32
    return %c0_i32, %c0_i32_0 : i32, i32
  }
  func.func @transform_6(%arg0: i32) -> (i32, i32) {
    %c0_i32 = arith.constant 0 : i32
    %c0_i32_0 = arith.constant 0 : i32
    %c0_i32_1 = arith.constant 0 : i32
    return %c0_i32, %c0_i32_0 : i32, i32
  }
  func.func @transform_7(%arg0: i32) -> (i32, i32) {
    %c0_i32 = arith.constant 0 : i32
    %c0_i32_0 = arith.constant 0 : i32
    return %c0_i32, %arg0 : i32, i32
  }
}

</mosaic_0001>

<llo_original>
// kernel: tpu_custom_call.1
$region0: #{tpu_custom_call.1}
  #allocation0 [shape = 'u32[]', space=smem, size = 0x4, offset = 0x4, fixed_abs, tag = 'smem constant byte address 0x4 - core index']
  #allocation1 [shape = 'u32[72,128]{1,0:T(1,128)}', space=vmem, size = 0x9000, scoped, tag = 'internal scratch']
  #allocation2 [shape = 'f32[1,1]{1,0:T(1,128)S(1)}', space=vmem, size = 0x200, scoped, tag = 'scoped memory for tpu_custom_call.1']
  %s0 = inlined_call_operand.vmem [shape: bf16[2,8192], index: 0, kind: input, shape index: {}]
  %s1 = inlined_call_operand.vmem [shape: bf16[64,2], index: 1, kind: input, shape index: {}]
  %s2 = inlined_call_operand.vmem [shape: bf16[64,1], index: 2, kind: input, shape index: {}]
  %s3 = inlined_call_operand.vmem [shape: bf16[64,64], index: 3, kind: input, shape index: {}]
  %s4 = inlined_call_operand.vmem [shape: f32[64,1], index: 4, kind: input, shape index: {}]
  %s5 = inlined_call_operand.vmem [shape: f32[64,1], index: 5, kind: input, shape index: {}]
  %s6 = inlined_call_operand.<no memory space> [shape: f32[1,1], index: 6, kind: input, shape index: {}]
  %s7 = inlined_call_operand.hbm [shape: f32[1,8192], index: 7, kind: output, shape index: {}]
  %s8 = sld [smem:[#allocation0]]
  $region38: #{tpu_custom_call.1} parent=0
    _
  %s10 = ssub.s32 1, %s8
  %s11 = scalar_select 0, %s10, %s8
  %v12 = vstv %s6
  %13 = vst [vmem:[#allocation2] sm:$0x1] %v12
  $region1: #{tpu_custom_call.1} parent=0
    #allocation3 [shape = 'u8[32768]{0}', space=vmem, size = 0x8000, scoped, tag = 'output window, operand 0, single buffered']
    #allocation4 [shape = 's32[1]{0}', space=sflag, size = 0x4, scoped, tag = 'scoped memory for tpu_custom_call.1']
    %14 = vsyncpa [#allocation4], 0
    // Predicated region
    $region2: #{tpu_custom_call.1} parent=1 // pred_check
      _
    $region3: #{tpu_custom_call.1} parent=1 // pred_check_branch
      %16 = sbr.rel (0) target = $region5
    $region4: #{tpu_custom_call.1} parent=1 // pred_region
      _
    $region5: #{tpu_custom_call.1} parent=1 // pred_fallthru
      _
    // Predicated region
    $region6: #{tpu_custom_call.1} parent=1 // pred_check
      _
    $region7: #{tpu_custom_call.1} parent=1 // pred_check_branch
      %18 = sbr.rel (0) target = $region9
    $region8: #{tpu_custom_call.1} parent=1 // pred_region
      _
    $region9: #{tpu_custom_call.1} parent=1 // pred_fallthru
      _
    // Predicated region
    $region10: #{tpu_custom_call.1} parent=1 // pred_check
      _
    $region11: #{tpu_custom_call.1} parent=1 // pred_check_branch
      %20 = sbr.rel (0) target = $region13
    $region12: #{tpu_custom_call.1} parent=1 // pred_region
      _
    $region13: #{tpu_custom_call.1} parent=1 // pred_fallthru
      _
    // Predicated region
    $region14: #{tpu_custom_call.1} parent=1 // pred_check
      _
    $region15: #{tpu_custom_call.1} parent=1 // pred_check_branch
      %22 = sbr.rel (0) target = $region17
    $region16: #{tpu_custom_call.1} parent=1 // pred_region
      _
    $region17: #{tpu_custom_call.1} parent=1 // pred_fallthru
      _
    // Predicated region
    $region18: #{tpu_custom_call.1} parent=1 // pred_check
      _
    $region19: #{tpu_custom_call.1} parent=1 // pred_check_branch
      %24 = sbr.rel (0) target = $region21
    $region20: #{tpu_custom_call.1} parent=1 // pred_region
      _
    $region21: #{tpu_custom_call.1} parent=1 // pred_fallthru
      _
    // Predicated region
    $region22: #{tpu_custom_call.1} parent=1 // pred_check
      _
    $region23: #{tpu_custom_call.1} parent=1 // pred_check_branch
      %26 = sbr.rel (0) target = $region25
    $region24: #{tpu_custom_call.1} parent=1 // pred_region
      _
    $region25: #{tpu_custom_call.1} parent=1 // pred_fallthru
      _
    // Predicated region
    $region26: #{tpu_custom_call.1} parent=1 // pred_check
      _
    $region27: #{tpu_custom_call.1} parent=1 // pred_check_branch
      %28 = sbr.rel (0) target = $region29
    $region28: #{tpu_custom_call.1} parent=1 // pred_region
      _
    $region29: #{tpu_custom_call.1} parent=1 // pred_fallthru
      _
    %v30 = vld [vmem:[%s0] sm:$0xff]
    %v31 = vld [vmem:[%s0 + $0x8] sm:$0xff]
    %v32 = vld [vmem:[%s0 + $0x10] sm:$0xff]
    %v33 = vld [vmem:[%s0 + $0x18] sm:$0xff]
    %v34 = vld [vmem:[%s0 + $0x20] sm:$0xff]
    %v35 = vld [vmem:[%s0 + $0x28] sm:$0xff]
    %v36 = vld [vmem:[%s0 + $0x30] sm:$0xff]
    %v37 = vld [vmem:[%s0 + $0x38] sm:$0xff]
    %v38 = vld [vmem:[%s1] sm:$0xf]
    %v39 = vld [vmem:[%s1 + $0x4] sm:$0xf]
    %v40 = vld [vmem:[%s1 + $0x8] sm:$0xf]
    %v41 = vld [vmem:[%s1 + $0xc] sm:$0xf]
    %v42 = vld [vmem:[%s1 + $0x10] sm:$0xf]
    %v43 = vld [vmem:[%s1 + $0x14] sm:$0xf]
    %v44 = vld [vmem:[%s1 + $0x18] sm:$0xf]
    %v45 = vld [vmem:[%s1 + $0x1c] sm:$0xf]
    %47 = vset.pattern.permute.xlu0 0
    %48 = vperm.xlu0 %47, %v38
    %v49 = vpop.permute.xlu0 %48
    %v52 = vunpack.c.l.s4 839922192
    %v53 = vunpack.c.0.s8 %v52
    %v54 = vperm.slane %v49, %v53
    %56 = vset.pattern.permute.xlu0 0
    %57 = vperm.xlu0 %56, %v39
    %v58 = vpop.permute.xlu0 %57
    %v61 = vunpack.c.l.s4 839922192
    %v62 = vunpack.c.0.s8 %v61
    %v63 = vperm.slane %v58, %v62
    %65 = vset.pattern.permute.xlu0 0
    %66 = vperm.xlu0 %65, %v40
    %v67 = vpop.permute.xlu0 %66
    %v70 = vunpack.c.l.s4 839922192
    %v71 = vunpack.c.0.s8 %v70
    %v72 = vperm.slane %v67, %v71
    %74 = vset.pattern.permute.xlu0 0
    %75 = vperm.xlu0 %74, %v41
    %v76 = vpop.permute.xlu0 %75
    %v79 = vunpack.c.l.s4 839922192
    %v80 = vunpack.c.0.s8 %v79
    %v81 = vperm.slane %v76, %v80
    %83 = vset.pattern.permute.xlu0 0
    %84 = vperm.xlu0 %83, %v42
    %v85 = vpop.permute.xlu0 %84
    %v88 = vunpack.c.l.s4 839922192
    %v89 = vunpack.c.0.s8 %v88
    %v90 = vperm.slane %v85, %v89
    %92 = vset.pattern.permute.xlu0 0
    %93 = vperm.xlu0 %92, %v43
    %v94 = vpop.permute.xlu0 %93
    %v97 = vunpack.c.l.s4 839922192
    %v98 = vunpack.c.0.s8 %v97
    %v99 = vperm.slane %v94, %v98
    %101 = vset.pattern.permute.xlu0 0
    %102 = vperm.xlu0 %101, %v44
    %v103 = vpop.permute.xlu0 %102
    %v106 = vunpack.c.l.s4 839922192
    %v107 = vunpack.c.0.s8 %v106
    %v108 = vperm.slane %v103, %v107
    %110 = vset.pattern.permute.xlu0 0
    %111 = vperm.xlu0 %110, %v45
    %v112 = vpop.permute.xlu0 %111
    %v115 = vunpack.c.l.s4 839922192
    %v116 = vunpack.c.0.s8 %v115
    %v117 = vperm.slane %v112, %v116
    %119 = vst [vmem:[#allocation1] ss:$9 sm:$0xff] %v30
    %v120 = vld [vmem:[#allocation1] sm:$0xff]
    %v121 = vld [vmem:[#allocation1 + $0x9] sm:$0xff]
    %v122 = vld [vmem:[#allocation1 + $0x12] sm:$0xff]
    %v123 = vld [vmem:[#allocation1 + $0x1b] sm:$0xff]
    %v124 = vld [vmem:[#allocation1 + $0x24] sm:$0xff]
    %v125 = vld [vmem:[#allocation1 + $0x2d] sm:$0xff]
    %v126 = vld [vmem:[#allocation1 + $0x36] sm:$0xff]
    %v127 = vld [vmem:[#allocation1 + $0x3f] sm:$0xff]
    %129 = vst [vmem:[#allocation1] ss:$9 sm:$0xff] %v31
    %v130 = vld [vmem:[#allocation1] sm:$0xff]
    %v131 = vld [vmem:[#allocation1 + $0x9] sm:$0xff]
    %v132 = vld [vmem:[#allocation1 + $0x12] sm:$0xff]
    %v133 = vld [vmem:[#allocation1 + $0x1b] sm:$0xff]
    %v134 = vld [vmem:[#allocation1 + $0x24] sm:$0xff]
    %v135 = vld [vmem:[#allocation1 + $0x2d] sm:$0xff]
    %v136 = vld [vmem:[#allocation1 + $0x36] sm:$0xff]
    %v137 = vld [vmem:[#allocation1 + $0x3f] sm:$0xff]
    %139 = vst [vmem:[#allocation1] ss:$9 sm:$0xff] %v32
    %v140 = vld [vmem:[#allocation1] sm:$0xff]
    %v141 = vld [vmem:[#allocation1 + $0x9] sm:$0xff]
    %v142 = vld [vmem:[#allocation1 + $0x12] sm:$0xff]
    %v143 = vld [vmem:[#allocation1 + $0x1b] sm:$0xff]
    %v144 = vld [vmem:[#allocation1 + $0x24] sm:$0xff]
    %v145 = vld [vmem:[#allocation1 + $0x2d] sm:$0xff]
    %v146 = vld [vmem:[#allocation1 + $0x36] sm:$0xff]
    %v147 = vld [vmem:[#allocation1 + $0x3f] sm:$0xff]
    %149 = vst [vmem:[#allocation1] ss:$9 sm:$0xff] %v33
    %v150 = vld [vmem:[#allocation1] sm:$0xff]
    %v151 = vld [vmem:[#allocation1 + $0x9] sm:$0xff]
    %v152 = vld [vmem:[#allocation1 + $0x12] sm:$0xff]
    %v153 = vld [vmem:[#allocation1 + $0x1b] sm:$0xff]
    %v154 = vld [vmem:[#allocation1 + $0x24] sm:$0xff]
    %v155 = vld [vmem:[#allocation1 + $0x2d] sm:$0xff]
    %v156 = vld [vmem:[#allocation1 + $0x36] sm:$0xff]
    %v157 = vld [vmem:[#allocation1 + $0x3f] sm:$0xff]
    %159 = vst [vmem:[#allocation1] ss:$9 sm:$0xff] %v34
    %v160 = vld [vmem:[#allocation1] sm:$0xff]
    %v161 = vld [vmem:[#allocation1 + $0x9] sm:$0xff]
    %v162 = vld [vmem:[#allocation1 + $0x12] sm:$0xff]
    %v163 = vld [vmem:[#allocation1 + $0x1b] sm:$0xff]
    %v164 = vld [vmem:[#allocation1 + $0x24] sm:$0xff]
    %v165 = vld [vmem:[#allocation1 + $0x2d] sm:$0xff]
    %v166 = vld [vmem:[#allocation1 + $0x36] sm:$0xff]
    %v167 = vld [vmem:[#allocation1 + $0x3f] sm:$0xff]
    %169 = vst [vmem:[#allocation1] ss:$9 sm:$0xff] %v35
    %v170 = vld [vmem:[#allocation1] sm:$0xff]
    %v171 = vld [vmem:[#allocation1 + $0x9] sm:$0xff]
    %v172 = vld [vmem:[#allocation1 + $0x12] sm:$0xff]
    %v173 = vld [vmem:[#allocation1 + $0x1b] sm:$0xff]
    %v174 = vld [vmem:[#allocation1 + $0x24] sm:$0xff]
    %v175 = vld [vmem:[#allocation1 + $0x2d] sm:$0xff]
    %v176 = vld [vmem:[#allocation1 + $0x36] sm:$0xff]
    %v177 = vld [vmem:[#allocation1 + $0x3f] sm:$0xff]
    %179 = vst [vmem:[#allocation1] ss:$9 sm:$0xff] %v36
    %v180 = vld [vmem:[#allocation1] sm:$0xff]
    %v181 = vld [vmem:[#allocation1 + $0x9] sm:$0xff]
    %v182 = vld [vmem:[#allocation1 + $0x12] sm:$0xff]
    %v183 = vld [vmem:[#allocation1 + $0x1b] sm:$0xff]
    %v184 = vld [vmem:[#allocation1 + $0x24] sm:$0xff]
    %v185 = vld [vmem:[#allocation1 + $0x2d] sm:$0xff]
    %v186 = vld [vmem:[#allocation1 + $0x36] sm:$0xff]
    %v187 = vld [vmem:[#allocation1 + $0x3f] sm:$0xff]
    %189 = vst [vmem:[#allocation1] ss:$9 sm:$0xff] %v37
    %v190 = vld [vmem:[#allocation1] sm:$0xff]
    %v191 = vld [vmem:[#allocation1 + $0x9] sm:$0xff]
    %v192 = vld [vmem:[#allocation1 + $0x12] sm:$0xff]
    %v193 = vld [vmem:[#allocation1 + $0x1b] sm:$0xff]
    %v194 = vld [vmem:[#allocation1 + $0x24] sm:$0xff]
    %v195 = vld [vmem:[#allocation1 + $0x2d] sm:$0xff]
    %v196 = vld [vmem:[#allocation1 + $0x36] sm:$0xff]
    %v197 = vld [vmem:[#allocation1 + $0x3f] sm:$0xff]
    %v198 = vpack.i.b16 %v120, %v120
    %v200 = vperm.slane %v198, 0
    %v201 = vpack.i.b16 %v121, %v121
    %v203 = vperm.slane %v201, 0
    %v204 = vpack.i.b16 %v122, %v122
    %v206 = vperm.slane %v204, 0
    %v207 = vpack.i.b16 %v123, %v123
    %v209 = vperm.slane %v207, 0
    %v210 = vpack.i.b16 %v124, %v124
    %v212 = vperm.slane %v210, 0
    %v213 = vpack.i.b16 %v125, %v125
    %v215 = vperm.slane %v213, 0
    %v216 = vpack.i.b16 %v126, %v126
    %v218 = vperm.slane %v216, 0
    %v219 = vpack.i.b16 %v127, %v127
    %v221 = vperm.slane %v219, 0
    %v222 = vpack.i.b16 %v130, %v130
    %v224 = vperm.slane %v222, 0
    %v225 = vpack.i.b16 %v131, %v131
    %v227 = vperm.slane %v225, 0
    %v228 = vpack.i.b16 %v132, %v132
    %v230 = vperm.slane %v228, 0
    %v231 = vpack.i.b16 %v133, %v133
    %v233 = vperm.slane %v231, 0
    %v234 = vpack.i.b16 %v134, %v134
    %v236 = vperm.slane %v234, 0
    %v237 = vpack.i.b16 %v135, %v135
    %v239 = vperm.slane %v237, 0
    %v240 = vpack.i.b16 %v136, %v136
    %v242 = vperm.slane %v240, 0
    %v243 = vpack.i.b16 %v137, %v137
    %v245 = vperm.slane %v243, 0
    %v246 = vpack.i.b16 %v140, %v140
    %v248 = vperm.slane %v246, 0
    %v249 = vpack.i.b16 %v141, %v141
    %v251 = vperm.slane %v249, 0
    %v252 = vpack.i.b16 %v142, %v142
    %v254 = vperm.slane %v252, 0
    %v255 = vpack.i.b16 %v143, %v143
    %v257 = vperm.slane %v255, 0
    %v258 = vpack.i.b16 %v144, %v144
    %v260 = vperm.slane %v258, 0
    %v261 = vpack.i.b16 %v145, %v145
    %v263 = vperm.slane %v261, 0
    %v264 = vpack.i.b16 %v146, %v146
    %v266 = vperm.slane %v264, 0
    %v267 = vpack.i.b16 %v147, %v147
    %v269 = vperm.slane %v267, 0
    %v270 = vpack.i.b16 %v150, %v150
    %v272 = vperm.slane %v270, 0
    %v273 = vpack.i.b16 %v151, %v151
    %v275 = vperm.slane %v273, 0
    %v276 = vpack.i.b16 %v152, %v152
    %v278 = vperm.slane %v276, 0
    %v279 = vpack.i.b16 %v153, %v153
    %v281 = vperm.slane %v279, 0
    %v282 = vpack.i.b16 %v154, %v154
    %v284 = vperm.slane %v282, 0
    %v285 = vpack.i.b16 %v155, %v155
    %v287 = vperm.slane %v285, 0
    %v288 = vpack.i.b16 %v156, %v156
    %v290 = vperm.slane %v288, 0
    %v291 = vpack.i.b16 %v157, %v157
    %v293 = vperm.slane %v291, 0
    %v294 = vpack.i.b16 %v160, %v160
    %v296 = vperm.slane %v294, 0
    %v297 = vpack.i.b16 %v161, %v161
    %v299 = vperm.slane %v297, 0
    %v300 = vpack.i.b16 %v162, %v162
    %v302 = vperm.slane %v300, 0
    %v303 = vpack.i.b16 %v163, %v163
    %v305 = vperm.slane %v303, 0
    %v306 = vpack.i.b16 %v164, %v164
    %v308 = vperm.slane %v306, 0
    %v309 = vpack.i.b16 %v165, %v165
    %v311 = vperm.slane %v309, 0
    %v312 = vpack.i.b16 %v166, %v166
    %v314 = vperm.slane %v312, 0
    %v315 = vpack.i.b16 %v167, %v167
    %v317 = vperm.slane %v315, 0
    %v318 = vpack.i.b16 %v170, %v170
    %v320 = vperm.slane %v318, 0
    %v321 = vpack.i.b16 %v171, %v171
    %v323 = vperm.slane %v321, 0
    %v324 = vpack.i.b16 %v172, %v172
    %v326 = vperm.slane %v324, 0
    %v327 = vpack.i.b16 %v173, %v173
    %v329 = vperm.slane %v327, 0
    %v330 = vpack.i.b16 %v174, %v174
    %v332 = vperm.slane %v330, 0
    %v333 = vpack.i.b16 %v175, %v175
    %v335 = vperm.slane %v333, 0
    %v336 = vpack.i.b16 %v176, %v176
    %v338 = vperm.slane %v336, 0
    %v339 = vpack.i.b16 %v177, %v177
    %v341 = vperm.slane %v339, 0
    %v342 = vpack.i.b16 %v180, %v180
    %v344 = vperm.slane %v342, 0
    %v345 = vpack.i.b16 %v181, %v181
    %v347 = vperm.slane %v345, 0
    %v348 = vpack.i.b16 %v182, %v182
    %v350 = vperm.slane %v348, 0
    %v351 = vpack.i.b16 %v183, %v183
    %v353 = vperm.slane %v351, 0
    %v354 = vpack.i.b16 %v184, %v184
    %v356 = vperm.slane %v354, 0
    %v357 = vpack.i.b16 %v185, %v185
    %v359 = vperm.slane %v357, 0
    %v360 = vpack.i.b16 %v186, %v186
    %v362 = vperm.slane %v360, 0
    %v363 = vpack.i.b16 %v187, %v187
    %v365 = vperm.slane %v363, 0
    %v366 = vpack.i.b16 %v190, %v190
    %v368 = vperm.slane %v366, 0
    %v369 = vpack.i.b16 %v191, %v191
    %v371 = vperm.slane %v369, 0
    %v372 = vpack.i.b16 %v192, %v192
    %v374 = vperm.slane %v372, 0
    %v375 = vpack.i.b16 %v193, %v193
    %v377 = vperm.slane %v375, 0
    %v378 = vpack.i.b16 %v194, %v194
    %v380 = vperm.slane %v378, 0
    %v381 = vpack.i.b16 %v195, %v195
    %v383 = vperm.slane %v381, 0
    %v384 = vpack.i.b16 %v196, %v196
    %v386 = vperm.slane %v384, 0
    %v387 = vpack.i.b16 %v197, %v197
    %v389 = vperm.slane %v387, 0
    %v390 = vunpack.c.l.bf16 %v54
    %v391 = vunpack.c.l.bf16 %v63
    %v392 = vunpack.c.l.bf16 %v72
    %v393 = vunpack.c.l.bf16 %v81
    %v394 = vunpack.c.l.bf16 %v90
    %v395 = vunpack.c.l.bf16 %v99
    %v396 = vunpack.c.l.bf16 %v108
    %v397 = vunpack.c.l.bf16 %v117
    %v398 = vunpack.c.l.bf16 %v200
    %v399 = vunpack.c.l.bf16 %v203
    %v400 = vunpack.c.l.bf16 %v206
    %v401 = vunpack.c.l.bf16 %v209
    %v402 = vunpack.c.l.bf16 %v212
    %v403 = vunpack.c.l.bf16 %v215
    %v404 = vunpack.c.l.bf16 %v218
    %v405 = vunpack.c.l.bf16 %v221
    %v406 = vunpack.c.l.bf16 %v224
    %v407 = vunpack.c.l.bf16 %v227
    %v408 = vunpack.c.l.bf16 %v230
    %v409 = vunpack.c.l.bf16 %v233
    %v410 = vunpack.c.l.bf16 %v236
    %v411 = vunpack.c.l.bf16 %v239
    %v412 = vunpack.c.l.bf16 %v242
    %v413 = vunpack.c.l.bf16 %v245
    %v414 = vunpack.c.l.bf16 %v248
    %v415 = vunpack.c.l.bf16 %v251
    %v416 = vunpack.c.l.bf16 %v254
    %v417 = vunpack.c.l.bf16 %v257
    %v418 = vunpack.c.l.bf16 %v260
    %v419 = vunpack.c.l.bf16 %v263
    %v420 = vunpack.c.l.bf16 %v266
    %v421 = vunpack.c.l.bf16 %v269
    %v422 = vunpack.c.l.bf16 %v272
    %v423 = vunpack.c.l.bf16 %v275
    %v424 = vunpack.c.l.bf16 %v278
    %v425 = vunpack.c.l.bf16 %v281
    %v426 = vunpack.c.l.bf16 %v284
    %v427 = vunpack.c.l.bf16 %v287
    %v428 = vunpack.c.l.bf16 %v290
    %v429 = vunpack.c.l.bf16 %v293
    %v430 = vunpack.c.l.bf16 %v296
    %v431 = vunpack.c.l.bf16 %v299
    %v432 = vunpack.c.l.bf16 %v302
    %v433 = vunpack.c.l.bf16 %v305
    %v434 = vunpack.c.l.bf16 %v308
    %v435 = vunpack.c.l.bf16 %v311
    %v436 = vunpack.c.l.bf16 %v314
    %v437 = vunpack.c.l.bf16 %v317
    %v438 = vunpack.c.l.bf16 %v320
    %v439 = vunpack.c.l.bf16 %v323
    %v440 = vunpack.c.l.bf16 %v326
    %v441 = vunpack.c.l.bf16 %v329
    %v442 = vunpack.c.l.bf16 %v332
    %v443 = vunpack.c.l.bf16 %v335
    %v444 = vunpack.c.l.bf16 %v338
    %v445 = vunpack.c.l.bf16 %v341
    %v446 = vunpack.c.l.bf16 %v344
    %v447 = vunpack.c.l.bf16 %v347
    %v448 = vunpack.c.l.bf16 %v350
    %v449 = vunpack.c.l.bf16 %v353
    %v450 = vunpack.c.l.bf16 %v356
    %v451 = vunpack.c.l.bf16 %v359
    %v452 = vunpack.c.l.bf16 %v362
    %v453 = vunpack.c.l.bf16 %v365
    %v454 = vunpack.c.l.bf16 %v368
    %v455 = vunpack.c.l.bf16 %v371
    %v456 = vunpack.c.l.bf16 %v374
    %v457 = vunpack.c.l.bf16 %v377
    %v458 = vunpack.c.l.bf16 %v380
    %v459 = vunpack.c.l.bf16 %v383
    %v460 = vunpack.c.l.bf16 %v386
    %v461 = vunpack.c.l.bf16 %v389
    %v462 = vmul.f32 %v390, %v398
    %v463 = vmul.f32 %v390, %v399
    %v464 = vmul.f32 %v390, %v400
    %v465 = vmul.f32 %v390, %v401
    %v466 = vmul.f32 %v390, %v402
    %v467 = vmul.f32 %v390, %v403
    %v468 = vmul.f32 %v390, %v404
    %v469 = vmul.f32 %v390, %v405
    %v470 = vmul.f32 %v390, %v406
    %v471 = vmul.f32 %v390, %v407
    %v472 = vmul.f32 %v390, %v408
    %v473 = vmul.f32 %v390, %v409
    %v474 = vmul.f32 %v390, %v410
    %v475 = vmul.f32 %v390, %v411
    %v476 = vmul.f32 %v390, %v412
    %v477 = vmul.f32 %v390, %v413
    %v478 = vmul.f32 %v390, %v414
    %v479 = vmul.f32 %v390, %v415
    %v480 = vmul.f32 %v390, %v416
    %v481 = vmul.f32 %v390, %v417
    %v482 = vmul.f32 %v390, %v418
    %v483 = vmul.f32 %v390, %v419
    %v484 = vmul.f32 %v390, %v420
    %v485 = vmul.f32 %v390, %v421
    %v486 = vmul.f32 %v390, %v422
    %v487 = vmul.f32 %v390, %v423
    %v488 = vmul.f32 %v390, %v424
    %v489 = vmul.f32 %v390, %v425
    %v490 = vmul.f32 %v390, %v426
    %v491 = vmul.f32 %v390, %v427
    %v492 = vmul.f32 %v390, %v428
    %v493 = vmul.f32 %v390, %v429
    %v494 = vmul.f32 %v390, %v430
    %v495 = vmul.f32 %v390, %v431
    %v496 = vmul.f32 %v390, %v432
    %v497 = vmul.f32 %v390, %v433
    %v498 = vmul.f32 %v390, %v434
    %v499 = vmul.f32 %v390, %v435
    %v500 = vmul.f32 %v390, %v436
    %v501 = vmul.f32 %v390, %v437
    %v502 = vmul.f32 %v390, %v438
    %v503 = vmul.f32 %v390, %v439
    %v504 = vmul.f32 %v390, %v440
    %v505 = vmul.f32 %v390, %v441
    %v506 = vmul.f32 %v390, %v442
    %v507 = vmul.f32 %v390, %v443
    %v508 = vmul.f32 %v390, %v444
    %v509 = vmul.f32 %v390, %v445
    %v510 = vmul.f32 %v390, %v446
    %v511 = vmul.f32 %v390, %v447
    %v512 = vmul.f32 %v390, %v448
    %v513 = vmul.f32 %v390, %v449
    %v514 = vmul.f32 %v390, %v450
    %v515 = vmul.f32 %v390, %v451
    %v516 = vmul.f32 %v390, %v452
    %v517 = vmul.f32 %v390, %v453
    %v518 = vmul.f32 %v390, %v454
    %v519 = vmul.f32 %v390, %v455
    %v520 = vmul.f32 %v390, %v456
    %v521 = vmul.f32 %v390, %v457
    %v522 = vmul.f32 %v390, %v458
    %v523 = vmul.f32 %v390, %v459
    %v524 = vmul.f32 %v390, %v460
    %v525 = vmul.f32 %v390, %v461
    %v526 = vmul.f32 %v391, %v398
    %v527 = vmul.f32 %v391, %v399
    %v528 = vmul.f32 %v391, %v400
    %v529 = vmul.f32 %v391, %v401
    %v530 = vmul.f32 %v391, %v402
    %v531 = vmul.f32 %v391, %v403
    %v532 = vmul.f32 %v391, %v404
    %v533 = vmul.f32 %v391, %v405
    %v534 = vmul.f32 %v391, %v406
    %v535 = vmul.f32 %v391, %v407
    %v536 = vmul.f32 %v391, %v408
    %v537 = vmul.f32 %v391, %v409
    %v538 = vmul.f32 %v391, %v410
    %v539 = vmul.f32 %v391, %v411
    %v540 = vmul.f32 %v391, %v412
    %v541 = vmul.f32 %v391, %v413
    %v542 = vmul.f32 %v391, %v414
    %v543 = vmul.f32 %v391, %v415
    %v544 = vmul.f32 %v391, %v416
    %v545 = vmul.f32 %v391, %v417
    %v546 = vmul.f32 %v391, %v418
    %v547 = vmul.f32 %v391, %v419
    %v548 = vmul.f32 %v391, %v420
    %v549 = vmul.f32 %v391, %v421
    %v550 = vmul.f32 %v391, %v422
    %v551 = vmul.f32 %v391, %v423
    %v552 = vmul.f32 %v391, %v424
    %v553 = vmul.f32 %v391, %v425
    %v554 = vmul.f32 %v391, %v426
    %v555 = vmul.f32 %v391, %v427
    %v556 = vmul.f32 %v391, %v428
    %v557 = vmul.f32 %v391, %v429
    %v558 = vmul.f32 %v391, %v430
    %v559 = vmul.f32 %v391, %v431
    %v560 = vmul.f32 %v391, %v432
    %v561 = vmul.f32 %v391, %v433
    %v562 = vmul.f32 %v391, %v434
    %v563 = vmul.f32 %v391, %v435
    %v564 = vmul.f32 %v391, %v436
    %v565 = vmul.f32 %v391, %v437
    %v566 = vmul.f32 %v391, %v438
    %v567 = vmul.f32 %v391, %v439
    %v568 = vmul.f32 %v391, %v440
    %v569 = vmul.f32 %v391, %v441
    %v570 = vmul.f32 %v391, %v442
    %v571 = vmul.f32 %v391, %v443
    %v572 = vmul.f32 %v391, %v444
    %v573 = vmul.f32 %v391, %v445
    %v574 = vmul.f32 %v391, %v446
    %v575 = vmul.f32 %v391, %v447
    %v576 = vmul.f32 %v391, %v448
    %v577 = vmul.f32 %v391, %v449
    %v578 = vmul.f32 %v391, %v450
    %v579 = vmul.f32 %v391, %v451
    %v580 = vmul.f32 %v391, %v452
    %v581 = vmul.f32 %v391, %v453
    %v582 = vmul.f32 %v391, %v454
    %v583 = vmul.f32 %v391, %v455
    %v584 = vmul.f32 %v391, %v456
    %v585 = vmul.f32 %v391, %v457
    %v586 = vmul.f32 %v391, %v458
    %v587 = vmul.f32 %v391, %v459
    %v588 = vmul.f32 %v391, %v460
    %v589 = vmul.f32 %v391, %v461
    %v590 = vmul.f32 %v392, %v398
    %v591 = vmul.f32 %v392, %v399
    %v592 = vmul.f32 %v392, %v400
    %v593 = vmul.f32 %v392, %v401
    %v594 = vmul.f32 %v392, %v402
    %v595 = vmul.f32 %v392, %v403
    %v596 = vmul.f32 %v392, %v404
    %v597 = vmul.f32 %v392, %v405
    %v598 = vmul.f32 %v392, %v406
    %v599 = vmul.f32 %v392, %v407
    %v600 = vmul.f32 %v392, %v408
    %v601 = vmul.f32 %v392, %v409
    %v602 = vmul.f32 %v392, %v410
    %v603 = vmul.f32 %v392, %v411
    %v604 = vmul.f32 %v392, %v412
    %v605 = vmul.f32 %v392, %v413
    %v606 = vmul.f32 %v392, %v414
    %v607 = vmul.f32 %v392, %v415
    %v608 = vmul.f32 %v392, %v416
    %v609 = vmul.f32 %v392, %v417
    %v610 = vmul.f32 %v392, %v418
    %v611 = vmul.f32 %v392, %v419
    %v612 = vmul.f32 %v392, %v420
    %v613 = vmul.f32 %v392, %v421
    %v614 = vmul.f32 %v392, %v422
    %v615 = vmul.f32 %v392, %v423
    %v616 = vmul.f32 %v392, %v424
    %v617 = vmul.f32 %v392, %v425
    %v618 = vmul.f32 %v392, %v426
    %v619 = vmul.f32 %v392, %v427
    %v620 = vmul.f32 %v392, %v428
    %v621 = vmul.f32 %v392, %v429
    %v622 = vmul.f32 %v392, %v430
    %v623 = vmul.f32 %v392, %v431
    %v624 = vmul.f32 %v392, %v432
    %v625 = vmul.f32 %v392, %v433
    %v626 = vmul.f32 %v392, %v434
    %v627 = vmul.f32 %v392, %v435
    %v628 = vmul.f32 %v392, %v436
    %v629 = vmul.f32 %v392, %v437
    %v630 = vmul.f32 %v392, %v438
    %v631 = vmul.f32 %v392, %v439
    %v632 = vmul.f32 %v392, %v440
    %v633 = vmul.f32 %v392, %v441
    %v634 = vmul.f32 %v392, %v442
    %v635 = vmul.f32 %v392, %v443
    %v636 = vmul.f32 %v392, %v444
    %v637 = vmul.f32 %v392, %v445
    %v638 = vmul.f32 %v392, %v446
    %v639 = vmul.f32 %v392, %v447
    %v640 = vmul.f32 %v392, %v448
    %v641 = vmul.f32 %v392, %v449
    %v642 = vmul.f32 %v392, %v450
    %v643 = vmul.f32 %v392, %v451
    %v644 = vmul.f32 %v392, %v452
    %v645 = vmul.f32 %v392, %v453
    %v646 = vmul.f32 %v392, %v454
    %v647 = vmul.f32 %v392, %v455
    %v648 = vmul.f32 %v392, %v456
    %v649 = vmul.f32 %v392, %v457
    %v650 = vmul.f32 %v392, %v458
    %v651 = vmul.f32 %v392, %v459
    %v652 = vmul.f32 %v392, %v460
    %v653 = vmul.f32 %v392, %v461
    %v654 = vmul.f32 %v393, %v398
    %v655 = vmul.f32 %v393, %v399
    %v656 = vmul.f32 %v393, %v400
    %v657 = vmul.f32 %v393, %v401
    %v658 = vmul.f32 %v393, %v402
    %v659 = vmul.f32 %v393, %v403
    %v660 = vmul.f32 %v393, %v404
    %v661 = vmul.f32 %v393, %v405
    %v662 = vmul.f32 %v393, %v406
    %v663 = vmul.f32 %v393, %v407
    %v664 = vmul.f32 %v393, %v408
    %v665 = vmul.f32 %v393, %v409
    %v666 = vmul.f32 %v393, %v410
    %v667 = vmul.f32 %v393, %v411
    %v668 = vmul.f32 %v393, %v412
    %v669 = vmul.f32 %v393, %v413
    %v670 = vmul.f32 %v393, %v414
    %v671 = vmul.f32 %v393, %v415
    %v672 = vmul.f32 %v393, %v416
    %v673 = vmul.f32 %v393, %v417
    %v674 = vmul.f32 %v393, %v418
    %v675 = vmul.f32 %v393, %v419
    %v676 = vmul.f32 %v393, %v420
    %v677 = vmul.f32 %v393, %v421
    %v678 = vmul.f32 %v393, %v422
    %v679 = vmul.f32 %v393, %v423
    %v680 = vmul.f32 %v393, %v424
    %v681 = vmul.f32 %v393, %v425
    %v682 = vmul.f32 %v393, %v426
    %v683 = vmul.f32 %v393, %v427
    %v684 = vmul.f32 %v393, %v428
    %v685 = vmul.f32 %v393, %v429
    %v686 = vmul.f32 %v393, %v430
    %v687 = vmul.f32 %v393, %v431
    %v688 = vmul.f32 %v393, %v432
    %v689 = vmul.f32 %v393, %v433
    %v690 = vmul.f32 %v393, %v434
    %v691 = vmul.f32 %v393, %v435
    %v692 = vmul.f32 %v393, %v436
    %v693 = vmul.f32 %v393, %v437
    %v694 = vmul.f32 %v393, %v438
    %v695 = vmul.f32 %v393, %v439
    %v696 = vmul.f32 %v393, %v440
    %v697 = vmul.f32 %v393, %v441
    %v698 = vmul.f32 %v393, %v442
    %v699 = vmul.f32 %v393, %v443
    %v700 = vmul.f32 %v393, %v444
    %v701 = vmul.f32 %v393, %v445
    %v702 = vmul.f32 %v393, %v446
    %v703 = vmul.f32 %v393, %v447
    %v704 = vmul.f32 %v393, %v448
    %v705 = vmul.f32 %v393, %v449
    %v706 = vmul.f32 %v393, %v450
    %v707 = vmul.f32 %v393, %v451
    %v708 = vmul.f32 %v393, %v452
    %v709 = vmul.f32 %v393, %v453
    %v710 = vmul.f32 %v393, %v454
    %v711 = vmul.f32 %v393, %v455
    %v712 = vmul.f32 %v393, %v456
    %v713 = vmul.f32 %v393, %v457
    %v714 = vmul.f32 %v393, %v458
    %v715 = vmul.f32 %v393, %v459
    %v716 = vmul.f32 %v393, %v460
    %v717 = vmul.f32 %v393, %v461
    %v718 = vmul.f32 %v394, %v398
    %v719 = vmul.f32 %v394, %v399
    %v720 = vmul.f32 %v394, %v400
    %v721 = vmul.f32 %v394, %v401
    %v722 = vmul.f32 %v394, %v402
    %v723 = vmul.f32 %v394, %v403
    %v724 = vmul.f32 %v394, %v404
    %v725 = vmul.f32 %v394, %v405
    %v726 = vmul.f32 %v394, %v406
    %v727 = vmul.f32 %v394, %v407
    %v728 = vmul.f32 %v394, %v408
    %v729 = vmul.f32 %v394, %v409
    %v730 = vmul.f32 %v394, %v410
    %v731 = vmul.f32 %v394, %v411
    %v732 = vmul.f32 %v394, %v412
    %v733 = vmul.f32 %v394, %v413
    %v734 = vmul.f32 %v394, %v414
    %v735 = vmul.f32 %v394, %v415
    %v736 = vmul.f32 %v394, %v416
    %v737 = vmul.f32 %v394, %v417
    %v738 = vmul.f32 %v394, %v418
    %v739 = vmul.f32 %v394, %v419
    %v740 = vmul.f32 %v394, %v420
    %v741 = vmul.f32 %v394, %v421
    %v742 = vmul.f32 %v394, %v422
    %v743 = vmul.f32 %v394, %v423
    %v744 = vmul.f32 %v394, %v424
    %v745 = vmul.f32 %v394, %v425
    %v746 = vmul.f32 %v394, %v426
    %v747 = vmul.f32 %v394, %v427
    %v748 = vmul.f32 %v394, %v428
    %v749 = vmul.f32 %v394, %v429
    %v750 = vmul.f32 %v394, %v430
    %v751 = vmul.f32 %v394, %v431
    %v752 = vmul.f32 %v394, %v432
    %v753 = vmul.f32 %v394, %v433
    %v754 = vmul.f32 %v394, %v434
    %v755 = vmul.f32 %v394, %v435
    %v756 = vmul.f32 %v394, %v436
    %v757 = vmul.f32 %v394, %v437
    %v758 = vmul.f32 %v394, %v438
    %v759 = vmul.f32 %v394, %v439
    %v760 = vmul.f32 %v394, %v440
    %v761 = vmul.f32 %v394, %v441
    %v762 = vmul.f32 %v394, %v442
    %v763 = vmul.f32 %v394, %v443
    %v764 = vmul.f32 %v394, %v444
    %v765 = vmul.f32 %v394, %v445
    %v766 = vmul.f32 %v394, %v446
    %v767 = vmul.f32 %v394, %v447
    %v768 = vmul.f32 %v394, %v448
    %v769 = vmul.f32 %v394, %v449
    %v770 = vmul.f32 %v394, %v450
    %v771 = vmul.f32 %v394, %v451
    %v772 = vmul.f32 %v394, %v452
    %v773 = vmul.f32 %v394, %v453
    %v774 = vmul.f32 %v394, %v454
    %v775 = vmul.f32 %v394, %v455
    %v776 = vmul.f32 %v394, %v456
    %v777 = vmul.f32 %v394, %v457
    %v778 = vmul.f32 %v394, %v458
    %v779 = vmul.f32 %v394, %v459
    %v780 = vmul.f32 %v394, %v460
    %v781 = vmul.f32 %v394, %v461
    %v782 = vmul.f32 %v395, %v398
    %v783 = vmul.f32 %v395, %v399
    %v784 = vmul.f32 %v395, %v400
    %v785 = vmul.f32 %v395, %v401
    %v786 = vmul.f32 %v395, %v402
    %v787 = vmul.f32 %v395, %v403
    %v788 = vmul.f32 %v395, %v404
    %v789 = vmul.f32 %v395, %v405
    %v790 = vmul.f32 %v395, %v406
    %v791 = vmul.f32 %v395, %v407
    %v792 = vmul.f32 %v395, %v408
    %v793 = vmul.f32 %v395, %v409
    %v794 = vmul.f32 %v395, %v410
    %v795 = vmul.f32 %v395, %v411
    %v796 = vmul.f32 %v395, %v412
    %v797 = vmul.f32 %v395, %v413
    %v798 = vmul.f32 %v395, %v414
    %v799 = vmul.f32 %v395, %v415
    %v800 = vmul.f32 %v395, %v416
    %v801 = vmul.f32 %v395, %v417
    %v802 = vmul.f32 %v395, %v418
    %v803 = vmul.f32 %v395, %v419
    %v804 = vmul.f32 %v395, %v420
    %v805 = vmul.f32 %v395, %v421
    %v806 = vmul.f32 %v395, %v422
    %v807 = vmul.f32 %v395, %v423
    %v808 = vmul.f32 %v395, %v424
    %v809 = vmul.f32 %v395, %v425
    %v810 = vmul.f32 %v395, %v426
    %v811 = vmul.f32 %v395, %v427
    %v812 = vmul.f32 %v395, %v428
    %v813 = vmul.f32 %v395, %v429
    %v814 = vmul.f32 %v395, %v430
    %v815 = vmul.f32 %v395, %v431
    %v816 = vmul.f32 %v395, %v432
    %v817 = vmul.f32 %v395, %v433
    %v818 = vmul.f32 %v395, %v434
    %v819 = vmul.f32 %v395, %v435
    %v820 = vmul.f32 %v395, %v436
    %v821 = vmul.f32 %v395, %v437
    %v822 = vmul.f32 %v395, %v438
    %v823 = vmul.f32 %v395, %v439
    %v824 = vmul.f32 %v395, %v440
    %v825 = vmul.f32 %v395, %v441
    %v826 = vmul.f32 %v395, %v442
    %v827 = vmul.f32 %v395, %v443
    %v828 = vmul.f32 %v395, %v444
    %v829 = vmul.f32 %v395, %v445
    %v830 = vmul.f32 %v395, %v446
    %v831 = vmul.f32 %v395, %v447
    %v832 = vmul.f32 %v395, %v448
    %v833 = vmul.f32 %v395, %v449
    %v834 = vmul.f32 %v395, %v450
    %v835 = vmul.f32 %v395, %v451
    %v836 = vmul.f32 %v395, %v452
    %v837 = vmul.f32 %v395, %v453
    %v838 = vmul.f32 %v395, %v454
    %v839 = vmul.f32 %v395, %v455
    %v840 = vmul.f32 %v395, %v456
    %v841 = vmul.f32 %v395, %v457
    %v842 = vmul.f32 %v395, %v458
    %v843 = vmul.f32 %v395, %v459
    %v844 = vmul.f32 %v395, %v460
    %v845 = vmul.f32 %v395, %v461
    %v846 = vmul.f32 %v396, %v398
    %v847 = vmul.f32 %v396, %v399
    %v848 = vmul.f32 %v396, %v400
    %v849 = vmul.f32 %v396, %v401
    %v850 = vmul.f32 %v396, %v402
    %v851 = vmul.f32 %v396, %v403
    %v852 = vmul.f32 %v396, %v404
    %v853 = vmul.f32 %v396, %v405
    %v854 = vmul.f32 %v396, %v406
    %v855 = vmul.f32 %v396, %v407
    %v856 = vmul.f32 %v396, %v408
    %v857 = vmul.f32 %v396, %v409
    %v858 = vmul.f32 %v396, %v410
    %v859 = vmul.f32 %v396, %v411
    %v860 = vmul.f32 %v396, %v412
    %v861 = vmul.f32 %v396, %v413
    %v862 = vmul.f32 %v396, %v414
    %v863 = vmul.f32 %v396, %v415
    %v864 = vmul.f32 %v396, %v416
    %v865 = vmul.f32 %v396, %v417
    %v866 = vmul.f32 %v396, %v418
    %v867 = vmul.f32 %v396, %v419
    %v868 = vmul.f32 %v396, %v420
    %v869 = vmul.f32 %v396, %v421
    %v870 = vmul.f32 %v396, %v422
    %v871 = vmul.f32 %v396, %v423
    %v872 = vmul.f32 %v396, %v424
    %v873 = vmul.f32 %v396, %v425
    %v874 = vmul.f32 %v396, %v426
    %v875 = vmul.f32 %v396, %v427
    %v876 = vmul.f32 %v396, %v428
    %v877 = vmul.f32 %v396, %v429
    %v878 = vmul.f32 %v396, %v430
    %v879 = vmul.f32 %v396, %v431
    %v880 = vmul.f32 %v396, %v432
    %v881 = vmul.f32 %v396, %v433
    %v882 = vmul.f32 %v396, %v434
    %v883 = vmul.f32 %v396, %v435
    %v884 = vmul.f32 %v396, %v436
    %v885 = vmul.f32 %v396, %v437
    %v886 = vmul.f32 %v396, %v438
    %v887 = vmul.f32 %v396, %v439
    %v888 = vmul.f32 %v396, %v440
    %v889 = vmul.f32 %v396, %v441
    %v890 = vmul.f32 %v396, %v442
    %v891 = vmul.f32 %v396, %v443
    %v892 = vmul.f32 %v396, %v444
    %v893 = vmul.f32 %v396, %v445
    %v894 = vmul.f32 %v396, %v446
    %v895 = vmul.f32 %v396, %v447
    %v896 = vmul.f32 %v396, %v448
    %v897 = vmul.f32 %v396, %v449
    %v898 = vmul.f32 %v396, %v450
    %v899 = vmul.f32 %v396, %v451
    %v900 = vmul.f32 %v396, %v452
    %v901 = vmul.f32 %v396, %v453
    %v902 = vmul.f32 %v396, %v454
    %v903 = vmul.f32 %v396, %v455
    %v904 = vmul.f32 %v396, %v456
    %v905 = vmul.f32 %v396, %v457
    %v906 = vmul.f32 %v396, %v458
    %v907 = vmul.f32 %v396, %v459
    %v908 = vmul.f32 %v396, %v460
    %v909 = vmul.f32 %v396, %v461
    %v910 = vmul.f32 %v397, %v398
    %v911 = vmul.f32 %v397, %v399
    %v912 = vmul.f32 %v397, %v400
    %v913 = vmul.f32 %v397, %v401
    %v914 = vmul.f32 %v397, %v402
    %v915 = vmul.f32 %v397, %v403
    %v916 = vmul.f32 %v397, %v404
    %v917 = vmul.f32 %v397, %v405
    %v918 = vmul.f32 %v397, %v406
    %v919 = vmul.f32 %v397, %v407
    %v920 = vmul.f32 %v397, %v408
    %v921 = vmul.f32 %v397, %v409
    %v922 = vmul.f32 %v397, %v410
    %v923 = vmul.f32 %v397, %v411
    %v924 = vmul.f32 %v397, %v412
    %v925 = vmul.f32 %v397, %v413
    %v926 = vmul.f32 %v397, %v414
    %v927 = vmul.f32 %v397, %v415
    %v928 = vmul.f32 %v397, %v416
    %v929 = vmul.f32 %v397, %v417
    %v930 = vmul.f32 %v397, %v418
    %v931 = vmul.f32 %v397, %v419
    %v932 = vmul.f32 %v397, %v420
    %v933 = vmul.f32 %v397, %v421
    %v934 = vmul.f32 %v397, %v422
    %v935 = vmul.f32 %v397, %v423
    %v936 = vmul.f32 %v397, %v424
    %v937 = vmul.f32 %v397, %v425
    %v938 = vmul.f32 %v397, %v426
    %v939 = vmul.f32 %v397, %v427
    %v940 = vmul.f32 %v397, %v428
    %v941 = vmul.f32 %v397, %v429
    %v942 = vmul.f32 %v397, %v430
    %v943 = vmul.f32 %v397, %v431
    %v944 = vmul.f32 %v397, %v432
    %v945 = vmul.f32 %v397, %v433
    %v946 = vmul.f32 %v397, %v434
    %v947 = vmul.f32 %v397, %v435
    %v948 = vmul.f32 %v397, %v436
    %v949 = vmul.f32 %v397, %v437
    %v950 = vmul.f32 %v397, %v438
    %v951 = vmul.f32 %v397, %v439
    %v952 = vmul.f32 %v397, %v440
    %v953 = vmul.f32 %v397, %v441
    %v954 = vmul.f32 %v397, %v442
    %v955 = vmul.f32 %v397, %v443
    %v956 = vmul.f32 %v397, %v444
    %v957 = vmul.f32 %v397, %v445
    %v958 = vmul.f32 %v397, %v446
    %v959 = vmul.f32 %v397, %v447
    %v960 = vmul.f32 %v397, %v448
    %v961 = vmul.f32 %v397, %v449
    %v962 = vmul.f32 %v397, %v450
    %v963 = vmul.f32 %v397, %v451
    %v964 = vmul.f32 %v397, %v452
    %v965 = vmul.f32 %v397, %v453
    %v966 = vmul.f32 %v397, %v454
    %v967 = vmul.f32 %v397, %v455
    %v968 = vmul.f32 %v397, %v456
    %v969 = vmul.f32 %v397, %v457
    %v970 = vmul.f32 %v397, %v458
    %v971 = vmul.f32 %v397, %v459
    %v972 = vmul.f32 %v397, %v460
    %v973 = vmul.f32 %v397, %v461
    %v974 = vpack.c.bf16 %v463, %v462
    %v975 = vpack.c.bf16 %v465, %v464
    %v976 = vpack.c.bf16 %v467, %v466
    %v977 = vpack.c.bf16 %v469, %v468
    %v978 = vpack.c.bf16 %v471, %v470
    %v979 = vpack.c.bf16 %v473, %v472
    %v980 = vpack.c.bf16 %v475, %v474
    %v981 = vpack.c.bf16 %v477, %v476
    %v982 = vpack.c.bf16 %v479, %v478
    %v983 = vpack.c.bf16 %v481, %v480
    %v984 = vpack.c.bf16 %v483, %v482
    %v985 = vpack.c.bf16 %v485, %v484
    %v986 = vpack.c.bf16 %v487, %v486
    %v987 = vpack.c.bf16 %v489, %v488
    %v988 = vpack.c.bf16 %v491, %v490
    %v989 = vpack.c.bf16 %v493, %v492
    %v990 = vpack.c.bf16 %v495, %v494
    %v991 = vpack.c.bf16 %v497, %v496
    %v992 = vpack.c.bf16 %v499, %v498
    %v993 = vpack.c.bf16 %v501, %v500
    %v994 = vpack.c.bf16 %v503, %v502
    %v995 = vpack.c.bf16 %v505, %v504
    %v996 = vpack.c.bf16 %v507, %v506
    %v997 = vpack.c.bf16 %v509, %v508
    %v998 = vpack.c.bf16 %v511, %v510
    %v999 = vpack.c.bf16 %v513, %v512
    %v1000 = vpack.c.bf16 %v515, %v514
    %v1001 = vpack.c.bf16 %v517, %v516
    %v1002 = vpack.c.bf16 %v519, %v518
    %v1003 = vpack.c.bf16 %v521, %v520
    %v1004 = vpack.c.bf16 %v523, %v522
    %v1005 = vpack.c.bf16 %v525, %v524
    %v1006 = vpack.c.bf16 %v527, %v526
    %v1007 = vpack.c.bf16 %v529, %v528
    %v1008 = vpack.c.bf16 %v531, %v530
    %v1009 = vpack.c.bf16 %v533, %v532
    %v1010 = vpack.c.bf16 %v535, %v534
    %v1011 = vpack.c.bf16 %v537, %v536
    %v1012 = vpack.c.bf16 %v539, %v538
    %v1013 = vpack.c.bf16 %v541, %v540
    %v1014 = vpack.c.bf16 %v543, %v542
    %v1015 = vpack.c.bf16 %v545, %v544
    %v1016 = vpack.c.bf16 %v547, %v546
    %v1017 = vpack.c.bf16 %v549, %v548
    %v1018 = vpack.c.bf16 %v551, %v550
    %v1019 = vpack.c.bf16 %v553, %v552
    %v1020 = vpack.c.bf16 %v555, %v554
    %v1021 = vpack.c.bf16 %v557, %v556
    %v1022 = vpack.c.bf16 %v559, %v558
    %v1023 = vpack.c.bf16 %v561, %v560
    %v1024 = vpack.c.bf16 %v563, %v562
    %v1025 = vpack.c.bf16 %v565, %v564
    %v1026 = vpack.c.bf16 %v567, %v566
    %v1027 = vpack.c.bf16 %v569, %v568
    %v1028 = vpack.c.bf16 %v571, %v570
    %v1029 = vpack.c.bf16 %v573, %v572
    %v1030 = vpack.c.bf16 %v575, %v574
    %v1031 = vpack.c.bf16 %v577, %v576
    %v1032 = vpack.c.bf16 %v579, %v578
    %v1033 = vpack.c.bf16 %v581, %v580
    %v1034 = vpack.c.bf16 %v583, %v582
    %v1035 = vpack.c.bf16 %v585, %v584
    %v1036 = vpack.c.bf16 %v587, %v586
    %v1037 = vpack.c.bf16 %v589, %v588
    %v1038 = vpack.c.bf16 %v591, %v590
    %v1039 = vpack.c.bf16 %v593, %v592
    %v1040 = vpack.c.bf16 %v595, %v594
    %v1041 = vpack.c.bf16 %v597, %v596
    %v1042 = vpack.c.bf16 %v599, %v598
    %v1043 = vpack.c.bf16 %v601, %v600
    %v1044 = vpack.c.bf16 %v603, %v602
    %v1045 = vpack.c.bf16 %v605, %v604
    %v1046 = vpack.c.bf16 %v607, %v606
    %v1047 = vpack.c.bf16 %v609, %v608
    %v1048 = vpack.c.bf16 %v611, %v610
    %v1049 = vpack.c.bf16 %v613, %v612
    %v1050 = vpack.c.bf16 %v615, %v614
    %v1051 = vpack.c.bf16 %v617, %v616
    %v1052 = vpack.c.bf16 %v619, %v618
    %v1053 = vpack.c.bf16 %v621, %v620
    %v1054 = vpack.c.bf16 %v623, %v622
    %v1055 = vpack.c.bf16 %v625, %v624
    %v1056 = vpack.c.bf16 %v627, %v626
    %v1057 = vpack.c.bf16 %v629, %v628
    %v1058 = vpack.c.bf16 %v631, %v630
    %v1059 = vpack.c.bf16 %v633, %v632
    %v1060 = vpack.c.bf16 %v635, %v634
    %v1061 = vpack.c.bf16 %v637, %v636
    %v1062 = vpack.c.bf16 %v639, %v638
    %v1063 = vpack.c.bf16 %v641, %v640
    %v1064 = vpack.c.bf16 %v643, %v642
    %v1065 = vpack.c.bf16 %v645, %v644
    %v1066 = vpack.c.bf16 %v647, %v646
    %v1067 = vpack.c.bf16 %v649, %v648
    %v1068 = vpack.c.bf16 %v651, %v650
    %v1069 = vpack.c.bf16 %v653, %v652
    %v1070 = vpack.c.bf16 %v655, %v654
    %v1071 = vpack.c.bf16 %v657, %v656
    %v1072 = vpack.c.bf16 %v659, %v658
    %v1073 = vpack.c.bf16 %v661, %v660
    %v1074 = vpack.c.bf16 %v663, %v662
    %v1075 = vpack.c.bf16 %v665, %v664
    %v1076 = vpack.c.bf16 %v667, %v666
    %v1077 = vpack.c.bf16 %v669, %v668
    %v1078 = vpack.c.bf16 %v671, %v670
    %v1079 = vpack.c.bf16 %v673, %v672
    %v1080 = vpack.c.bf16 %v675, %v674
    %v1081 = vpack.c.bf16 %v677, %v676
    %v1082 = vpack.c.bf16 %v679, %v678
    %v1083 = vpack.c.bf16 %v681, %v680
    %v1084 = vpack.c.bf16 %v683, %v682
    %v1085 = vpack.c.bf16 %v685, %v684
    %v1086 = vpack.c.bf16 %v687, %v686
    %v1087 = vpack.c.bf16 %v689, %v688
    %v1088 = vpack.c.bf16 %v691, %v690
    %v1089 = vpack.c.bf16 %v693, %v692
    %v1090 = vpack.c.bf16 %v695, %v694
    %v1091 = vpack.c.bf16 %v697, %v696
    %v1092 = vpack.c.bf16 %v699, %v698
    %v1093 = vpack.c.bf16 %v701, %v700
    %v1094 = vpack.c.bf16 %v703, %v702
    %v1095 = vpack.c.bf16 %v705, %v704
    %v1096 = vpack.c.bf16 %v707, %v706
    %v1097 = vpack.c.bf16 %v709, %v708
    %v1098 = vpack.c.bf16 %v711, %v710
    %v1099 = vpack.c.bf16 %v713, %v712
    %v1100 = vpack.c.bf16 %v715, %v714
    %v1101 = vpack.c.bf16 %v717, %v716
    %v1102 = vpack.c.bf16 %v719, %v718
    %v1103 = vpack.c.bf16 %v721, %v720
    %v1104 = vpack.c.bf16 %v723, %v722
    %v1105 = vpack.c.bf16 %v725, %v724
    %v1106 = vpack.c.bf16 %v727, %v726
    %v1107 = vpack.c.bf16 %v729, %v728
    %v1108 = vpack.c.bf16 %v731, %v730
    %v1109 = vpack.c.bf16 %v733, %v732
    %v1110 = vpack.c.bf16 %v735, %v734
    %v1111 = vpack.c.bf16 %v737, %v736
    %v1112 = vpack.c.bf16 %v739, %v738
    %v1113 = vpack.c.bf16 %v741, %v740
    %v1114 = vpack.c.bf16 %v743, %v742
    %v1115 = vpack.c.bf16 %v745, %v744
    %v1116 = vpack.c.bf16 %v747, %v746
    %v1117 = vpack.c.bf16 %v749, %v748
    %v1118 = vpack.c.bf16 %v751, %v750
    %v1119 = vpack.c.bf16 %v753, %v752
    %v1120 = vpack.c.bf16 %v755, %v754
    %v1121 = vpack.c.bf16 %v757, %v756
    %v1122 = vpack.c.bf16 %v759, %v758
    %v1123 = vpack.c.bf16 %v761, %v760
    %v1124 = vpack.c.bf16 %v763, %v762
    %v1125 = vpack.c.bf16 %v765, %v764
    %v1126 = vpack.c.bf16 %v767, %v766
    %v1127 = vpack.c.bf16 %v769, %v768
    %v1128 = vpack.c.bf16 %v771, %v770
    %v1129 = vpack.c.bf16 %v773, %v772
    %v1130 = vpack.c.bf16 %v775, %v774
    %v1131 = vpack.c.bf16 %v777, %v776
    %v1132 = vpack.c.bf16 %v779, %v778
    %v1133 = vpack.c.bf16 %v781, %v780
    %v1134 = vpack.c.bf16 %v783, %v782
    %v1135 = vpack.c.bf16 %v785, %v784
    %v1136 = vpack.c.bf16 %v787, %v786
    %v1137 = vpack.c.bf16 %v789, %v788
    %v1138 = vpack.c.bf16 %v791, %v790
    %v1139 = vpack.c.bf16 %v793, %v792
    %v1140 = vpack.c.bf16 %v795, %v794
    %v1141 = vpack.c.bf16 %v797, %v796
    %v1142 = vpack.c.bf16 %v799, %v798
    %v1143 = vpack.c.bf16 %v801, %v800
    %v1144 = vpack.c.bf16 %v803, %v802
    %v1145 = vpack.c.bf16 %v805, %v804
    %v1146 = vpack.c.bf16 %v807, %v806
    %v1147 = vpack.c.bf16 %v809, %v808
    %v1148 = vpack.c.bf16 %v811, %v810
    %v1149 = vpack.c.bf16 %v813, %v812
    %v1150 = vpack.c.bf16 %v815, %v814
    %v1151 = vpack.c.bf16 %v817, %v816
    %v1152 = vpack.c.bf16 %v819, %v818
    %v1153 = vpack.c.bf16 %v821, %v820
    %v1154 = vpack.c.bf16 %v823, %v822
    %v1155 = vpack.c.bf16 %v825, %v824
    %v1156 = vpack.c.bf16 %v827, %v826
    %v1157 = vpack.c.bf16 %v829, %v828
    %v1158 = vpack.c.bf16 %v831, %v830
    %v1159 = vpack.c.bf16 %v833, %v832
    %v1160 = vpack.c.bf16 %v835, %v834
    %v1161 = vpack.c.bf16 %v837, %v836
    %v1162 = vpack.c.bf16 %v839, %v838
    %v1163 = vpack.c.bf16 %v841, %v840
    %v1164 = vpack.c.bf16 %v843, %v842
    %v1165 = vpack.c.bf16 %v845, %v844
    %v1166 = vpack.c.bf16 %v847, %v846
    %v1167 = vpack.c.bf16 %v849, %v848
    %v1168 = vpack.c.bf16 %v851, %v850
    %v1169 = vpack.c.bf16 %v853, %v852
    %v1170 = vpack.c.bf16 %v855, %v854
    %v1171 = vpack.c.bf16 %v857, %v856
    %v1172 = vpack.c.bf16 %v859, %v858
    %v1173 = vpack.c.bf16 %v861, %v860
    %v1174 = vpack.c.bf16 %v863, %v862
    %v1175 = vpack.c.bf16 %v865, %v864
    %v1176 = vpack.c.bf16 %v867, %v866
    %v1177 = vpack.c.bf16 %v869, %v868
    %v1178 = vpack.c.bf16 %v871, %v870
    %v1179 = vpack.c.bf16 %v873, %v872
    %v1180 = vpack.c.bf16 %v875, %v874
    %v1181 = vpack.c.bf16 %v877, %v876
    %v1182 = vpack.c.bf16 %v879, %v878
    %v1183 = vpack.c.bf16 %v881, %v880
    %v1184 = vpack.c.bf16 %v883, %v882
    %v1185 = vpack.c.bf16 %v885, %v884
    %v1186 = vpack.c.bf16 %v887, %v886
    %v1187 = vpack.c.bf16 %v889, %v888
    %v1188 = vpack.c.bf16 %v891, %v890
    %v1189 = vpack.c.bf16 %v893, %v892
    %v1190 = vpack.c.bf16 %v895, %v894
    %v1191 = vpack.c.bf16 %v897, %v896
    %v1192 = vpack.c.bf16 %v899, %v898
    %v1193 = vpack.c.bf16 %v901, %v900
    %v1194 = vpack.c.bf16 %v903, %v902
    %v1195 = vpack.c.bf16 %v905, %v904
    %v1196 = vpack.c.bf16 %v907, %v906
    %v1197 = vpack.c.bf16 %v909, %v908
    %v1198 = vpack.c.bf16 %v911, %v910
    %v1199 = vpack.c.bf16 %v913, %v912
    %v1200 = vpack.c.bf16 %v915, %v914
    %v1201 = vpack.c.bf16 %v917, %v916
    %v1202 = vpack.c.bf16 %v919, %v918
    %v1203 = vpack.c.bf16 %v921, %v920
    %v1204 = vpack.c.bf16 %v923, %v922
    %v1205 = vpack.c.bf16 %v925, %v924
    %v1206 = vpack.c.bf16 %v927, %v926
    %v1207 = vpack.c.bf16 %v929, %v928
    %v1208 = vpack.c.bf16 %v931, %v930
    %v1209 = vpack.c.bf16 %v933, %v932
    %v1210 = vpack.c.bf16 %v935, %v934
    %v1211 = vpack.c.bf16 %v937, %v936
    %v1212 = vpack.c.bf16 %v939, %v938
    %v1213 = vpack.c.bf16 %v941, %v940
    %v1214 = vpack.c.bf16 %v943, %v942
    %v1215 = vpack.c.bf16 %v945, %v944
    %v1216 = vpack.c.bf16 %v947, %v946
    %v1217 = vpack.c.bf16 %v949, %v948
    %v1218 = vpack.c.bf16 %v951, %v950
    %v1219 = vpack.c.bf16 %v953, %v952
    %v1220 = vpack.c.bf16 %v955, %v954
    %v1221 = vpack.c.bf16 %v957, %v956
    %v1222 = vpack.c.bf16 %v959, %v958
    %v1223 = vpack.c.bf16 %v961, %v960
    %v1224 = vpack.c.bf16 %v963, %v962
    %v1225 = vpack.c.bf16 %v965, %v964
    %v1226 = vpack.c.bf16 %v967, %v966
    %v1227 = vpack.c.bf16 %v969, %v968
    %v1228 = vpack.c.bf16 %v971, %v970
    %v1229 = vpack.c.bf16 %v973, %v972
    %1230 = vset.pattern.permute.xlu0 1
    %1231 = vperm.xlu0 %1230, %v38
    %v1232 = vpop.permute.xlu0 %1231
    %v1235 = vunpack.c.l.s4 839922192
    %v1236 = vunpack.c.0.s8 %v1235
    %v1237 = vperm.slane %v1232, %v1236
    %1238 = vset.pattern.permute.xlu0 1
    %1239 = vperm.xlu0 %1238, %v39
    %v1240 = vpop.permute.xlu0 %1239
    %v1243 = vunpack.c.l.s4 839922192
    %v1244 = vunpack.c.0.s8 %v1243
    %v1245 = vperm.slane %v1240, %v1244
    %1246 = vset.pattern.permute.xlu0 1
    %1247 = vperm.xlu0 %1246, %v40
    %v1248 = vpop.permute.xlu0 %1247
    %v1251 = vunpack.c.l.s4 839922192
    %v1252 = vunpack.c.0.s8 %v1251
    %v1253 = vperm.slane %v1248, %v1252
    %1254 = vset.pattern.permute.xlu0 1
    %1255 = vperm.xlu0 %1254, %v41
    %v1256 = vpop.permute.xlu0 %1255
    %v1259 = vunpack.c.l.s4 839922192
    %v1260 = vunpack.c.0.s8 %v1259
    %v1261 = vperm.slane %v1256, %v1260
    %1262 = vset.pattern.permute.xlu0 1
    %1263 = vperm.xlu0 %1262, %v42
    %v1264 = vpop.permute.xlu0 %1263
    %v1267 = vunpack.c.l.s4 839922192
    %v1268 = vunpack.c.0.s8 %v1267
    %v1269 = vperm.slane %v1264, %v1268
    %1270 = vset.pattern.permute.xlu0 1
    %1271 = vperm.xlu0 %1270, %v43
    %v1272 = vpop.permute.xlu0 %1271
    %v1275 = vunpack.c.l.s4 839922192
    %v1276 = vunpack.c.0.s8 %v1275
    %v1277 = vperm.slane %v1272, %v1276
    %1278 = vset.pattern.permute.xlu0 1
    %1279 = vperm.xlu0 %1278, %v44
    %v1280 = vpop.permute.xlu0 %1279
    %v1283 = vunpack.c.l.s4 839922192
    %v1284 = vunpack.c.0.s8 %v1283
    %v1285 = vperm.slane %v1280, %v1284
    %1286 = vset.pattern.permute.xlu0 1
    %1287 = vperm.xlu0 %1286, %v45
    %v1288 = vpop.permute.xlu0 %1287
    %v1291 = vunpack.c.l.s4 839922192
    %v1292 = vunpack.c.0.s8 %v1291
    %v1293 = vperm.slane %v1288, %v1292
    %1294 = vst [vmem:[#allocation1] ss:$9 sm:$0xff] %v30
    %v1295 = vld [vmem:[#allocation1] sm:$0xff]
    %v1296 = vld [vmem:[#allocation1 + $0x9] sm:$0xff]
    %v1297 = vld [vmem:[#allocation1 + $0x12] sm:$0xff]
    %v1298 = vld [vmem:[#allocation1 + $0x1b] sm:$0xff]
    %v1299 = vld [vmem:[#allocation1 + $0x24] sm:$0xff]
    %v1300 = vld [vmem:[#allocation1 + $0x2d] sm:$0xff]
    %v1301 = vld [vmem:[#allocation1 + $0x36] sm:$0xff]
    %v1302 = vld [vmem:[#allocation1 + $0x3f] sm:$0xff]
    %1303 = vst [vmem:[#allocation1] ss:$9 sm:$0xff] %v31
    %v1304 = vld [vmem:[#allocation1] sm:$0xff]
    %v1305 = vld [vmem:[#allocation1 + $0x9] sm:$0xff]
    %v1306 = vld [vmem:[#allocation1 + $0x12] sm:$0xff]
    %v1307 = vld [vmem:[#allocation1 + $0x1b] sm:$0xff]
    %v1308 = vld [vmem:[#allocation1 + $0x24] sm:$0xff]
    %v1309 = vld [vmem:[#allocation1 + $0x2d] sm:$0xff]
    %v1310 = vld [vmem:[#allocation1 + $0x36] sm:$0xff]
    %v1311 = vld [vmem:[#allocation1 + $0x3f] sm:$0xff]
    %1312 = vst [vmem:[#allocation1] ss:$9 sm:$0xff] %v32
    %v1313 = vld [vmem:[#allocation1] sm:$0xff]
    %v1314 = vld [vmem:[#allocation1 + $0x9] sm:$0xff]
    %v1315 = vld [vmem:[#allocation1 + $0x12] sm:$0xff]
    %v1316 = vld [vmem:[#allocation1 + $0x1b] sm:$0xff]
    %v1317 = vld [vmem:[#allocation1 + $0x24] sm:$0xff]
    %v1318 = vld [vmem:[#allocation1 + $0x2d] sm:$0xff]
    %v1319 = vld [vmem:[#allocation1 + $0x36] sm:$0xff]
    %v1320 = vld [vmem:[#allocation1 + $0x3f] sm:$0xff]
    %1321 = vst [vmem:[#allocation1] ss:$9 sm:$0xff] %v33
    %v1322 = vld [vmem:[#allocation1] sm:$0xff]
    %v1323 = vld [vmem:[#allocation1 + $0x9] sm:$0xff]
    %v1324 = vld [vmem:[#allocation1 + $0x12] sm:$0xff]
    %v1325 = vld [vmem:[#allocation1 + $0x1b] sm:$0xff]
    %v1326 = vld [vmem:[#allocation1 + $0x24] sm:$0xff]
    %v1327 = vld [vmem:[#allocation1 + $0x2d] sm:$0xff]
    %v1328 = vld [vmem:[#allocation1 + $0x36] sm:$0xff]
    %v1329 = vld [vmem:[#allocation1 + $0x3f] sm:$0xff]
    %1330 = vst [vmem:[#allocation1] ss:$9 sm:$0xff] %v34
    %v1331 = vld [vmem:[#allocation1] sm:$0xff]
    %v1332 = vld [vmem:[#allocation1 + $0x9] sm:$0xff]
    %v1333 = vld [vmem:[#allocation1 + $0x12] sm:$0xff]
    %v1334 = vld [vmem:[#allocation1 + $0x1b] sm:$0xff]
    %v1335 = vld [vmem:[#allocation1 + $0x24] sm:$0xff]
    %v1336 = vld [vmem:[#allocation1 + $0x2d] sm:$0xff]
    %v1337 = vld [vmem:[#allocation1 + $0x36] sm:$0xff]
    %v1338 = vld [vmem:[#allocation1 + $0x3f] sm:$0xff]
    %1339 = vst [vmem:[#allocation1] ss:$9 sm:$0xff] %v35
    %v1340 = vld [vmem:[#allocation1] sm:$0xff]
    %v1341 = vld [vmem:[#allocation1 + $0x9] sm:$0xff]
    %v1342 = vld [vmem:[#allocation1 + $0x12] sm:$0xff]
    %v1343 = vld [vmem:[#allocation1 + $0x1b] sm:$0xff]
    %v1344 = vld [vmem:[#allocation1 + $0x24] sm:$0xff]
    %v1345 = vld [vmem:[#allocation1 + $0x2d] sm:$0xff]
    %v1346 = vld [vmem:[#allocation1 + $0x36] sm:$0xff]
    %v1347 = vld [vmem:[#allocation1 + $0x3f] sm:$0xff]
    %1348 = vst [vmem:[#allocation1] ss:$9 sm:$0xff] %v36
    %v1349 = vld [vmem:[#allocation1] sm:$0xff]
    %v1350 = vld [vmem:[#allocation1 + $0x9] sm:$0xff]
    %v1351 = vld [vmem:[#allocation1 + $0x12] sm:$0xff]
    %v1352 = vld [vmem:[#allocation1 + $0x1b] sm:$0xff]
    %v1353 = vld [vmem:[#allocation1 + $0x24] sm:$0xff]
    %v1354 = vld [vmem:[#allocation1 + $0x2d] sm:$0xff]
    %v1355 = vld [vmem:[#allocation1 + $0x36] sm:$0xff]
    %v1356 = vld [vmem:[#allocation1 + $0x3f] sm:$0xff]
    %1357 = vst [vmem:[#allocation1] ss:$9 sm:$0xff] %v37
    %v1358 = vld [vmem:[#allocation1] sm:$0xff]
    %v1359 = vld [vmem:[#allocation1 + $0x9] sm:$0xff]
    %v1360 = vld [vmem:[#allocation1 + $0x12] sm:$0xff]
    %v1361 = vld [vmem:[#allocation1 + $0x1b] sm:$0xff]
    %v1362 = vld [vmem:[#allocation1 + $0x24] sm:$0xff]
    %v1363 = vld [vmem:[#allocation1 + $0x2d] sm:$0xff]
    %v1364 = vld [vmem:[#allocation1 + $0x36] sm:$0xff]
    %v1365 = vld [vmem:[#allocation1 + $0x3f] sm:$0xff]
    %v1366 = vshrl.u32 %v1295, 16
    %v1367 = vpack.i.b16 %v1366, %v1366
    %v1369 = vperm.slane %v1367, 0
    %v1370 = vshrl.u32 %v1296, 16
    %v1371 = vpack.i.b16 %v1370, %v1370
    %v1373 = vperm.slane %v1371, 0
    %v1374 = vshrl.u32 %v1297, 16
    %v1375 = vpack.i.b16 %v1374, %v1374
    %v1377 = vperm.slane %v1375, 0
    %v1378 = vshrl.u32 %v1298, 16
    %v1379 = vpack.i.b16 %v1378, %v1378
    %v1381 = vperm.slane %v1379, 0
    %v1382 = vshrl.u32 %v1299, 16
    %v1383 = vpack.i.b16 %v1382, %v1382
    %v1385 = vperm.slane %v1383, 0
    %v1386 = vshrl.u32 %v1300, 16
    %v1387 = vpack.i.b16 %v1386, %v1386
    %v1389 = vperm.slane %v1387, 0
    %v1390 = vshrl.u32 %v1301, 16
    %v1391 = vpack.i.b16 %v1390, %v1390
    %v1393 = vperm.slane %v1391, 0
    %v1394 = vshrl.u32 %v1302, 16
    %v1395 = vpack.i.b16 %v1394, %v1394
    %v1397 = vperm.slane %v1395, 0
    %v1398 = vshrl.u32 %v1304, 16
    %v1399 = vpack.i.b16 %v1398, %v1398
    %v1401 = vperm.slane %v1399, 0
    %v1402 = vshrl.u32 %v1305, 16
    %v1403 = vpack.i.b16 %v1402, %v1402
    %v1405 = vperm.slane %v1403, 0
    %v1406 = vshrl.u32 %v1306, 16
    %v1407 = vpack.i.b16 %v1406, %v1406
    %v1409 = vperm.slane %v1407, 0
    %v1410 = vshrl.u32 %v1307, 16
    %v1411 = vpack.i.b16 %v1410, %v1410
    %v1413 = vperm.slane %v1411, 0
    %v1414 = vshrl.u32 %v1308, 16
    %v1415 = vpack.i.b16 %v1414, %v1414
    %v1417 = vperm.slane %v1415, 0
    %v1418 = vshrl.u32 %v1309, 16
    %v1419 = vpack.i.b16 %v1418, %v1418
    %v1421 = vperm.slane %v1419, 0
    %v1422 = vshrl.u32 %v1310, 16
    %v1423 = vpack.i.b16 %v1422, %v1422
    %v1425 = vperm.slane %v1423, 0
    %v1426 = vshrl.u32 %v1311, 16
    %v1427 = vpack.i.b16 %v1426, %v1426
    %v1429 = vperm.slane %v1427, 0
    %v1430 = vshrl.u32 %v1313, 16
    %v1431 = vpack.i.b16 %v1430, %v1430
    %v1433 = vperm.slane %v1431, 0
    %v1434 = vshrl.u32 %v1314, 16
    %v1435 = vpack.i.b16 %v1434, %v1434
    %v1437 = vperm.slane %v1435, 0
    %v1438 = vshrl.u32 %v1315, 16
    %v1439 = vpack.i.b16 %v1438, %v1438
    %v1441 = vperm.slane %v1439, 0
    %v1442 = vshrl.u32 %v1316, 16
    %v1443 = vpack.i.b16 %v1442, %v1442
    %v1445 = vperm.slane %v1443, 0
    %v1446 = vshrl.u32 %v1317, 16
    %v1447 = vpack.i.b16 %v1446, %v1446
    %v1449 = vperm.slane %v1447, 0
    %v1450 = vshrl.u32 %v1318, 16
    %v1451 = vpack.i.b16 %v1450, %v1450
    %v1453 = vperm.slane %v1451, 0
    %v1454 = vshrl.u32 %v1319, 16
    %v1455 = vpack.i.b16 %v1454, %v1454
    %v1457 = vperm.slane %v1455, 0
    %v1458 = vshrl.u32 %v1320, 16
    %v1459 = vpack.i.b16 %v1458, %v1458
    %v1461 = vperm.slane %v1459, 0
    %v1462 = vshrl.u32 %v1322, 16
    %v1463 = vpack.i.b16 %v1462, %v1462
    %v1465 = vperm.slane %v1463, 0
    %v1466 = vshrl.u32 %v1323, 16
    %v1467 = vpack.i.b16 %v1466, %v1466
    %v1469 = vperm.slane %v1467, 0
    %v1470 = vshrl.u32 %v1324, 16
    %v1471 = vpack.i.b16 %v1470, %v1470
    %v1473 = vperm.slane %v1471, 0
    %v1474 = vshrl.u32 %v1325, 16
    %v1475 = vpack.i.b16 %v1474, %v1474
    %v1477 = vperm.slane %v1475, 0
    %v1478 = vshrl.u32 %v1326, 16
    %v1479 = vpack.i.b16 %v1478, %v1478
    %v1481 = vperm.slane %v1479, 0
    %v1482 = vshrl.u32 %v1327, 16
    %v1483 = vpack.i.b16 %v1482, %v1482
    %v1485 = vperm.slane %v1483, 0
    %v1486 = vshrl.u32 %v1328, 16
    %v1487 = vpack.i.b16 %v1486, %v1486
    %v1489 = vperm.slane %v1487, 0
    %v1490 = vshrl.u32 %v1329, 16
    %v1491 = vpack.i.b16 %v1490, %v1490
    %v1493 = vperm.slane %v1491, 0
    %v1494 = vshrl.u32 %v1331, 16
    %v1495 = vpack.i.b16 %v1494, %v1494
    %v1497 = vperm.slane %v1495, 0
    %v1498 = vshrl.u32 %v1332, 16
    %v1499 = vpack.i.b16 %v1498, %v1498
    %v1501 = vperm.slane %v1499, 0
    %v1502 = vshrl.u32 %v1333, 16
    %v1503 = vpack.i.b16 %v1502, %v1502
    %v1505 = vperm.slane %v1503, 0
    %v1506 = vshrl.u32 %v1334, 16
    %v1507 = vpack.i.b16 %v1506, %v1506
    %v1509 = vperm.slane %v1507, 0
    %v1510 = vshrl.u32 %v1335, 16
    %v1511 = vpack.i.b16 %v1510, %v1510
    %v1513 = vperm.slane %v1511, 0
    %v1514 = vshrl.u32 %v1336, 16
    %v1515 = vpack.i.b16 %v1514, %v1514
    %v1517 = vperm.slane %v1515, 0
    %v1518 = vshrl.u32 %v1337, 16
    %v1519 = vpack.i.b16 %v1518, %v1518
    %v1521 = vperm.slane %v1519, 0
    %v1522 = vshrl.u32 %v1338, 16
    %v1523 = vpack.i.b16 %v1522, %v1522
    %v1525 = vperm.slane %v1523, 0
    %v1526 = vshrl.u32 %v1340, 16
    %v1527 = vpack.i.b16 %v1526, %v1526
    %v1529 = vperm.slane %v1527, 0
    %v1530 = vshrl.u32 %v1341, 16
    %v1531 = vpack.i.b16 %v1530, %v1530
    %v1533 = vperm.slane %v1531, 0
    %v1534 = vshrl.u32 %v1342, 16
    %v1535 = vpack.i.b16 %v1534, %v1534
    %v1537 = vperm.slane %v1535, 0
    %v1538 = vshrl.u32 %v1343, 16
    %v1539 = vpack.i.b16 %v1538, %v1538
    %v1541 = vperm.slane %v1539, 0
    %v1542 = vshrl.u32 %v1344, 16
    %v1543 = vpack.i.b16 %v1542, %v1542
    %v1545 = vperm.slane %v1543, 0
    %v1546 = vshrl.u32 %v1345, 16
    %v1547 = vpack.i.b16 %v1546, %v1546
    %v1549 = vperm.slane %v1547, 0
    %v1550 = vshrl.u32 %v1346, 16
    %v1551 = vpack.i.b16 %v1550, %v1550
    %v1553 = vperm.slane %v1551, 0
    %v1554 = vshrl.u32 %v1347, 16
    %v1555 = vpack.i.b16 %v1554, %v1554
    %v1557 = vperm.slane %v1555, 0
    %v1558 = vshrl.u32 %v1349, 16
    %v1559 = vpack.i.b16 %v1558, %v1558
    %v1561 = vperm.slane %v1559, 0
    %v1562 = vshrl.u32 %v1350, 16
    %v1563 = vpack.i.b16 %v1562, %v1562
    %v1565 = vperm.slane %v1563, 0
    %v1566 = vshrl.u32 %v1351, 16
    %v1567 = vpack.i.b16 %v1566, %v1566
    %v1569 = vperm.slane %v1567, 0
    %v1570 = vshrl.u32 %v1352, 16
    %v1571 = vpack.i.b16 %v1570, %v1570
    %v1573 = vperm.slane %v1571, 0
    %v1574 = vshrl.u32 %v1353, 16
    %v1575 = vpack.i.b16 %v1574, %v1574
    %v1577 = vperm.slane %v1575, 0
    %v1578 = vshrl.u32 %v1354, 16
    %v1579 = vpack.i.b16 %v1578, %v1578
    %v1581 = vperm.slane %v1579, 0
    %v1582 = vshrl.u32 %v1355, 16
    %v1583 = vpack.i.b16 %v1582, %v1582
    %v1585 = vperm.slane %v1583, 0
    %v1586 = vshrl.u32 %v1356, 16
    %v1587 = vpack.i.b16 %v1586, %v1586
    %v1589 = vperm.slane %v1587, 0
    %v1590 = vshrl.u32 %v1358, 16
    %v1591 = vpack.i.b16 %v1590, %v1590
    %v1593 = vperm.slane %v1591, 0
    %v1594 = vshrl.u32 %v1359, 16
    %v1595 = vpack.i.b16 %v1594, %v1594
    %v1597 = vperm.slane %v1595, 0
    %v1598 = vshrl.u32 %v1360, 16
    %v1599 = vpack.i.b16 %v1598, %v1598
    %v1601 = vperm.slane %v1599, 0
    %v1602 = vshrl.u32 %v1361, 16
    %v1603 = vpack.i.b16 %v1602, %v1602
    %v1605 = vperm.slane %v1603, 0
    %v1606 = vshrl.u32 %v1362, 16
    %v1607 = vpack.i.b16 %v1606, %v1606
    %v1609 = vperm.slane %v1607, 0
    %v1610 = vshrl.u32 %v1363, 16
    %v1611 = vpack.i.b16 %v1610, %v1610
    %v1613 = vperm.slane %v1611, 0
    %v1614 = vshrl.u32 %v1364, 16
    %v1615 = vpack.i.b16 %v1614, %v1614
    %v1617 = vperm.slane %v1615, 0
    %v1618 = vshrl.u32 %v1365, 16
    %v1619 = vpack.i.b16 %v1618, %v1618
    %v1621 = vperm.slane %v1619, 0
    %v1622 = vunpack.c.l.bf16 %v1237
    %v1623 = vunpack.c.l.bf16 %v1245
    %v1624 = vunpack.c.l.bf16 %v1253
    %v1625 = vunpack.c.l.bf16 %v1261
    %v1626 = vunpack.c.l.bf16 %v1269
    %v1627 = vunpack.c.l.bf16 %v1277
    %v1628 = vunpack.c.l.bf16 %v1285
    %v1629 = vunpack.c.l.bf16 %v1293
    %v1630 = vunpack.c.l.bf16 %v1369
    %v1631 = vunpack.c.l.bf16 %v1373
    %v1632 = vunpack.c.l.bf16 %v1377
    %v1633 = vunpack.c.l.bf16 %v1381
    %v1634 = vunpack.c.l.bf16 %v1385
    %v1635 = vunpack.c.l.bf16 %v1389
    %v1636 = vunpack.c.l.bf16 %v1393
    %v1637 = vunpack.c.l.bf16 %v1397
    %v1638 = vunpack.c.l.bf16 %v1401
    %v1639 = vunpack.c.l.bf16 %v1405
    %v1640 = vunpack.c.l.bf16 %v1409
    %v1641 = vunpack.c.l.bf16 %v1413
    %v1642 = vunpack.c.l.bf16 %v1417
    %v1643 = vunpack.c.l.bf16 %v1421
    %v1644 = vunpack.c.l.bf16 %v1425
    %v1645 = vunpack.c.l.bf16 %v1429
    %v1646 = vunpack.c.l.bf16 %v1433
    %v1647 = vunpack.c.l.bf16 %v1437
    %v1648 = vunpack.c.l.bf16 %v1441
    %v1649 = vunpack.c.l.bf16 %v1445
    %v1650 = vunpack.c.l.bf16 %v1449
    %v1651 = vunpack.c.l.bf16 %v1453
    %v1652 = vunpack.c.l.bf16 %v1457
    %v1653 = vunpack.c.l.bf16 %v1461
    %v1654 = vunpack.c.l.bf16 %v1465
    %v1655 = vunpack.c.l.bf16 %v1469
    %v1656 = vunpack.c.l.bf16 %v1473
    %v1657 = vunpack.c.l.bf16 %v1477
    %v1658 = vunpack.c.l.bf16 %v1481
    %v1659 = vunpack.c.l.bf16 %v1485
    %v1660 = vunpack.c.l.bf16 %v1489
    %v1661 = vunpack.c.l.bf16 %v1493
    %v1662 = vunpack.c.l.bf16 %v1497
    %v1663 = vunpack.c.l.bf16 %v1501
    %v1664 = vunpack.c.l.bf16 %v1505
    %v1665 = vunpack.c.l.bf16 %v1509
    %v1666 = vunpack.c.l.bf16 %v1513
    %v1667 = vunpack.c.l.bf16 %v1517
    %v1668 = vunpack.c.l.bf16 %v1521
    %v1669 = vunpack.c.l.bf16 %v1525
    %v1670 = vunpack.c.l.bf16 %v1529
    %v1671 = vunpack.c.l.bf16 %v1533
    %v1672 = vunpack.c.l.bf16 %v1537
    %v1673 = vunpack.c.l.bf16 %v1541
    %v1674 = vunpack.c.l.bf16 %v1545
    %v1675 = vunpack.c.l.bf16 %v1549
    %v1676 = vunpack.c.l.bf16 %v1553
    %v1677 = vunpack.c.l.bf16 %v1557
    %v1678 = vunpack.c.l.bf16 %v1561
    %v1679 = vunpack.c.l.bf16 %v1565
    %v1680 = vunpack.c.l.bf16 %v1569
    %v1681 = vunpack.c.l.bf16 %v1573
    %v1682 = vunpack.c.l.bf16 %v1577
    %v1683 = vunpack.c.l.bf16 %v1581
    %v1684 = vunpack.c.l.bf16 %v1585
    %v1685 = vunpack.c.l.bf16 %v1589
    %v1686 = vunpack.c.l.bf16 %v1593
    %v1687 = vunpack.c.l.bf16 %v1597
    %v1688 = vunpack.c.l.bf16 %v1601
    %v1689 = vunpack.c.l.bf16 %v1605
    %v1690 = vunpack.c.l.bf16 %v1609
    %v1691 = vunpack.c.l.bf16 %v1613
    %v1692 = vunpack.c.l.bf16 %v1617
    %v1693 = vunpack.c.l.bf16 %v1621
    %v1694 = vmul.f32 %v1622, %v1630
    %v1695 = vmul.f32 %v1622, %v1631
    %v1696 = vmul.f32 %v1622, %v1632
    %v1697 = vmul.f32 %v1622, %v1633
    %v1698 = vmul.f32 %v1622, %v1634
    %v1699 = vmul.f32 %v1622, %v1635
    %v1700 = vmul.f32 %v1622, %v1636
    %v1701 = vmul.f32 %v1622, %v1637
    %v1702 = vmul.f32 %v1622, %v1638
    %v1703 = vmul.f32 %v1622, %v1639
    %v1704 = vmul.f32 %v1622, %v1640
    %v1705 = vmul.f32 %v1622, %v1641
    %v1706 = vmul.f32 %v1622, %v1642
    %v1707 = vmul.f32 %v1622, %v1643
    %v1708 = vmul.f32 %v1622, %v1644
    %v1709 = vmul.f32 %v1622, %v1645
    %v1710 = vmul.f32 %v1622, %v1646
    %v1711 = vmul.f32 %v1622, %v1647
    %v1712 = vmul.f32 %v1622, %v1648
    %v1713 = vmul.f32 %v1622, %v1649
    %v1714 = vmul.f32 %v1622, %v1650
    %v1715 = vmul.f32 %v1622, %v1651
    %v1716 = vmul.f32 %v1622, %v1652
    %v1717 = vmul.f32 %v1622, %v1653
    %v1718 = vmul.f32 %v1622, %v1654
    %v1719 = vmul.f32 %v1622, %v1655
    %v1720 = vmul.f32 %v1622, %v1656
    %v1721 = vmul.f32 %v1622, %v1657
    %v1722 = vmul.f32 %v1622, %v1658
    %v1723 = vmul.f32 %v1622, %v1659
    %v1724 = vmul.f32 %v1622, %v1660
    %v1725 = vmul.f32 %v1622, %v1661
    %v1726 = vmul.f32 %v1622, %v1662
    %v1727 = vmul.f32 %v1622, %v1663
    %v1728 = vmul.f32 %v1622, %v1664
    %v1729 = vmul.f32 %v1622, %v1665
    %v1730 = vmul.f32 %v1622, %v1666
    %v1731 = vmul.f32 %v1622, %v1667
    %v1732 = vmul.f32 %v1622, %v1668
    %v1733 = vmul.f32 %v1622, %v1669
    %v1734 = vmul.f32 %v1622, %v1670
    %v1735 = vmul.f32 %v1622, %v1671
    %v1736 = vmul.f32 %v1622, %v1672
    %v1737 = vmul.f32 %v1622, %v1673
    %v1738 = vmul.f32 %v1622, %v1674
    %v1739 = vmul.f32 %v1622, %v1675
    %v1740 = vmul.f32 %v1622, %v1676
    %v1741 = vmul.f32 %v1622, %v1677
    %v1742 = vmul.f32 %v1622, %v1678
    %v1743 = vmul.f32 %v1622, %v1679
    %v1744 = vmul.f32 %v1622, %v1680
    %v1745 = vmul.f32 %v1622, %v1681
    %v1746 = vmul.f32 %v1622, %v1682
    %v1747 = vmul.f32 %v1622, %v1683
    %v1748 = vmul.f32 %v1622, %v1684
    %v1749 = vmul.f32 %v1622, %v1685
    %v1750 = vmul.f32 %v1622, %v1686
    %v1751 = vmul.f32 %v1622, %v1687
    %v1752 = vmul.f32 %v1622, %v1688
    %v1753 = vmul.f32 %v1622, %v1689
    %v1754 = vmul.f32 %v1622, %v1690
    %v1755 = vmul.f32 %v1622, %v1691
    %v1756 = vmul.f32 %v1622, %v1692
    %v1757 = vmul.f32 %v1622, %v1693
    %v1758 = vmul.f32 %v1623, %v1630
    %v1759 = vmul.f32 %v1623, %v1631
    %v1760 = vmul.f32 %v1623, %v1632
    %v1761 = vmul.f32 %v1623, %v1633
    %v1762 = vmul.f32 %v1623, %v1634
    %v1763 = vmul.f32 %v1623, %v1635
    %v1764 = vmul.f32 %v1623, %v1636
    %v1765 = vmul.f32 %v1623, %v1637
    %v1766 = vmul.f32 %v1623, %v1638
    %v1767 = vmul.f32 %v1623, %v1639
    %v1768 = vmul.f32 %v1623, %v1640
    %v1769 = vmul.f32 %v1623, %v1641
    %v1770 = vmul.f32 %v1623, %v1642
    %v1771 = vmul.f32 %v1623, %v1643
    %v1772 = vmul.f32 %v1623, %v1644
    %v1773 = vmul.f32 %v1623, %v1645
    %v1774 = vmul.f32 %v1623, %v1646
    %v1775 = vmul.f32 %v1623, %v1647
    %v1776 = vmul.f32 %v1623, %v1648
    %v1777 = vmul.f32 %v1623, %v1649
    %v1778 = vmul.f32 %v1623, %v1650
    %v1779 = vmul.f32 %v1623, %v1651
    %v1780 = vmul.f32 %v1623, %v1652
    %v1781 = vmul.f32 %v1623, %v1653
    %v1782 = vmul.f32 %v1623, %v1654
    %v1783 = vmul.f32 %v1623, %v1655
    %v1784 = vmul.f32 %v1623, %v1656
    %v1785 = vmul.f32 %v1623, %v1657
    %v1786 = vmul.f32 %v1623, %v1658
    %v1787 = vmul.f32 %v1623, %v1659
    %v1788 = vmul.f32 %v1623, %v1660
    %v1789 = vmul.f32 %v1623, %v1661
    %v1790 = vmul.f32 %v1623, %v1662
    %v1791 = vmul.f32 %v1623, %v1663
    %v1792 = vmul.f32 %v1623, %v1664
    %v1793 = vmul.f32 %v1623, %v1665
    %v1794 = vmul.f32 %v1623, %v1666
    %v1795 = vmul.f32 %v1623, %v1667
    %v1796 = vmul.f32 %v1623, %v1668
    %v1797 = vmul.f32 %v1623, %v1669
    %v1798 = vmul.f32 %v1623, %v1670
    %v1799 = vmul.f32 %v1623, %v1671
    %v1800 = vmul.f32 %v1623, %v1672
    %v1801 = vmul.f32 %v1623, %v1673
    %v1802 = vmul.f32 %v1623, %v1674
    %v1803 = vmul.f32 %v1623, %v1675
    %v1804 = vmul.f32 %v1623, %v1676
    %v1805 = vmul.f32 %v1623, %v1677
    %v1806 = vmul.f32 %v1623, %v1678
    %v1807 = vmul.f32 %v1623, %v1679
    %v1808 = vmul.f32 %v1623, %v1680
    %v1809 = vmul.f32 %v1623, %v1681
    %v1810 = vmul.f32 %v1623, %v1682
    %v1811 = vmul.f32 %v1623, %v1683
    %v1812 = vmul.f32 %v1623, %v1684
    %v1813 = vmul.f32 %v1623, %v1685
    %v1814 = vmul.f32 %v1623, %v1686
    %v1815 = vmul.f32 %v1623, %v1687
    %v1816 = vmul.f32 %v1623, %v1688
    %v1817 = vmul.f32 %v1623, %v1689
    %v1818 = vmul.f32 %v1623, %v1690
    %v1819 = vmul.f32 %v1623, %v1691
    %v1820 = vmul.f32 %v1623, %v1692
    %v1821 = vmul.f32 %v1623, %v1693
    %v1822 = vmul.f32 %v1624, %v1630
    %v1823 = vmul.f32 %v1624, %v1631
    %v1824 = vmul.f32 %v1624, %v1632
    %v1825 = vmul.f32 %v1624, %v1633
    %v1826 = vmul.f32 %v1624, %v1634
    %v1827 = vmul.f32 %v1624, %v1635
    %v1828 = vmul.f32 %v1624, %v1636
    %v1829 = vmul.f32 %v1624, %v1637
    %v1830 = vmul.f32 %v1624, %v1638
    %v1831 = vmul.f32 %v1624, %v1639
    %v1832 = vmul.f32 %v1624, %v1640
    %v1833 = vmul.f32 %v1624, %v1641
    %v1834 = vmul.f32 %v1624, %v1642
    %v1835 = vmul.f32 %v1624, %v1643
    %v1836 = vmul.f32 %v1624, %v1644
    %v1837 = vmul.f32 %v1624, %v1645
    %v1838 = vmul.f32 %v1624, %v1646
    %v1839 = vmul.f32 %v1624, %v1647
    %v1840 = vmul.f32 %v1624, %v1648
    %v1841 = vmul.f32 %v1624, %v1649
    %v1842 = vmul.f32 %v1624, %v1650
    %v1843 = vmul.f32 %v1624, %v1651
    %v1844 = vmul.f32 %v1624, %v1652
    %v1845 = vmul.f32 %v1624, %v1653
    %v1846 = vmul.f32 %v1624, %v1654
    %v1847 = vmul.f32 %v1624, %v1655
    %v1848 = vmul.f32 %v1624, %v1656
    %v1849 = vmul.f32 %v1624, %v1657
    %v1850 = vmul.f32 %v1624, %v1658
    %v1851 = vmul.f32 %v1624, %v1659
    %v1852 = vmul.f32 %v1624, %v1660
    %v1853 = vmul.f32 %v1624, %v1661
    %v1854 = vmul.f32 %v1624, %v1662
    %v1855 = vmul.f32 %v1624, %v1663
    %v1856 = vmul.f32 %v1624, %v1664
    %v1857 = vmul.f32 %v1624, %v1665
    %v1858 = vmul.f32 %v1624, %v1666
    %v1859 = vmul.f32 %v1624, %v1667
    %v1860 = vmul.f32 %v1624, %v1668
    %v1861 = vmul.f32 %v1624, %v1669
    %v1862 = vmul.f32 %v1624, %v1670
    %v1863 = vmul.f32 %v1624, %v1671
    %v1864 = vmul.f32 %v1624, %v1672
    %v1865 = vmul.f32 %v1624, %v1673
    %v1866 = vmul.f32 %v1624, %v1674
    %v1867 = vmul.f32 %v1624, %v1675
    %v1868 = vmul.f32 %v1624, %v1676
    %v1869 = vmul.f32 %v1624, %v1677
    %v1870 = vmul.f32 %v1624, %v1678
    %v1871 = vmul.f32 %v1624, %v1679
    %v1872 = vmul.f32 %v1624, %v1680
    %v1873 = vmul.f32 %v1624, %v1681
    %v1874 = vmul.f32 %v1624, %v1682
    %v1875 = vmul.f32 %v1624, %v1683
    %v1876 = vmul.f32 %v1624, %v1684
    %v1877 = vmul.f32 %v1624, %v1685
    %v1878 = vmul.f32 %v1624, %v1686
    %v1879 = vmul.f32 %v1624, %v1687
    %v1880 = vmul.f32 %v1624, %v1688
    %v1881 = vmul.f32 %v1624, %v1689
    %v1882 = vmul.f32 %v1624, %v1690
    %v1883 = vmul.f32 %v1624, %v1691
    %v1884 = vmul.f32 %v1624, %v1692
    %v1885 = vmul.f32 %v1624, %v1693
    %v1886 = vmul.f32 %v1625, %v1630
    %v1887 = vmul.f32 %v1625, %v1631
    %v1888 = vmul.f32 %v1625, %v1632
    %v1889 = vmul.f32 %v1625, %v1633
    %v1890 = vmul.f32 %v1625, %v1634
    %v1891 = vmul.f32 %v1625, %v1635
    %v1892 = vmul.f32 %v1625, %v1636
    %v1893 = vmul.f32 %v1625, %v1637
    %v1894 = vmul.f32 %v1625, %v1638
    %v1895 = vmul.f32 %v1625, %v1639
    %v1896 = vmul.f32 %v1625, %v1640
    %v1897 = vmul.f32 %v1625, %v1641
    %v1898 = vmul.f32 %v1625, %v1642
    %v1899 = vmul.f32 %v1625, %v1643
    %v1900 = vmul.f32 %v1625, %v1644
    %v1901 = vmul.f32 %v1625, %v1645
    %v1902 = vmul.f32 %v1625, %v1646
    %v1903 = vmul.f32 %v1625, %v1647
    %v1904 = vmul.f32 %v1625, %v1648
    %v1905 = vmul.f32 %v1625, %v1649
    %v1906 = vmul.f32 %v1625, %v1650
    %v1907 = vmul.f32 %v1625, %v1651
    %v1908 = vmul.f32 %v1625, %v1652
    %v1909 = vmul.f32 %v1625, %v1653
    %v1910 = vmul.f32 %v1625, %v1654
    %v1911 = vmul.f32 %v1625, %v1655
    %v1912 = vmul.f32 %v1625, %v1656
    %v1913 = vmul.f32 %v1625, %v1657
    %v1914 = vmul.f32 %v1625, %v1658
    %v1915 = vmul.f32 %v1625, %v1659
    %v1916 = vmul.f32 %v1625, %v1660
    %v1917 = vmul.f32 %v1625, %v1661
    %v1918 = vmul.f32 %v1625, %v1662
    %v1919 = vmul.f32 %v1625, %v1663
    %v1920 = vmul.f32 %v1625, %v1664
    %v1921 = vmul.f32 %v1625, %v1665
    %v1922 = vmul.f32 %v1625, %v1666
    %v1923 = vmul.f32 %v1625, %v1667
    %v1924 = vmul.f32 %v1625, %v1668
    %v1925 = vmul.f32 %v1625, %v1669
    %v1926 = vmul.f32 %v1625, %v1670
    %v1927 = vmul.f32 %v1625, %v1671
    %v1928 = vmul.f32 %v1625, %v1672
    %v1929 = vmul.f32 %v1625, %v1673
    %v1930 = vmul.f32 %v1625, %v1674
    %v1931 = vmul.f32 %v1625, %v1675
    %v1932 = vmul.f32 %v1625, %v1676
    %v1933 = vmul.f32 %v1625, %v1677
    %v1934 = vmul.f32 %v1625, %v1678
    %v1935 = vmul.f32 %v1625, %v1679
    %v1936 = vmul.f32 %v1625, %v1680
    %v1937 = vmul.f32 %v1625, %v1681
    %v1938 = vmul.f32 %v1625, %v1682
    %v1939 = vmul.f32 %v1625, %v1683
    %v1940 = vmul.f32 %v1625, %v1684
    %v1941 = vmul.f32 %v1625, %v1685
    %v1942 = vmul.f32 %v1625, %v1686
    %v1943 = vmul.f32 %v1625, %v1687
    %v1944 = vmul.f32 %v1625, %v1688
    %v1945 = vmul.f32 %v1625, %v1689
    %v1946 = vmul.f32 %v1625, %v1690
    %v1947 = vmul.f32 %v1625, %v1691
    %v1948 = vmul.f32 %v1625, %v1692
    %v1949 = vmul.f32 %v1625, %v1693
    %v1950 = vmul.f32 %v1626, %v1630
    %v1951 = vmul.f32 %v1626, %v1631
    %v1952 = vmul.f32 %v1626, %v1632
    %v1953 = vmul.f32 %v1626, %v1633
    %v1954 = vmul.f32 %v1626, %v1634
    %v1955 = vmul.f32 %v1626, %v1635
    %v1956 = vmul.f32 %v1626, %v1636
    %v1957 = vmul.f32 %v1626, %v1637
    %v1958 = vmul.f32 %v1626, %v1638
    %v1959 = vmul.f32 %v1626, %v1639
    %v1960 = vmul.f32 %v1626, %v1640
    %v1961 = vmul.f32 %v1626, %v1641
    %v1962 = vmul.f32 %v1626, %v1642
    %v1963 = vmul.f32 %v1626, %v1643
    %v1964 = vmul.f32 %v1626, %v1644
    %v1965 = vmul.f32 %v1626, %v1645
    %v1966 = vmul.f32 %v1626, %v1646
    %v1967 = vmul.f32 %v1626, %v1647
    %v1968 = vmul.f32 %v1626, %v1648
    %v1969 = vmul.f32 %v1626, %v1649
    %v1970 = vmul.f32 %v1626, %v1650
    %v1971 = vmul.f32 %v1626, %v1651
    %v1972 = vmul.f32 %v1626, %v1652
    %v1973 = vmul.f32 %v1626, %v1653
    %v1974 = vmul.f32 %v1626, %v1654
    %v1975 = vmul.f32 %v1626, %v1655
    %v1976 = vmul.f32 %v1626, %v1656
    %v1977 = vmul.f32 %v1626, %v1657
    %v1978 = vmul.f32 %v1626, %v1658
    %v1979 = vmul.f32 %v1626, %v1659
    %v1980 = vmul.f32 %v1626, %v1660
    %v1981 = vmul.f32 %v1626, %v1661
    %v1982 = vmul.f32 %v1626, %v1662
    %v1983 = vmul.f32 %v1626, %v1663
    %v1984 = vmul.f32 %v1626, %v1664
    %v1985 = vmul.f32 %v1626, %v1665
    %v1986 = vmul.f32 %v1626, %v1666
    %v1987 = vmul.f32 %v1626, %v1667
    %v1988 = vmul.f32 %v1626, %v1668
    %v1989 = vmul.f32 %v1626, %v1669
    %v1990 = vmul.f32 %v1626, %v1670
    %v1991 = vmul.f32 %v1626, %v1671
    %v1992 = vmul.f32 %v1626, %v1672
    %v1993 = vmul.f32 %v1626, %v1673
    %v1994 = vmul.f32 %v1626, %v1674
    %v1995 = vmul.f32 %v1626, %v1675
    %v1996 = vmul.f32 %v1626, %v1676
    %v1997 = vmul.f32 %v1626, %v1677
    %v1998 = vmul.f32 %v1626, %v1678
    %v1999 = vmul.f32 %v1626, %v1679
    %v2000 = vmul.f32 %v1626, %v1680
    %v2001 = vmul.f32 %v1626, %v1681
    %v2002 = vmul.f32 %v1626, %v1682
    %v2003 = vmul.f32 %v1626, %v1683
    %v2004 = vmul.f32 %v1626, %v1684
    %v2005 = vmul.f32 %v1626, %v1685
    %v2006 = vmul.f32 %v1626, %v1686
    %v2007 = vmul.f32 %v1626, %v1687
    %v2008 = vmul.f32 %v1626, %v1688
    %v2009 = vmul.f32 %v1626, %v1689
    %v2010 = vmul.f32 %v1626, %v1690
    %v2011 = vmul.f32 %v1626, %v1691
    %v2012 = vmul.f32 %v1626, %v1692
    %v2013 = vmul.f32 %v1626, %v1693
    %v2014 = vmul.f32 %v1627, %v1630
    %v2015 = vmul.f32 %v1627, %v1631
    %v2016 = vmul.f32 %v1627, %v1632
    %v2017 = vmul.f32 %v1627, %v1633
    %v2018 = vmul.f32 %v1627, %v1634
    %v2019 = vmul.f32 %v1627, %v1635
    %v2020 = vmul.f32 %v1627, %v1636
    %v2021 = vmul.f32 %v1627, %v1637
    %v2022 = vmul.f32 %v1627, %v1638
    %v2023 = vmul.f32 %v1627, %v1639
    %v2024 = vmul.f32 %v1627, %v1640
    %v2025 = vmul.f32 %v1627, %v1641
    %v2026 = vmul.f32 %v1627, %v1642
    %v2027 = vmul.f32 %v1627, %v1643
    %v2028 = vmul.f32 %v1627, %v1644
    %v2029 = vmul.f32 %v1627, %v1645
    %v2030 = vmul.f32 %v1627, %v1646
    %v2031 = vmul.f32 %v1627, %v1647
    %v2032 = vmul.f32 %v1627, %v1648
    %v2033 = vmul.f32 %v1627, %v1649
    %v2034 = vmul.f32 %v1627, %v1650
    %v2035 = vmul.f32 %v1627, %v1651
    %v2036 = vmul.f32 %v1627, %v1652
    %v2037 = vmul.f32 %v1627, %v1653
    %v2038 = vmul.f32 %v1627, %v1654
    %v2039 = vmul.f32 %v1627, %v1655
    %v2040 = vmul.f32 %v1627, %v1656
    %v2041 = vmul.f32 %v1627, %v1657
    %v2042 = vmul.f32 %v1627, %v1658
    %v2043 = vmul.f32 %v1627, %v1659
    %v2044 = vmul.f32 %v1627, %v1660
    %v2045 = vmul.f32 %v1627, %v1661
    %v2046 = vmul.f32 %v1627, %v1662
    %v2047 = vmul.f32 %v1627, %v1663
    %v2048 = vmul.f32 %v1627, %v1664
    %v2049 = vmul.f32 %v1627, %v1665
    %v2050 = vmul.f32 %v1627, %v1666
    %v2051 = vmul.f32 %v1627, %v1667
    %v2052 = vmul.f32 %v1627, %v1668
    %v2053 = vmul.f32 %v1627, %v1669
    %v2054 = vmul.f32 %v1627, %v1670
    %v2055 = vmul.f32 %v1627, %v1671
    %v2056 = vmul.f32 %v1627, %v1672
    %v2057 = vmul.f32 %v1627, %v1673
    %v2058 = vmul.f32 %v1627, %v1674
    %v2059 = vmul.f32 %v1627, %v1675
    %v2060 = vmul.f32 %v1627, %v1676
    %v2061 = vmul.f32 %v1627, %v1677
    %v2062 = vmul.f32 %v1627, %v1678
    %v2063 = vmul.f32 %v1627, %v1679
    %v2064 = vmul.f32 %v1627, %v1680
    %v2065 = vmul.f32 %v1627, %v1681
    %v2066 = vmul.f32 %v1627, %v1682
    %v2067 = vmul.f32 %v1627, %v1683
    %v2068 = vmul.f32 %v1627, %v1684
    %v2069 = vmul.f32 %v1627, %v1685
    %v2070 = vmul.f32 %v1627, %v1686
    %v2071 = vmul.f32 %v1627, %v1687
    %v2072 = vmul.f32 %v1627, %v1688
    %v2073 = vmul.f32 %v1627, %v1689
    %v2074 = vmul.f32 %v1627, %v1690
    %v2075 = vmul.f32 %v1627, %v1691
    %v2076 = vmul.f32 %v1627, %v1692
    %v2077 = vmul.f32 %v1627, %v1693
    %v2078 = vmul.f32 %v1628, %v1630
    %v2079 = vmul.f32 %v1628, %v1631
    %v2080 = vmul.f32 %v1628, %v1632
    %v2081 = vmul.f32 %v1628, %v1633
    %v2082 = vmul.f32 %v1628, %v1634
    %v2083 = vmul.f32 %v1628, %v1635
    %v2084 = vmul.f32 %v1628, %v1636
    %v2085 = vmul.f32 %v1628, %v1637
    %v2086 = vmul.f32 %v1628, %v1638
    %v2087 = vmul.f32 %v1628, %v1639
    %v2088 = vmul.f32 %v1628, %v1640
    %v2089 = vmul.f32 %v1628, %v1641
    %v2090 = vmul.f32 %v1628, %v1642
    %v2091 = vmul.f32 %v1628, %v1643
    %v2092 = vmul.f32 %v1628, %v1644
    %v2093 = vmul.f32 %v1628, %v1645
    %v2094 = vmul.f32 %v1628, %v1646
    %v2095 = vmul.f32 %v1628, %v1647
    %v2096 = vmul.f32 %v1628, %v1648
    %v2097 = vmul.f32 %v1628, %v1649
    %v2098 = vmul.f32 %v1628, %v1650
    %v2099 = vmul.f32 %v1628, %v1651
    %v2100 = vmul.f32 %v1628, %v1652
    %v2101 = vmul.f32 %v1628, %v1653
    %v2102 = vmul.f32 %v1628, %v1654
    %v2103 = vmul.f32 %v1628, %v1655
    %v2104 = vmul.f32 %v1628, %v1656
    %v2105 = vmul.f32 %v1628, %v1657
    %v2106 = vmul.f32 %v1628, %v1658
    %v2107 = vmul.f32 %v1628, %v1659
    %v2108 = vmul.f32 %v1628, %v1660
    %v2109 = vmul.f32 %v1628, %v1661
    %v2110 = vmul.f32 %v1628, %v1662
    %v2111 = vmul.f32 %v1628, %v1663
    %v2112 = vmul.f32 %v1628, %v1664
    %v2113 = vmul.f32 %v1628, %v1665
    %v2114 = vmul.f32 %v1628, %v1666
    %v2115 = vmul.f32 %v1628, %v1667
    %v2116 = vmul.f32 %v1628, %v1668
    %v2117 = vmul.f32 %v1628, %v1669
    %v2118 = vmul.f32 %v1628, %v1670
    %v2119 = vmul.f32 %v1628, %v1671
    %v2120 = vmul.f32 %v1628, %v1672
    %v2121 = vmul.f32 %v1628, %v1673
    %v2122 = vmul.f32 %v1628, %v1674
    %v2123 = vmul.f32 %v1628, %v1675
    %v2124 = vmul.f32 %v1628, %v1676
    %v2125 = vmul.f32 %v1628, %v1677
    %v2126 = vmul.f32 %v1628, %v1678
    %v2127 = vmul.f32 %v1628, %v1679
    %v2128 = vmul.f32 %v1628, %v1680
    %v2129 = vmul.f32 %v1628, %v1681
    %v2130 = vmul.f32 %v1628, %v1682
    %v2131 = vmul.f32 %v1628, %v1683
    %v2132 = vmul.f32 %v1628, %v1684
    %v2133 = vmul.f32 %v1628, %v1685
    %v2134 = vmul.f32 %v1628, %v1686
    %v2135 = vmul.f32 %v1628, %v1687
    %v2136 = vmul.f32 %v1628, %v1688
    %v2137 = vmul.f32 %v1628, %v1689
    %v2138 = vmul.f32 %v1628, %v1690
    %v2139 = vmul.f32 %v1628, %v1691
    %v2140 = vmul.f32 %v1628, %v1692
    %v2141 = vmul.f32 %v1628, %v1693
    %v2142 = vmul.f32 %v1629, %v1630
    %v2143 = vmul.f32 %v1629, %v1631
    %v2144 = vmul.f32 %v1629, %v1632
    %v2145 = vmul.f32 %v1629, %v1633
    %v2146 = vmul.f32 %v1629, %v1634
    %v2147 = vmul.f32 %v1629, %v1635
    %v2148 = vmul.f32 %v1629, %v1636
    %v2149 = vmul.f32 %v1629, %v1637
    %v2150 = vmul.f32 %v1629, %v1638
    %v2151 = vmul.f32 %v1629, %v1639
    %v2152 = vmul.f32 %v1629, %v1640
    %v2153 = vmul.f32 %v1629, %v1641
    %v2154 = vmul.f32 %v1629, %v1642
    %v2155 = vmul.f32 %v1629, %v1643
    %v2156 = vmul.f32 %v1629, %v1644
    %v2157 = vmul.f32 %v1629, %v1645
    %v2158 = vmul.f32 %v1629, %v1646
    %v2159 = vmul.f32 %v1629, %v1647
    %v2160 = vmul.f32 %v1629, %v1648
    %v2161 = vmul.f32 %v1629, %v1649
    %v2162 = vmul.f32 %v1629, %v1650
    %v2163 = vmul.f32 %v1629, %v1651
    %v2164 = vmul.f32 %v1629, %v1652
    %v2165 = vmul.f32 %v1629, %v1653
    %v2166 = vmul.f32 %v1629, %v1654
    %v2167 = vmul.f32 %v1629, %v1655
    %v2168 = vmul.f32 %v1629, %v1656
    %v2169 = vmul.f32 %v1629, %v1657
    %v2170 = vmul.f32 %v1629, %v1658
    %v2171 = vmul.f32 %v1629, %v1659
    %v2172 = vmul.f32 %v1629, %v1660
    %v2173 = vmul.f32 %v1629, %v1661
    %v2174 = vmul.f32 %v1629, %v1662
    %v2175 = vmul.f32 %v1629, %v1663
    %v2176 = vmul.f32 %v1629, %v1664
    %v2177 = vmul.f32 %v1629, %v1665
    %v2178 = vmul.f32 %v1629, %v1666
    %v2179 = vmul.f32 %v1629, %v1667
    %v2180 = vmul.f32 %v1629, %v1668
    %v2181 = vmul.f32 %v1629, %v1669
    %v2182 = vmul.f32 %v1629, %v1670
    %v2183 = vmul.f32 %v1629, %v1671
    %v2184 = vmul.f32 %v1629, %v1672
    %v2185 = vmul.f32 %v1629, %v1673
    %v2186 = vmul.f32 %v1629, %v1674
    %v2187 = vmul.f32 %v1629, %v1675
    %v2188 = vmul.f32 %v1629, %v1676
    %v2189 = vmul.f32 %v1629, %v1677
    %v2190 = vmul.f32 %v1629, %v1678
    %v2191 = vmul.f32 %v1629, %v1679
    %v2192 = vmul.f32 %v1629, %v1680
    %v2193 = vmul.f32 %v1629, %v1681
    %v2194 = vmul.f32 %v1629, %v1682
    %v2195 = vmul.f32 %v1629, %v1683
    %v2196 = vmul.f32 %v1629, %v1684
    %v2197 = vmul.f32 %v1629, %v1685
    %v2198 = vmul.f32 %v1629, %v1686
    %v2199 = vmul.f32 %v1629, %v1687
    %v2200 = vmul.f32 %v1629, %v1688
    %v2201 = vmul.f32 %v1629, %v1689
    %v2202 = vmul.f32 %v1629, %v1690
    %v2203 = vmul.f32 %v1629, %v1691
    %v2204 = vmul.f32 %v1629, %v1692
    %v2205 = vmul.f32 %v1629, %v1693
    %v2206 = vpack.c.bf16 %v1695, %v1694
    %v2207 = vpack.c.bf16 %v1697, %v1696
    %v2208 = vpack.c.bf16 %v1699, %v1698
    %v2209 = vpack.c.bf16 %v1701, %v1700
    %v2210 = vpack.c.bf16 %v1703, %v1702
    %v2211 = vpack.c.bf16 %v1705, %v1704
    %v2212 = vpack.c.bf16 %v1707, %v1706
    %v2213 = vpack.c.bf16 %v1709, %v1708
    %v2214 = vpack.c.bf16 %v1711, %v1710
    %v2215 = vpack.c.bf16 %v1713, %v1712
    %v2216 = vpack.c.bf16 %v1715, %v1714
    %v2217 = vpack.c.bf16 %v1717, %v1716
    %v2218 = vpack.c.bf16 %v1719, %v1718
    %v2219 = vpack.c.bf16 %v1721, %v1720
    %v2220 = vpack.c.bf16 %v1723, %v1722
    %v2221 = vpack.c.bf16 %v1725, %v1724
    %v2222 = vpack.c.bf16 %v1727, %v1726
    %v2223 = vpack.c.bf16 %v1729, %v1728
    %v2224 = vpack.c.bf16 %v1731, %v1730
    %v2225 = vpack.c.bf16 %v1733, %v1732
    %v2226 = vpack.c.bf16 %v1735, %v1734
    %v2227 = vpack.c.bf16 %v1737, %v1736
    %v2228 = vpack.c.bf16 %v1739, %v1738
    %v2229 = vpack.c.bf16 %v1741, %v1740
    %v2230 = vpack.c.bf16 %v1743, %v1742
    %v2231 = vpack.c.bf16 %v1745, %v1744
    %v2232 = vpack.c.bf16 %v1747, %v1746
    %v2233 = vpack.c.bf16 %v1749, %v1748
    %v2234 = vpack.c.bf16 %v1751, %v1750
    %v2235 = vpack.c.bf16 %v1753, %v1752
    %v2236 = vpack.c.bf16 %v1755, %v1754
    %v2237 = vpack.c.bf16 %v1757, %v1756
    %v2238 = vpack.c.bf16 %v1759, %v1758
    %v2239 = vpack.c.bf16 %v1761, %v1760
    %v2240 = vpack.c.bf16 %v1763, %v1762
    %v2241 = vpack.c.bf16 %v1765, %v1764
    %v2242 = vpack.c.bf16 %v1767, %v1766
    %v2243 = vpack.c.bf16 %v1769, %v1768
    %v2244 = vpack.c.bf16 %v1771, %v1770
    %v2245 = vpack.c.bf16 %v1773, %v1772
    %v2246 = vpack.c.bf16 %v1775, %v1774
    %v2247 = vpack.c.bf16 %v1777, %v1776
    %v2248 = vpack.c.bf16 %v1779, %v1778
    %v2249 = vpack.c.bf16 %v1781, %v1780
    %v2250 = vpack.c.bf16 %v1783, %v1782
    %v2251 = vpack.c.bf16 %v1785, %v1784
    %v2252 = vpack.c.bf16 %v1787, %v1786
    %v2253 = vpack.c.bf16 %v1789, %v1788
    %v2254 = vpack.c.bf16 %v1791, %v1790
    %v2255 = vpack.c.bf16 %v1793, %v1792
    %v2256 = vpack.c.bf16 %v1795, %v1794
    %v2257 = vpack.c.bf16 %v1797, %v1796
    %v2258 = vpack.c.bf16 %v1799, %v1798
    %v2259 = vpack.c.bf16 %v1801, %v1800
    %v2260 = vpack.c.bf16 %v1803, %v1802
    %v2261 = vpack.c.bf16 %v1805, %v1804
    %v2262 = vpack.c.bf16 %v1807, %v1806
    %v2263 = vpack.c.bf16 %v1809, %v1808
    %v2264 = vpack.c.bf16 %v1811, %v1810
    %v2265 = vpack.c.bf16 %v1813, %v1812
    %v2266 = vpack.c.bf16 %v1815, %v1814
    %v2267 = vpack.c.bf16 %v1817, %v1816
    %v2268 = vpack.c.bf16 %v1819, %v1818
    %v2269 = vpack.c.bf16 %v1821, %v1820
    %v2270 = vpack.c.bf16 %v1823, %v1822
    %v2271 = vpack.c.bf16 %v1825, %v1824
    %v2272 = vpack.c.bf16 %v1827, %v1826
    %v2273 = vpack.c.bf16 %v1829, %v1828
    %v2274 = vpack.c.bf16 %v1831, %v1830
    %v2275 = vpack.c.bf16 %v1833, %v1832
    %v2276 = vpack.c.bf16 %v1835, %v1834
    %v2277 = vpack.c.bf16 %v1837, %v1836
    %v2278 = vpack.c.bf16 %v1839, %v1838
    %v2279 = vpack.c.bf16 %v1841, %v1840
    %v2280 = vpack.c.bf16 %v1843, %v1842
    %v2281 = vpack.c.bf16 %v1845, %v1844
    %v2282 = vpack.c.bf16 %v1847, %v1846
    %v2283 = vpack.c.bf16 %v1849, %v1848
    %v2284 = vpack.c.bf16 %v1851, %v1850
    %v2285 = vpack.c.bf16 %v1853, %v1852
    %v2286 = vpack.c.bf16 %v1855, %v1854
    %v2287 = vpack.c.bf16 %v1857, %v1856
    %v2288 = vpack.c.bf16 %v1859, %v1858
    %v2289 = vpack.c.bf16 %v1861, %v1860
    %v2290 = vpack.c.bf16 %v1863, %v1862
    %v2291 = vpack.c.bf16 %v1865, %v1864
    %v2292 = vpack.c.bf16 %v1867, %v1866
    %v2293 = vpack.c.bf16 %v1869, %v1868
    %v2294 = vpack.c.bf16 %v1871, %v1870
    %v2295 = vpack.c.bf16 %v1873, %v1872
    %v2296 = vpack.c.bf16 %v1875, %v1874
    %v2297 = vpack.c.bf16 %v1877, %v1876
    %v2298 = vpack.c.bf16 %v1879, %v1878
    %v2299 = vpack.c.bf16 %v1881, %v1880
    %v2300 = vpack.c.bf16 %v1883, %v1882
    %v2301 = vpack.c.bf16 %v1885, %v1884
    %v2302 = vpack.c.bf16 %v1887, %v1886
    %v2303 = vpack.c.bf16 %v1889, %v1888
    %v2304 = vpack.c.bf16 %v1891, %v1890
    %v2305 = vpack.c.bf16 %v1893, %v1892
    %v2306 = vpack.c.bf16 %v1895, %v1894
    %v2307 = vpack.c.bf16 %v1897, %v1896
    %v2308 = vpack.c.bf16 %v1899, %v1898
    %v2309 = vpack.c.bf16 %v1901, %v1900
    %v2310 = vpack.c.bf16 %v1903, %v1902
    %v2311 = vpack.c.bf16 %v1905, %v1904
    %v2312 = vpack.c.bf16 %v1907, %v1906
    %v2313 = vpack.c.bf16 %v1909, %v1908
    %v2314 = vpack.c.bf16 %v1911, %v1910
    %v2315 = vpack.c.bf16 %v1913, %v1912
    %v2316 = vpack.c.bf16 %v1915, %v1914
    %v2317 = vpack.c.bf16 %v1917, %v1916
    %v2318 = vpack.c.bf16 %v1919, %v1918
    %v2319 = vpack.c.bf16 %v1921, %v1920
    %v2320 = vpack.c.bf16 %v1923, %v1922
    %v2321 = vpack.c.bf16 %v1925, %v1924
    %v2322 = vpack.c.bf16 %v1927, %v1926
    %v2323 = vpack.c.bf16 %v1929, %v1928
    %v2324 = vpack.c.bf16 %v1931, %v1930
    %v2325 = vpack.c.bf16 %v1933, %v1932
    %v2326 = vpack.c.bf16 %v1935, %v1934
    %v2327 = vpack.c.bf16 %v1937, %v1936
    %v2328 = vpack.c.bf16 %v1939, %v1938
    %v2329 = vpack.c.bf16 %v1941, %v1940
    %v2330 = vpack.c.bf16 %v1943, %v1942
    %v2331 = vpack.c.bf16 %v1945, %v1944
    %v2332 = vpack.c.bf16 %v1947, %v1946
    %v2333 = vpack.c.bf16 %v1949, %v1948
    %v2334 = vpack.c.bf16 %v1951, %v1950
    %v2335 = vpack.c.bf16 %v1953, %v1952
    %v2336 = vpack.c.bf16 %v1955, %v1954
    %v2337 = vpack.c.bf16 %v1957, %v1956
    %v2338 = vpack.c.bf16 %v1959, %v1958
    %v2339 = vpack.c.bf16 %v1961, %v1960
    %v2340 = vpack.c.bf16 %v1963, %v1962
    %v2341 = vpack.c.bf16 %v1965, %v1964
    %v2342 = vpack.c.bf16 %v1967, %v1966
    %v2343 = vpack.c.bf16 %v1969, %v1968
    %v2344 = vpack.c.bf16 %v1971, %v1970
    %v2345 = vpack.c.bf16 %v1973, %v1972
    %v2346 = vpack.c.bf16 %v1975, %v1974
    %v2347 = vpack.c.bf16 %v1977, %v1976
    %v2348 = vpack.c.bf16 %v1979, %v1978
    %v2349 = vpack.c.bf16 %v1981, %v1980
    %v2350 = vpack.c.bf16 %v1983, %v1982
    %v2351 = vpack.c.bf16 %v1985, %v1984
    %v2352 = vpack.c.bf16 %v1987, %v1986
    %v2353 = vpack.c.bf16 %v1989, %v1988
    %v2354 = vpack.c.bf16 %v1991, %v1990
    %v2355 = vpack.c.bf16 %v1993, %v1992
    %v2356 = vpack.c.bf16 %v1995, %v1994
    %v2357 = vpack.c.bf16 %v1997, %v1996
    %v2358 = vpack.c.bf16 %v1999, %v1998
    %v2359 = vpack.c.bf16 %v2001, %v2000
    %v2360 = vpack.c.bf16 %v2003, %v2002
    %v2361 = vpack.c.bf16 %v2005, %v2004
    %v2362 = vpack.c.bf16 %v2007, %v2006
    %v2363 = vpack.c.bf16 %v2009, %v2008
    %v2364 = vpack.c.bf16 %v2011, %v2010
    %v2365 = vpack.c.bf16 %v2013, %v2012
    %v2366 = vpack.c.bf16 %v2015, %v2014
    %v2367 = vpack.c.bf16 %v2017, %v2016
    %v2368 = vpack.c.bf16 %v2019, %v2018
    %v2369 = vpack.c.bf16 %v2021, %v2020
    %v2370 = vpack.c.bf16 %v2023, %v2022
    %v2371 = vpack.c.bf16 %v2025, %v2024
    %v2372 = vpack.c.bf16 %v2027, %v2026
    %v2373 = vpack.c.bf16 %v2029, %v2028
    %v2374 = vpack.c.bf16 %v2031, %v2030
    %v2375 = vpack.c.bf16 %v2033, %v2032
    %v2376 = vpack.c.bf16 %v2035, %v2034
    %v2377 = vpack.c.bf16 %v2037, %v2036
    %v2378 = vpack.c.bf16 %v2039, %v2038
    %v2379 = vpack.c.bf16 %v2041, %v2040
    %v2380 = vpack.c.bf16 %v2043, %v2042
    %v2381 = vpack.c.bf16 %v2045, %v2044
    %v2382 = vpack.c.bf16 %v2047, %v2046
    %v2383 = vpack.c.bf16 %v2049, %v2048
    %v2384 = vpack.c.bf16 %v2051, %v2050
    %v2385 = vpack.c.bf16 %v2053, %v2052
    %v2386 = vpack.c.bf16 %v2055, %v2054
    %v2387 = vpack.c.bf16 %v2057, %v2056
    %v2388 = vpack.c.bf16 %v2059, %v2058
    %v2389 = vpack.c.bf16 %v2061, %v2060
    %v2390 = vpack.c.bf16 %v2063, %v2062
    %v2391 = vpack.c.bf16 %v2065, %v2064
    %v2392 = vpack.c.bf16 %v2067, %v2066
    %v2393 = vpack.c.bf16 %v2069, %v2068
    %v2394 = vpack.c.bf16 %v2071, %v2070
    %v2395 = vpack.c.bf16 %v2073, %v2072
    %v2396 = vpack.c.bf16 %v2075, %v2074
    %v2397 = vpack.c.bf16 %v2077, %v2076
    %v2398 = vpack.c.bf16 %v2079, %v2078
    %v2399 = vpack.c.bf16 %v2081, %v2080
    %v2400 = vpack.c.bf16 %v2083, %v2082
    %v2401 = vpack.c.bf16 %v2085, %v2084
    %v2402 = vpack.c.bf16 %v2087, %v2086
    %v2403 = vpack.c.bf16 %v2089, %v2088
    %v2404 = vpack.c.bf16 %v2091, %v2090
    %v2405 = vpack.c.bf16 %v2093, %v2092
    %v2406 = vpack.c.bf16 %v2095, %v2094
    %v2407 = vpack.c.bf16 %v2097, %v2096
    %v2408 = vpack.c.bf16 %v2099, %v2098
    %v2409 = vpack.c.bf16 %v2101, %v2100
    %v2410 = vpack.c.bf16 %v2103, %v2102
    %v2411 = vpack.c.bf16 %v2105, %v2104
    %v2412 = vpack.c.bf16 %v2107, %v2106
    %v2413 = vpack.c.bf16 %v2109, %v2108
    %v2414 = vpack.c.bf16 %v2111, %v2110
    %v2415 = vpack.c.bf16 %v2113, %v2112
    %v2416 = vpack.c.bf16 %v2115, %v2114
    %v2417 = vpack.c.bf16 %v2117, %v2116
    %v2418 = vpack.c.bf16 %v2119, %v2118
    %v2419 = vpack.c.bf16 %v2121, %v2120
    %v2420 = vpack.c.bf16 %v2123, %v2122
    %v2421 = vpack.c.bf16 %v2125, %v2124
    %v2422 = vpack.c.bf16 %v2127, %v2126
    %v2423 = vpack.c.bf16 %v2129, %v2128
    %v2424 = vpack.c.bf16 %v2131, %v2130
    %v2425 = vpack.c.bf16 %v2133, %v2132
    %v2426 = vpack.c.bf16 %v2135, %v2134
    %v2427 = vpack.c.bf16 %v2137, %v2136
    %v2428 = vpack.c.bf16 %v2139, %v2138
    %v2429 = vpack.c.bf16 %v2141, %v2140
    %v2430 = vpack.c.bf16 %v2143, %v2142
    %v2431 = vpack.c.bf16 %v2145, %v2144
    %v2432 = vpack.c.bf16 %v2147, %v2146
    %v2433 = vpack.c.bf16 %v2149, %v2148
    %v2434 = vpack.c.bf16 %v2151, %v2150
    %v2435 = vpack.c.bf16 %v2153, %v2152
    %v2436 = vpack.c.bf16 %v2155, %v2154
    %v2437 = vpack.c.bf16 %v2157, %v2156
    %v2438 = vpack.c.bf16 %v2159, %v2158
    %v2439 = vpack.c.bf16 %v2161, %v2160
    %v2440 = vpack.c.bf16 %v2163, %v2162
    %v2441 = vpack.c.bf16 %v2165, %v2164
    %v2442 = vpack.c.bf16 %v2167, %v2166
    %v2443 = vpack.c.bf16 %v2169, %v2168
    %v2444 = vpack.c.bf16 %v2171, %v2170
    %v2445 = vpack.c.bf16 %v2173, %v2172
    %v2446 = vpack.c.bf16 %v2175, %v2174
    %v2447 = vpack.c.bf16 %v2177, %v2176
    %v2448 = vpack.c.bf16 %v2179, %v2178
    %v2449 = vpack.c.bf16 %v2181, %v2180
    %v2450 = vpack.c.bf16 %v2183, %v2182
    %v2451 = vpack.c.bf16 %v2185, %v2184
    %v2452 = vpack.c.bf16 %v2187, %v2186
    %v2453 = vpack.c.bf16 %v2189, %v2188
    %v2454 = vpack.c.bf16 %v2191, %v2190
    %v2455 = vpack.c.bf16 %v2193, %v2192
    %v2456 = vpack.c.bf16 %v2195, %v2194
    %v2457 = vpack.c.bf16 %v2197, %v2196
    %v2458 = vpack.c.bf16 %v2199, %v2198
    %v2459 = vpack.c.bf16 %v2201, %v2200
    %v2460 = vpack.c.bf16 %v2203, %v2202
    %v2461 = vpack.c.bf16 %v2205, %v2204
    %v2462 = vunpack.c.l.bf16 %v974
    %v2463 = vunpack.c.h.bf16 %v974
    %v2464 = vunpack.c.l.bf16 %v975
    %v2465 = vunpack.c.h.bf16 %v975
    %v2466 = vunpack.c.l.bf16 %v976
    %v2467 = vunpack.c.h.bf16 %v976
    %v2468 = vunpack.c.l.bf16 %v977
    %v2469 = vunpack.c.h.bf16 %v977
    %v2470 = vunpack.c.l.bf16 %v978
    %v2471 = vunpack.c.h.bf16 %v978
    %v2472 = vunpack.c.l.bf16 %v979
    %v2473 = vunpack.c.h.bf16 %v979
    %v2474 = vunpack.c.l.bf16 %v980
    %v2475 = vunpack.c.h.bf16 %v980
    %v2476 = vunpack.c.l.bf16 %v981
    %v2477 = vunpack.c.h.bf16 %v981
    %v2478 = vunpack.c.l.bf16 %v982
    %v2479 = vunpack.c.h.bf16 %v982
    %v2480 = vunpack.c.l.bf16 %v983
    %v2481 = vunpack.c.h.bf16 %v983
    %v2482 = vunpack.c.l.bf16 %v984
    %v2483 = vunpack.c.h.bf16 %v984
    %v2484 = vunpack.c.l.bf16 %v985
    %v2485 = vunpack.c.h.bf16 %v985
    %v2486 = vunpack.c.l.bf16 %v986
    %v2487 = vunpack.c.h.bf16 %v986
    %v2488 = vunpack.c.l.bf16 %v987
    %v2489 = vunpack.c.h.bf16 %v987
    %v2490 = vunpack.c.l.bf16 %v988
    %v2491 = vunpack.c.h.bf16 %v988
    %v2492 = vunpack.c.l.bf16 %v989
    %v2493 = vunpack.c.h.bf16 %v989
    %v2494 = vunpack.c.l.bf16 %v990
    %v2495 = vunpack.c.h.bf16 %v990
    %v2496 = vunpack.c.l.bf16 %v991
    %v2497 = vunpack.c.h.bf16 %v991
    %v2498 = vunpack.c.l.bf16 %v992
    %v2499 = vunpack.c.h.bf16 %v992
    %v2500 = vunpack.c.l.bf16 %v993
    %v2501 = vunpack.c.h.bf16 %v993
    %v2502 = vunpack.c.l.bf16 %v994
    %v2503 = vunpack.c.h.bf16 %v994
    %v2504 = vunpack.c.l.bf16 %v995
    %v2505 = vunpack.c.h.bf16 %v995
    %v2506 = vunpack.c.l.bf16 %v996
    %v2507 = vunpack.c.h.bf16 %v996
    %v2508 = vunpack.c.l.bf16 %v997
    %v2509 = vunpack.c.h.bf16 %v997
    %v2510 = vunpack.c.l.bf16 %v998
    %v2511 = vunpack.c.h.bf16 %v998
    %v2512 = vunpack.c.l.bf16 %v999
    %v2513 = vunpack.c.h.bf16 %v999
    %v2514 = vunpack.c.l.bf16 %v1000
    %v2515 = vunpack.c.h.bf16 %v1000
    %v2516 = vunpack.c.l.bf16 %v1001
    %v2517 = vunpack.c.h.bf16 %v1001
    %v2518 = vunpack.c.l.bf16 %v1002
    %v2519 = vunpack.c.h.bf16 %v1002
    %v2520 = vunpack.c.l.bf16 %v1003
    %v2521 = vunpack.c.h.bf16 %v1003
    %v2522 = vunpack.c.l.bf16 %v1004
    %v2523 = vunpack.c.h.bf16 %v1004
    %v2524 = vunpack.c.l.bf16 %v1005
    %v2525 = vunpack.c.h.bf16 %v1005
    %v2526 = vunpack.c.l.bf16 %v1006
    %v2527 = vunpack.c.h.bf16 %v1006
    %v2528 = vunpack.c.l.bf16 %v1007
    %v2529 = vunpack.c.h.bf16 %v1007
    %v2530 = vunpack.c.l.bf16 %v1008
    %v2531 = vunpack.c.h.bf16 %v1008
    %v2532 = vunpack.c.l.bf16 %v1009
    %v2533 = vunpack.c.h.bf16 %v1009
    %v2534 = vunpack.c.l.bf16 %v1010
    %v2535 = vunpack.c.h.bf16 %v1010
    %v2536 = vunpack.c.l.bf16 %v1011
    %v2537 = vunpack.c.h.bf16 %v1011
    %v2538 = vunpack.c.l.bf16 %v1012
    %v2539 = vunpack.c.h.bf16 %v1012
    %v2540 = vunpack.c.l.bf16 %v1013
    %v2541 = vunpack.c.h.bf16 %v1013
    %v2542 = vunpack.c.l.bf16 %v1014
    %v2543 = vunpack.c.h.bf16 %v1014
    %v2544 = vunpack.c.l.bf16 %v1015
    %v2545 = vunpack.c.h.bf16 %v1015
    %v2546 = vunpack.c.l.bf16 %v1016
    %v2547 = vunpack.c.h.bf16 %v1016
    %v2548 = vunpack.c.l.bf16 %v1017
    %v2549 = vunpack.c.h.bf16 %v1017
    %v2550 = vunpack.c.l.bf16 %v1018
    %v2551 = vunpack.c.h.bf16 %v1018
    %v2552 = vunpack.c.l.bf16 %v1019
    %v2553 = vunpack.c.h.bf16 %v1019
    %v2554 = vunpack.c.l.bf16 %v1020
    %v2555 = vunpack.c.h.bf16 %v1020
    %v2556 = vunpack.c.l.bf16 %v1021
    %v2557 = vunpack.c.h.bf16 %v1021
    %v2558 = vunpack.c.l.bf16 %v1022
    %v2559 = vunpack.c.h.bf16 %v1022
    %v2560 = vunpack.c.l.bf16 %v1023
    %v2561 = vunpack.c.h.bf16 %v1023
    %v2562 = vunpack.c.l.bf16 %v1024
    %v2563 = vunpack.c.h.bf16 %v1024
    %v2564 = vunpack.c.l.bf16 %v1025
    %v2565 = vunpack.c.h.bf16 %v1025
    %v2566 = vunpack.c.l.bf16 %v1026
    %v2567 = vunpack.c.h.bf16 %v1026
    %v2568 = vunpack.c.l.bf16 %v1027
    %v2569 = vunpack.c.h.bf16 %v1027
    %v2570 = vunpack.c.l.bf16 %v1028
    %v2571 = vunpack.c.h.bf16 %v1028
    %v2572 = vunpack.c.l.bf16 %v1029
    %v2573 = vunpack.c.h.bf16 %v1029
    %v2574 = vunpack.c.l.bf16 %v1030
    %v2575 = vunpack.c.h.bf16 %v1030
    %v2576 = vunpack.c.l.bf16 %v1031
    %v2577 = vunpack.c.h.bf16 %v1031
    %v2578 = vunpack.c.l.bf16 %v1032
    %v2579 = vunpack.c.h.bf16 %v1032
    %v2580 = vunpack.c.l.bf16 %v1033
    %v2581 = vunpack.c.h.bf16 %v1033
    %v2582 = vunpack.c.l.bf16 %v1034
    %v2583 = vunpack.c.h.bf16 %v1034
    %v2584 = vunpack.c.l.bf16 %v1035
    %v2585 = vunpack.c.h.bf16 %v1035
    %v2586 = vunpack.c.l.bf16 %v1036
    %v2587 = vunpack.c.h.bf16 %v1036
    %v2588 = vunpack.c.l.bf16 %v1037
    %v2589 = vunpack.c.h.bf16 %v1037
    %v2590 = vunpack.c.l.bf16 %v1038
    %v2591 = vunpack.c.h.bf16 %v1038
    %v2592 = vunpack.c.l.bf16 %v1039
    %v2593 = vunpack.c.h.bf16 %v1039
    %v2594 = vunpack.c.l.bf16 %v1040
    %v2595 = vunpack.c.h.bf16 %v1040
    %v2596 = vunpack.c.l.bf16 %v1041
    %v2597 = vunpack.c.h.bf16 %v1041
    %v2598 = vunpack.c.l.bf16 %v1042
    %v2599 = vunpack.c.h.bf16 %v1042
    %v2600 = vunpack.c.l.bf16 %v1043
    %v2601 = vunpack.c.h.bf16 %v1043
    %v2602 = vunpack.c.l.bf16 %v1044
    %v2603 = vunpack.c.h.bf16 %v1044
    %v2604 = vunpack.c.l.bf16 %v1045
    %v2605 = vunpack.c.h.bf16 %v1045
    %v2606 = vunpack.c.l.bf16 %v1046
    %v2607 = vunpack.c.h.bf16 %v1046
    %v2608 = vunpack.c.l.bf16 %v1047
    %v2609 = vunpack.c.h.bf16 %v1047
    %v2610 = vunpack.c.l.bf16 %v1048
    %v2611 = vunpack.c.h.bf16 %v1048
    %v2612 = vunpack.c.l.bf16 %v1049
    %v2613 = vunpack.c.h.bf16 %v1049
    %v2614 = vunpack.c.l.bf16 %v1050
    %v2615 = vunpack.c.h.bf16 %v1050
    %v2616 = vunpack.c.l.bf16 %v1051
    %v2617 = vunpack.c.h.bf16 %v1051
    %v2618 = vunpack.c.l.bf16 %v1052
    %v2619 = vunpack.c.h.bf16 %v1052
    %v2620 = vunpack.c.l.bf16 %v1053
    %v2621 = vunpack.c.h.bf16 %v1053
    %v2622 = vunpack.c.l.bf16 %v1054
    %v2623 = vunpack.c.h.bf16 %v1054
    %v2624 = vunpack.c.l.bf16 %v1055
    %v2625 = vunpack.c.h.bf16 %v1055
    %v2626 = vunpack.c.l.bf16 %v1056
    %v2627 = vunpack.c.h.bf16 %v1056
    %v2628 = vunpack.c.l.bf16 %v1057
    %v2629 = vunpack.c.h.bf16 %v1057
    %v2630 = vunpack.c.l.bf16 %v1058
    %v2631 = vunpack.c.h.bf16 %v1058
    %v2632 = vunpack.c.l.bf16 %v1059
    %v2633 = vunpack.c.h.bf16 %v1059
    %v2634 = vunpack.c.l.bf16 %v1060
    %v2635 = vunpack.c.h.bf16 %v1060
    %v2636 = vunpack.c.l.bf16 %v1061
    %v2637 = vunpack.c.h.bf16 %v1061
    %v2638 = vunpack.c.l.bf16 %v1062
    %v2639 = vunpack.c.h.bf16 %v1062
    %v2640 = vunpack.c.l.bf16 %v1063
    %v2641 = vunpack.c.h.bf16 %v1063
    %v2642 = vunpack.c.l.bf16 %v1064
    %v2643 = vunpack.c.h.bf16 %v1064
    %v2644 = vunpack.c.l.bf16 %v1065
    %v2645 = vunpack.c.h.bf16 %v1065
    %v2646 = vunpack.c.l.bf16 %v1066
    %v2647 = vunpack.c.h.bf16 %v1066
    %v2648 = vunpack.c.l.bf16 %v1067
    %v2649 = vunpack.c.h.bf16 %v1067
    %v2650 = vunpack.c.l.bf16 %v1068
    %v2651 = vunpack.c.h.bf16 %v1068
    %v2652 = vunpack.c.l.bf16 %v1069
    %v2653 = vunpack.c.h.bf16 %v1069
    %v2654 = vunpack.c.l.bf16 %v1070
    %v2655 = vunpack.c.h.bf16 %v1070
    %v2656 = vunpack.c.l.bf16 %v1071
    %v2657 = vunpack.c.h.bf16 %v1071
    %v2658 = vunpack.c.l.bf16 %v1072
    %v2659 = vunpack.c.h.bf16 %v1072
    %v2660 = vunpack.c.l.bf16 %v1073
    %v2661 = vunpack.c.h.bf16 %v1073
    %v2662 = vunpack.c.l.bf16 %v1074
    %v2663 = vunpack.c.h.bf16 %v1074
    %v2664 = vunpack.c.l.bf16 %v1075
    %v2665 = vunpack.c.h.bf16 %v1075
    %v2666 = vunpack.c.l.bf16 %v1076
    %v2667 = vunpack.c.h.bf16 %v1076
    %v2668 = vunpack.c.l.bf16 %v1077
    %v2669 = vunpack.c.h.bf16 %v1077
    %v2670 = vunpack.c.l.bf16 %v1078
    %v2671 = vunpack.c.h.bf16 %v1078
    %v2672 = vunpack.c.l.bf16 %v1079
    %v2673 = vunpack.c.h.bf16 %v1079
    %v2674 = vunpack.c.l.bf16 %v1080
    %v2675 = vunpack.c.h.bf16 %v1080
    %v2676 = vunpack.c.l.bf16 %v1081
    %v2677 = vunpack.c.h.bf16 %v1081
    %v2678 = vunpack.c.l.bf16 %v1082
    %v2679 = vunpack.c.h.bf16 %v1082
    %v2680 = vunpack.c.l.bf16 %v1083
    %v2681 = vunpack.c.h.bf16 %v1083
    %v2682 = vunpack.c.l.bf16 %v1084
    %v2683 = vunpack.c.h.bf16 %v1084
    %v2684 = vunpack.c.l.bf16 %v1085
    %v2685 = vunpack.c.h.bf16 %v1085
    %v2686 = vunpack.c.l.bf16 %v1086
    %v2687 = vunpack.c.h.bf16 %v1086
    %v2688 = vunpack.c.l.bf16 %v1087
    %v2689 = vunpack.c.h.bf16 %v1087
    %v2690 = vunpack.c.l.bf16 %v1088
    %v2691 = vunpack.c.h.bf16 %v1088
    %v2692 = vunpack.c.l.bf16 %v1089
    %v2693 = vunpack.c.h.bf16 %v1089
    %v2694 = vunpack.c.l.bf16 %v1090
    %v2695 = vunpack.c.h.bf16 %v1090
    %v2696 = vunpack.c.l.bf16 %v1091
    %v2697 = vunpack.c.h.bf16 %v1091
    %v2698 = vunpack.c.l.bf16 %v1092
    %v2699 = vunpack.c.h.bf16 %v1092
    %v2700 = vunpack.c.l.bf16 %v1093
    %v2701 = vunpack.c.h.bf16 %v1093
    %v2702 = vunpack.c.l.bf16 %v1094
    %v2703 = vunpack.c.h.bf16 %v1094
    %v2704 = vunpack.c.l.bf16 %v1095
    %v2705 = vunpack.c.h.bf16 %v1095
    %v2706 = vunpack.c.l.bf16 %v1096
    %v2707 = vunpack.c.h.bf16 %v1096
    %v2708 = vunpack.c.l.bf16 %v1097
    %v2709 = vunpack.c.h.bf16 %v1097
    %v2710 = vunpack.c.l.bf16 %v1098
    %v2711 = vunpack.c.h.bf16 %v1098
    %v2712 = vunpack.c.l.bf16 %v1099
    %v2713 = vunpack.c.h.bf16 %v1099
    %v2714 = vunpack.c.l.bf16 %v1100
    %v2715 = vunpack.c.h.bf16 %v1100
    %v2716 = vunpack.c.l.bf16 %v1101
    %v2717 = vunpack.c.h.bf16 %v1101
    %v2718 = vunpack.c.l.bf16 %v1102
    %v2719 = vunpack.c.h.bf16 %v1102
    %v2720 = vunpack.c.l.bf16 %v1103
    %v2721 = vunpack.c.h.bf16 %v1103
    %v2722 = vunpack.c.l.bf16 %v1104
    %v2723 = vunpack.c.h.bf16 %v1104
    %v2724 = vunpack.c.l.bf16 %v1105
    %v2725 = vunpack.c.h.bf16 %v1105
    %v2726 = vunpack.c.l.bf16 %v1106
    %v2727 = vunpack.c.h.bf16 %v1106
    %v2728 = vunpack.c.l.bf16 %v1107
    %v2729 = vunpack.c.h.bf16 %v1107
    %v2730 = vunpack.c.l.bf16 %v1108
    %v2731 = vunpack.c.h.bf16 %v1108
    %v2732 = vunpack.c.l.bf16 %v1109
    %v2733 = vunpack.c.h.bf16 %v1109
    %v2734 = vunpack.c.l.bf16 %v1110
    %v2735 = vunpack.c.h.bf16 %v1110
    %v2736 = vunpack.c.l.bf16 %v1111
    %v2737 = vunpack.c.h.bf16 %v1111
    %v2738 = vunpack.c.l.bf16 %v1112
    %v2739 = vunpack.c.h.bf16 %v1112
    %v2740 = vunpack.c.l.bf16 %v1113
    %v2741 = vunpack.c.h.bf16 %v1113
    %v2742 = vunpack.c.l.bf16 %v1114
    %v2743 = vunpack.c.h.bf16 %v1114
    %v2744 = vunpack.c.l.bf16 %v1115
    %v2745 = vunpack.c.h.bf16 %v1115
    %v2746 = vunpack.c.l.bf16 %v1116
    %v2747 = vunpack.c.h.bf16 %v1116
    %v2748 = vunpack.c.l.bf16 %v1117
    %v2749 = vunpack.c.h.bf16 %v1117
    %v2750 = vunpack.c.l.bf16 %v1118
    %v2751 = vunpack.c.h.bf16 %v1118
    %v2752 = vunpack.c.l.bf16 %v1119
    %v2753 = vunpack.c.h.bf16 %v1119
    %v2754 = vunpack.c.l.bf16 %v1120
    %v2755 = vunpack.c.h.bf16 %v1120
    %v2756 = vunpack.c.l.bf16 %v1121
    %v2757 = vunpack.c.h.bf16 %v1121
    %v2758 = vunpack.c.l.bf16 %v1122
    %v2759 = vunpack.c.h.bf16 %v1122
    %v2760 = vunpack.c.l.bf16 %v1123
    %v2761 = vunpack.c.h.bf16 %v1123
    %v2762 = vunpack.c.l.bf16 %v1124
    %v2763 = vunpack.c.h.bf16 %v1124
    %v2764 = vunpack.c.l.bf16 %v1125
    %v2765 = vunpack.c.h.bf16 %v1125
    %v2766 = vunpack.c.l.bf16 %v1126
    %v2767 = vunpack.c.h.bf16 %v1126
    %v2768 = vunpack.c.l.bf16 %v1127
    %v2769 = vunpack.c.h.bf16 %v1127
    %v2770 = vunpack.c.l.bf16 %v1128
    %v2771 = vunpack.c.h.bf16 %v1128
    %v2772 = vunpack.c.l.bf16 %v1129
    %v2773 = vunpack.c.h.bf16 %v1129
    %v2774 = vunpack.c.l.bf16 %v1130
    %v2775 = vunpack.c.h.bf16 %v1130
    %v2776 = vunpack.c.l.bf16 %v1131
    %v2777 = vunpack.c.h.bf16 %v1131
    %v2778 = vunpack.c.l.bf16 %v1132
    %v2779 = vunpack.c.h.bf16 %v1132
    %v2780 = vunpack.c.l.bf16 %v1133
    %v2781 = vunpack.c.h.bf16 %v1133
    %v2782 = vunpack.c.l.bf16 %v1134
    %v2783 = vunpack.c.h.bf16 %v1134
    %v2784 = vunpack.c.l.bf16 %v1135
    %v2785 = vunpack.c.h.bf16 %v1135
    %v2786 = vunpack.c.l.bf16 %v1136
    %v2787 = vunpack.c.h.bf16 %v1136
    %v2788 = vunpack.c.l.bf16 %v1137
    %v2789 = vunpack.c.h.bf16 %v1137
    %v2790 = vunpack.c.l.bf16 %v1138
    %v2791 = vunpack.c.h.bf16 %v1138
    %v2792 = vunpack.c.l.bf16 %v1139
    %v2793 = vunpack.c.h.bf16 %v1139
    %v2794 = vunpack.c.l.bf16 %v1140
    %v2795 = vunpack.c.h.bf16 %v1140
    %v2796 = vunpack.c.l.bf16 %v1141
    %v2797 = vunpack.c.h.bf16 %v1141
    %v2798 = vunpack.c.l.bf16 %v1142
    %v2799 = vunpack.c.h.bf16 %v1142
    %v2800 = vunpack.c.l.bf16 %v1143
    %v2801 = vunpack.c.h.bf16 %v1143
    %v2802 = vunpack.c.l.bf16 %v1144
    %v2803 = vunpack.c.h.bf16 %v1144
    %v2804 = vunpack.c.l.bf16 %v1145
    %v2805 = vunpack.c.h.bf16 %v1145
    %v2806 = vunpack.c.l.bf16 %v1146
    %v2807 = vunpack.c.h.bf16 %v1146
    %v2808 = vunpack.c.l.bf16 %v1147
    %v2809 = vunpack.c.h.bf16 %v1147
    %v2810 = vunpack.c.l.bf16 %v1148
    %v2811 = vunpack.c.h.bf16 %v1148
    %v2812 = vunpack.c.l.bf16 %v1149
    %v2813 = vunpack.c.h.bf16 %v1149
    %v2814 = vunpack.c.l.bf16 %v1150
    %v2815 = vunpack.c.h.bf16 %v1150
    %v2816 = vunpack.c.l.bf16 %v1151
    %v2817 = vunpack.c.h.bf16 %v1151
    %v2818 = vunpack.c.l.bf16 %v1152
    %v2819 = vunpack.c.h.bf16 %v1152
    %v2820 = vunpack.c.l.bf16 %v1153
    %v2821 = vunpack.c.h.bf16 %v1153
    %v2822 = vunpack.c.l.bf16 %v1154
    %v2823 = vunpack.c.h.bf16 %v1154
    %v2824 = vunpack.c.l.bf16 %v1155
    %v2825 = vunpack.c.h.bf16 %v1155
    %v2826 = vunpack.c.l.bf16 %v1156
    %v2827 = vunpack.c.h.bf16 %v1156
    %v2828 = vunpack.c.l.bf16 %v1157
    %v2829 = vunpack.c.h.bf16 %v1157
    %v2830 = vunpack.c.l.bf16 %v1158
    %v2831 = vunpack.c.h.bf16 %v1158
    %v2832 = vunpack.c.l.bf16 %v1159
    %v2833 = vunpack.c.h.bf16 %v1159
    %v2834 = vunpack.c.l.bf16 %v1160
    %v2835 = vunpack.c.h.bf16 %v1160
    %v2836 = vunpack.c.l.bf16 %v1161
    %v2837 = vunpack.c.h.bf16 %v1161
    %v2838 = vunpack.c.l.bf16 %v1162
    %v2839 = vunpack.c.h.bf16 %v1162
    %v2840 = vunpack.c.l.bf16 %v1163
    %v2841 = vunpack.c.h.bf16 %v1163
    %v2842 = vunpack.c.l.bf16 %v1164
    %v2843 = vunpack.c.h.bf16 %v1164
    %v2844 = vunpack.c.l.bf16 %v1165
    %v2845 = vunpack.c.h.bf16 %v1165
    %v2846 = vunpack.c.l.bf16 %v1166
    %v2847 = vunpack.c.h.bf16 %v1166
    %v2848 = vunpack.c.l.bf16 %v1167
    %v2849 = vunpack.c.h.bf16 %v1167
    %v2850 = vunpack.c.l.bf16 %v1168
    %v2851 = vunpack.c.h.bf16 %v1168
    %v2852 = vunpack.c.l.bf16 %v1169
    %v2853 = vunpack.c.h.bf16 %v1169
    %v2854 = vunpack.c.l.bf16 %v1170
    %v2855 = vunpack.c.h.bf16 %v1170
    %v2856 = vunpack.c.l.bf16 %v1171
    %v2857 = vunpack.c.h.bf16 %v1171
    %v2858 = vunpack.c.l.bf16 %v1172
    %v2859 = vunpack.c.h.bf16 %v1172
    %v2860 = vunpack.c.l.bf16 %v1173
    %v2861 = vunpack.c.h.bf16 %v1173
    %v2862 = vunpack.c.l.bf16 %v1174
    %v2863 = vunpack.c.h.bf16 %v1174
    %v2864 = vunpack.c.l.bf16 %v1175
    %v2865 = vunpack.c.h.bf16 %v1175
    %v2866 = vunpack.c.l.bf16 %v1176
    %v2867 = vunpack.c.h.bf16 %v1176
    %v2868 = vunpack.c.l.bf16 %v1177
    %v2869 = vunpack.c.h.bf16 %v1177
    %v2870 = vunpack.c.l.bf16 %v1178
    %v2871 = vunpack.c.h.bf16 %v1178
    %v2872 = vunpack.c.l.bf16 %v1179
    %v2873 = vunpack.c.h.bf16 %v1179
    %v2874 = vunpack.c.l.bf16 %v1180
    %v2875 = vunpack.c.h.bf16 %v1180
    %v2876 = vunpack.c.l.bf16 %v1181
    %v2877 = vunpack.c.h.bf16 %v1181
    %v2878 = vunpack.c.l.bf16 %v1182
    %v2879 = vunpack.c.h.bf16 %v1182
    %v2880 = vunpack.c.l.bf16 %v1183
    %v2881 = vunpack.c.h.bf16 %v1183
    %v2882 = vunpack.c.l.bf16 %v1184
    %v2883 = vunpack.c.h.bf16 %v1184
    %v2884 = vunpack.c.l.bf16 %v1185
    %v2885 = vunpack.c.h.bf16 %v1185
    %v2886 = vunpack.c.l.bf16 %v1186
    %v2887 = vunpack.c.h.bf16 %v1186
    %v2888 = vunpack.c.l.bf16 %v1187
    %v2889 = vunpack.c.h.bf16 %v1187
    %v2890 = vunpack.c.l.bf16 %v1188
    %v2891 = vunpack.c.h.bf16 %v1188
    %v2892 = vunpack.c.l.bf16 %v1189
    %v2893 = vunpack.c.h.bf16 %v1189
    %v2894 = vunpack.c.l.bf16 %v1190
    %v2895 = vunpack.c.h.bf16 %v1190
    %v2896 = vunpack.c.l.bf16 %v1191
    %v2897 = vunpack.c.h.bf16 %v1191
    %v2898 = vunpack.c.l.bf16 %v1192
    %v2899 = vunpack.c.h.bf16 %v1192
    %v2900 = vunpack.c.l.bf16 %v1193
    %v2901 = vunpack.c.h.bf16 %v1193
    %v2902 = vunpack.c.l.bf16 %v1194
    %v2903 = vunpack.c.h.bf16 %v1194
    %v2904 = vunpack.c.l.bf16 %v1195
    %v2905 = vunpack.c.h.bf16 %v1195
    %v2906 = vunpack.c.l.bf16 %v1196
    %v2907 = vunpack.c.h.bf16 %v1196
    %v2908 = vunpack.c.l.bf16 %v1197
    %v2909 = vunpack.c.h.bf16 %v1197
    %v2910 = vunpack.c.l.bf16 %v1198
    %v2911 = vunpack.c.h.bf16 %v1198
    %v2912 = vunpack.c.l.bf16 %v1199
    %v2913 = vunpack.c.h.bf16 %v1199
    %v2914 = vunpack.c.l.bf16 %v1200
    %v2915 = vunpack.c.h.bf16 %v1200
    %v2916 = vunpack.c.l.bf16 %v1201
    %v2917 = vunpack.c.h.bf16 %v1201
    %v2918 = vunpack.c.l.bf16 %v1202
    %v2919 = vunpack.c.h.bf16 %v1202
    %v2920 = vunpack.c.l.bf16 %v1203
    %v2921 = vunpack.c.h.bf16 %v1203
    %v2922 = vunpack.c.l.bf16 %v1204
    %v2923 = vunpack.c.h.bf16 %v1204
    %v2924 = vunpack.c.l.bf16 %v1205
    %v2925 = vunpack.c.h.bf16 %v1205
    %v2926 = vunpack.c.l.bf16 %v1206
    %v2927 = vunpack.c.h.bf16 %v1206
    %v2928 = vunpack.c.l.bf16 %v1207
    %v2929 = vunpack.c.h.bf16 %v1207
    %v2930 = vunpack.c.l.bf16 %v1208
    %v2931 = vunpack.c.h.bf16 %v1208
    %v2932 = vunpack.c.l.bf16 %v1209
    %v2933 = vunpack.c.h.bf16 %v1209
    %v2934 = vunpack.c.l.bf16 %v1210
    %v2935 = vunpack.c.h.bf16 %v1210
    %v2936 = vunpack.c.l.bf16 %v1211
    %v2937 = vunpack.c.h.bf16 %v1211
    %v2938 = vunpack.c.l.bf16 %v1212
    %v2939 = vunpack.c.h.bf16 %v1212
    %v2940 = vunpack.c.l.bf16 %v1213
    %v2941 = vunpack.c.h.bf16 %v1213
    %v2942 = vunpack.c.l.bf16 %v1214
    %v2943 = vunpack.c.h.bf16 %v1214
    %v2944 = vunpack.c.l.bf16 %v1215
    %v2945 = vunpack.c.h.bf16 %v1215
    %v2946 = vunpack.c.l.bf16 %v1216
    %v2947 = vunpack.c.h.bf16 %v1216
    %v2948 = vunpack.c.l.bf16 %v1217
    %v2949 = vunpack.c.h.bf16 %v1217
    %v2950 = vunpack.c.l.bf16 %v1218
    %v2951 = vunpack.c.h.bf16 %v1218
    %v2952 = vunpack.c.l.bf16 %v1219
    %v2953 = vunpack.c.h.bf16 %v1219
    %v2954 = vunpack.c.l.bf16 %v1220
    %v2955 = vunpack.c.h.bf16 %v1220
    %v2956 = vunpack.c.l.bf16 %v1221
    %v2957 = vunpack.c.h.bf16 %v1221
    %v2958 = vunpack.c.l.bf16 %v1222
    %v2959 = vunpack.c.h.bf16 %v1222
    %v2960 = vunpack.c.l.bf16 %v1223
    %v2961 = vunpack.c.h.bf16 %v1223
    %v2962 = vunpack.c.l.bf16 %v1224
    %v2963 = vunpack.c.h.bf16 %v1224
    %v2964 = vunpack.c.l.bf16 %v1225
    %v2965 = vunpack.c.h.bf16 %v1225
    %v2966 = vunpack.c.l.bf16 %v1226
    %v2967 = vunpack.c.h.bf16 %v1226
    %v2968 = vunpack.c.l.bf16 %v1227
    %v2969 = vunpack.c.h.bf16 %v1227
    %v2970 = vunpack.c.l.bf16 %v1228
    %v2971 = vunpack.c.h.bf16 %v1228
    %v2972 = vunpack.c.l.bf16 %v1229
    %v2973 = vunpack.c.h.bf16 %v1229
    %v2974 = vunpack.c.l.bf16 %v2206
    %v2975 = vunpack.c.h.bf16 %v2206
    %v2976 = vunpack.c.l.bf16 %v2207
    %v2977 = vunpack.c.h.bf16 %v2207
    %v2978 = vunpack.c.l.bf16 %v2208
    %v2979 = vunpack.c.h.bf16 %v2208
    %v2980 = vunpack.c.l.bf16 %v2209
    %v2981 = vunpack.c.h.bf16 %v2209
    %v2982 = vunpack.c.l.bf16 %v2210
    %v2983 = vunpack.c.h.bf16 %v2210
    %v2984 = vunpack.c.l.bf16 %v2211
    %v2985 = vunpack.c.h.bf16 %v2211
    %v2986 = vunpack.c.l.bf16 %v2212
    %v2987 = vunpack.c.h.bf16 %v2212
    %v2988 = vunpack.c.l.bf16 %v2213
    %v2989 = vunpack.c.h.bf16 %v2213
    %v2990 = vunpack.c.l.bf16 %v2214
    %v2991 = vunpack.c.h.bf16 %v2214
    %v2992 = vunpack.c.l.bf16 %v2215
    %v2993 = vunpack.c.h.bf16 %v2215
    %v2994 = vunpack.c.l.bf16 %v2216
    %v2995 = vunpack.c.h.bf16 %v2216
    %v2996 = vunpack.c.l.bf16 %v2217
    %v2997 = vunpack.c.h.bf16 %v2217
    %v2998 = vunpack.c.l.bf16 %v2218
    %v2999 = vunpack.c.h.bf16 %v2218
    %v3000 = vunpack.c.l.bf16 %v2219
    %v3001 = vunpack.c.h.bf16 %v2219
    %v3002 = vunpack.c.l.bf16 %v2220
    %v3003 = vunpack.c.h.bf16 %v2220
    %v3004 = vunpack.c.l.bf16 %v2221
    %v3005 = vunpack.c.h.bf16 %v2221
    %v3006 = vunpack.c.l.bf16 %v2222
    %v3007 = vunpack.c.h.bf16 %v2222
    %v3008 = vunpack.c.l.bf16 %v2223
    %v3009 = vunpack.c.h.bf16 %v2223
    %v3010 = vunpack.c.l.bf16 %v2224
    %v3011 = vunpack.c.h.bf16 %v2224
    %v3012 = vunpack.c.l.bf16 %v2225
    %v3013 = vunpack.c.h.bf16 %v2225
    %v3014 = vunpack.c.l.bf16 %v2226
    %v3015 = vunpack.c.h.bf16 %v2226
    %v3016 = vunpack.c.l.bf16 %v2227
    %v3017 = vunpack.c.h.bf16 %v2227
    %v3018 = vunpack.c.l.bf16 %v2228
    %v3019 = vunpack.c.h.bf16 %v2228
    %v3020 = vunpack.c.l.bf16 %v2229
    %v3021 = vunpack.c.h.bf16 %v2229
    %v3022 = vunpack.c.l.bf16 %v2230
    %v3023 = vunpack.c.h.bf16 %v2230
    %v3024 = vunpack.c.l.bf16 %v2231
    %v3025 = vunpack.c.h.bf16 %v2231
    %v3026 = vunpack.c.l.bf16 %v2232
    %v3027 = vunpack.c.h.bf16 %v2232
    %v3028 = vunpack.c.l.bf16 %v2233
    %v3029 = vunpack.c.h.bf16 %v2233
    %v3030 = vunpack.c.l.bf16 %v2234
    %v3031 = vunpack.c.h.bf16 %v2234
    %v3032 = vunpack.c.l.bf16 %v2235
    %v3033 = vunpack.c.h.bf16 %v2235
    %v3034 = vunpack.c.l.bf16 %v2236
    %v3035 = vunpack.c.h.bf16 %v2236
    %v3036 = vunpack.c.l.bf16 %v2237
    %v3037 = vunpack.c.h.bf16 %v2237
    %v3038 = vunpack.c.l.bf16 %v2238
    %v3039 = vunpack.c.h.bf16 %v2238
    %v3040 = vunpack.c.l.bf16 %v2239
    %v3041 = vunpack.c.h.bf16 %v2239
    %v3042 = vunpack.c.l.bf16 %v2240
    %v3043 = vunpack.c.h.bf16 %v2240
    %v3044 = vunpack.c.l.bf16 %v2241
    %v3045 = vunpack.c.h.bf16 %v2241
    %v3046 = vunpack.c.l.bf16 %v2242
    %v3047 = vunpack.c.h.bf16 %v2242
    %v3048 = vunpack.c.l.bf16 %v2243
    %v3049 = vunpack.c.h.bf16 %v2243
    %v3050 = vunpack.c.l.bf16 %v2244
    %v3051 = vunpack.c.h.bf16 %v2244
    %v3052 = vunpack.c.l.bf16 %v2245
    %v3053 = vunpack.c.h.bf16 %v2245
    %v3054 = vunpack.c.l.bf16 %v2246
    %v3055 = vunpack.c.h.bf16 %v2246
    %v3056 = vunpack.c.l.bf16 %v2247
    %v3057 = vunpack.c.h.bf16 %v2247
    %v3058 = vunpack.c.l.bf16 %v2248
    %v3059 = vunpack.c.h.bf16 %v2248
    %v3060 = vunpack.c.l.bf16 %v2249
    %v3061 = vunpack.c.h.bf16 %v2249
    %v3062 = vunpack.c.l.bf16 %v2250
    %v3063 = vunpack.c.h.bf16 %v2250
    %v3064 = vunpack.c.l.bf16 %v2251
    %v3065 = vunpack.c.h.bf16 %v2251
    %v3066 = vunpack.c.l.bf16 %v2252
    %v3067 = vunpack.c.h.bf16 %v2252
    %v3068 = vunpack.c.l.bf16 %v2253
    %v3069 = vunpack.c.h.bf16 %v2253
    %v3070 = vunpack.c.l.bf16 %v2254
    %v3071 = vunpack.c.h.bf16 %v2254
    %v3072 = vunpack.c.l.bf16 %v2255
    %v3073 = vunpack.c.h.bf16 %v2255
    %v3074 = vunpack.c.l.bf16 %v2256
    %v3075 = vunpack.c.h.bf16 %v2256
    %v3076 = vunpack.c.l.bf16 %v2257
    %v3077 = vunpack.c.h.bf16 %v2257
    %v3078 = vunpack.c.l.bf16 %v2258
    %v3079 = vunpack.c.h.bf16 %v2258
    %v3080 = vunpack.c.l.bf16 %v2259
    %v3081 = vunpack.c.h.bf16 %v2259
    %v3082 = vunpack.c.l.bf16 %v2260
    %v3083 = vunpack.c.h.bf16 %v2260
    %v3084 = vunpack.c.l.bf16 %v2261
    %v3085 = vunpack.c.h.bf16 %v2261
    %v3086 = vunpack.c.l.bf16 %v2262
    %v3087 = vunpack.c.h.bf16 %v2262
    %v3088 = vunpack.c.l.bf16 %v2263
    %v3089 = vunpack.c.h.bf16 %v2263
    %v3090 = vunpack.c.l.bf16 %v2264
    %v3091 = vunpack.c.h.bf16 %v2264
    %v3092 = vunpack.c.l.bf16 %v2265
    %v3093 = vunpack.c.h.bf16 %v2265
    %v3094 = vunpack.c.l.bf16 %v2266
    %v3095 = vunpack.c.h.bf16 %v2266
    %v3096 = vunpack.c.l.bf16 %v2267
    %v3097 = vunpack.c.h.bf16 %v2267
    %v3098 = vunpack.c.l.bf16 %v2268
    %v3099 = vunpack.c.h.bf16 %v2268
    %v3100 = vunpack.c.l.bf16 %v2269
    %v3101 = vunpack.c.h.bf16 %v2269
    %v3102 = vunpack.c.l.bf16 %v2270
    %v3103 = vunpack.c.h.bf16 %v2270
    %v3104 = vunpack.c.l.bf16 %v2271
    %v3105 = vunpack.c.h.bf16 %v2271
    %v3106 = vunpack.c.l.bf16 %v2272
    %v3107 = vunpack.c.h.bf16 %v2272
    %v3108 = vunpack.c.l.bf16 %v2273
    %v3109 = vunpack.c.h.bf16 %v2273
    %v3110 = vunpack.c.l.bf16 %v2274
    %v3111 = vunpack.c.h.bf16 %v2274
    %v3112 = vunpack.c.l.bf16 %v2275
    %v3113 = vunpack.c.h.bf16 %v2275
    %v3114 = vunpack.c.l.bf16 %v2276
    %v3115 = vunpack.c.h.bf16 %v2276
    %v3116 = vunpack.c.l.bf16 %v2277
    %v3117 = vunpack.c.h.bf16 %v2277
    %v3118 = vunpack.c.l.bf16 %v2278
    %v3119 = vunpack.c.h.bf16 %v2278
    %v3120 = vunpack.c.l.bf16 %v2279
    %v3121 = vunpack.c.h.bf16 %v2279
    %v3122 = vunpack.c.l.bf16 %v2280
    %v3123 = vunpack.c.h.bf16 %v2280
    %v3124 = vunpack.c.l.bf16 %v2281
    %v3125 = vunpack.c.h.bf16 %v2281
    %v3126 = vunpack.c.l.bf16 %v2282
    %v3127 = vunpack.c.h.bf16 %v2282
    %v3128 = vunpack.c.l.bf16 %v2283
    %v3129 = vunpack.c.h.bf16 %v2283
    %v3130 = vunpack.c.l.bf16 %v2284
    %v3131 = vunpack.c.h.bf16 %v2284
    %v3132 = vunpack.c.l.bf16 %v2285
    %v3133 = vunpack.c.h.bf16 %v2285
    %v3134 = vunpack.c.l.bf16 %v2286
    %v3135 = vunpack.c.h.bf16 %v2286
    %v3136 = vunpack.c.l.bf16 %v2287
    %v3137 = vunpack.c.h.bf16 %v2287
    %v3138 = vunpack.c.l.bf16 %v2288
    %v3139 = vunpack.c.h.bf16 %v2288
    %v3140 = vunpack.c.l.bf16 %v2289
    %v3141 = vunpack.c.h.bf16 %v2289
    %v3142 = vunpack.c.l.bf16 %v2290
    %v3143 = vunpack.c.h.bf16 %v2290
    %v3144 = vunpack.c.l.bf16 %v2291
    %v3145 = vunpack.c.h.bf16 %v2291
    %v3146 = vunpack.c.l.bf16 %v2292
    %v3147 = vunpack.c.h.bf16 %v2292
    %v3148 = vunpack.c.l.bf16 %v2293
    %v3149 = vunpack.c.h.bf16 %v2293
    %v3150 = vunpack.c.l.bf16 %v2294
    %v3151 = vunpack.c.h.bf16 %v2294
    %v3152 = vunpack.c.l.bf16 %v2295
    %v3153 = vunpack.c.h.bf16 %v2295
    %v3154 = vunpack.c.l.bf16 %v2296
    %v3155 = vunpack.c.h.bf16 %v2296
    %v3156 = vunpack.c.l.bf16 %v2297
    %v3157 = vunpack.c.h.bf16 %v2297
    %v3158 = vunpack.c.l.bf16 %v2298
    %v3159 = vunpack.c.h.bf16 %v2298
    %v3160 = vunpack.c.l.bf16 %v2299
    %v3161 = vunpack.c.h.bf16 %v2299
    %v3162 = vunpack.c.l.bf16 %v2300
    %v3163 = vunpack.c.h.bf16 %v2300
    %v3164 = vunpack.c.l.bf16 %v2301
    %v3165 = vunpack.c.h.bf16 %v2301
    %v3166 = vunpack.c.l.bf16 %v2302
    %v3167 = vunpack.c.h.bf16 %v2302
    %v3168 = vunpack.c.l.bf16 %v2303
    %v3169 = vunpack.c.h.bf16 %v2303
    %v3170 = vunpack.c.l.bf16 %v2304
    %v3171 = vunpack.c.h.bf16 %v2304
    %v3172 = vunpack.c.l.bf16 %v2305
    %v3173 = vunpack.c.h.bf16 %v2305
    %v3174 = vunpack.c.l.bf16 %v2306
    %v3175 = vunpack.c.h.bf16 %v2306
    %v3176 = vunpack.c.l.bf16 %v2307
    %v3177 = vunpack.c.h.bf16 %v2307
    %v3178 = vunpack.c.l.bf16 %v2308
    %v3179 = vunpack.c.h.bf16 %v2308
    %v3180 = vunpack.c.l.bf16 %v2309
    %v3181 = vunpack.c.h.bf16 %v2309
    %v3182 = vunpack.c.l.bf16 %v2310
    %v3183 = vunpack.c.h.bf16 %v2310
    %v3184 = vunpack.c.l.bf16 %v2311
    %v3185 = vunpack.c.h.bf16 %v2311
    %v3186 = vunpack.c.l.bf16 %v2312
    %v3187 = vunpack.c.h.bf16 %v2312
    %v3188 = vunpack.c.l.bf16 %v2313
    %v3189 = vunpack.c.h.bf16 %v2313
    %v3190 = vunpack.c.l.bf16 %v2314
    %v3191 = vunpack.c.h.bf16 %v2314
    %v3192 = vunpack.c.l.bf16 %v2315
    %v3193 = vunpack.c.h.bf16 %v2315
    %v3194 = vunpack.c.l.bf16 %v2316
    %v3195 = vunpack.c.h.bf16 %v2316
    %v3196 = vunpack.c.l.bf16 %v2317
    %v3197 = vunpack.c.h.bf16 %v2317
    %v3198 = vunpack.c.l.bf16 %v2318
    %v3199 = vunpack.c.h.bf16 %v2318
    %v3200 = vunpack.c.l.bf16 %v2319
    %v3201 = vunpack.c.h.bf16 %v2319
    %v3202 = vunpack.c.l.bf16 %v2320
    %v3203 = vunpack.c.h.bf16 %v2320
    %v3204 = vunpack.c.l.bf16 %v2321
    %v3205 = vunpack.c.h.bf16 %v2321
    %v3206 = vunpack.c.l.bf16 %v2322
    %v3207 = vunpack.c.h.bf16 %v2322
    %v3208 = vunpack.c.l.bf16 %v2323
    %v3209 = vunpack.c.h.bf16 %v2323
    %v3210 = vunpack.c.l.bf16 %v2324
    %v3211 = vunpack.c.h.bf16 %v2324
    %v3212 = vunpack.c.l.bf16 %v2325
    %v3213 = vunpack.c.h.bf16 %v2325
    %v3214 = vunpack.c.l.bf16 %v2326
    %v3215 = vunpack.c.h.bf16 %v2326
    %v3216 = vunpack.c.l.bf16 %v2327
    %v3217 = vunpack.c.h.bf16 %v2327
    %v3218 = vunpack.c.l.bf16 %v2328
    %v3219 = vunpack.c.h.bf16 %v2328
    %v3220 = vunpack.c.l.bf16 %v2329
    %v3221 = vunpack.c.h.bf16 %v2329
    %v3222 = vunpack.c.l.bf16 %v2330
    %v3223 = vunpack.c.h.bf16 %v2330
    %v3224 = vunpack.c.l.bf16 %v2331
    %v3225 = vunpack.c.h.bf16 %v2331
    %v3226 = vunpack.c.l.bf16 %v2332
    %v3227 = vunpack.c.h.bf16 %v2332
    %v3228 = vunpack.c.l.bf16 %v2333
    %v3229 = vunpack.c.h.bf16 %v2333
    %v3230 = vunpack.c.l.bf16 %v2334
    %v3231 = vunpack.c.h.bf16 %v2334
    %v3232 = vunpack.c.l.bf16 %v2335
    %v3233 = vunpack.c.h.bf16 %v2335
    %v3234 = vunpack.c.l.bf16 %v2336
    %v3235 = vunpack.c.h.bf16 %v2336
    %v3236 = vunpack.c.l.bf16 %v2337
    %v3237 = vunpack.c.h.bf16 %v2337
    %v3238 = vunpack.c.l.bf16 %v2338
    %v3239 = vunpack.c.h.bf16 %v2338
    %v3240 = vunpack.c.l.bf16 %v2339
    %v3241 = vunpack.c.h.bf16 %v2339
    %v3242 = vunpack.c.l.bf16 %v2340
    %v3243 = vunpack.c.h.bf16 %v2340
    %v3244 = vunpack.c.l.bf16 %v2341
    %v3245 = vunpack.c.h.bf16 %v2341
    %v3246 = vunpack.c.l.bf16 %v2342
    %v3247 = vunpack.c.h.bf16 %v2342
    %v3248 = vunpack.c.l.bf16 %v2343
    %v3249 = vunpack.c.h.bf16 %v2343
    %v3250 = vunpack.c.l.bf16 %v2344
    %v3251 = vunpack.c.h.bf16 %v2344
    %v3252 = vunpack.c.l.bf16 %v2345
    %v3253 = vunpack.c.h.bf16 %v2345
    %v3254 = vunpack.c.l.bf16 %v2346
    %v3255 = vunpack.c.h.bf16 %v2346
    %v3256 = vunpack.c.l.bf16 %v2347
    %v3257 = vunpack.c.h.bf16 %v2347
    %v3258 = vunpack.c.l.bf16 %v2348
    %v3259 = vunpack.c.h.bf16 %v2348
    %v3260 = vunpack.c.l.bf16 %v2349
    %v3261 = vunpack.c.h.bf16 %v2349
    %v3262 = vunpack.c.l.bf16 %v2350
    %v3263 = vunpack.c.h.bf16 %v2350
    %v3264 = vunpack.c.l.bf16 %v2351
    %v3265 = vunpack.c.h.bf16 %v2351
    %v3266 = vunpack.c.l.bf16 %v2352
    %v3267 = vunpack.c.h.bf16 %v2352
    %v3268 = vunpack.c.l.bf16 %v2353
    %v3269 = vunpack.c.h.bf16 %v2353
    %v3270 = vunpack.c.l.bf16 %v2354
    %v3271 = vunpack.c.h.bf16 %v2354
    %v3272 = vunpack.c.l.bf16 %v2355
    %v3273 = vunpack.c.h.bf16 %v2355
    %v3274 = vunpack.c.l.bf16 %v2356
    %v3275 = vunpack.c.h.bf16 %v2356
    %v3276 = vunpack.c.l.bf16 %v2357
    %v3277 = vunpack.c.h.bf16 %v2357
    %v3278 = vunpack.c.l.bf16 %v2358
    %v3279 = vunpack.c.h.bf16 %v2358
    %v3280 = vunpack.c.l.bf16 %v2359
    %v3281 = vunpack.c.h.bf16 %v2359
    %v3282 = vunpack.c.l.bf16 %v2360
    %v3283 = vunpack.c.h.bf16 %v2360
    %v3284 = vunpack.c.l.bf16 %v2361
    %v3285 = vunpack.c.h.bf16 %v2361
    %v3286 = vunpack.c.l.bf16 %v2362
    %v3287 = vunpack.c.h.bf16 %v2362
    %v3288 = vunpack.c.l.bf16 %v2363
    %v3289 = vunpack.c.h.bf16 %v2363
    %v3290 = vunpack.c.l.bf16 %v2364
    %v3291 = vunpack.c.h.bf16 %v2364
    %v3292 = vunpack.c.l.bf16 %v2365
    %v3293 = vunpack.c.h.bf16 %v2365
    %v3294 = vunpack.c.l.bf16 %v2366
    %v3295 = vunpack.c.h.bf16 %v2366
    %v3296 = vunpack.c.l.bf16 %v2367
    %v3297 = vunpack.c.h.bf16 %v2367
    %v3298 = vunpack.c.l.bf16 %v2368
    %v3299 = vunpack.c.h.bf16 %v2368
    %v3300 = vunpack.c.l.bf16 %v2369
    %v3301 = vunpack.c.h.bf16 %v2369
    %v3302 = vunpack.c.l.bf16 %v2370
    %v3303 = vunpack.c.h.bf16 %v2370
    %v3304 = vunpack.c.l.bf16 %v2371
    %v3305 = vunpack.c.h.bf16 %v2371
    %v3306 = vunpack.c.l.bf16 %v2372
    %v3307 = vunpack.c.h.bf16 %v2372
    %v3308 = vunpack.c.l.bf16 %v2373
    %v3309 = vunpack.c.h.bf16 %v2373
    %v3310 = vunpack.c.l.bf16 %v2374
    %v3311 = vunpack.c.h.bf16 %v2374
    %v3312 = vunpack.c.l.bf16 %v2375
    %v3313 = vunpack.c.h.bf16 %v2375
    %v3314 = vunpack.c.l.bf16 %v2376
    %v3315 = vunpack.c.h.bf16 %v2376
    %v3316 = vunpack.c.l.bf16 %v2377
    %v3317 = vunpack.c.h.bf16 %v2377
    %v3318 = vunpack.c.l.bf16 %v2378
    %v3319 = vunpack.c.h.bf16 %v2378
    %v3320 = vunpack.c.l.bf16 %v2379
    %v3321 = vunpack.c.h.bf16 %v2379
    %v3322 = vunpack.c.l.bf16 %v2380
    %v3323 = vunpack.c.h.bf16 %v2380
    %v3324 = vunpack.c.l.bf16 %v2381
    %v3325 = vunpack.c.h.bf16 %v2381
    %v3326 = vunpack.c.l.bf16 %v2382
    %v3327 = vunpack.c.h.bf16 %v2382
    %v3328 = vunpack.c.l.bf16 %v2383
    %v3329 = vunpack.c.h.bf16 %v2383
    %v3330 = vunpack.c.l.bf16 %v2384
    %v3331 = vunpack.c.h.bf16 %v2384
    %v3332 = vunpack.c.l.bf16 %v2385
    %v3333 = vunpack.c.h.bf16 %v2385
    %v3334 = vunpack.c.l.bf16 %v2386
    %v3335 = vunpack.c.h.bf16 %v2386
    %v3336 = vunpack.c.l.bf16 %v2387
    %v3337 = vunpack.c.h.bf16 %v2387
    %v3338 = vunpack.c.l.bf16 %v2388
    %v3339 = vunpack.c.h.bf16 %v2388
    %v3340 = vunpack.c.l.bf16 %v2389
    %v3341 = vunpack.c.h.bf16 %v2389
    %v3342 = vunpack.c.l.bf16 %v2390
    %v3343 = vunpack.c.h.bf16 %v2390
    %v3344 = vunpack.c.l.bf16 %v2391
    %v3345 = vunpack.c.h.bf16 %v2391
    %v3346 = vunpack.c.l.bf16 %v2392
    %v3347 = vunpack.c.h.bf16 %v2392
    %v3348 = vunpack.c.l.bf16 %v2393
    %v3349 = vunpack.c.h.bf16 %v2393
    %v3350 = vunpack.c.l.bf16 %v2394
    %v3351 = vunpack.c.h.bf16 %v2394
    %v3352 = vunpack.c.l.bf16 %v2395
    %v3353 = vunpack.c.h.bf16 %v2395
    %v3354 = vunpack.c.l.bf16 %v2396
    %v3355 = vunpack.c.h.bf16 %v2396
    %v3356 = vunpack.c.l.bf16 %v2397
    %v3357 = vunpack.c.h.bf16 %v2397
    %v3358 = vunpack.c.l.bf16 %v2398
    %v3359 = vunpack.c.h.bf16 %v2398
    %v3360 = vunpack.c.l.bf16 %v2399
    %v3361 = vunpack.c.h.bf16 %v2399
    %v3362 = vunpack.c.l.bf16 %v2400
    %v3363 = vunpack.c.h.bf16 %v2400
    %v3364 = vunpack.c.l.bf16 %v2401
    %v3365 = vunpack.c.h.bf16 %v2401
    %v3366 = vunpack.c.l.bf16 %v2402
    %v3367 = vunpack.c.h.bf16 %v2402
    %v3368 = vunpack.c.l.bf16 %v2403
    %v3369 = vunpack.c.h.bf16 %v2403
    %v3370 = vunpack.c.l.bf16 %v2404
    %v3371 = vunpack.c.h.bf16 %v2404
    %v3372 = vunpack.c.l.bf16 %v2405
    %v3373 = vunpack.c.h.bf16 %v2405
    %v3374 = vunpack.c.l.bf16 %v2406
    %v3375 = vunpack.c.h.bf16 %v2406
    %v3376 = vunpack.c.l.bf16 %v2407
    %v3377 = vunpack.c.h.bf16 %v2407
    %v3378 = vunpack.c.l.bf16 %v2408
    %v3379 = vunpack.c.h.bf16 %v2408
    %v3380 = vunpack.c.l.bf16 %v2409
    %v3381 = vunpack.c.h.bf16 %v2409
    %v3382 = vunpack.c.l.bf16 %v2410
    %v3383 = vunpack.c.h.bf16 %v2410
    %v3384 = vunpack.c.l.bf16 %v2411
    %v3385 = vunpack.c.h.bf16 %v2411
    %v3386 = vunpack.c.l.bf16 %v2412
    %v3387 = vunpack.c.h.bf16 %v2412
    %v3388 = vunpack.c.l.bf16 %v2413
    %v3389 = vunpack.c.h.bf16 %v2413
    %v3390 = vunpack.c.l.bf16 %v2414
    %v3391 = vunpack.c.h.bf16 %v2414
    %v3392 = vunpack.c.l.bf16 %v2415
    %v3393 = vunpack.c.h.bf16 %v2415
    %v3394 = vunpack.c.l.bf16 %v2416
    %v3395 = vunpack.c.h.bf16 %v2416
    %v3396 = vunpack.c.l.bf16 %v2417
    %v3397 = vunpack.c.h.bf16 %v2417
    %v3398 = vunpack.c.l.bf16 %v2418
    %v3399 = vunpack.c.h.bf16 %v2418
    %v3400 = vunpack.c.l.bf16 %v2419
    %v3401 = vunpack.c.h.bf16 %v2419
    %v3402 = vunpack.c.l.bf16 %v2420
    %v3403 = vunpack.c.h.bf16 %v2420
    %v3404 = vunpack.c.l.bf16 %v2421
    %v3405 = vunpack.c.h.bf16 %v2421
    %v3406 = vunpack.c.l.bf16 %v2422
    %v3407 = vunpack.c.h.bf16 %v2422
    %v3408 = vunpack.c.l.bf16 %v2423
    %v3409 = vunpack.c.h.bf16 %v2423
    %v3410 = vunpack.c.l.bf16 %v2424
    %v3411 = vunpack.c.h.bf16 %v2424
    %v3412 = vunpack.c.l.bf16 %v2425
    %v3413 = vunpack.c.h.bf16 %v2425
    %v3414 = vunpack.c.l.bf16 %v2426
    %v3415 = vunpack.c.h.bf16 %v2426
    %v3416 = vunpack.c.l.bf16 %v2427
    %v3417 = vunpack.c.h.bf16 %v2427
    %v3418 = vunpack.c.l.bf16 %v2428
    %v3419 = vunpack.c.h.bf16 %v2428
    %v3420 = vunpack.c.l.bf16 %v2429
    %v3421 = vunpack.c.h.bf16 %v2429
    %v3422 = vunpack.c.l.bf16 %v2430
    %v3423 = vunpack.c.h.bf16 %v2430
    %v3424 = vunpack.c.l.bf16 %v2431
    %v3425 = vunpack.c.h.bf16 %v2431
    %v3426 = vunpack.c.l.bf16 %v2432
    %v3427 = vunpack.c.h.bf16 %v2432
    %v3428 = vunpack.c.l.bf16 %v2433
    %v3429 = vunpack.c.h.bf16 %v2433
    %v3430 = vunpack.c.l.bf16 %v2434
    %v3431 = vunpack.c.h.bf16 %v2434
    %v3432 = vunpack.c.l.bf16 %v2435
    %v3433 = vunpack.c.h.bf16 %v2435
    %v3434 = vunpack.c.l.bf16 %v2436
    %v3435 = vunpack.c.h.bf16 %v2436
    %v3436 = vunpack.c.l.bf16 %v2437
    %v3437 = vunpack.c.h.bf16 %v2437
    %v3438 = vunpack.c.l.bf16 %v2438
    %v3439 = vunpack.c.h.bf16 %v2438
    %v3440 = vunpack.c.l.bf16 %v2439
    %v3441 = vunpack.c.h.bf16 %v2439
    %v3442 = vunpack.c.l.bf16 %v2440
    %v3443 = vunpack.c.h.bf16 %v2440
    %v3444 = vunpack.c.l.bf16 %v2441
    %v3445 = vunpack.c.h.bf16 %v2441
    %v3446 = vunpack.c.l.bf16 %v2442
    %v3447 = vunpack.c.h.bf16 %v2442
    %v3448 = vunpack.c.l.bf16 %v2443
    %v3449 = vunpack.c.h.bf16 %v2443
    %v3450 = vunpack.c.l.bf16 %v2444
    %v3451 = vunpack.c.h.bf16 %v2444
    %v3452 = vunpack.c.l.bf16 %v2445
    %v3453 = vunpack.c.h.bf16 %v2445
    %v3454 = vunpack.c.l.bf16 %v2446
    %v3455 = vunpack.c.h.bf16 %v2446
    %v3456 = vunpack.c.l.bf16 %v2447
    %v3457 = vunpack.c.h.bf16 %v2447
    %v3458 = vunpack.c.l.bf16 %v2448
    %v3459 = vunpack.c.h.bf16 %v2448
    %v3460 = vunpack.c.l.bf16 %v2449
    %v3461 = vunpack.c.h.bf16 %v2449
    %v3462 = vunpack.c.l.bf16 %v2450
    %v3463 = vunpack.c.h.bf16 %v2450
    %v3464 = vunpack.c.l.bf16 %v2451
    %v3465 = vunpack.c.h.bf16 %v2451
    %v3466 = vunpack.c.l.bf16 %v2452
    %v3467 = vunpack.c.h.bf16 %v2452
    %v3468 = vunpack.c.l.bf16 %v2453
    %v3469 = vunpack.c.h.bf16 %v2453
    %v3470 = vunpack.c.l.bf16 %v2454
    %v3471 = vunpack.c.h.bf16 %v2454
    %v3472 = vunpack.c.l.bf16 %v2455
    %v3473 = vunpack.c.h.bf16 %v2455
    %v3474 = vunpack.c.l.bf16 %v2456
    %v3475 = vunpack.c.h.bf16 %v2456
    %v3476 = vunpack.c.l.bf16 %v2457
    %v3477 = vunpack.c.h.bf16 %v2457
    %v3478 = vunpack.c.l.bf16 %v2458
    %v3479 = vunpack.c.h.bf16 %v2458
    %v3480 = vunpack.c.l.bf16 %v2459
    %v3481 = vunpack.c.h.bf16 %v2459
    %v3482 = vunpack.c.l.bf16 %v2460
    %v3483 = vunpack.c.h.bf16 %v2460
    %v3484 = vunpack.c.l.bf16 %v2461
    %v3485 = vunpack.c.h.bf16 %v2461
    %v3486 = vadd.f32 %v2462, %v2974
    %v3487 = vadd.f32 %v2463, %v2975
    %v3488 = vadd.f32 %v2464, %v2976
    %v3489 = vadd.f32 %v2465, %v2977
    %v3490 = vadd.f32 %v2466, %v2978
    %v3491 = vadd.f32 %v2467, %v2979
    %v3492 = vadd.f32 %v2468, %v2980
    %v3493 = vadd.f32 %v2469, %v2981
    %v3494 = vadd.f32 %v2470, %v2982
    %v3495 = vadd.f32 %v2471, %v2983
    %v3496 = vadd.f32 %v2472, %v2984
    %v3497 = vadd.f32 %v2473, %v2985
    %v3498 = vadd.f32 %v2474, %v2986
    %v3499 = vadd.f32 %v2475, %v2987
    %v3500 = vadd.f32 %v2476, %v2988
    %v3501 = vadd.f32 %v2477, %v2989
    %v3502 = vadd.f32 %v2478, %v2990
    %v3503 = vadd.f32 %v2479, %v2991
    %v3504 = vadd.f32 %v2480, %v2992
    %v3505 = vadd.f32 %v2481, %v2993
    %v3506 = vadd.f32 %v2482, %v2994
    %v3507 = vadd.f32 %v2483, %v2995
    %v3508 = vadd.f32 %v2484, %v2996
    %v3509 = vadd.f32 %v2485, %v2997
    %v3510 = vadd.f32 %v2486, %v2998
    %v3511 = vadd.f32 %v2487, %v2999
    %v3512 = vadd.f32 %v2488, %v3000
    %v3513 = vadd.f32 %v2489, %v3001
    %v3514 = vadd.f32 %v2490, %v3002
    %v3515 = vadd.f32 %v2491, %v3003
    %v3516 = vadd.f32 %v2492, %v3004
    %v3517 = vadd.f32 %v2493, %v3005
    %v3518 = vadd.f32 %v2494, %v3006
    %v3519 = vadd.f32 %v2495, %v3007
    %v3520 = vadd.f32 %v2496, %v3008
    %v3521 = vadd.f32 %v2497, %v3009
    %v3522 = vadd.f32 %v2498, %v3010
    %v3523 = vadd.f32 %v2499, %v3011
    %v3524 = vadd.f32 %v2500, %v3012
    %v3525 = vadd.f32 %v2501, %v3013
    %v3526 = vadd.f32 %v2502, %v3014
    %v3527 = vadd.f32 %v2503, %v3015
    %v3528 = vadd.f32 %v2504, %v3016
    %v3529 = vadd.f32 %v2505, %v3017
    %v3530 = vadd.f32 %v2506, %v3018
    %v3531 = vadd.f32 %v2507, %v3019
    %v3532 = vadd.f32 %v2508, %v3020
    %v3533 = vadd.f32 %v2509, %v3021
    %v3534 = vadd.f32 %v2510, %v3022
    %v3535 = vadd.f32 %v2511, %v3023
    %v3536 = vadd.f32 %v2512, %v3024
    %v3537 = vadd.f32 %v2513, %v3025
    %v3538 = vadd.f32 %v2514, %v3026
    %v3539 = vadd.f32 %v2515, %v3027
    %v3540 = vadd.f32 %v2516, %v3028
    %v3541 = vadd.f32 %v2517, %v3029
    %v3542 = vadd.f32 %v2518, %v3030
    %v3543 = vadd.f32 %v2519, %v3031
    %v3544 = vadd.f32 %v2520, %v3032
    %v3545 = vadd.f32 %v2521, %v3033
    %v3546 = vadd.f32 %v2522, %v3034
    %v3547 = vadd.f32 %v2523, %v3035
    %v3548 = vadd.f32 %v2524, %v3036
    %v3549 = vadd.f32 %v2525, %v3037
    %v3550 = vadd.f32 %v2526, %v3038
    %v3551 = vadd.f32 %v2527, %v3039
    %v3552 = vadd.f32 %v2528, %v3040
    %v3553 = vadd.f32 %v2529, %v3041
    %v3554 = vadd.f32 %v2530, %v3042
    %v3555 = vadd.f32 %v2531, %v3043
    %v3556 = vadd.f32 %v2532, %v3044
    %v3557 = vadd.f32 %v2533, %v3045
    %v3558 = vadd.f32 %v2534, %v3046
    %v3559 = vadd.f32 %v2535, %v3047
    %v3560 = vadd.f32 %v2536, %v3048
    %v3561 = vadd.f32 %v2537, %v3049
    %v3562 = vadd.f32 %v2538, %v3050
    %v3563 = vadd.f32 %v2539, %v3051
    %v3564 = vadd.f32 %v2540, %v3052
    %v3565 = vadd.f32 %v2541, %v3053
    %v3566 = vadd.f32 %v2542, %v3054
    %v3567 = vadd.f32 %v2543, %v3055
    %v3568 = vadd.f32 %v2544, %v3056
    %v3569 = vadd.f32 %v2545, %v3057
    %v3570 = vadd.f32 %v2546, %v3058
    %v3571 = vadd.f32 %v2547, %v3059
    %v3572 = vadd.f32 %v2548, %v3060
    %v3573 = vadd.f32 %v2549, %v3061
    %v3574 = vadd.f32 %v2550, %v3062
    %v3575 = vadd.f32 %v2551, %v3063
    %v3576 = vadd.f32 %v2552, %v3064
    %v3577 = vadd.f32 %v2553, %v3065
    %v3578 = vadd.f32 %v2554, %v3066
    %v3579 = vadd.f32 %v2555, %v3067
    %v3580 = vadd.f32 %v2556, %v3068
    %v3581 = vadd.f32 %v2557, %v3069
    %v3582 = vadd.f32 %v2558, %v3070
    %v3583 = vadd.f32 %v2559, %v3071
    %v3584 = vadd.f32 %v2560, %v3072
    %v3585 = vadd.f32 %v2561, %v3073
    %v3586 = vadd.f32 %v2562, %v3074
    %v3587 = vadd.f32 %v2563, %v3075
    %v3588 = vadd.f32 %v2564, %v3076
    %v3589 = vadd.f32 %v2565, %v3077
    %v3590 = vadd.f32 %v2566, %v3078
    %v3591 = vadd.f32 %v2567, %v3079
    %v3592 = vadd.f32 %v2568, %v3080
    %v3593 = vadd.f32 %v2569, %v3081
    %v3594 = vadd.f32 %v2570, %v3082
    %v3595 = vadd.f32 %v2571, %v3083
    %v3596 = vadd.f32 %v2572, %v3084
    %v3597 = vadd.f32 %v2573, %v3085
    %v3598 = vadd.f32 %v2574, %v3086
    %v3599 = vadd.f32 %v2575, %v3087
    %v3600 = vadd.f32 %v2576, %v3088
    %v3601 = vadd.f32 %v2577, %v3089
    %v3602 = vadd.f32 %v2578, %v3090
    %v3603 = vadd.f32 %v2579, %v3091
    %v3604 = vadd.f32 %v2580, %v3092
    %v3605 = vadd.f32 %v2581, %v3093
    %v3606 = vadd.f32 %v2582, %v3094
    %v3607 = vadd.f32 %v2583, %v3095
    %v3608 = vadd.f32 %v2584, %v3096
    %v3609 = vadd.f32 %v2585, %v3097
    %v3610 = vadd.f32 %v2586, %v3098
    %v3611 = vadd.f32 %v2587, %v3099
    %v3612 = vadd.f32 %v2588, %v3100
    %v3613 = vadd.f32 %v2589, %v3101
    %v3614 = vadd.f32 %v2590, %v3102
    %v3615 = vadd.f32 %v2591, %v3103
    %v3616 = vadd.f32 %v2592, %v3104
    %v3617 = vadd.f32 %v2593, %v3105
    %v3618 = vadd.f32 %v2594, %v3106
    %v3619 = vadd.f32 %v2595, %v3107
    %v3620 = vadd.f32 %v2596, %v3108
    %v3621 = vadd.f32 %v2597, %v3109
    %v3622 = vadd.f32 %v2598, %v3110
    %v3623 = vadd.f32 %v2599, %v3111
    %v3624 = vadd.f32 %v2600, %v3112
    %v3625 = vadd.f32 %v2601, %v3113
    %v3626 = vadd.f32 %v2602, %v3114
    %v3627 = vadd.f32 %v2603, %v3115
    %v3628 = vadd.f32 %v2604, %v3116
    %v3629 = vadd.f32 %v2605, %v3117
    %v3630 = vadd.f32 %v2606, %v3118
    %v3631 = vadd.f32 %v2607, %v3119
    %v3632 = vadd.f32 %v2608, %v3120
    %v3633 = vadd.f32 %v2609, %v3121
    %v3634 = vadd.f32 %v2610, %v3122
    %v3635 = vadd.f32 %v2611, %v3123
    %v3636 = vadd.f32 %v2612, %v3124
    %v3637 = vadd.f32 %v2613, %v3125
    %v3638 = vadd.f32 %v2614, %v3126
    %v3639 = vadd.f32 %v2615, %v3127
    %v3640 = vadd.f32 %v2616, %v3128
    %v3641 = vadd.f32 %v2617, %v3129
    %v3642 = vadd.f32 %v2618, %v3130
    %v3643 = vadd.f32 %v2619, %v3131
    %v3644 = vadd.f32 %v2620, %v3132
    %v3645 = vadd.f32 %v2621, %v3133
    %v3646 = vadd.f32 %v2622, %v3134
    %v3647 = vadd.f32 %v2623, %v3135
    %v3648 = vadd.f32 %v2624, %v3136
    %v3649 = vadd.f32 %v2625, %v3137
    %v3650 = vadd.f32 %v2626, %v3138
    %v3651 = vadd.f32 %v2627, %v3139
    %v3652 = vadd.f32 %v2628, %v3140
    %v3653 = vadd.f32 %v2629, %v3141
    %v3654 = vadd.f32 %v2630, %v3142
    %v3655 = vadd.f32 %v2631, %v3143
    %v3656 = vadd.f32 %v2632, %v3144
    %v3657 = vadd.f32 %v2633, %v3145
    %v3658 = vadd.f32 %v2634, %v3146
    %v3659 = vadd.f32 %v2635, %v3147
    %v3660 = vadd.f32 %v2636, %v3148
    %v3661 = vadd.f32 %v2637, %v3149
    %v3662 = vadd.f32 %v2638, %v3150
    %v3663 = vadd.f32 %v2639, %v3151
    %v3664 = vadd.f32 %v2640, %v3152
    %v3665 = vadd.f32 %v2641, %v3153
    %v3666 = vadd.f32 %v2642, %v3154
    %v3667 = vadd.f32 %v2643, %v3155
    %v3668 = vadd.f32 %v2644, %v3156
    %v3669 = vadd.f32 %v2645, %v3157
    %v3670 = vadd.f32 %v2646, %v3158
    %v3671 = vadd.f32 %v2647, %v3159
    %v3672 = vadd.f32 %v2648, %v3160
    %v3673 = vadd.f32 %v2649, %v3161
    %v3674 = vadd.f32 %v2650, %v3162
    %v3675 = vadd.f32 %v2651, %v3163
    %v3676 = vadd.f32 %v2652, %v3164
    %v3677 = vadd.f32 %v2653, %v3165
    %v3678 = vadd.f32 %v2654, %v3166
    %v3679 = vadd.f32 %v2655, %v3167
    %v3680 = vadd.f32 %v2656, %v3168
    %v3681 = vadd.f32 %v2657, %v3169
    %v3682 = vadd.f32 %v2658, %v3170
    %v3683 = vadd.f32 %v2659, %v3171
    %v3684 = vadd.f32 %v2660, %v3172
    %v3685 = vadd.f32 %v2661, %v3173
    %v3686 = vadd.f32 %v2662, %v3174
    %v3687 = vadd.f32 %v2663, %v3175
    %v3688 = vadd.f32 %v2664, %v3176
    %v3689 = vadd.f32 %v2665, %v3177
    %v3690 = vadd.f32 %v2666, %v3178
    %v3691 = vadd.f32 %v2667, %v3179
    %v3692 = vadd.f32 %v2668, %v3180
    %v3693 = vadd.f32 %v2669, %v3181
    %v3694 = vadd.f32 %v2670, %v3182
    %v3695 = vadd.f32 %v2671, %v3183
    %v3696 = vadd.f32 %v2672, %v3184
    %v3697 = vadd.f32 %v2673, %v3185
    %v3698 = vadd.f32 %v2674, %v3186
    %v3699 = vadd.f32 %v2675, %v3187
    %v3700 = vadd.f32 %v2676, %v3188
    %v3701 = vadd.f32 %v2677, %v3189
    %v3702 = vadd.f32 %v2678, %v3190
    %v3703 = vadd.f32 %v2679, %v3191
    %v3704 = vadd.f32 %v2680, %v3192
    %v3705 = vadd.f32 %v2681, %v3193
    %v3706 = vadd.f32 %v2682, %v3194
    %v3707 = vadd.f32 %v2683, %v3195
    %v3708 = vadd.f32 %v2684, %v3196
    %v3709 = vadd.f32 %v2685, %v3197
    %v3710 = vadd.f32 %v2686, %v3198
    %v3711 = vadd.f32 %v2687, %v3199
    %v3712 = vadd.f32 %v2688, %v3200
    %v3713 = vadd.f32 %v2689, %v3201
    %v3714 = vadd.f32 %v2690, %v3202
    %v3715 = vadd.f32 %v2691, %v3203
    %v3716 = vadd.f32 %v2692, %v3204
    %v3717 = vadd.f32 %v2693, %v3205
    %v3718 = vadd.f32 %v2694, %v3206
    %v3719 = vadd.f32 %v2695, %v3207
    %v3720 = vadd.f32 %v2696, %v3208
    %v3721 = vadd.f32 %v2697, %v3209
    %v3722 = vadd.f32 %v2698, %v3210
    %v3723 = vadd.f32 %v2699, %v3211
    %v3724 = vadd.f32 %v2700, %v3212
    %v3725 = vadd.f32 %v2701, %v3213
    %v3726 = vadd.f32 %v2702, %v3214
    %v3727 = vadd.f32 %v2703, %v3215
    %v3728 = vadd.f32 %v2704, %v3216
    %v3729 = vadd.f32 %v2705, %v3217
    %v3730 = vadd.f32 %v2706, %v3218
    %v3731 = vadd.f32 %v2707, %v3219
    %v3732 = vadd.f32 %v2708, %v3220
    %v3733 = vadd.f32 %v2709, %v3221
    %v3734 = vadd.f32 %v2710, %v3222
    %v3735 = vadd.f32 %v2711, %v3223
    %v3736 = vadd.f32 %v2712, %v3224
    %v3737 = vadd.f32 %v2713, %v3225
    %v3738 = vadd.f32 %v2714, %v3226
    %v3739 = vadd.f32 %v2715, %v3227
    %v3740 = vadd.f32 %v2716, %v3228
    %v3741 = vadd.f32 %v2717, %v3229
    %v3742 = vadd.f32 %v2718, %v3230
    %v3743 = vadd.f32 %v2719, %v3231
    %v3744 = vadd.f32 %v2720, %v3232
    %v3745 = vadd.f32 %v2721, %v3233
    %v3746 = vadd.f32 %v2722, %v3234
    %v3747 = vadd.f32 %v2723, %v3235
    %v3748 = vadd.f32 %v2724, %v3236
    %v3749 = vadd.f32 %v2725, %v3237
    %v3750 = vadd.f32 %v2726, %v3238
    %v3751 = vadd.f32 %v2727, %v3239
    %v3752 = vadd.f32 %v2728, %v3240
    %v3753 = vadd.f32 %v2729, %v3241
    %v3754 = vadd.f32 %v2730, %v3242
    %v3755 = vadd.f32 %v2731, %v3243
    %v3756 = vadd.f32 %v2732, %v3244
    %v3757 = vadd.f32 %v2733, %v3245
    %v3758 = vadd.f32 %v2734, %v3246
    %v3759 = vadd.f32 %v2735, %v3247
    %v3760 = vadd.f32 %v2736, %v3248
    %v3761 = vadd.f32 %v2737, %v3249
    %v3762 = vadd.f32 %v2738, %v3250
    %v3763 = vadd.f32 %v2739, %v3251
    %v3764 = vadd.f32 %v2740, %v3252
    %v3765 = vadd.f32 %v2741, %v3253
    %v3766 = vadd.f32 %v2742, %v3254
    %v3767 = vadd.f32 %v2743, %v3255
    %v3768 = vadd.f32 %v2744, %v3256
    %v3769 = vadd.f32 %v2745, %v3257
    %v3770 = vadd.f32 %v2746, %v3258
    %v3771 = vadd.f32 %v2747, %v3259
    %v3772 = vadd.f32 %v2748, %v3260
    %v3773 = vadd.f32 %v2749, %v3261
    %v3774 = vadd.f32 %v2750, %v3262
    %v3775 = vadd.f32 %v2751, %v3263
    %v3776 = vadd.f32 %v2752, %v3264
    %v3777 = vadd.f32 %v2753, %v3265
    %v3778 = vadd.f32 %v2754, %v3266
    %v3779 = vadd.f32 %v2755, %v3267
    %v3780 = vadd.f32 %v2756, %v3268
    %v3781 = vadd.f32 %v2757, %v3269
    %v3782 = vadd.f32 %v2758, %v3270
    %v3783 = vadd.f32 %v2759, %v3271
    %v3784 = vadd.f32 %v2760, %v3272
    %v3785 = vadd.f32 %v2761, %v3273
    %v3786 = vadd.f32 %v2762, %v3274
    %v3787 = vadd.f32 %v2763, %v3275
    %v3788 = vadd.f32 %v2764, %v3276
    %v3789 = vadd.f32 %v2765, %v3277
    %v3790 = vadd.f32 %v2766, %v3278
    %v3791 = vadd.f32 %v2767, %v3279
    %v3792 = vadd.f32 %v2768, %v3280
    %v3793 = vadd.f32 %v2769, %v3281
    %v3794 = vadd.f32 %v2770, %v3282
    %v3795 = vadd.f32 %v2771, %v3283
    %v3796 = vadd.f32 %v2772, %v3284
    %v3797 = vadd.f32 %v2773, %v3285
    %v3798 = vadd.f32 %v2774, %v3286
    %v3799 = vadd.f32 %v2775, %v3287
    %v3800 = vadd.f32 %v2776, %v3288
    %v3801 = vadd.f32 %v2777, %v3289
    %v3802 = vadd.f32 %v2778, %v3290
    %v3803 = vadd.f32 %v2779, %v3291
    %v3804 = vadd.f32 %v2780, %v3292
    %v3805 = vadd.f32 %v2781, %v3293
    %v3806 = vadd.f32 %v2782, %v3294
    %v3807 = vadd.f32 %v2783, %v3295
    %v3808 = vadd.f32 %v2784, %v3296
    %v3809 = vadd.f32 %v2785, %v3297
    %v3810 = vadd.f32 %v2786, %v3298
    %v3811 = vadd.f32 %v2787, %v3299
    %v3812 = vadd.f32 %v2788, %v3300
    %v3813 = vadd.f32 %v2789, %v3301
    %v3814 = vadd.f32 %v2790, %v3302
    %v3815 = vadd.f32 %v2791, %v3303
    %v3816 = vadd.f32 %v2792, %v3304
    %v3817 = vadd.f32 %v2793, %v3305
    %v3818 = vadd.f32 %v2794, %v3306
    %v3819 = vadd.f32 %v2795, %v3307
    %v3820 = vadd.f32 %v2796, %v3308
    %v3821 = vadd.f32 %v2797, %v3309
    %v3822 = vadd.f32 %v2798, %v3310
    %v3823 = vadd.f32 %v2799, %v3311
    %v3824 = vadd.f32 %v2800, %v3312
    %v3825 = vadd.f32 %v2801, %v3313
    %v3826 = vadd.f32 %v2802, %v3314
    %v3827 = vadd.f32 %v2803, %v3315
    %v3828 = vadd.f32 %v2804, %v3316
    %v3829 = vadd.f32 %v2805, %v3317
    %v3830 = vadd.f32 %v2806, %v3318
    %v3831 = vadd.f32 %v2807, %v3319
    %v3832 = vadd.f32 %v2808, %v3320
    %v3833 = vadd.f32 %v2809, %v3321
    %v3834 = vadd.f32 %v2810, %v3322
    %v3835 = vadd.f32 %v2811, %v3323
    %v3836 = vadd.f32 %v2812, %v3324
    %v3837 = vadd.f32 %v2813, %v3325
    %v3838 = vadd.f32 %v2814, %v3326
    %v3839 = vadd.f32 %v2815, %v3327
    %v3840 = vadd.f32 %v2816, %v3328
    %v3841 = vadd.f32 %v2817, %v3329
    %v3842 = vadd.f32 %v2818, %v3330
    %v3843 = vadd.f32 %v2819, %v3331
    %v3844 = vadd.f32 %v2820, %v3332
    %v3845 = vadd.f32 %v2821, %v3333
    %v3846 = vadd.f32 %v2822, %v3334
    %v3847 = vadd.f32 %v2823, %v3335
    %v3848 = vadd.f32 %v2824, %v3336
    %v3849 = vadd.f32 %v2825, %v3337
    %v3850 = vadd.f32 %v2826, %v3338
    %v3851 = vadd.f32 %v2827, %v3339
    %v3852 = vadd.f32 %v2828, %v3340
    %v3853 = vadd.f32 %v2829, %v3341
    %v3854 = vadd.f32 %v2830, %v3342
    %v3855 = vadd.f32 %v2831, %v3343
    %v3856 = vadd.f32 %v2832, %v3344
    %v3857 = vadd.f32 %v2833, %v3345
    %v3858 = vadd.f32 %v2834, %v3346
    %v3859 = vadd.f32 %v2835, %v3347
    %v3860 = vadd.f32 %v2836, %v3348
    %v3861 = vadd.f32 %v2837, %v3349
    %v3862 = vadd.f32 %v2838, %v3350
    %v3863 = vadd.f32 %v2839, %v3351
    %v3864 = vadd.f32 %v2840, %v3352
    %v3865 = vadd.f32 %v2841, %v3353
    %v3866 = vadd.f32 %v2842, %v3354
    %v3867 = vadd.f32 %v2843, %v3355
    %v3868 = vadd.f32 %v2844, %v3356
    %v3869 = vadd.f32 %v2845, %v3357
    %v3870 = vadd.f32 %v2846, %v3358
    %v3871 = vadd.f32 %v2847, %v3359
    %v3872 = vadd.f32 %v2848, %v3360
    %v3873 = vadd.f32 %v2849, %v3361
    %v3874 = vadd.f32 %v2850, %v3362
    %v3875 = vadd.f32 %v2851, %v3363
    %v3876 = vadd.f32 %v2852, %v3364
    %v3877 = vadd.f32 %v2853, %v3365
    %v3878 = vadd.f32 %v2854, %v3366
    %v3879 = vadd.f32 %v2855, %v3367
    %v3880 = vadd.f32 %v2856, %v3368
    %v3881 = vadd.f32 %v2857, %v3369
    %v3882 = vadd.f32 %v2858, %v3370
    %v3883 = vadd.f32 %v2859, %v3371
    %v3884 = vadd.f32 %v2860, %v3372
    %v3885 = vadd.f32 %v2861, %v3373
    %v3886 = vadd.f32 %v2862, %v3374
    %v3887 = vadd.f32 %v2863, %v3375
    %v3888 = vadd.f32 %v2864, %v3376
    %v3889 = vadd.f32 %v2865, %v3377
    %v3890 = vadd.f32 %v2866, %v3378
    %v3891 = vadd.f32 %v2867, %v3379
    %v3892 = vadd.f32 %v2868, %v3380
    %v3893 = vadd.f32 %v2869, %v3381
    %v3894 = vadd.f32 %v2870, %v3382
    %v3895 = vadd.f32 %v2871, %v3383
    %v3896 = vadd.f32 %v2872, %v3384
    %v3897 = vadd.f32 %v2873, %v3385
    %v3898 = vadd.f32 %v2874, %v3386
    %v3899 = vadd.f32 %v2875, %v3387
    %v3900 = vadd.f32 %v2876, %v3388
    %v3901 = vadd.f32 %v2877, %v3389
    %v3902 = vadd.f32 %v2878, %v3390
    %v3903 = vadd.f32 %v2879, %v3391
    %v3904 = vadd.f32 %v2880, %v3392
    %v3905 = vadd.f32 %v2881, %v3393
    %v3906 = vadd.f32 %v2882, %v3394
    %v3907 = vadd.f32 %v2883, %v3395
    %v3908 = vadd.f32 %v2884, %v3396
    %v3909 = vadd.f32 %v2885, %v3397
    %v3910 = vadd.f32 %v2886, %v3398
    %v3911 = vadd.f32 %v2887, %v3399
    %v3912 = vadd.f32 %v2888, %v3400
    %v3913 = vadd.f32 %v2889, %v3401
    %v3914 = vadd.f32 %v2890, %v3402
    %v3915 = vadd.f32 %v2891, %v3403
    %v3916 = vadd.f32 %v2892, %v3404
    %v3917 = vadd.f32 %v2893, %v3405
    %v3918 = vadd.f32 %v2894, %v3406
    %v3919 = vadd.f32 %v2895, %v3407
    %v3920 = vadd.f32 %v2896, %v3408
    %v3921 = vadd.f32 %v2897, %v3409
    %v3922 = vadd.f32 %v2898, %v3410
    %v3923 = vadd.f32 %v2899, %v3411
    %v3924 = vadd.f32 %v2900, %v3412
    %v3925 = vadd.f32 %v2901, %v3413
    %v3926 = vadd.f32 %v2902, %v3414
    %v3927 = vadd.f32 %v2903, %v3415
    %v3928 = vadd.f32 %v2904, %v3416
    %v3929 = vadd.f32 %v2905, %v3417
    %v3930 = vadd.f32 %v2906, %v3418
    %v3931 = vadd.f32 %v2907, %v3419
    %v3932 = vadd.f32 %v2908, %v3420
    %v3933 = vadd.f32 %v2909, %v3421
    %v3934 = vadd.f32 %v2910, %v3422
    %v3935 = vadd.f32 %v2911, %v3423
    %v3936 = vadd.f32 %v2912, %v3424
    %v3937 = vadd.f32 %v2913, %v3425
    %v3938 = vadd.f32 %v2914, %v3426
    %v3939 = vadd.f32 %v2915, %v3427
    %v3940 = vadd.f32 %v2916, %v3428
    %v3941 = vadd.f32 %v2917, %v3429
    %v3942 = vadd.f32 %v2918, %v3430
    %v3943 = vadd.f32 %v2919, %v3431
    %v3944 = vadd.f32 %v2920, %v3432
    %v3945 = vadd.f32 %v2921, %v3433
    %v3946 = vadd.f32 %v2922, %v3434
    %v3947 = vadd.f32 %v2923, %v3435
    %v3948 = vadd.f32 %v2924, %v3436
    %v3949 = vadd.f32 %v2925, %v3437
    %v3950 = vadd.f32 %v2926, %v3438
    %v3951 = vadd.f32 %v2927, %v3439
    %v3952 = vadd.f32 %v2928, %v3440
    %v3953 = vadd.f32 %v2929, %v3441
    %v3954 = vadd.f32 %v2930, %v3442
    %v3955 = vadd.f32 %v2931, %v3443
    %v3956 = vadd.f32 %v2932, %v3444
    %v3957 = vadd.f32 %v2933, %v3445
    %v3958 = vadd.f32 %v2934, %v3446
    %v3959 = vadd.f32 %v2935, %v3447
    %v3960 = vadd.f32 %v2936, %v3448
    %v3961 = vadd.f32 %v2937, %v3449
    %v3962 = vadd.f32 %v2938, %v3450
    %v3963 = vadd.f32 %v2939, %v3451
    %v3964 = vadd.f32 %v2940, %v3452
    %v3965 = vadd.f32 %v2941, %v3453
    %v3966 = vadd.f32 %v2942, %v3454
    %v3967 = vadd.f32 %v2943, %v3455
    %v3968 = vadd.f32 %v2944, %v3456
    %v3969 = vadd.f32 %v2945, %v3457
    %v3970 = vadd.f32 %v2946, %v3458
    %v3971 = vadd.f32 %v2947, %v3459
    %v3972 = vadd.f32 %v2948, %v3460
    %v3973 = vadd.f32 %v2949, %v3461
    %v3974 = vadd.f32 %v2950, %v3462
    %v3975 = vadd.f32 %v2951, %v3463
    %v3976 = vadd.f32 %v2952, %v3464
    %v3977 = vadd.f32 %v2953, %v3465
    %v3978 = vadd.f32 %v2954, %v3466
    %v3979 = vadd.f32 %v2955, %v3467
    %v3980 = vadd.f32 %v2956, %v3468
    %v3981 = vadd.f32 %v2957, %v3469
    %v3982 = vadd.f32 %v2958, %v3470
    %v3983 = vadd.f32 %v2959, %v3471
    %v3984 = vadd.f32 %v2960, %v3472
    %v3985 = vadd.f32 %v2961, %v3473
    %v3986 = vadd.f32 %v2962, %v3474
    %v3987 = vadd.f32 %v2963, %v3475
    %v3988 = vadd.f32 %v2964, %v3476
    %v3989 = vadd.f32 %v2965, %v3477
    %v3990 = vadd.f32 %v2966, %v3478
    %v3991 = vadd.f32 %v2967, %v3479
    %v3992 = vadd.f32 %v2968, %v3480
    %v3993 = vadd.f32 %v2969, %v3481
    %v3994 = vadd.f32 %v2970, %v3482
    %v3995 = vadd.f32 %v2971, %v3483
    %v3996 = vadd.f32 %v2972, %v3484
    %v3997 = vadd.f32 %v2973, %v3485
    %v3998 = vpack.c.bf16 %v3487, %v3486
    %v3999 = vpack.c.bf16 %v3489, %v3488
    %v4000 = vpack.c.bf16 %v3491, %v3490
    %v4001 = vpack.c.bf16 %v3493, %v3492
    %v4002 = vpack.c.bf16 %v3495, %v3494
    %v4003 = vpack.c.bf16 %v3497, %v3496
    %v4004 = vpack.c.bf16 %v3499, %v3498
    %v4005 = vpack.c.bf16 %v3501, %v3500
    %v4006 = vpack.c.bf16 %v3503, %v3502
    %v4007 = vpack.c.bf16 %v3505, %v3504
    %v4008 = vpack.c.bf16 %v3507, %v3506
    %v4009 = vpack.c.bf16 %v3509, %v3508
    %v4010 = vpack.c.bf16 %v3511, %v3510
    %v4011 = vpack.c.bf16 %v3513, %v3512
    %v4012 = vpack.c.bf16 %v3515, %v3514
    %v4013 = vpack.c.bf16 %v3517, %v3516
    %v4014 = vpack.c.bf16 %v3519, %v3518
    %v4015 = vpack.c.bf16 %v3521, %v3520
    %v4016 = vpack.c.bf16 %v3523, %v3522
    %v4017 = vpack.c.bf16 %v3525, %v3524
    %v4018 = vpack.c.bf16 %v3527, %v3526
    %v4019 = vpack.c.bf16 %v3529, %v3528
    %v4020 = vpack.c.bf16 %v3531, %v3530
    %v4021 = vpack.c.bf16 %v3533, %v3532
    %v4022 = vpack.c.bf16 %v3535, %v3534
    %v4023 = vpack.c.bf16 %v3537, %v3536
    %v4024 = vpack.c.bf16 %v3539, %v3538
    %v4025 = vpack.c.bf16 %v3541, %v3540
    %v4026 = vpack.c.bf16 %v3543, %v3542
    %v4027 = vpack.c.bf16 %v3545, %v3544
    %v4028 = vpack.c.bf16 %v3547, %v3546
    %v4029 = vpack.c.bf16 %v3549, %v3548
    %v4030 = vpack.c.bf16 %v3551, %v3550
    %v4031 = vpack.c.bf16 %v3553, %v3552
    %v4032 = vpack.c.bf16 %v3555, %v3554
    %v4033 = vpack.c.bf16 %v3557, %v3556
    %v4034 = vpack.c.bf16 %v3559, %v3558
    %v4035 = vpack.c.bf16 %v3561, %v3560
    %v4036 = vpack.c.bf16 %v3563, %v3562
    %v4037 = vpack.c.bf16 %v3565, %v3564
    %v4038 = vpack.c.bf16 %v3567, %v3566
    %v4039 = vpack.c.bf16 %v3569, %v3568
    %v4040 = vpack.c.bf16 %v3571, %v3570
    %v4041 = vpack.c.bf16 %v3573, %v3572
    %v4042 = vpack.c.bf16 %v3575, %v3574
    %v4043 = vpack.c.bf16 %v3577, %v3576
    %v4044 = vpack.c.bf16 %v3579, %v3578
    %v4045 = vpack.c.bf16 %v3581, %v3580
    %v4046 = vpack.c.bf16 %v3583, %v3582
    %v4047 = vpack.c.bf16 %v3585, %v3584
    %v4048 = vpack.c.bf16 %v3587, %v3586
    %v4049 = vpack.c.bf16 %v3589, %v3588
    %v4050 = vpack.c.bf16 %v3591, %v3590
    %v4051 = vpack.c.bf16 %v3593, %v3592
    %v4052 = vpack.c.bf16 %v3595, %v3594
    %v4053 = vpack.c.bf16 %v3597, %v3596
    %v4054 = vpack.c.bf16 %v3599, %v3598
    %v4055 = vpack.c.bf16 %v3601, %v3600
    %v4056 = vpack.c.bf16 %v3603, %v3602
    %v4057 = vpack.c.bf16 %v3605, %v3604
    %v4058 = vpack.c.bf16 %v3607, %v3606
    %v4059 = vpack.c.bf16 %v3609, %v3608
    %v4060 = vpack.c.bf16 %v3611, %v3610
    %v4061 = vpack.c.bf16 %v3613, %v3612
    %v4062 = vpack.c.bf16 %v3615, %v3614
    %v4063 = vpack.c.bf16 %v3617, %v3616
    %v4064 = vpack.c.bf16 %v3619, %v3618
    %v4065 = vpack.c.bf16 %v3621, %v3620
    %v4066 = vpack.c.bf16 %v3623, %v3622
    %v4067 = vpack.c.bf16 %v3625, %v3624
    %v4068 = vpack.c.bf16 %v3627, %v3626
    %v4069 = vpack.c.bf16 %v3629, %v3628
    %v4070 = vpack.c.bf16 %v3631, %v3630
    %v4071 = vpack.c.bf16 %v3633, %v3632
    %v4072 = vpack.c.bf16 %v3635, %v3634
    %v4073 = vpack.c.bf16 %v3637, %v3636
    %v4074 = vpack.c.bf16 %v3639, %v3638
    %v4075 = vpack.c.bf16 %v3641, %v3640
    %v4076 = vpack.c.bf16 %v3643, %v3642
    %v4077 = vpack.c.bf16 %v3645, %v3644
    %v4078 = vpack.c.bf16 %v3647, %v3646
    %v4079 = vpack.c.bf16 %v3649, %v3648
    %v4080 = vpack.c.bf16 %v3651, %v3650
    %v4081 = vpack.c.bf16 %v3653, %v3652
    %v4082 = vpack.c.bf16 %v3655, %v3654
    %v4083 = vpack.c.bf16 %v3657, %v3656
    %v4084 = vpack.c.bf16 %v3659, %v3658
    %v4085 = vpack.c.bf16 %v3661, %v3660
    %v4086 = vpack.c.bf16 %v3663, %v3662
    %v4087 = vpack.c.bf16 %v3665, %v3664
    %v4088 = vpack.c.bf16 %v3667, %v3666
    %v4089 = vpack.c.bf16 %v3669, %v3668
    %v4090 = vpack.c.bf16 %v3671, %v3670
    %v4091 = vpack.c.bf16 %v3673, %v3672
    %v4092 = vpack.c.bf16 %v3675, %v3674
    %v4093 = vpack.c.bf16 %v3677, %v3676
    %v4094 = vpack.c.bf16 %v3679, %v3678
    %v4095 = vpack.c.bf16 %v3681, %v3680
    %v4096 = vpack.c.bf16 %v3683, %v3682
    %v4097 = vpack.c.bf16 %v3685, %v3684
    %v4098 = vpack.c.bf16 %v3687, %v3686
    %v4099 = vpack.c.bf16 %v3689, %v3688
    %v4100 = vpack.c.bf16 %v3691, %v3690
    %v4101 = vpack.c.bf16 %v3693, %v3692
    %v4102 = vpack.c.bf16 %v3695, %v3694
    %v4103 = vpack.c.bf16 %v3697, %v3696
    %v4104 = vpack.c.bf16 %v3699, %v3698
    %v4105 = vpack.c.bf16 %v3701, %v3700
    %v4106 = vpack.c.bf16 %v3703, %v3702
    %v4107 = vpack.c.bf16 %v3705, %v3704
    %v4108 = vpack.c.bf16 %v3707, %v3706
    %v4109 = vpack.c.bf16 %v3709, %v3708
    %v4110 = vpack.c.bf16 %v3711, %v3710
    %v4111 = vpack.c.bf16 %v3713, %v3712
    %v4112 = vpack.c.bf16 %v3715, %v3714
    %v4113 = vpack.c.bf16 %v3717, %v3716
    %v4114 = vpack.c.bf16 %v3719, %v3718
    %v4115 = vpack.c.bf16 %v3721, %v3720
    %v4116 = vpack.c.bf16 %v3723, %v3722
    %v4117 = vpack.c.bf16 %v3725, %v3724
    %v4118 = vpack.c.bf16 %v3727, %v3726
    %v4119 = vpack.c.bf16 %v3729, %v3728
    %v4120 = vpack.c.bf16 %v3731, %v3730
    %v4121 = vpack.c.bf16 %v3733, %v3732
    %v4122 = vpack.c.bf16 %v3735, %v3734
    %v4123 = vpack.c.bf16 %v3737, %v3736
    %v4124 = vpack.c.bf16 %v3739, %v3738
    %v4125 = vpack.c.bf16 %v3741, %v3740
    %v4126 = vpack.c.bf16 %v3743, %v3742
    %v4127 = vpack.c.bf16 %v3745, %v3744
    %v4128 = vpack.c.bf16 %v3747, %v3746
    %v4129 = vpack.c.bf16 %v3749, %v3748
    %v4130 = vpack.c.bf16 %v3751, %v3750
    %v4131 = vpack.c.bf16 %v3753, %v3752
    %v4132 = vpack.c.bf16 %v3755, %v3754
    %v4133 = vpack.c.bf16 %v3757, %v3756
    %v4134 = vpack.c.bf16 %v3759, %v3758
    %v4135 = vpack.c.bf16 %v3761, %v3760
    %v4136 = vpack.c.bf16 %v3763, %v3762
    %v4137 = vpack.c.bf16 %v3765, %v3764
    %v4138 = vpack.c.bf16 %v3767, %v3766
    %v4139 = vpack.c.bf16 %v3769, %v3768
    %v4140 = vpack.c.bf16 %v3771, %v3770
    %v4141 = vpack.c.bf16 %v3773, %v3772
    %v4142 = vpack.c.bf16 %v3775, %v3774
    %v4143 = vpack.c.bf16 %v3777, %v3776
    %v4144 = vpack.c.bf16 %v3779, %v3778
    %v4145 = vpack.c.bf16 %v3781, %v3780
    %v4146 = vpack.c.bf16 %v3783, %v3782
    %v4147 = vpack.c.bf16 %v3785, %v3784
    %v4148 = vpack.c.bf16 %v3787, %v3786
    %v4149 = vpack.c.bf16 %v3789, %v3788
    %v4150 = vpack.c.bf16 %v3791, %v3790
    %v4151 = vpack.c.bf16 %v3793, %v3792
    %v4152 = vpack.c.bf16 %v3795, %v3794
    %v4153 = vpack.c.bf16 %v3797, %v3796
    %v4154 = vpack.c.bf16 %v3799, %v3798
    %v4155 = vpack.c.bf16 %v3801, %v3800
    %v4156 = vpack.c.bf16 %v3803, %v3802
    %v4157 = vpack.c.bf16 %v3805, %v3804
    %v4158 = vpack.c.bf16 %v3807, %v3806
    %v4159 = vpack.c.bf16 %v3809, %v3808
    %v4160 = vpack.c.bf16 %v3811, %v3810
    %v4161 = vpack.c.bf16 %v3813, %v3812
    %v4162 = vpack.c.bf16 %v3815, %v3814
    %v4163 = vpack.c.bf16 %v3817, %v3816
    %v4164 = vpack.c.bf16 %v3819, %v3818
    %v4165 = vpack.c.bf16 %v3821, %v3820
    %v4166 = vpack.c.bf16 %v3823, %v3822
    %v4167 = vpack.c.bf16 %v3825, %v3824
    %v4168 = vpack.c.bf16 %v3827, %v3826
    %v4169 = vpack.c.bf16 %v3829, %v3828
    %v4170 = vpack.c.bf16 %v3831, %v3830
    %v4171 = vpack.c.bf16 %v3833, %v3832
    %v4172 = vpack.c.bf16 %v3835, %v3834
    %v4173 = vpack.c.bf16 %v3837, %v3836
    %v4174 = vpack.c.bf16 %v3839, %v3838
    %v4175 = vpack.c.bf16 %v3841, %v3840
    %v4176 = vpack.c.bf16 %v3843, %v3842
    %v4177 = vpack.c.bf16 %v3845, %v3844
    %v4178 = vpack.c.bf16 %v3847, %v3846
    %v4179 = vpack.c.bf16 %v3849, %v3848
    %v4180 = vpack.c.bf16 %v3851, %v3850
    %v4181 = vpack.c.bf16 %v3853, %v3852
    %v4182 = vpack.c.bf16 %v3855, %v3854
    %v4183 = vpack.c.bf16 %v3857, %v3856
    %v4184 = vpack.c.bf16 %v3859, %v3858
    %v4185 = vpack.c.bf16 %v3861, %v3860
    %v4186 = vpack.c.bf16 %v3863, %v3862
    %v4187 = vpack.c.bf16 %v3865, %v3864
    %v4188 = vpack.c.bf16 %v3867, %v3866
    %v4189 = vpack.c.bf16 %v3869, %v3868
    %v4190 = vpack.c.bf16 %v3871, %v3870
    %v4191 = vpack.c.bf16 %v3873, %v3872
    %v4192 = vpack.c.bf16 %v3875, %v3874
    %v4193 = vpack.c.bf16 %v3877, %v3876
    %v4194 = vpack.c.bf16 %v3879, %v3878
    %v4195 = vpack.c.bf16 %v3881, %v3880
    %v4196 = vpack.c.bf16 %v3883, %v3882
    %v4197 = vpack.c.bf16 %v3885, %v3884
    %v4198 = vpack.c.bf16 %v3887, %v3886
    %v4199 = vpack.c.bf16 %v3889, %v3888
    %v4200 = vpack.c.bf16 %v3891, %v3890
    %v4201 = vpack.c.bf16 %v3893, %v3892
    %v4202 = vpack.c.bf16 %v3895, %v3894
    %v4203 = vpack.c.bf16 %v3897, %v3896
    %v4204 = vpack.c.bf16 %v3899, %v3898
    %v4205 = vpack.c.bf16 %v3901, %v3900
    %v4206 = vpack.c.bf16 %v3903, %v3902
    %v4207 = vpack.c.bf16 %v3905, %v3904
    %v4208 = vpack.c.bf16 %v3907, %v3906
    %v4209 = vpack.c.bf16 %v3909, %v3908
    %v4210 = vpack.c.bf16 %v3911, %v3910
    %v4211 = vpack.c.bf16 %v3913, %v3912
    %v4212 = vpack.c.bf16 %v3915, %v3914
    %v4213 = vpack.c.bf16 %v3917, %v3916
    %v4214 = vpack.c.bf16 %v3919, %v3918
    %v4215 = vpack.c.bf16 %v3921, %v3920
    %v4216 = vpack.c.bf16 %v3923, %v3922
    %v4217 = vpack.c.bf16 %v3925, %v3924
    %v4218 = vpack.c.bf16 %v3927, %v3926
    %v4219 = vpack.c.bf16 %v3929, %v3928
    %v4220 = vpack.c.bf16 %v3931, %v3930
    %v4221 = vpack.c.bf16 %v3933, %v3932
    %v4222 = vpack.c.bf16 %v3935, %v3934
    %v4223 = vpack.c.bf16 %v3937, %v3936
    %v4224 = vpack.c.bf16 %v3939, %v3938
    %v4225 = vpack.c.bf16 %v3941, %v3940
    %v4226 = vpack.c.bf16 %v3943, %v3942
    %v4227 = vpack.c.bf16 %v3945, %v3944
    %v4228 = vpack.c.bf16 %v3947, %v3946
    %v4229 = vpack.c.bf16 %v3949, %v3948
    %v4230 = vpack.c.bf16 %v3951, %v3950
    %v4231 = vpack.c.bf16 %v3953, %v3952
    %v4232 = vpack.c.bf16 %v3955, %v3954
    %v4233 = vpack.c.bf16 %v3957, %v3956
    %v4234 = vpack.c.bf16 %v3959, %v3958
    %v4235 = vpack.c.bf16 %v3961, %v3960
    %v4236 = vpack.c.bf16 %v3963, %v3962
    %v4237 = vpack.c.bf16 %v3965, %v3964
    %v4238 = vpack.c.bf16 %v3967, %v3966
    %v4239 = vpack.c.bf16 %v3969, %v3968
    %v4240 = vpack.c.bf16 %v3971, %v3970
    %v4241 = vpack.c.bf16 %v3973, %v3972
    %v4242 = vpack.c.bf16 %v3975, %v3974
    %v4243 = vpack.c.bf16 %v3977, %v3976
    %v4244 = vpack.c.bf16 %v3979, %v3978
    %v4245 = vpack.c.bf16 %v3981, %v3980
    %v4246 = vpack.c.bf16 %v3983, %v3982
    %v4247 = vpack.c.bf16 %v3985, %v3984
    %v4248 = vpack.c.bf16 %v3987, %v3986
    %v4249 = vpack.c.bf16 %v3989, %v3988
    %v4250 = vpack.c.bf16 %v3991, %v3990
    %v4251 = vpack.c.bf16 %v3993, %v3992
    %v4252 = vpack.c.bf16 %v3995, %v3994
    %v4253 = vpack.c.bf16 %v3997, %v3996
    %v4254 = vld [vmem:[%s2] sm:$0xf]
    %v4255 = vld [vmem:[%s2 + $0x4] sm:$0xf]
    %v4256 = vld [vmem:[%s2 + $0x8] sm:$0xf]
    %v4257 = vld [vmem:[%s2 + $0xc] sm:$0xf]
    %v4258 = vld [vmem:[%s2 + $0x10] sm:$0xf]
    %v4259 = vld [vmem:[%s2 + $0x14] sm:$0xf]
    %v4260 = vld [vmem:[%s2 + $0x18] sm:$0xf]
    %v4261 = vld [vmem:[%s2 + $0x1c] sm:$0xf]
    %4263 = vset.pattern.permute.xlu0 0
    %4264 = vperm.xlu0 %4263, %v4254
    %v4265 = vpop.permute.xlu0 %4264
    %v4268 = vunpack.c.l.s4 839922192
    %v4269 = vunpack.c.0.s8 %v4268
    %v4270 = vperm.slane %v4265, %v4269
    %4272 = vset.pattern.permute.xlu0 0
    %4273 = vperm.xlu0 %4272, %v4255
    %v4274 = vpop.permute.xlu0 %4273
    %v4277 = vunpack.c.l.s4 839922192
    %v4278 = vunpack.c.0.s8 %v4277
    %v4279 = vperm.slane %v4274, %v4278
    %4281 = vset.pattern.permute.xlu0 0
    %4282 = vperm.xlu0 %4281, %v4256
    %v4283 = vpop.permute.xlu0 %4282
    %v4286 = vunpack.c.l.s4 839922192
    %v4287 = vunpack.c.0.s8 %v4286
    %v4288 = vperm.slane %v4283, %v4287
    %4290 = vset.pattern.permute.xlu0 0
    %4291 = vperm.xlu0 %4290, %v4257
    %v4292 = vpop.permute.xlu0 %4291
    %v4295 = vunpack.c.l.s4 839922192
    %v4296 = vunpack.c.0.s8 %v4295
    %v4297 = vperm.slane %v4292, %v4296
    %4299 = vset.pattern.permute.xlu0 0
    %4300 = vperm.xlu0 %4299, %v4258
    %v4301 = vpop.permute.xlu0 %4300
    %v4304 = vunpack.c.l.s4 839922192
    %v4305 = vunpack.c.0.s8 %v4304
    %v4306 = vperm.slane %v4301, %v4305
    %4308 = vset.pattern.permute.xlu0 0
    %4309 = vperm.xlu0 %4308, %v4259
    %v4310 = vpop.permute.xlu0 %4309
    %v4313 = vunpack.c.l.s4 839922192
    %v4314 = vunpack.c.0.s8 %v4313
    %v4315 = vperm.slane %v4310, %v4314
    %4317 = vset.pattern.permute.xlu0 0
    %4318 = vperm.xlu0 %4317, %v4260
    %v4319 = vpop.permute.xlu0 %4318
    %v4322 = vunpack.c.l.s4 839922192
    %v4323 = vunpack.c.0.s8 %v4322
    %v4324 = vperm.slane %v4319, %v4323
    %4326 = vset.pattern.permute.xlu0 0
    %4327 = vperm.xlu0 %4326, %v4261
    %v4328 = vpop.permute.xlu0 %4327
    %v4331 = vunpack.c.l.s4 839922192
    %v4332 = vunpack.c.0.s8 %v4331
    %v4333 = vperm.slane %v4328, %v4332
    %v4334 = vunpack.c.l.bf16 %v3998
    %v4335 = vunpack.c.h.bf16 %v3998
    %v4336 = vunpack.c.l.bf16 %v3999
    %v4337 = vunpack.c.h.bf16 %v3999
    %v4338 = vunpack.c.l.bf16 %v4000
    %v4339 = vunpack.c.h.bf16 %v4000
    %v4340 = vunpack.c.l.bf16 %v4001
    %v4341 = vunpack.c.h.bf16 %v4001
    %v4342 = vunpack.c.l.bf16 %v4002
    %v4343 = vunpack.c.h.bf16 %v4002
    %v4344 = vunpack.c.l.bf16 %v4003
    %v4345 = vunpack.c.h.bf16 %v4003
    %v4346 = vunpack.c.l.bf16 %v4004
    %v4347 = vunpack.c.h.bf16 %v4004
    %v4348 = vunpack.c.l.bf16 %v4005
    %v4349 = vunpack.c.h.bf16 %v4005
    %v4350 = vunpack.c.l.bf16 %v4006
    %v4351 = vunpack.c.h.bf16 %v4006
    %v4352 = vunpack.c.l.bf16 %v4007
    %v4353 = vunpack.c.h.bf16 %v4007
    %v4354 = vunpack.c.l.bf16 %v4008
    %v4355 = vunpack.c.h.bf16 %v4008
    %v4356 = vunpack.c.l.bf16 %v4009
    %v4357 = vunpack.c.h.bf16 %v4009
    %v4358 = vunpack.c.l.bf16 %v4010
    %v4359 = vunpack.c.h.bf16 %v4010
    %v4360 = vunpack.c.l.bf16 %v4011
    %v4361 = vunpack.c.h.bf16 %v4011
    %v4362 = vunpack.c.l.bf16 %v4012
    %v4363 = vunpack.c.h.bf16 %v4012
    %v4364 = vunpack.c.l.bf16 %v4013
    %v4365 = vunpack.c.h.bf16 %v4013
    %v4366 = vunpack.c.l.bf16 %v4014
    %v4367 = vunpack.c.h.bf16 %v4014
    %v4368 = vunpack.c.l.bf16 %v4015
    %v4369 = vunpack.c.h.bf16 %v4015
    %v4370 = vunpack.c.l.bf16 %v4016
    %v4371 = vunpack.c.h.bf16 %v4016
    %v4372 = vunpack.c.l.bf16 %v4017
    %v4373 = vunpack.c.h.bf16 %v4017
    %v4374 = vunpack.c.l.bf16 %v4018
    %v4375 = vunpack.c.h.bf16 %v4018
    %v4376 = vunpack.c.l.bf16 %v4019
    %v4377 = vunpack.c.h.bf16 %v4019
    %v4378 = vunpack.c.l.bf16 %v4020
    %v4379 = vunpack.c.h.bf16 %v4020
    %v4380 = vunpack.c.l.bf16 %v4021
    %v4381 = vunpack.c.h.bf16 %v4021
    %v4382 = vunpack.c.l.bf16 %v4022
    %v4383 = vunpack.c.h.bf16 %v4022
    %v4384 = vunpack.c.l.bf16 %v4023
    %v4385 = vunpack.c.h.bf16 %v4023
    %v4386 = vunpack.c.l.bf16 %v4024
    %v4387 = vunpack.c.h.bf16 %v4024
    %v4388 = vunpack.c.l.bf16 %v4025
    %v4389 = vunpack.c.h.bf16 %v4025
    %v4390 = vunpack.c.l.bf16 %v4026
    %v4391 = vunpack.c.h.bf16 %v4026
    %v4392 = vunpack.c.l.bf16 %v4027
    %v4393 = vunpack.c.h.bf16 %v4027
    %v4394 = vunpack.c.l.bf16 %v4028
    %v4395 = vunpack.c.h.bf16 %v4028
    %v4396 = vunpack.c.l.bf16 %v4029
    %v4397 = vunpack.c.h.bf16 %v4029
    %v4398 = vunpack.c.l.bf16 %v4030
    %v4399 = vunpack.c.h.bf16 %v4030
    %v4400 = vunpack.c.l.bf16 %v4031
    %v4401 = vunpack.c.h.bf16 %v4031
    %v4402 = vunpack.c.l.bf16 %v4032
    %v4403 = vunpack.c.h.bf16 %v4032
    %v4404 = vunpack.c.l.bf16 %v4033
    %v4405 = vunpack.c.h.bf16 %v4033
    %v4406 = vunpack.c.l.bf16 %v4034
    %v4407 = vunpack.c.h.bf16 %v4034
    %v4408 = vunpack.c.l.bf16 %v4035
    %v4409 = vunpack.c.h.bf16 %v4035
    %v4410 = vunpack.c.l.bf16 %v4036
    %v4411 = vunpack.c.h.bf16 %v4036
    %v4412 = vunpack.c.l.bf16 %v4037
    %v4413 = vunpack.c.h.bf16 %v4037
    %v4414 = vunpack.c.l.bf16 %v4038
    %v4415 = vunpack.c.h.bf16 %v4038
    %v4416 = vunpack.c.l.bf16 %v4039
    %v4417 = vunpack.c.h.bf16 %v4039
    %v4418 = vunpack.c.l.bf16 %v4040
    %v4419 = vunpack.c.h.bf16 %v4040
    %v4420 = vunpack.c.l.bf16 %v4041
    %v4421 = vunpack.c.h.bf16 %v4041
    %v4422 = vunpack.c.l.bf16 %v4042
    %v4423 = vunpack.c.h.bf16 %v4042
    %v4424 = vunpack.c.l.bf16 %v4043
    %v4425 = vunpack.c.h.bf16 %v4043
    %v4426 = vunpack.c.l.bf16 %v4044
    %v4427 = vunpack.c.h.bf16 %v4044
    %v4428 = vunpack.c.l.bf16 %v4045
    %v4429 = vunpack.c.h.bf16 %v4045
    %v4430 = vunpack.c.l.bf16 %v4046
    %v4431 = vunpack.c.h.bf16 %v4046
    %v4432 = vunpack.c.l.bf16 %v4047
    %v4433 = vunpack.c.h.bf16 %v4047
    %v4434 = vunpack.c.l.bf16 %v4048
    %v4435 = vunpack.c.h.bf16 %v4048
    %v4436 = vunpack.c.l.bf16 %v4049
    %v4437 = vunpack.c.h.bf16 %v4049
    %v4438 = vunpack.c.l.bf16 %v4050
    %v4439 = vunpack.c.h.bf16 %v4050
    %v4440 = vunpack.c.l.bf16 %v4051
    %v4441 = vunpack.c.h.bf16 %v4051
    %v4442 = vunpack.c.l.bf16 %v4052
    %v4443 = vunpack.c.h.bf16 %v4052
    %v4444 = vunpack.c.l.bf16 %v4053
    %v4445 = vunpack.c.h.bf16 %v4053
    %v4446 = vunpack.c.l.bf16 %v4054
    %v4447 = vunpack.c.h.bf16 %v4054
    %v4448 = vunpack.c.l.bf16 %v4055
    %v4449 = vunpack.c.h.bf16 %v4055
    %v4450 = vunpack.c.l.bf16 %v4056
    %v4451 = vunpack.c.h.bf16 %v4056
    %v4452 = vunpack.c.l.bf16 %v4057
    %v4453 = vunpack.c.h.bf16 %v4057
    %v4454 = vunpack.c.l.bf16 %v4058
    %v4455 = vunpack.c.h.bf16 %v4058
    %v4456 = vunpack.c.l.bf16 %v4059
    %v4457 = vunpack.c.h.bf16 %v4059
    %v4458 = vunpack.c.l.bf16 %v4060
    %v4459 = vunpack.c.h.bf16 %v4060
    %v4460 = vunpack.c.l.bf16 %v4061
    %v4461 = vunpack.c.h.bf16 %v4061
    %v4462 = vunpack.c.l.bf16 %v4062
    %v4463 = vunpack.c.h.bf16 %v4062
    %v4464 = vunpack.c.l.bf16 %v4063
    %v4465 = vunpack.c.h.bf16 %v4063
    %v4466 = vunpack.c.l.bf16 %v4064
    %v4467 = vunpack.c.h.bf16 %v4064
    %v4468 = vunpack.c.l.bf16 %v4065
    %v4469 = vunpack.c.h.bf16 %v4065
    %v4470 = vunpack.c.l.bf16 %v4066
    %v4471 = vunpack.c.h.bf16 %v4066
    %v4472 = vunpack.c.l.bf16 %v4067
    %v4473 = vunpack.c.h.bf16 %v4067
    %v4474 = vunpack.c.l.bf16 %v4068
    %v4475 = vunpack.c.h.bf16 %v4068
    %v4476 = vunpack.c.l.bf16 %v4069
    %v4477 = vunpack.c.h.bf16 %v4069
    %v4478 = vunpack.c.l.bf16 %v4070
    %v4479 = vunpack.c.h.bf16 %v4070
    %v4480 = vunpack.c.l.bf16 %v4071
    %v4481 = vunpack.c.h.bf16 %v4071
    %v4482 = vunpack.c.l.bf16 %v4072
    %v4483 = vunpack.c.h.bf16 %v4072
    %v4484 = vunpack.c.l.bf16 %v4073
    %v4485 = vunpack.c.h.bf16 %v4073
    %v4486 = vunpack.c.l.bf16 %v4074
    %v4487 = vunpack.c.h.bf16 %v4074
    %v4488 = vunpack.c.l.bf16 %v4075
    %v4489 = vunpack.c.h.bf16 %v4075
    %v4490 = vunpack.c.l.bf16 %v4076
    %v4491 = vunpack.c.h.bf16 %v4076
    %v4492 = vunpack.c.l.bf16 %v4077
    %v4493 = vunpack.c.h.bf16 %v4077
    %v4494 = vunpack.c.l.bf16 %v4078
    %v4495 = vunpack.c.h.bf16 %v4078
    %v4496 = vunpack.c.l.bf16 %v4079
    %v4497 = vunpack.c.h.bf16 %v4079
    %v4498 = vunpack.c.l.bf16 %v4080
    %v4499 = vunpack.c.h.bf16 %v4080
    %v4500 = vunpack.c.l.bf16 %v4081
    %v4501 = vunpack.c.h.bf16 %v4081
    %v4502 = vunpack.c.l.bf16 %v4082
    %v4503 = vunpack.c.h.bf16 %v4082
    %v4504 = vunpack.c.l.bf16 %v4083
    %v4505 = vunpack.c.h.bf16 %v4083
    %v4506 = vunpack.c.l.bf16 %v4084
    %v4507 = vunpack.c.h.bf16 %v4084
    %v4508 = vunpack.c.l.bf16 %v4085
    %v4509 = vunpack.c.h.bf16 %v4085
    %v4510 = vunpack.c.l.bf16 %v4086
    %v4511 = vunpack.c.h.bf16 %v4086
    %v4512 = vunpack.c.l.bf16 %v4087
    %v4513 = vunpack.c.h.bf16 %v4087
    %v4514 = vunpack.c.l.bf16 %v4088
    %v4515 = vunpack.c.h.bf16 %v4088
    %v4516 = vunpack.c.l.bf16 %v4089
    %v4517 = vunpack.c.h.bf16 %v4089
    %v4518 = vunpack.c.l.bf16 %v4090
    %v4519 = vunpack.c.h.bf16 %v4090
    %v4520 = vunpack.c.l.bf16 %v4091
    %v4521 = vunpack.c.h.bf16 %v4091
    %v4522 = vunpack.c.l.bf16 %v4092
    %v4523 = vunpack.c.h.bf16 %v4092
    %v4524 = vunpack.c.l.bf16 %v4093
    %v4525 = vunpack.c.h.bf16 %v4093
    %v4526 = vunpack.c.l.bf16 %v4094
    %v4527 = vunpack.c.h.bf16 %v4094
    %v4528 = vunpack.c.l.bf16 %v4095
    %v4529 = vunpack.c.h.bf16 %v4095
    %v4530 = vunpack.c.l.bf16 %v4096
    %v4531 = vunpack.c.h.bf16 %v4096
    %v4532 = vunpack.c.l.bf16 %v4097
    %v4533 = vunpack.c.h.bf16 %v4097
    %v4534 = vunpack.c.l.bf16 %v4098
    %v4535 = vunpack.c.h.bf16 %v4098
    %v4536 = vunpack.c.l.bf16 %v4099
    %v4537 = vunpack.c.h.bf16 %v4099
    %v4538 = vunpack.c.l.bf16 %v4100
    %v4539 = vunpack.c.h.bf16 %v4100
    %v4540 = vunpack.c.l.bf16 %v4101
    %v4541 = vunpack.c.h.bf16 %v4101
    %v4542 = vunpack.c.l.bf16 %v4102
    %v4543 = vunpack.c.h.bf16 %v4102
    %v4544 = vunpack.c.l.bf16 %v4103
    %v4545 = vunpack.c.h.bf16 %v4103
    %v4546 = vunpack.c.l.bf16 %v4104
    %v4547 = vunpack.c.h.bf16 %v4104
    %v4548 = vunpack.c.l.bf16 %v4105
    %v4549 = vunpack.c.h.bf16 %v4105
    %v4550 = vunpack.c.l.bf16 %v4106
    %v4551 = vunpack.c.h.bf16 %v4106
    %v4552 = vunpack.c.l.bf16 %v4107
    %v4553 = vunpack.c.h.bf16 %v4107
    %v4554 = vunpack.c.l.bf16 %v4108
    %v4555 = vunpack.c.h.bf16 %v4108
    %v4556 = vunpack.c.l.bf16 %v4109
    %v4557 = vunpack.c.h.bf16 %v4109
    %v4558 = vunpack.c.l.bf16 %v4110
    %v4559 = vunpack.c.h.bf16 %v4110
    %v4560 = vunpack.c.l.bf16 %v4111
    %v4561 = vunpack.c.h.bf16 %v4111
    %v4562 = vunpack.c.l.bf16 %v4112
    %v4563 = vunpack.c.h.bf16 %v4112
    %v4564 = vunpack.c.l.bf16 %v4113
    %v4565 = vunpack.c.h.bf16 %v4113
    %v4566 = vunpack.c.l.bf16 %v4114
    %v4567 = vunpack.c.h.bf16 %v4114
    %v4568 = vunpack.c.l.bf16 %v4115
    %v4569 = vunpack.c.h.bf16 %v4115
    %v4570 = vunpack.c.l.bf16 %v4116
    %v4571 = vunpack.c.h.bf16 %v4116
    %v4572 = vunpack.c.l.bf16 %v4117
    %v4573 = vunpack.c.h.bf16 %v4117
    %v4574 = vunpack.c.l.bf16 %v4118
    %v4575 = vunpack.c.h.bf16 %v4118
    %v4576 = vunpack.c.l.bf16 %v4119
    %v4577 = vunpack.c.h.bf16 %v4119
    %v4578 = vunpack.c.l.bf16 %v4120
    %v4579 = vunpack.c.h.bf16 %v4120
    %v4580 = vunpack.c.l.bf16 %v4121
    %v4581 = vunpack.c.h.bf16 %v4121
    %v4582 = vunpack.c.l.bf16 %v4122
    %v4583 = vunpack.c.h.bf16 %v4122
    %v4584 = vunpack.c.l.bf16 %v4123
    %v4585 = vunpack.c.h.bf16 %v4123
    %v4586 = vunpack.c.l.bf16 %v4124
    %v4587 = vunpack.c.h.bf16 %v4124
    %v4588 = vunpack.c.l.bf16 %v4125
    %v4589 = vunpack.c.h.bf16 %v4125
    %v4590 = vunpack.c.l.bf16 %v4126
    %v4591 = vunpack.c.h.bf16 %v4126
    %v4592 = vunpack.c.l.bf16 %v4127
    %v4593 = vunpack.c.h.bf16 %v4127
    %v4594 = vunpack.c.l.bf16 %v4128
    %v4595 = vunpack.c.h.bf16 %v4128
    %v4596 = vunpack.c.l.bf16 %v4129
    %v4597 = vunpack.c.h.bf16 %v4129
    %v4598 = vunpack.c.l.bf16 %v4130
    %v4599 = vunpack.c.h.bf16 %v4130
    %v4600 = vunpack.c.l.bf16 %v4131
    %v4601 = vunpack.c.h.bf16 %v4131
    %v4602 = vunpack.c.l.bf16 %v4132
    %v4603 = vunpack.c.h.bf16 %v4132
    %v4604 = vunpack.c.l.bf16 %v4133
    %v4605 = vunpack.c.h.bf16 %v4133
    %v4606 = vunpack.c.l.bf16 %v4134
    %v4607 = vunpack.c.h.bf16 %v4134
    %v4608 = vunpack.c.l.bf16 %v4135
    %v4609 = vunpack.c.h.bf16 %v4135
    %v4610 = vunpack.c.l.bf16 %v4136
    %v4611 = vunpack.c.h.bf16 %v4136
    %v4612 = vunpack.c.l.bf16 %v4137
    %v4613 = vunpack.c.h.bf16 %v4137
    %v4614 = vunpack.c.l.bf16 %v4138
    %v4615 = vunpack.c.h.bf16 %v4138
    %v4616 = vunpack.c.l.bf16 %v4139
    %v4617 = vunpack.c.h.bf16 %v4139
    %v4618 = vunpack.c.l.bf16 %v4140
    %v4619 = vunpack.c.h.bf16 %v4140
    %v4620 = vunpack.c.l.bf16 %v4141
    %v4621 = vunpack.c.h.bf16 %v4141
    %v4622 = vunpack.c.l.bf16 %v4142
    %v4623 = vunpack.c.h.bf16 %v4142
    %v4624 = vunpack.c.l.bf16 %v4143
    %v4625 = vunpack.c.h.bf16 %v4143
    %v4626 = vunpack.c.l.bf16 %v4144
    %v4627 = vunpack.c.h.bf16 %v4144
    %v4628 = vunpack.c.l.bf16 %v4145
    %v4629 = vunpack.c.h.bf16 %v4145
    %v4630 = vunpack.c.l.bf16 %v4146
    %v4631 = vunpack.c.h.bf16 %v4146
    %v4632 = vunpack.c.l.bf16 %v4147
    %v4633 = vunpack.c.h.bf16 %v4147
    %v4634 = vunpack.c.l.bf16 %v4148
    %v4635 = vunpack.c.h.bf16 %v4148
    %v4636 = vunpack.c.l.bf16 %v4149
    %v4637 = vunpack.c.h.bf16 %v4149
    %v4638 = vunpack.c.l.bf16 %v4150
    %v4639 = vunpack.c.h.bf16 %v4150
    %v4640 = vunpack.c.l.bf16 %v4151
    %v4641 = vunpack.c.h.bf16 %v4151
    %v4642 = vunpack.c.l.bf16 %v4152
    %v4643 = vunpack.c.h.bf16 %v4152
    %v4644 = vunpack.c.l.bf16 %v4153
    %v4645 = vunpack.c.h.bf16 %v4153
    %v4646 = vunpack.c.l.bf16 %v4154
    %v4647 = vunpack.c.h.bf16 %v4154
    %v4648 = vunpack.c.l.bf16 %v4155
    %v4649 = vunpack.c.h.bf16 %v4155
    %v4650 = vunpack.c.l.bf16 %v4156
    %v4651 = vunpack.c.h.bf16 %v4156
    %v4652 = vunpack.c.l.bf16 %v4157
    %v4653 = vunpack.c.h.bf16 %v4157
    %v4654 = vunpack.c.l.bf16 %v4158
    %v4655 = vunpack.c.h.bf16 %v4158
    %v4656 = vunpack.c.l.bf16 %v4159
    %v4657 = vunpack.c.h.bf16 %v4159
    %v4658 = vunpack.c.l.bf16 %v4160
    %v4659 = vunpack.c.h.bf16 %v4160
    %v4660 = vunpack.c.l.bf16 %v4161
    %v4661 = vunpack.c.h.bf16 %v4161
    %v4662 = vunpack.c.l.bf16 %v4162
    %v4663 = vunpack.c.h.bf16 %v4162
    %v4664 = vunpack.c.l.bf16 %v4163
    %v4665 = vunpack.c.h.bf16 %v4163
    %v4666 = vunpack.c.l.bf16 %v4164
    %v4667 = vunpack.c.h.bf16 %v4164
    %v4668 = vunpack.c.l.bf16 %v4165
    %v4669 = vunpack.c.h.bf16 %v4165
    %v4670 = vunpack.c.l.bf16 %v4166
    %v4671 = vunpack.c.h.bf16 %v4166
    %v4672 = vunpack.c.l.bf16 %v4167
    %v4673 = vunpack.c.h.bf16 %v4167
    %v4674 = vunpack.c.l.bf16 %v4168
    %v4675 = vunpack.c.h.bf16 %v4168
    %v4676 = vunpack.c.l.bf16 %v4169
    %v4677 = vunpack.c.h.bf16 %v4169
    %v4678 = vunpack.c.l.bf16 %v4170
    %v4679 = vunpack.c.h.bf16 %v4170
    %v4680 = vunpack.c.l.bf16 %v4171
    %v4681 = vunpack.c.h.bf16 %v4171
    %v4682 = vunpack.c.l.bf16 %v4172
    %v4683 = vunpack.c.h.bf16 %v4172
    %v4684 = vunpack.c.l.bf16 %v4173
    %v4685 = vunpack.c.h.bf16 %v4173
    %v4686 = vunpack.c.l.bf16 %v4174
    %v4687 = vunpack.c.h.bf16 %v4174
    %v4688 = vunpack.c.l.bf16 %v4175
    %v4689 = vunpack.c.h.bf16 %v4175
    %v4690 = vunpack.c.l.bf16 %v4176
    %v4691 = vunpack.c.h.bf16 %v4176
    %v4692 = vunpack.c.l.bf16 %v4177
    %v4693 = vunpack.c.h.bf16 %v4177
    %v4694 = vunpack.c.l.bf16 %v4178
    %v4695 = vunpack.c.h.bf16 %v4178
    %v4696 = vunpack.c.l.bf16 %v4179
    %v4697 = vunpack.c.h.bf16 %v4179
    %v4698 = vunpack.c.l.bf16 %v4180
    %v4699 = vunpack.c.h.bf16 %v4180
    %v4700 = vunpack.c.l.bf16 %v4181
    %v4701 = vunpack.c.h.bf16 %v4181
    %v4702 = vunpack.c.l.bf16 %v4182
    %v4703 = vunpack.c.h.bf16 %v4182
    %v4704 = vunpack.c.l.bf16 %v4183
    %v4705 = vunpack.c.h.bf16 %v4183
    %v4706 = vunpack.c.l.bf16 %v4184
    %v4707 = vunpack.c.h.bf16 %v4184
    %v4708 = vunpack.c.l.bf16 %v4185
    %v4709 = vunpack.c.h.bf16 %v4185
    %v4710 = vunpack.c.l.bf16 %v4186
    %v4711 = vunpack.c.h.bf16 %v4186
    %v4712 = vunpack.c.l.bf16 %v4187
    %v4713 = vunpack.c.h.bf16 %v4187
    %v4714 = vunpack.c.l.bf16 %v4188
    %v4715 = vunpack.c.h.bf16 %v4188
    %v4716 = vunpack.c.l.bf16 %v4189
    %v4717 = vunpack.c.h.bf16 %v4189
    %v4718 = vunpack.c.l.bf16 %v4190
    %v4719 = vunpack.c.h.bf16 %v4190
    %v4720 = vunpack.c.l.bf16 %v4191
    %v4721 = vunpack.c.h.bf16 %v4191
    %v4722 = vunpack.c.l.bf16 %v4192
    %v4723 = vunpack.c.h.bf16 %v4192
    %v4724 = vunpack.c.l.bf16 %v4193
    %v4725 = vunpack.c.h.bf16 %v4193
    %v4726 = vunpack.c.l.bf16 %v4194
    %v4727 = vunpack.c.h.bf16 %v4194
    %v4728 = vunpack.c.l.bf16 %v4195
    %v4729 = vunpack.c.h.bf16 %v4195
    %v4730 = vunpack.c.l.bf16 %v4196
    %v4731 = vunpack.c.h.bf16 %v4196
    %v4732 = vunpack.c.l.bf16 %v4197
    %v4733 = vunpack.c.h.bf16 %v4197
    %v4734 = vunpack.c.l.bf16 %v4198
    %v4735 = vunpack.c.h.bf16 %v4198
    %v4736 = vunpack.c.l.bf16 %v4199
    %v4737 = vunpack.c.h.bf16 %v4199
    %v4738 = vunpack.c.l.bf16 %v4200
    %v4739 = vunpack.c.h.bf16 %v4200
    %v4740 = vunpack.c.l.bf16 %v4201
    %v4741 = vunpack.c.h.bf16 %v4201
    %v4742 = vunpack.c.l.bf16 %v4202
    %v4743 = vunpack.c.h.bf16 %v4202
    %v4744 = vunpack.c.l.bf16 %v4203
    %v4745 = vunpack.c.h.bf16 %v4203
    %v4746 = vunpack.c.l.bf16 %v4204
    %v4747 = vunpack.c.h.bf16 %v4204
    %v4748 = vunpack.c.l.bf16 %v4205
    %v4749 = vunpack.c.h.bf16 %v4205
    %v4750 = vunpack.c.l.bf16 %v4206
    %v4751 = vunpack.c.h.bf16 %v4206
    %v4752 = vunpack.c.l.bf16 %v4207
    %v4753 = vunpack.c.h.bf16 %v4207
    %v4754 = vunpack.c.l.bf16 %v4208
    %v4755 = vunpack.c.h.bf16 %v4208
    %v4756 = vunpack.c.l.bf16 %v4209
    %v4757 = vunpack.c.h.bf16 %v4209
    %v4758 = vunpack.c.l.bf16 %v4210
    %v4759 = vunpack.c.h.bf16 %v4210
    %v4760 = vunpack.c.l.bf16 %v4211
    %v4761 = vunpack.c.h.bf16 %v4211
    %v4762 = vunpack.c.l.bf16 %v4212
    %v4763 = vunpack.c.h.bf16 %v4212
    %v4764 = vunpack.c.l.bf16 %v4213
    %v4765 = vunpack.c.h.bf16 %v4213
    %v4766 = vunpack.c.l.bf16 %v4214
    %v4767 = vunpack.c.h.bf16 %v4214
    %v4768 = vunpack.c.l.bf16 %v4215
    %v4769 = vunpack.c.h.bf16 %v4215
    %v4770 = vunpack.c.l.bf16 %v4216
    %v4771 = vunpack.c.h.bf16 %v4216
    %v4772 = vunpack.c.l.bf16 %v4217
    %v4773 = vunpack.c.h.bf16 %v4217
    %v4774 = vunpack.c.l.bf16 %v4218
    %v4775 = vunpack.c.h.bf16 %v4218
    %v4776 = vunpack.c.l.bf16 %v4219
    %v4777 = vunpack.c.h.bf16 %v4219
    %v4778 = vunpack.c.l.bf16 %v4220
    %v4779 = vunpack.c.h.bf16 %v4220
    %v4780 = vunpack.c.l.bf16 %v4221
    %v4781 = vunpack.c.h.bf16 %v4221
    %v4782 = vunpack.c.l.bf16 %v4222
    %v4783 = vunpack.c.h.bf16 %v4222
    %v4784 = vunpack.c.l.bf16 %v4223
    %v4785 = vunpack.c.h.bf16 %v4223
    %v4786 = vunpack.c.l.bf16 %v4224
    %v4787 = vunpack.c.h.bf16 %v4224
    %v4788 = vunpack.c.l.bf16 %v4225
    %v4789 = vunpack.c.h.bf16 %v4225
    %v4790 = vunpack.c.l.bf16 %v4226
    %v4791 = vunpack.c.h.bf16 %v4226
    %v4792 = vunpack.c.l.bf16 %v4227
    %v4793 = vunpack.c.h.bf16 %v4227
    %v4794 = vunpack.c.l.bf16 %v4228
    %v4795 = vunpack.c.h.bf16 %v4228
    %v4796 = vunpack.c.l.bf16 %v4229
    %v4797 = vunpack.c.h.bf16 %v4229
    %v4798 = vunpack.c.l.bf16 %v4230
    %v4799 = vunpack.c.h.bf16 %v4230
    %v4800 = vunpack.c.l.bf16 %v4231
    %v4801 = vunpack.c.h.bf16 %v4231
    %v4802 = vunpack.c.l.bf16 %v4232
    %v4803 = vunpack.c.h.bf16 %v4232
    %v4804 = vunpack.c.l.bf16 %v4233
    %v4805 = vunpack.c.h.bf16 %v4233
    %v4806 = vunpack.c.l.bf16 %v4234
    %v4807 = vunpack.c.h.bf16 %v4234
    %v4808 = vunpack.c.l.bf16 %v4235
    %v4809 = vunpack.c.h.bf16 %v4235
    %v4810 = vunpack.c.l.bf16 %v4236
    %v4811 = vunpack.c.h.bf16 %v4236
    %v4812 = vunpack.c.l.bf16 %v4237
    %v4813 = vunpack.c.h.bf16 %v4237
    %v4814 = vunpack.c.l.bf16 %v4238
    %v4815 = vunpack.c.h.bf16 %v4238
    %v4816 = vunpack.c.l.bf16 %v4239
    %v4817 = vunpack.c.h.bf16 %v4239
    %v4818 = vunpack.c.l.bf16 %v4240
    %v4819 = vunpack.c.h.bf16 %v4240
    %v4820 = vunpack.c.l.bf16 %v4241
    %v4821 = vunpack.c.h.bf16 %v4241
    %v4822 = vunpack.c.l.bf16 %v4242
    %v4823 = vunpack.c.h.bf16 %v4242
    %v4824 = vunpack.c.l.bf16 %v4243
    %v4825 = vunpack.c.h.bf16 %v4243
    %v4826 = vunpack.c.l.bf16 %v4244
    %v4827 = vunpack.c.h.bf16 %v4244
    %v4828 = vunpack.c.l.bf16 %v4245
    %v4829 = vunpack.c.h.bf16 %v4245
    %v4830 = vunpack.c.l.bf16 %v4246
    %v4831 = vunpack.c.h.bf16 %v4246
    %v4832 = vunpack.c.l.bf16 %v4247
    %v4833 = vunpack.c.h.bf16 %v4247
    %v4834 = vunpack.c.l.bf16 %v4248
    %v4835 = vunpack.c.h.bf16 %v4248
    %v4836 = vunpack.c.l.bf16 %v4249
    %v4837 = vunpack.c.h.bf16 %v4249
    %v4838 = vunpack.c.l.bf16 %v4250
    %v4839 = vunpack.c.h.bf16 %v4250
    %v4840 = vunpack.c.l.bf16 %v4251
    %v4841 = vunpack.c.h.bf16 %v4251
    %v4842 = vunpack.c.l.bf16 %v4252
    %v4843 = vunpack.c.h.bf16 %v4252
    %v4844 = vunpack.c.l.bf16 %v4253
    %v4845 = vunpack.c.h.bf16 %v4253
    %v4846 = vunpack.c.l.bf16 %v4270
    %v4847 = vunpack.c.l.bf16 %v4279
    %v4848 = vunpack.c.l.bf16 %v4288
    %v4849 = vunpack.c.l.bf16 %v4297
    %v4850 = vunpack.c.l.bf16 %v4306
    %v4851 = vunpack.c.l.bf16 %v4315
    %v4852 = vunpack.c.l.bf16 %v4324
    %v4853 = vunpack.c.l.bf16 %v4333
    %v4854 = vadd.f32 %v4334, %v4846
    %v4855 = vadd.f32 %v4335, %v4846
    %v4856 = vadd.f32 %v4336, %v4846
    %v4857 = vadd.f32 %v4337, %v4846
    %v4858 = vadd.f32 %v4338, %v4846
    %v4859 = vadd.f32 %v4339, %v4846
    %v4860 = vadd.f32 %v4340, %v4846
    %v4861 = vadd.f32 %v4341, %v4846
    %v4862 = vadd.f32 %v4342, %v4846
    %v4863 = vadd.f32 %v4343, %v4846
    %v4864 = vadd.f32 %v4344, %v4846
    %v4865 = vadd.f32 %v4345, %v4846
    %v4866 = vadd.f32 %v4346, %v4846
    %v4867 = vadd.f32 %v4347, %v4846
    %v4868 = vadd.f32 %v4348, %v4846
    %v4869 = vadd.f32 %v4349, %v4846
    %v4870 = vadd.f32 %v4350, %v4846
    %v4871 = vadd.f32 %v4351, %v4846
    %v4872 = vadd.f32 %v4352, %v4846
    %v4873 = vadd.f32 %v4353, %v4846
    %v4874 = vadd.f32 %v4354, %v4846
    %v4875 = vadd.f32 %v4355, %v4846
    %v4876 = vadd.f32 %v4356, %v4846
    %v4877 = vadd.f32 %v4357, %v4846
    %v4878 = vadd.f32 %v4358, %v4846
    %v4879 = vadd.f32 %v4359, %v4846
    %v4880 = vadd.f32 %v4360, %v4846
    %v4881 = vadd.f32 %v4361, %v4846
    %v4882 = vadd.f32 %v4362, %v4846
    %v4883 = vadd.f32 %v4363, %v4846
    %v4884 = vadd.f32 %v4364, %v4846
    %v4885 = vadd.f32 %v4365, %v4846
    %v4886 = vadd.f32 %v4366, %v4846
    %v4887 = vadd.f32 %v4367, %v4846
    %v4888 = vadd.f32 %v4368, %v4846
    %v4889 = vadd.f32 %v4369, %v4846
    %v4890 = vadd.f32 %v4370, %v4846
    %v4891 = vadd.f32 %v4371, %v4846
    %v4892 = vadd.f32 %v4372, %v4846
    %v4893 = vadd.f32 %v4373, %v4846
    %v4894 = vadd.f32 %v4374, %v4846
    %v4895 = vadd.f32 %v4375, %v4846
    %v4896 = vadd.f32 %v4376, %v4846
    %v4897 = vadd.f32 %v4377, %v4846
    %v4898 = vadd.f32 %v4378, %v4846
    %v4899 = vadd.f32 %v4379, %v4846
    %v4900 = vadd.f32 %v4380, %v4846
    %v4901 = vadd.f32 %v4381, %v4846
    %v4902 = vadd.f32 %v4382, %v4846
    %v4903 = vadd.f32 %v4383, %v4846
    %v4904 = vadd.f32 %v4384, %v4846
    %v4905 = vadd.f32 %v4385, %v4846
    %v4906 = vadd.f32 %v4386, %v4846
    %v4907 = vadd.f32 %v4387, %v4846
    %v4908 = vadd.f32 %v4388, %v4846
    %v4909 = vadd.f32 %v4389, %v4846
    %v4910 = vadd.f32 %v4390, %v4846
    %v4911 = vadd.f32 %v4391, %v4846
    %v4912 = vadd.f32 %v4392, %v4846
    %v4913 = vadd.f32 %v4393, %v4846
    %v4914 = vadd.f32 %v4394, %v4846
    %v4915 = vadd.f32 %v4395, %v4846
    %v4916 = vadd.f32 %v4396, %v4846
    %v4917 = vadd.f32 %v4397, %v4846
    %v4918 = vadd.f32 %v4398, %v4847
    %v4919 = vadd.f32 %v4399, %v4847
    %v4920 = vadd.f32 %v4400, %v4847
    %v4921 = vadd.f32 %v4401, %v4847
    %v4922 = vadd.f32 %v4402, %v4847
    %v4923 = vadd.f32 %v4403, %v4847
    %v4924 = vadd.f32 %v4404, %v4847
    %v4925 = vadd.f32 %v4405, %v4847
    %v4926 = vadd.f32 %v4406, %v4847
    %v4927 = vadd.f32 %v4407, %v4847
    %v4928 = vadd.f32 %v4408, %v4847
    %v4929 = vadd.f32 %v4409, %v4847
    %v4930 = vadd.f32 %v4410, %v4847
    %v4931 = vadd.f32 %v4411, %v4847
    %v4932 = vadd.f32 %v4412, %v4847
    %v4933 = vadd.f32 %v4413, %v4847
    %v4934 = vadd.f32 %v4414, %v4847
    %v4935 = vadd.f32 %v4415, %v4847
    %v4936 = vadd.f32 %v4416, %v4847
    %v4937 = vadd.f32 %v4417, %v4847
    %v4938 = vadd.f32 %v4418, %v4847
    %v4939 = vadd.f32 %v4419, %v4847
    %v4940 = vadd.f32 %v4420, %v4847
    %v4941 = vadd.f32 %v4421, %v4847
    %v4942 = vadd.f32 %v4422, %v4847
    %v4943 = vadd.f32 %v4423, %v4847
    %v4944 = vadd.f32 %v4424, %v4847
    %v4945 = vadd.f32 %v4425, %v4847
    %v4946 = vadd.f32 %v4426, %v4847
    %v4947 = vadd.f32 %v4427, %v4847
    %v4948 = vadd.f32 %v4428, %v4847
    %v4949 = vadd.f32 %v4429, %v4847
    %v4950 = vadd.f32 %v4430, %v4847
    %v4951 = vadd.f32 %v4431, %v4847
    %v4952 = vadd.f32 %v4432, %v4847
    %v4953 = vadd.f32 %v4433, %v4847
    %v4954 = vadd.f32 %v4434, %v4847
    %v4955 = vadd.f32 %v4435, %v4847
    %v4956 = vadd.f32 %v4436, %v4847
    %v4957 = vadd.f32 %v4437, %v4847
    %v4958 = vadd.f32 %v4438, %v4847
    %v4959 = vadd.f32 %v4439, %v4847
    %v4960 = vadd.f32 %v4440, %v4847
    %v4961 = vadd.f32 %v4441, %v4847
    %v4962 = vadd.f32 %v4442, %v4847
    %v4963 = vadd.f32 %v4443, %v4847
    %v4964 = vadd.f32 %v4444, %v4847
    %v4965 = vadd.f32 %v4445, %v4847
    %v4966 = vadd.f32 %v4446, %v4847
    %v4967 = vadd.f32 %v4447, %v4847
    %v4968 = vadd.f32 %v4448, %v4847
    %v4969 = vadd.f32 %v4449, %v4847
    %v4970 = vadd.f32 %v4450, %v4847
    %v4971 = vadd.f32 %v4451, %v4847
    %v4972 = vadd.f32 %v4452, %v4847
    %v4973 = vadd.f32 %v4453, %v4847
    %v4974 = vadd.f32 %v4454, %v4847
    %v4975 = vadd.f32 %v4455, %v4847
    %v4976 = vadd.f32 %v4456, %v4847
    %v4977 = vadd.f32 %v4457, %v4847
    %v4978 = vadd.f32 %v4458, %v4847
    %v4979 = vadd.f32 %v4459, %v4847
    %v4980 = vadd.f32 %v4460, %v4847
    %v4981 = vadd.f32 %v4461, %v4847
    %v4982 = vadd.f32 %v4462, %v4848
    %v4983 = vadd.f32 %v4463, %v4848
    %v4984 = vadd.f32 %v4464, %v4848
    %v4985 = vadd.f32 %v4465, %v4848
    %v4986 = vadd.f32 %v4466, %v4848
    %v4987 = vadd.f32 %v4467, %v4848
    %v4988 = vadd.f32 %v4468, %v4848
    %v4989 = vadd.f32 %v4469, %v4848
    %v4990 = vadd.f32 %v4470, %v4848
    %v4991 = vadd.f32 %v4471, %v4848
    %v4992 = vadd.f32 %v4472, %v4848
    %v4993 = vadd.f32 %v4473, %v4848
    %v4994 = vadd.f32 %v4474, %v4848
    %v4995 = vadd.f32 %v4475, %v4848
    %v4996 = vadd.f32 %v4476, %v4848
    %v4997 = vadd.f32 %v4477, %v4848
    %v4998 = vadd.f32 %v4478, %v4848
    %v4999 = vadd.f32 %v4479, %v4848
    %v5000 = vadd.f32 %v4480, %v4848
    %v5001 = vadd.f32 %v4481, %v4848
    %v5002 = vadd.f32 %v4482, %v4848
    %v5003 = vadd.f32 %v4483, %v4848
    %v5004 = vadd.f32 %v4484, %v4848
    %v5005 = vadd.f32 %v4485, %v4848
    %v5006 = vadd.f32 %v4486, %v4848
    %v5007 = vadd.f32 %v4487, %v4848
    %v5008 = vadd.f32 %v4488, %v4848
    %v5009 = vadd.f32 %v4489, %v4848
    %v5010 = vadd.f32 %v4490, %v4848
    %v5011 = vadd.f32 %v4491, %v4848
    %v5012 = vadd.f32 %v4492, %v4848
    %v5013 = vadd.f32 %v4493, %v4848
    %v5014 = vadd.f32 %v4494, %v4848
    %v5015 = vadd.f32 %v4495, %v4848
    %v5016 = vadd.f32 %v4496, %v4848
    %v5017 = vadd.f32 %v4497, %v4848
    %v5018 = vadd.f32 %v4498, %v4848
    %v5019 = vadd.f32 %v4499, %v4848
    %v5020 = vadd.f32 %v4500, %v4848
    %v5021 = vadd.f32 %v4501, %v4848
    %v5022 = vadd.f32 %v4502, %v4848
    %v5023 = vadd.f32 %v4503, %v4848
    %v5024 = vadd.f32 %v4504, %v4848
    %v5025 = vadd.f32 %v4505, %v4848
    %v5026 = vadd.f32 %v4506, %v4848
    %v5027 = vadd.f32 %v4507, %v4848
    %v5028 = vadd.f32 %v4508, %v4848
    %v5029 = vadd.f32 %v4509, %v4848
    %v5030 = vadd.f32 %v4510, %v4848
    %v5031 = vadd.f32 %v4511, %v4848
    %v5032 = vadd.f32 %v4512, %v4848
    %v5033 = vadd.f32 %v4513, %v4848
    %v5034 = vadd.f32 %v4514, %v4848
    %v5035 = vadd.f32 %v4515, %v4848
    %v5036 = vadd.f32 %v4516, %v4848
    %v5037 = vadd.f32 %v4517, %v4848
    %v5038 = vadd.f32 %v4518, %v4848
    %v5039 = vadd.f32 %v4519, %v4848
    %v5040 = vadd.f32 %v4520, %v4848
    %v5041 = vadd.f32 %v4521, %v4848
    %v5042 = vadd.f32 %v4522, %v4848
    %v5043 = vadd.f32 %v4523, %v4848
    %v5044 = vadd.f32 %v4524, %v4848
    %v5045 = vadd.f32 %v4525, %v4848
    %v5046 = vadd.f32 %v4526, %v4849
    %v5047 = vadd.f32 %v4527, %v4849
    %v5048 = vadd.f32 %v4528, %v4849
    %v5049 = vadd.f32 %v4529, %v4849
    %v5050 = vadd.f32 %v4530, %v4849
    %v5051 = vadd.f32 %v4531, %v4849
    %v5052 = vadd.f32 %v4532, %v4849
    %v5053 = vadd.f32 %v4533, %v4849
    %v5054 = vadd.f32 %v4534, %v4849
    %v5055 = vadd.f32 %v4535, %v4849
    %v5056 = vadd.f32 %v4536, %v4849
    %v5057 = vadd.f32 %v4537, %v4849
    %v5058 = vadd.f32 %v4538, %v4849
    %v5059 = vadd.f32 %v4539, %v4849
    %v5060 = vadd.f32 %v4540, %v4849
    %v5061 = vadd.f32 %v4541, %v4849
    %v5062 = vadd.f32 %v4542, %v4849
    %v5063 = vadd.f32 %v4543, %v4849
    %v5064 = vadd.f32 %v4544, %v4849
    %v5065 = vadd.f32 %v4545, %v4849
    %v5066 = vadd.f32 %v4546, %v4849
    %v5067 = vadd.f32 %v4547, %v4849
    %v5068 = vadd.f32 %v4548, %v4849
    %v5069 = vadd.f32 %v4549, %v4849
    %v5070 = vadd.f32 %v4550, %v4849
    %v5071 = vadd.f32 %v4551, %v4849
    %v5072 = vadd.f32 %v4552, %v4849
    %v5073 = vadd.f32 %v4553, %v4849
    %v5074 = vadd.f32 %v4554, %v4849
    %v5075 = vadd.f32 %v4555, %v4849
    %v5076 = vadd.f32 %v4556, %v4849
    %v5077 = vadd.f32 %v4557, %v4849
    %v5078 = vadd.f32 %v4558, %v4849
    %v5079 = vadd.f32 %v4559, %v4849
    %v5080 = vadd.f32 %v4560, %v4849
    %v5081 = vadd.f32 %v4561, %v4849
    %v5082 = vadd.f32 %v4562, %v4849
    %v5083 = vadd.f32 %v4563, %v4849
    %v5084 = vadd.f32 %v4564, %v4849
    %v5085 = vadd.f32 %v4565, %v4849
    %v5086 = vadd.f32 %v4566, %v4849
    %v5087 = vadd.f32 %v4567, %v4849
    %v5088 = vadd.f32 %v4568, %v4849
    %v5089 = vadd.f32 %v4569, %v4849
    %v5090 = vadd.f32 %v4570, %v4849
    %v5091 = vadd.f32 %v4571, %v4849
    %v5092 = vadd.f32 %v4572, %v4849
    %v5093 = vadd.f32 %v4573, %v4849
    %v5094 = vadd.f32 %v4574, %v4849
    %v5095 = vadd.f32 %v4575, %v4849
    %v5096 = vadd.f32 %v4576, %v4849
    %v5097 = vadd.f32 %v4577, %v4849
    %v5098 = vadd.f32 %v4578, %v4849
    %v5099 = vadd.f32 %v4579, %v4849
    %v5100 = vadd.f32 %v4580, %v4849
    %v5101 = vadd.f32 %v4581, %v4849
    %v5102 = vadd.f32 %v4582, %v4849
    %v5103 = vadd.f32 %v4583, %v4849
    %v5104 = vadd.f32 %v4584, %v4849
    %v5105 = vadd.f32 %v4585, %v4849
    %v5106 = vadd.f32 %v4586, %v4849
    %v5107 = vadd.f32 %v4587, %v4849
    %v5108 = vadd.f32 %v4588, %v4849
    %v5109 = vadd.f32 %v4589, %v4849
    %v5110 = vadd.f32 %v4590, %v4850
    %v5111 = vadd.f32 %v4591, %v4850
    %v5112 = vadd.f32 %v4592, %v4850
    %v5113 = vadd.f32 %v4593, %v4850
    %v5114 = vadd.f32 %v4594, %v4850
    %v5115 = vadd.f32 %v4595, %v4850
    %v5116 = vadd.f32 %v4596, %v4850
    %v5117 = vadd.f32 %v4597, %v4850
    %v5118 = vadd.f32 %v4598, %v4850
    %v5119 = vadd.f32 %v4599, %v4850
    %v5120 = vadd.f32 %v4600, %v4850
    %v5121 = vadd.f32 %v4601, %v4850
    %v5122 = vadd.f32 %v4602, %v4850
    %v5123 = vadd.f32 %v4603, %v4850
    %v5124 = vadd.f32 %v4604, %v4850
    %v5125 = vadd.f32 %v4605, %v4850
    %v5126 = vadd.f32 %v4606, %v4850
    %v5127 = vadd.f32 %v4607, %v4850
    %v5128 = vadd.f32 %v4608, %v4850
    %v5129 = vadd.f32 %v4609, %v4850
    %v5130 = vadd.f32 %v4610, %v4850
    %v5131 = vadd.f32 %v4611, %v4850
    %v5132 = vadd.f32 %v4612, %v4850
    %v5133 = vadd.f32 %v4613, %v4850
    %v5134 = vadd.f32 %v4614, %v4850
    %v5135 = vadd.f32 %v4615, %v4850
    %v5136 = vadd.f32 %v4616, %v4850
    %v5137 = vadd.f32 %v4617, %v4850
    %v5138 = vadd.f32 %v4618, %v4850
    %v5139 = vadd.f32 %v4619, %v4850
    %v5140 = vadd.f32 %v4620, %v4850
    %v5141 = vadd.f32 %v4621, %v4850
    %v5142 = vadd.f32 %v4622, %v4850
    %v5143 = vadd.f32 %v4623, %v4850
    %v5144 = vadd.f32 %v4624, %v4850
    %v5145 = vadd.f32 %v4625, %v4850
    %v5146 = vadd.f32 %v4626, %v4850
    %v5147 = vadd.f32 %v4627, %v4850
    %v5148 = vadd.f32 %v4628, %v4850
    %v5149 = vadd.f32 %v4629, %v4850
    %v5150 = vadd.f32 %v4630, %v4850
    %v5151 = vadd.f32 %v4631, %v4850
    %v5152 = vadd.f32 %v4632, %v4850
    %v5153 = vadd.f32 %v4633, %v4850
    %v5154 = vadd.f32 %v4634, %v4850
    %v5155 = vadd.f32 %v4635, %v4850
    %v5156 = vadd.f32 %v4636, %v4850
    %v5157 = vadd.f32 %v4637, %v4850
    %v5158 = vadd.f32 %v4638, %v4850
    %v5159 = vadd.f32 %v4639, %v4850
    %v5160 = vadd.f32 %v4640, %v4850
    %v5161 = vadd.f32 %v4641, %v4850
    %v5162 = vadd.f32 %v4642, %v4850
    %v5163 = vadd.f32 %v4643, %v4850
    %v5164 = vadd.f32 %v4644, %v4850
    %v5165 = vadd.f32 %v4645, %v4850
    %v5166 = vadd.f32 %v4646, %v4850
    %v5167 = vadd.f32 %v4647, %v4850
    %v5168 = vadd.f32 %v4648, %v4850
    %v5169 = vadd.f32 %v4649, %v4850
    %v5170 = vadd.f32 %v4650, %v4850
    %v5171 = vadd.f32 %v4651, %v4850
    %v5172 = vadd.f32 %v4652, %v4850
    %v5173 = vadd.f32 %v4653, %v4850
    %v5174 = vadd.f32 %v4654, %v4851
    %v5175 = vadd.f32 %v4655, %v4851
    %v5176 = vadd.f32 %v4656, %v4851
    %v5177 = vadd.f32 %v4657, %v4851
    %v5178 = vadd.f32 %v4658, %v4851
    %v5179 = vadd.f32 %v4659, %v4851
    %v5180 = vadd.f32 %v4660, %v4851
    %v5181 = vadd.f32 %v4661, %v4851
    %v5182 = vadd.f32 %v4662, %v4851
    %v5183 = vadd.f32 %v4663, %v4851
    %v5184 = vadd.f32 %v4664, %v4851
    %v5185 = vadd.f32 %v4665, %v4851
    %v5186 = vadd.f32 %v4666, %v4851
    %v5187 = vadd.f32 %v4667, %v4851
    %v5188 = vadd.f32 %v4668, %v4851
    %v5189 = vadd.f32 %v4669, %v4851
    %v5190 = vadd.f32 %v4670, %v4851
    %v5191 = vadd.f32 %v4671, %v4851
    %v5192 = vadd.f32 %v4672, %v4851
    %v5193 = vadd.f32 %v4673, %v4851
    %v5194 = vadd.f32 %v4674, %v4851
    %v5195 = vadd.f32 %v4675, %v4851
    %v5196 = vadd.f32 %v4676, %v4851
    %v5197 = vadd.f32 %v4677, %v4851
    %v5198 = vadd.f32 %v4678, %v4851
    %v5199 = vadd.f32 %v4679, %v4851
    %v5200 = vadd.f32 %v4680, %v4851
    %v5201 = vadd.f32 %v4681, %v4851
    %v5202 = vadd.f32 %v4682, %v4851
    %v5203 = vadd.f32 %v4683, %v4851
    %v5204 = vadd.f32 %v4684, %v4851
    %v5205 = vadd.f32 %v4685, %v4851
    %v5206 = vadd.f32 %v4686, %v4851
    %v5207 = vadd.f32 %v4687, %v4851
    %v5208 = vadd.f32 %v4688, %v4851
    %v5209 = vadd.f32 %v4689, %v4851
    %v5210 = vadd.f32 %v4690, %v4851
    %v5211 = vadd.f32 %v4691, %v4851
    %v5212 = vadd.f32 %v4692, %v4851
    %v5213 = vadd.f32 %v4693, %v4851
    %v5214 = vadd.f32 %v4694, %v4851
    %v5215 = vadd.f32 %v4695, %v4851
    %v5216 = vadd.f32 %v4696, %v4851
    %v5217 = vadd.f32 %v4697, %v4851
    %v5218 = vadd.f32 %v4698, %v4851
    %v5219 = vadd.f32 %v4699, %v4851
    %v5220 = vadd.f32 %v4700, %v4851
    %v5221 = vadd.f32 %v4701, %v4851
    %v5222 = vadd.f32 %v4702, %v4851
    %v5223 = vadd.f32 %v4703, %v4851
    %v5224 = vadd.f32 %v4704, %v4851
    %v5225 = vadd.f32 %v4705, %v4851
    %v5226 = vadd.f32 %v4706, %v4851
    %v5227 = vadd.f32 %v4707, %v4851
    %v5228 = vadd.f32 %v4708, %v4851
    %v5229 = vadd.f32 %v4709, %v4851
    %v5230 = vadd.f32 %v4710, %v4851
    %v5231 = vadd.f32 %v4711, %v4851
    %v5232 = vadd.f32 %v4712, %v4851
    %v5233 = vadd.f32 %v4713, %v4851
    %v5234 = vadd.f32 %v4714, %v4851
    %v5235 = vadd.f32 %v4715, %v4851
    %v5236 = vadd.f32 %v4716, %v4851
    %v5237 = vadd.f32 %v4717, %v4851
    %v5238 = vadd.f32 %v4718, %v4852
    %v5239 = vadd.f32 %v4719, %v4852
    %v5240 = vadd.f32 %v4720, %v4852
    %v5241 = vadd.f32 %v4721, %v4852
    %v5242 = vadd.f32 %v4722, %v4852
    %v5243 = vadd.f32 %v4723, %v4852
    %v5244 = vadd.f32 %v4724, %v4852
    %v5245 = vadd.f32 %v4725, %v4852
    %v5246 = vadd.f32 %v4726, %v4852
    %v5247 = vadd.f32 %v4727, %v4852
    %v5248 = vadd.f32 %v4728, %v4852
    %v5249 = vadd.f32 %v4729, %v4852
    %v5250 = vadd.f32 %v4730, %v4852
    %v5251 = vadd.f32 %v4731, %v4852
    %v5252 = vadd.f32 %v4732, %v4852
    %v5253 = vadd.f32 %v4733, %v4852
    %v5254 = vadd.f32 %v4734, %v4852
    %v5255 = vadd.f32 %v4735, %v4852
    %v5256 = vadd.f32 %v4736, %v4852
    %v5257 = vadd.f32 %v4737, %v4852
    %v5258 = vadd.f32 %v4738, %v4852
    %v5259 = vadd.f32 %v4739, %v4852
    %v5260 = vadd.f32 %v4740, %v4852
    %v5261 = vadd.f32 %v4741, %v4852
    %v5262 = vadd.f32 %v4742, %v4852
    %v5263 = vadd.f32 %v4743, %v4852
    %v5264 = vadd.f32 %v4744, %v4852
    %v5265 = vadd.f32 %v4745, %v4852
    %v5266 = vadd.f32 %v4746, %v4852
    %v5267 = vadd.f32 %v4747, %v4852
    %v5268 = vadd.f32 %v4748, %v4852
    %v5269 = vadd.f32 %v4749, %v4852
    %v5270 = vadd.f32 %v4750, %v4852
    %v5271 = vadd.f32 %v4751, %v4852
    %v5272 = vadd.f32 %v4752, %v4852
    %v5273 = vadd.f32 %v4753, %v4852
    %v5274 = vadd.f32 %v4754, %v4852
    %v5275 = vadd.f32 %v4755, %v4852
    %v5276 = vadd.f32 %v4756, %v4852
    %v5277 = vadd.f32 %v4757, %v4852
    %v5278 = vadd.f32 %v4758, %v4852
    %v5279 = vadd.f32 %v4759, %v4852
    %v5280 = vadd.f32 %v4760, %v4852
    %v5281 = vadd.f32 %v4761, %v4852
    %v5282 = vadd.f32 %v4762, %v4852
    %v5283 = vadd.f32 %v4763, %v4852
    %v5284 = vadd.f32 %v4764, %v4852
    %v5285 = vadd.f32 %v4765, %v4852
    %v5286 = vadd.f32 %v4766, %v4852
    %v5287 = vadd.f32 %v4767, %v4852
    %v5288 = vadd.f32 %v4768, %v4852
    %v5289 = vadd.f32 %v4769, %v4852
    %v5290 = vadd.f32 %v4770, %v4852
    %v5291 = vadd.f32 %v4771, %v4852
    %v5292 = vadd.f32 %v4772, %v4852
    %v5293 = vadd.f32 %v4773, %v4852
    %v5294 = vadd.f32 %v4774, %v4852
    %v5295 = vadd.f32 %v4775, %v4852
    %v5296 = vadd.f32 %v4776, %v4852
    %v5297 = vadd.f32 %v4777, %v4852
    %v5298 = vadd.f32 %v4778, %v4852
    %v5299 = vadd.f32 %v4779, %v4852
    %v5300 = vadd.f32 %v4780, %v4852
    %v5301 = vadd.f32 %v4781, %v4852
    %v5302 = vadd.f32 %v4782, %v4853
    %v5303 = vadd.f32 %v4783, %v4853
    %v5304 = vadd.f32 %v4784, %v4853
    %v5305 = vadd.f32 %v4785, %v4853
    %v5306 = vadd.f32 %v4786, %v4853
    %v5307 = vadd.f32 %v4787, %v4853
    %v5308 = vadd.f32 %v4788, %v4853
    %v5309 = vadd.f32 %v4789, %v4853
    %v5310 = vadd.f32 %v4790, %v4853
    %v5311 = vadd.f32 %v4791, %v4853
    %v5312 = vadd.f32 %v4792, %v4853
    %v5313 = vadd.f32 %v4793, %v4853
    %v5314 = vadd.f32 %v4794, %v4853
    %v5315 = vadd.f32 %v4795, %v4853
    %v5316 = vadd.f32 %v4796, %v4853
    %v5317 = vadd.f32 %v4797, %v4853
    %v5318 = vadd.f32 %v4798, %v4853
    %v5319 = vadd.f32 %v4799, %v4853
    %v5320 = vadd.f32 %v4800, %v4853
    %v5321 = vadd.f32 %v4801, %v4853
    %v5322 = vadd.f32 %v4802, %v4853
    %v5323 = vadd.f32 %v4803, %v4853
    %v5324 = vadd.f32 %v4804, %v4853
    %v5325 = vadd.f32 %v4805, %v4853
    %v5326 = vadd.f32 %v4806, %v4853
    %v5327 = vadd.f32 %v4807, %v4853
    %v5328 = vadd.f32 %v4808, %v4853
    %v5329 = vadd.f32 %v4809, %v4853
    %v5330 = vadd.f32 %v4810, %v4853
    %v5331 = vadd.f32 %v4811, %v4853
    %v5332 = vadd.f32 %v4812, %v4853
    %v5333 = vadd.f32 %v4813, %v4853
    %v5334 = vadd.f32 %v4814, %v4853
    %v5335 = vadd.f32 %v4815, %v4853
    %v5336 = vadd.f32 %v4816, %v4853
    %v5337 = vadd.f32 %v4817, %v4853
    %v5338 = vadd.f32 %v4818, %v4853
    %v5339 = vadd.f32 %v4819, %v4853
    %v5340 = vadd.f32 %v4820, %v4853
    %v5341 = vadd.f32 %v4821, %v4853
    %v5342 = vadd.f32 %v4822, %v4853
    %v5343 = vadd.f32 %v4823, %v4853
    %v5344 = vadd.f32 %v4824, %v4853
    %v5345 = vadd.f32 %v4825, %v4853
    %v5346 = vadd.f32 %v4826, %v4853
    %v5347 = vadd.f32 %v4827, %v4853
    %v5348 = vadd.f32 %v4828, %v4853
    %v5349 = vadd.f32 %v4829, %v4853
    %v5350 = vadd.f32 %v4830, %v4853
    %v5351 = vadd.f32 %v4831, %v4853
    %v5352 = vadd.f32 %v4832, %v4853
    %v5353 = vadd.f32 %v4833, %v4853
    %v5354 = vadd.f32 %v4834, %v4853
    %v5355 = vadd.f32 %v4835, %v4853
    %v5356 = vadd.f32 %v4836, %v4853
    %v5357 = vadd.f32 %v4837, %v4853
    %v5358 = vadd.f32 %v4838, %v4853
    %v5359 = vadd.f32 %v4839, %v4853
    %v5360 = vadd.f32 %v4840, %v4853
    %v5361 = vadd.f32 %v4841, %v4853
    %v5362 = vadd.f32 %v4842, %v4853
    %v5363 = vadd.f32 %v4843, %v4853
    %v5364 = vadd.f32 %v4844, %v4853
    %v5365 = vadd.f32 %v4845, %v4853
    %v5366 = vpack.c.bf16 %v4855, %v4854
    %v5367 = vpack.c.bf16 %v4857, %v4856
    %v5368 = vpack.c.bf16 %v4859, %v4858
    %v5369 = vpack.c.bf16 %v4861, %v4860
    %v5370 = vpack.c.bf16 %v4863, %v4862
    %v5371 = vpack.c.bf16 %v4865, %v4864
    %v5372 = vpack.c.bf16 %v4867, %v4866
    %v5373 = vpack.c.bf16 %v4869, %v4868
    %v5374 = vpack.c.bf16 %v4871, %v4870
    %v5375 = vpack.c.bf16 %v4873, %v4872
    %v5376 = vpack.c.bf16 %v4875, %v4874
    %v5377 = vpack.c.bf16 %v4877, %v4876
    %v5378 = vpack.c.bf16 %v4879, %v4878
    %v5379 = vpack.c.bf16 %v4881, %v4880
    %v5380 = vpack.c.bf16 %v4883, %v4882
    %v5381 = vpack.c.bf16 %v4885, %v4884
    %v5382 = vpack.c.bf16 %v4887, %v4886
    %v5383 = vpack.c.bf16 %v4889, %v4888
    %v5384 = vpack.c.bf16 %v4891, %v4890
    %v5385 = vpack.c.bf16 %v4893, %v4892
    %v5386 = vpack.c.bf16 %v4895, %v4894
    %v5387 = vpack.c.bf16 %v4897, %v4896
    %v5388 = vpack.c.bf16 %v4899, %v4898
    %v5389 = vpack.c.bf16 %v4901, %v4900
    %v5390 = vpack.c.bf16 %v4903, %v4902
    %v5391 = vpack.c.bf16 %v4905, %v4904
    %v5392 = vpack.c.bf16 %v4907, %v4906
    %v5393 = vpack.c.bf16 %v4909, %v4908
    %v5394 = vpack.c.bf16 %v4911, %v4910
    %v5395 = vpack.c.bf16 %v4913, %v4912
    %v5396 = vpack.c.bf16 %v4915, %v4914
    %v5397 = vpack.c.bf16 %v4917, %v4916
    %v5398 = vpack.c.bf16 %v4919, %v4918
    %v5399 = vpack.c.bf16 %v4921, %v4920
    %v5400 = vpack.c.bf16 %v4923, %v4922
    %v5401 = vpack.c.bf16 %v4925, %v4924
    %v5402 = vpack.c.bf16 %v4927, %v4926
    %v5403 = vpack.c.bf16 %v4929, %v4928
    %v5404 = vpack.c.bf16 %v4931, %v4930
    %v5405 = vpack.c.bf16 %v4933, %v4932
    %v5406 = vpack.c.bf16 %v4935, %v4934
    %v5407 = vpack.c.bf16 %v4937, %v4936
    %v5408 = vpack.c.bf16 %v4939, %v4938
    %v5409 = vpack.c.bf16 %v4941, %v4940
    %v5410 = vpack.c.bf16 %v4943, %v4942
    %v5411 = vpack.c.bf16 %v4945, %v4944
    %v5412 = vpack.c.bf16 %v4947, %v4946
    %v5413 = vpack.c.bf16 %v4949, %v4948
    %v5414 = vpack.c.bf16 %v4951, %v4950
    %v5415 = vpack.c.bf16 %v4953, %v4952
    %v5416 = vpack.c.bf16 %v4955, %v4954
    %v5417 = vpack.c.bf16 %v4957, %v4956
    %v5418 = vpack.c.bf16 %v4959, %v4958
    %v5419 = vpack.c.bf16 %v4961, %v4960
    %v5420 = vpack.c.bf16 %v4963, %v4962
    %v5421 = vpack.c.bf16 %v4965, %v4964
    %v5422 = vpack.c.bf16 %v4967, %v4966
    %v5423 = vpack.c.bf16 %v4969, %v4968
    %v5424 = vpack.c.bf16 %v4971, %v4970
    %v5425 = vpack.c.bf16 %v4973, %v4972
    %v5426 = vpack.c.bf16 %v4975, %v4974
    %v5427 = vpack.c.bf16 %v4977, %v4976
    %v5428 = vpack.c.bf16 %v4979, %v4978
    %v5429 = vpack.c.bf16 %v4981, %v4980
    %v5430 = vpack.c.bf16 %v4983, %v4982
    %v5431 = vpack.c.bf16 %v4985, %v4984
    %v5432 = vpack.c.bf16 %v4987, %v4986
    %v5433 = vpack.c.bf16 %v4989, %v4988
    %v5434 = vpack.c.bf16 %v4991, %v4990
    %v5435 = vpack.c.bf16 %v4993, %v4992
    %v5436 = vpack.c.bf16 %v4995, %v4994
    %v5437 = vpack.c.bf16 %v4997, %v4996
    %v5438 = vpack.c.bf16 %v4999, %v4998
    %v5439 = vpack.c.bf16 %v5001, %v5000
    %v5440 = vpack.c.bf16 %v5003, %v5002
    %v5441 = vpack.c.bf16 %v5005, %v5004
    %v5442 = vpack.c.bf16 %v5007, %v5006
    %v5443 = vpack.c.bf16 %v5009, %v5008
    %v5444 = vpack.c.bf16 %v5011, %v5010
    %v5445 = vpack.c.bf16 %v5013, %v5012
    %v5446 = vpack.c.bf16 %v5015, %v5014
    %v5447 = vpack.c.bf16 %v5017, %v5016
    %v5448 = vpack.c.bf16 %v5019, %v5018
    %v5449 = vpack.c.bf16 %v5021, %v5020
    %v5450 = vpack.c.bf16 %v5023, %v5022
    %v5451 = vpack.c.bf16 %v5025, %v5024
    %v5452 = vpack.c.bf16 %v5027, %v5026
    %v5453 = vpack.c.bf16 %v5029, %v5028
    %v5454 = vpack.c.bf16 %v5031, %v5030
    %v5455 = vpack.c.bf16 %v5033, %v5032
    %v5456 = vpack.c.bf16 %v5035, %v5034
    %v5457 = vpack.c.bf16 %v5037, %v5036
    %v5458 = vpack.c.bf16 %v5039, %v5038
    %v5459 = vpack.c.bf16 %v5041, %v5040
    %v5460 = vpack.c.bf16 %v5043, %v5042
    %v5461 = vpack.c.bf16 %v5045, %v5044
    %v5462 = vpack.c.bf16 %v5047, %v5046
    %v5463 = vpack.c.bf16 %v5049, %v5048
    %v5464 = vpack.c.bf16 %v5051, %v5050
    %v5465 = vpack.c.bf16 %v5053, %v5052
    %v5466 = vpack.c.bf16 %v5055, %v5054
    %v5467 = vpack.c.bf16 %v5057, %v5056
    %v5468 = vpack.c.bf16 %v5059, %v5058
    %v5469 = vpack.c.bf16 %v5061, %v5060
    %v5470 = vpack.c.bf16 %v5063, %v5062
    %v5471 = vpack.c.bf16 %v5065, %v5064
    %v5472 = vpack.c.bf16 %v5067, %v5066
    %v5473 = vpack.c.bf16 %v5069, %v5068
    %v5474 = vpack.c.bf16 %v5071, %v5070
    %v5475 = vpack.c.bf16 %v5073, %v5072
    %v5476 = vpack.c.bf16 %v5075, %v5074
    %v5477 = vpack.c.bf16 %v5077, %v5076
    %v5478 = vpack.c.bf16 %v5079, %v5078
    %v5479 = vpack.c.bf16 %v5081, %v5080
    %v5480 = vpack.c.bf16 %v5083, %v5082
    %v5481 = vpack.c.bf16 %v5085, %v5084
    %v5482 = vpack.c.bf16 %v5087, %v5086
    %v5483 = vpack.c.bf16 %v5089, %v5088
    %v5484 = vpack.c.bf16 %v5091, %v5090
    %v5485 = vpack.c.bf16 %v5093, %v5092
    %v5486 = vpack.c.bf16 %v5095, %v5094
    %v5487 = vpack.c.bf16 %v5097, %v5096
    %v5488 = vpack.c.bf16 %v5099, %v5098
    %v5489 = vpack.c.bf16 %v5101, %v5100
    %v5490 = vpack.c.bf16 %v5103, %v5102
    %v5491 = vpack.c.bf16 %v5105, %v5104
    %v5492 = vpack.c.bf16 %v5107, %v5106
    %v5493 = vpack.c.bf16 %v5109, %v5108
    %v5494 = vpack.c.bf16 %v5111, %v5110
    %v5495 = vpack.c.bf16 %v5113, %v5112
    %v5496 = vpack.c.bf16 %v5115, %v5114
    %v5497 = vpack.c.bf16 %v5117, %v5116
    %v5498 = vpack.c.bf16 %v5119, %v5118
    %v5499 = vpack.c.bf16 %v5121, %v5120
    %v5500 = vpack.c.bf16 %v5123, %v5122
    %v5501 = vpack.c.bf16 %v5125, %v5124
    %v5502 = vpack.c.bf16 %v5127, %v5126
    %v5503 = vpack.c.bf16 %v5129, %v5128
    %v5504 = vpack.c.bf16 %v5131, %v5130
    %v5505 = vpack.c.bf16 %v5133, %v5132
    %v5506 = vpack.c.bf16 %v5135, %v5134
    %v5507 = vpack.c.bf16 %v5137, %v5136
    %v5508 = vpack.c.bf16 %v5139, %v5138
    %v5509 = vpack.c.bf16 %v5141, %v5140
    %v5510 = vpack.c.bf16 %v5143, %v5142
    %v5511 = vpack.c.bf16 %v5145, %v5144
    %v5512 = vpack.c.bf16 %v5147, %v5146
    %v5513 = vpack.c.bf16 %v5149, %v5148
    %v5514 = vpack.c.bf16 %v5151, %v5150
    %v5515 = vpack.c.bf16 %v5153, %v5152
    %v5516 = vpack.c.bf16 %v5155, %v5154
    %v5517 = vpack.c.bf16 %v5157, %v5156
    %v5518 = vpack.c.bf16 %v5159, %v5158
    %v5519 = vpack.c.bf16 %v5161, %v5160
    %v5520 = vpack.c.bf16 %v5163, %v5162
    %v5521 = vpack.c.bf16 %v5165, %v5164
    %v5522 = vpack.c.bf16 %v5167, %v5166
    %v5523 = vpack.c.bf16 %v5169, %v5168
    %v5524 = vpack.c.bf16 %v5171, %v5170
    %v5525 = vpack.c.bf16 %v5173, %v5172
    %v5526 = vpack.c.bf16 %v5175, %v5174
    %v5527 = vpack.c.bf16 %v5177, %v5176
    %v5528 = vpack.c.bf16 %v5179, %v5178
    %v5529 = vpack.c.bf16 %v5181, %v5180
    %v5530 = vpack.c.bf16 %v5183, %v5182
    %v5531 = vpack.c.bf16 %v5185, %v5184
    %v5532 = vpack.c.bf16 %v5187, %v5186
    %v5533 = vpack.c.bf16 %v5189, %v5188
    %v5534 = vpack.c.bf16 %v5191, %v5190
    %v5535 = vpack.c.bf16 %v5193, %v5192
    %v5536 = vpack.c.bf16 %v5195, %v5194
    %v5537 = vpack.c.bf16 %v5197, %v5196
    %v5538 = vpack.c.bf16 %v5199, %v5198
    %v5539 = vpack.c.bf16 %v5201, %v5200
    %v5540 = vpack.c.bf16 %v5203, %v5202
    %v5541 = vpack.c.bf16 %v5205, %v5204
    %v5542 = vpack.c.bf16 %v5207, %v5206
    %v5543 = vpack.c.bf16 %v5209, %v5208
    %v5544 = vpack.c.bf16 %v5211, %v5210
    %v5545 = vpack.c.bf16 %v5213, %v5212
    %v5546 = vpack.c.bf16 %v5215, %v5214
    %v5547 = vpack.c.bf16 %v5217, %v5216
    %v5548 = vpack.c.bf16 %v5219, %v5218
    %v5549 = vpack.c.bf16 %v5221, %v5220
    %v5550 = vpack.c.bf16 %v5223, %v5222
    %v5551 = vpack.c.bf16 %v5225, %v5224
    %v5552 = vpack.c.bf16 %v5227, %v5226
    %v5553 = vpack.c.bf16 %v5229, %v5228
    %v5554 = vpack.c.bf16 %v5231, %v5230
    %v5555 = vpack.c.bf16 %v5233, %v5232
    %v5556 = vpack.c.bf16 %v5235, %v5234
    %v5557 = vpack.c.bf16 %v5237, %v5236
    %v5558 = vpack.c.bf16 %v5239, %v5238
    %v5559 = vpack.c.bf16 %v5241, %v5240
    %v5560 = vpack.c.bf16 %v5243, %v5242
    %v5561 = vpack.c.bf16 %v5245, %v5244
    %v5562 = vpack.c.bf16 %v5247, %v5246
    %v5563 = vpack.c.bf16 %v5249, %v5248
    %v5564 = vpack.c.bf16 %v5251, %v5250
    %v5565 = vpack.c.bf16 %v5253, %v5252
    %v5566 = vpack.c.bf16 %v5255, %v5254
    %v5567 = vpack.c.bf16 %v5257, %v5256
    %v5568 = vpack.c.bf16 %v5259, %v5258
    %v5569 = vpack.c.bf16 %v5261, %v5260
    %v5570 = vpack.c.bf16 %v5263, %v5262
    %v5571 = vpack.c.bf16 %v5265, %v5264
    %v5572 = vpack.c.bf16 %v5267, %v5266
    %v5573 = vpack.c.bf16 %v5269, %v5268
    %v5574 = vpack.c.bf16 %v5271, %v5270
    %v5575 = vpack.c.bf16 %v5273, %v5272
    %v5576 = vpack.c.bf16 %v5275, %v5274
    %v5577 = vpack.c.bf16 %v5277, %v5276
    %v5578 = vpack.c.bf16 %v5279, %v5278
    %v5579 = vpack.c.bf16 %v5281, %v5280
    %v5580 = vpack.c.bf16 %v5283, %v5282
    %v5581 = vpack.c.bf16 %v5285, %v5284
    %v5582 = vpack.c.bf16 %v5287, %v5286
    %v5583 = vpack.c.bf16 %v5289, %v5288
    %v5584 = vpack.c.bf16 %v5291, %v5290
    %v5585 = vpack.c.bf16 %v5293, %v5292
    %v5586 = vpack.c.bf16 %v5295, %v5294
    %v5587 = vpack.c.bf16 %v5297, %v5296
    %v5588 = vpack.c.bf16 %v5299, %v5298
    %v5589 = vpack.c.bf16 %v5301, %v5300
    %v5590 = vpack.c.bf16 %v5303, %v5302
    %v5591 = vpack.c.bf16 %v5305, %v5304
    %v5592 = vpack.c.bf16 %v5307, %v5306
    %v5593 = vpack.c.bf16 %v5309, %v5308
    %v5594 = vpack.c.bf16 %v5311, %v5310
    %v5595 = vpack.c.bf16 %v5313, %v5312
    %v5596 = vpack.c.bf16 %v5315, %v5314
    %v5597 = vpack.c.bf16 %v5317, %v5316
    %v5598 = vpack.c.bf16 %v5319, %v5318
    %v5599 = vpack.c.bf16 %v5321, %v5320
    %v5600 = vpack.c.bf16 %v5323, %v5322
    %v5601 = vpack.c.bf16 %v5325, %v5324
    %v5602 = vpack.c.bf16 %v5327, %v5326
    %v5603 = vpack.c.bf16 %v5329, %v5328
    %v5604 = vpack.c.bf16 %v5331, %v5330
    %v5605 = vpack.c.bf16 %v5333, %v5332
    %v5606 = vpack.c.bf16 %v5335, %v5334
    %v5607 = vpack.c.bf16 %v5337, %v5336
    %v5608 = vpack.c.bf16 %v5339, %v5338
    %v5609 = vpack.c.bf16 %v5341, %v5340
    %v5610 = vpack.c.bf16 %v5343, %v5342
    %v5611 = vpack.c.bf16 %v5345, %v5344
    %v5612 = vpack.c.bf16 %v5347, %v5346
    %v5613 = vpack.c.bf16 %v5349, %v5348
    %v5614 = vpack.c.bf16 %v5351, %v5350
    %v5615 = vpack.c.bf16 %v5353, %v5352
    %v5616 = vpack.c.bf16 %v5355, %v5354
    %v5617 = vpack.c.bf16 %v5357, %v5356
    %v5618 = vpack.c.bf16 %v5359, %v5358
    %v5619 = vpack.c.bf16 %v5361, %v5360
    %v5620 = vpack.c.bf16 %v5363, %v5362
    %v5621 = vpack.c.bf16 %v5365, %v5364
    %v5622 = vunpack.c.l.bf16 %v5366
    %v5623 = vunpack.c.h.bf16 %v5366
    %v5624 = vunpack.c.l.bf16 %v5367
    %v5625 = vunpack.c.h.bf16 %v5367
    %v5626 = vunpack.c.l.bf16 %v5368
    %v5627 = vunpack.c.h.bf16 %v5368
    %v5628 = vunpack.c.l.bf16 %v5369
    %v5629 = vunpack.c.h.bf16 %v5369
    %v5630 = vunpack.c.l.bf16 %v5370
    %v5631 = vunpack.c.h.bf16 %v5370
    %v5632 = vunpack.c.l.bf16 %v5371
    %v5633 = vunpack.c.h.bf16 %v5371
    %v5634 = vunpack.c.l.bf16 %v5372
    %v5635 = vunpack.c.h.bf16 %v5372
    %v5636 = vunpack.c.l.bf16 %v5373
    %v5637 = vunpack.c.h.bf16 %v5373
    %v5638 = vunpack.c.l.bf16 %v5374
    %v5639 = vunpack.c.h.bf16 %v5374
    %v5640 = vunpack.c.l.bf16 %v5375
    %v5641 = vunpack.c.h.bf16 %v5375
    %v5642 = vunpack.c.l.bf16 %v5376
    %v5643 = vunpack.c.h.bf16 %v5376
    %v5644 = vunpack.c.l.bf16 %v5377
    %v5645 = vunpack.c.h.bf16 %v5377
    %v5646 = vunpack.c.l.bf16 %v5378
    %v5647 = vunpack.c.h.bf16 %v5378
    %v5648 = vunpack.c.l.bf16 %v5379
    %v5649 = vunpack.c.h.bf16 %v5379
    %v5650 = vunpack.c.l.bf16 %v5380
    %v5651 = vunpack.c.h.bf16 %v5380
    %v5652 = vunpack.c.l.bf16 %v5381
    %v5653 = vunpack.c.h.bf16 %v5381
    %v5654 = vunpack.c.l.bf16 %v5382
    %v5655 = vunpack.c.h.bf16 %v5382
    %v5656 = vunpack.c.l.bf16 %v5383
    %v5657 = vunpack.c.h.bf16 %v5383
    %v5658 = vunpack.c.l.bf16 %v5384
    %v5659 = vunpack.c.h.bf16 %v5384
    %v5660 = vunpack.c.l.bf16 %v5385
    %v5661 = vunpack.c.h.bf16 %v5385
    %v5662 = vunpack.c.l.bf16 %v5386
    %v5663 = vunpack.c.h.bf16 %v5386
    %v5664 = vunpack.c.l.bf16 %v5387
    %v5665 = vunpack.c.h.bf16 %v5387
    %v5666 = vunpack.c.l.bf16 %v5388
    %v5667 = vunpack.c.h.bf16 %v5388
    %v5668 = vunpack.c.l.bf16 %v5389
    %v5669 = vunpack.c.h.bf16 %v5389
    %v5670 = vunpack.c.l.bf16 %v5390
    %v5671 = vunpack.c.h.bf16 %v5390
    %v5672 = vunpack.c.l.bf16 %v5391
    %v5673 = vunpack.c.h.bf16 %v5391
    %v5674 = vunpack.c.l.bf16 %v5392
    %v5675 = vunpack.c.h.bf16 %v5392
    %v5676 = vunpack.c.l.bf16 %v5393
    %v5677 = vunpack.c.h.bf16 %v5393
    %v5678 = vunpack.c.l.bf16 %v5394
    %v5679 = vunpack.c.h.bf16 %v5394
    %v5680 = vunpack.c.l.bf16 %v5395
    %v5681 = vunpack.c.h.bf16 %v5395
    %v5682 = vunpack.c.l.bf16 %v5396
    %v5683 = vunpack.c.h.bf16 %v5396
    %v5684 = vunpack.c.l.bf16 %v5397
    %v5685 = vunpack.c.h.bf16 %v5397
    %v5686 = vunpack.c.l.bf16 %v5398
    %v5687 = vunpack.c.h.bf16 %v5398
    %v5688 = vunpack.c.l.bf16 %v5399
    %v5689 = vunpack.c.h.bf16 %v5399
    %v5690 = vunpack.c.l.bf16 %v5400
    %v5691 = vunpack.c.h.bf16 %v5400
    %v5692 = vunpack.c.l.bf16 %v5401
    %v5693 = vunpack.c.h.bf16 %v5401
    %v5694 = vunpack.c.l.bf16 %v5402
    %v5695 = vunpack.c.h.bf16 %v5402
    %v5696 = vunpack.c.l.bf16 %v5403
    %v5697 = vunpack.c.h.bf16 %v5403
    %v5698 = vunpack.c.l.bf16 %v5404
    %v5699 = vunpack.c.h.bf16 %v5404
    %v5700 = vunpack.c.l.bf16 %v5405
    %v5701 = vunpack.c.h.bf16 %v5405
    %v5702 = vunpack.c.l.bf16 %v5406
    %v5703 = vunpack.c.h.bf16 %v5406
    %v5704 = vunpack.c.l.bf16 %v5407
    %v5705 = vunpack.c.h.bf16 %v5407
    %v5706 = vunpack.c.l.bf16 %v5408
    %v5707 = vunpack.c.h.bf16 %v5408
    %v5708 = vunpack.c.l.bf16 %v5409
    %v5709 = vunpack.c.h.bf16 %v5409
    %v5710 = vunpack.c.l.bf16 %v5410
    %v5711 = vunpack.c.h.bf16 %v5410
    %v5712 = vunpack.c.l.bf16 %v5411
    %v5713 = vunpack.c.h.bf16 %v5411
    %v5714 = vunpack.c.l.bf16 %v5412
    %v5715 = vunpack.c.h.bf16 %v5412
    %v5716 = vunpack.c.l.bf16 %v5413
    %v5717 = vunpack.c.h.bf16 %v5413
    %v5718 = vunpack.c.l.bf16 %v5414
    %v5719 = vunpack.c.h.bf16 %v5414
    %v5720 = vunpack.c.l.bf16 %v5415
    %v5721 = vunpack.c.h.bf16 %v5415
    %v5722 = vunpack.c.l.bf16 %v5416
    %v5723 = vunpack.c.h.bf16 %v5416
    %v5724 = vunpack.c.l.bf16 %v5417
    %v5725 = vunpack.c.h.bf16 %v5417
    %v5726 = vunpack.c.l.bf16 %v5418
    %v5727 = vunpack.c.h.bf16 %v5418
    %v5728 = vunpack.c.l.bf16 %v5419
    %v5729 = vunpack.c.h.bf16 %v5419
    %v5730 = vunpack.c.l.bf16 %v5420
    %v5731 = vunpack.c.h.bf16 %v5420
    %v5732 = vunpack.c.l.bf16 %v5421
    %v5733 = vunpack.c.h.bf16 %v5421
    %v5734 = vunpack.c.l.bf16 %v5422
    %v5735 = vunpack.c.h.bf16 %v5422
    %v5736 = vunpack.c.l.bf16 %v5423
    %v5737 = vunpack.c.h.bf16 %v5423
    %v5738 = vunpack.c.l.bf16 %v5424
    %v5739 = vunpack.c.h.bf16 %v5424
    %v5740 = vunpack.c.l.bf16 %v5425
    %v5741 = vunpack.c.h.bf16 %v5425
    %v5742 = vunpack.c.l.bf16 %v5426
    %v5743 = vunpack.c.h.bf16 %v5426
    %v5744 = vunpack.c.l.bf16 %v5427
    %v5745 = vunpack.c.h.bf16 %v5427
    %v5746 = vunpack.c.l.bf16 %v5428
    %v5747 = vunpack.c.h.bf16 %v5428
    %v5748 = vunpack.c.l.bf16 %v5429
    %v5749 = vunpack.c.h.bf16 %v5429
    %v5750 = vunpack.c.l.bf16 %v5430
    %v5751 = vunpack.c.h.bf16 %v5430
    %v5752 = vunpack.c.l.bf16 %v5431
    %v5753 = vunpack.c.h.bf16 %v5431
    %v5754 = vunpack.c.l.bf16 %v5432
    %v5755 = vunpack.c.h.bf16 %v5432
    %v5756 = vunpack.c.l.bf16 %v5433
    %v5757 = vunpack.c.h.bf16 %v5433
    %v5758 = vunpack.c.l.bf16 %v5434
    %v5759 = vunpack.c.h.bf16 %v5434
    %v5760 = vunpack.c.l.bf16 %v5435
    %v5761 = vunpack.c.h.bf16 %v5435
    %v5762 = vunpack.c.l.bf16 %v5436
    %v5763 = vunpack.c.h.bf16 %v5436
    %v5764 = vunpack.c.l.bf16 %v5437
    %v5765 = vunpack.c.h.bf16 %v5437
    %v5766 = vunpack.c.l.bf16 %v5438
    %v5767 = vunpack.c.h.bf16 %v5438
    %v5768 = vunpack.c.l.bf16 %v5439
    %v5769 = vunpack.c.h.bf16 %v5439
    %v5770 = vunpack.c.l.bf16 %v5440
    %v5771 = vunpack.c.h.bf16 %v5440
    %v5772 = vunpack.c.l.bf16 %v5441
    %v5773 = vunpack.c.h.bf16 %v5441
    %v5774 = vunpack.c.l.bf16 %v5442
    %v5775 = vunpack.c.h.bf16 %v5442
    %v5776 = vunpack.c.l.bf16 %v5443
    %v5777 = vunpack.c.h.bf16 %v5443
    %v5778 = vunpack.c.l.bf16 %v5444
    %v5779 = vunpack.c.h.bf16 %v5444
    %v5780 = vunpack.c.l.bf16 %v5445
    %v5781 = vunpack.c.h.bf16 %v5445
    %v5782 = vunpack.c.l.bf16 %v5446
    %v5783 = vunpack.c.h.bf16 %v5446
    %v5784 = vunpack.c.l.bf16 %v5447
    %v5785 = vunpack.c.h.bf16 %v5447
    %v5786 = vunpack.c.l.bf16 %v5448
    %v5787 = vunpack.c.h.bf16 %v5448
    %v5788 = vunpack.c.l.bf16 %v5449
    %v5789 = vunpack.c.h.bf16 %v5449
    %v5790 = vunpack.c.l.bf16 %v5450
    %v5791 = vunpack.c.h.bf16 %v5450
    %v5792 = vunpack.c.l.bf16 %v5451
    %v5793 = vunpack.c.h.bf16 %v5451
    %v5794 = vunpack.c.l.bf16 %v5452
    %v5795 = vunpack.c.h.bf16 %v5452
    %v5796 = vunpack.c.l.bf16 %v5453
    %v5797 = vunpack.c.h.bf16 %v5453
    %v5798 = vunpack.c.l.bf16 %v5454
    %v5799 = vunpack.c.h.bf16 %v5454
    %v5800 = vunpack.c.l.bf16 %v5455
    %v5801 = vunpack.c.h.bf16 %v5455
    %v5802 = vunpack.c.l.bf16 %v5456
    %v5803 = vunpack.c.h.bf16 %v5456
    %v5804 = vunpack.c.l.bf16 %v5457
    %v5805 = vunpack.c.h.bf16 %v5457
    %v5806 = vunpack.c.l.bf16 %v5458
    %v5807 = vunpack.c.h.bf16 %v5458
    %v5808 = vunpack.c.l.bf16 %v5459
    %v5809 = vunpack.c.h.bf16 %v5459
    %v5810 = vunpack.c.l.bf16 %v5460
    %v5811 = vunpack.c.h.bf16 %v5460
    %v5812 = vunpack.c.l.bf16 %v5461
    %v5813 = vunpack.c.h.bf16 %v5461
    %v5814 = vunpack.c.l.bf16 %v5462
    %v5815 = vunpack.c.h.bf16 %v5462
    %v5816 = vunpack.c.l.bf16 %v5463
    %v5817 = vunpack.c.h.bf16 %v5463
    %v5818 = vunpack.c.l.bf16 %v5464
    %v5819 = vunpack.c.h.bf16 %v5464
    %v5820 = vunpack.c.l.bf16 %v5465
    %v5821 = vunpack.c.h.bf16 %v5465
    %v5822 = vunpack.c.l.bf16 %v5466
    %v5823 = vunpack.c.h.bf16 %v5466
    %v5824 = vunpack.c.l.bf16 %v5467
    %v5825 = vunpack.c.h.bf16 %v5467
    %v5826 = vunpack.c.l.bf16 %v5468
    %v5827 = vunpack.c.h.bf16 %v5468
    %v5828 = vunpack.c.l.bf16 %v5469
    %v5829 = vunpack.c.h.bf16 %v5469
    %v5830 = vunpack.c.l.bf16 %v5470
    %v5831 = vunpack.c.h.bf16 %v5470
    %v5832 = vunpack.c.l.bf16 %v5471
    %v5833 = vunpack.c.h.bf16 %v5471
    %v5834 = vunpack.c.l.bf16 %v5472
    %v5835 = vunpack.c.h.bf16 %v5472
    %v5836 = vunpack.c.l.bf16 %v5473
    %v5837 = vunpack.c.h.bf16 %v5473
    %v5838 = vunpack.c.l.bf16 %v5474
    %v5839 = vunpack.c.h.bf16 %v5474
    %v5840 = vunpack.c.l.bf16 %v5475
    %v5841 = vunpack.c.h.bf16 %v5475
    %v5842 = vunpack.c.l.bf16 %v5476
    %v5843 = vunpack.c.h.bf16 %v5476
    %v5844 = vunpack.c.l.bf16 %v5477
    %v5845 = vunpack.c.h.bf16 %v5477
    %v5846 = vunpack.c.l.bf16 %v5478
    %v5847 = vunpack.c.h.bf16 %v5478
    %v5848 = vunpack.c.l.bf16 %v5479
    %v5849 = vunpack.c.h.bf16 %v5479
    %v5850 = vunpack.c.l.bf16 %v5480
    %v5851 = vunpack.c.h.bf16 %v5480
    %v5852 = vunpack.c.l.bf16 %v5481
    %v5853 = vunpack.c.h.bf16 %v5481
    %v5854 = vunpack.c.l.bf16 %v5482
    %v5855 = vunpack.c.h.bf16 %v5482
    %v5856 = vunpack.c.l.bf16 %v5483
    %v5857 = vunpack.c.h.bf16 %v5483
    %v5858 = vunpack.c.l.bf16 %v5484
    %v5859 = vunpack.c.h.bf16 %v5484
    %v5860 = vunpack.c.l.bf16 %v5485
    %v5861 = vunpack.c.h.bf16 %v5485
    %v5862 = vunpack.c.l.bf16 %v5486
    %v5863 = vunpack.c.h.bf16 %v5486
    %v5864 = vunpack.c.l.bf16 %v5487
    %v5865 = vunpack.c.h.bf16 %v5487
    %v5866 = vunpack.c.l.bf16 %v5488
    %v5867 = vunpack.c.h.bf16 %v5488
    %v5868 = vunpack.c.l.bf16 %v5489
    %v5869 = vunpack.c.h.bf16 %v5489
    %v5870 = vunpack.c.l.bf16 %v5490
    %v5871 = vunpack.c.h.bf16 %v5490
    %v5872 = vunpack.c.l.bf16 %v5491
    %v5873 = vunpack.c.h.bf16 %v5491
    %v5874 = vunpack.c.l.bf16 %v5492
    %v5875 = vunpack.c.h.bf16 %v5492
    %v5876 = vunpack.c.l.bf16 %v5493
    %v5877 = vunpack.c.h.bf16 %v5493
    %v5878 = vunpack.c.l.bf16 %v5494
    %v5879 = vunpack.c.h.bf16 %v5494
    %v5880 = vunpack.c.l.bf16 %v5495
    %v5881 = vunpack.c.h.bf16 %v5495
    %v5882 = vunpack.c.l.bf16 %v5496
    %v5883 = vunpack.c.h.bf16 %v5496
    %v5884 = vunpack.c.l.bf16 %v5497
    %v5885 = vunpack.c.h.bf16 %v5497
    %v5886 = vunpack.c.l.bf16 %v5498
    %v5887 = vunpack.c.h.bf16 %v5498
    %v5888 = vunpack.c.l.bf16 %v5499
    %v5889 = vunpack.c.h.bf16 %v5499
    %v5890 = vunpack.c.l.bf16 %v5500
    %v5891 = vunpack.c.h.bf16 %v5500
    %v5892 = vunpack.c.l.bf16 %v5501
    %v5893 = vunpack.c.h.bf16 %v5501
    %v5894 = vunpack.c.l.bf16 %v5502
    %v5895 = vunpack.c.h.bf16 %v5502
    %v5896 = vunpack.c.l.bf16 %v5503
    %v5897 = vunpack.c.h.bf16 %v5503
    %v5898 = vunpack.c.l.bf16 %v5504
    %v5899 = vunpack.c.h.bf16 %v5504
    %v5900 = vunpack.c.l.bf16 %v5505
    %v5901 = vunpack.c.h.bf16 %v5505
    %v5902 = vunpack.c.l.bf16 %v5506
    %v5903 = vunpack.c.h.bf16 %v5506
    %v5904 = vunpack.c.l.bf16 %v5507
    %v5905 = vunpack.c.h.bf16 %v5507
    %v5906 = vunpack.c.l.bf16 %v5508
    %v5907 = vunpack.c.h.bf16 %v5508
    %v5908 = vunpack.c.l.bf16 %v5509
    %v5909 = vunpack.c.h.bf16 %v5509
    %v5910 = vunpack.c.l.bf16 %v5510
    %v5911 = vunpack.c.h.bf16 %v5510
    %v5912 = vunpack.c.l.bf16 %v5511
    %v5913 = vunpack.c.h.bf16 %v5511
    %v5914 = vunpack.c.l.bf16 %v5512
    %v5915 = vunpack.c.h.bf16 %v5512
    %v5916 = vunpack.c.l.bf16 %v5513
    %v5917 = vunpack.c.h.bf16 %v5513
    %v5918 = vunpack.c.l.bf16 %v5514
    %v5919 = vunpack.c.h.bf16 %v5514
    %v5920 = vunpack.c.l.bf16 %v5515
    %v5921 = vunpack.c.h.bf16 %v5515
    %v5922 = vunpack.c.l.bf16 %v5516
    %v5923 = vunpack.c.h.bf16 %v5516
    %v5924 = vunpack.c.l.bf16 %v5517
    %v5925 = vunpack.c.h.bf16 %v5517
    %v5926 = vunpack.c.l.bf16 %v5518
    %v5927 = vunpack.c.h.bf16 %v5518
    %v5928 = vunpack.c.l.bf16 %v5519
    %v5929 = vunpack.c.h.bf16 %v5519
    %v5930 = vunpack.c.l.bf16 %v5520
    %v5931 = vunpack.c.h.bf16 %v5520
    %v5932 = vunpack.c.l.bf16 %v5521
    %v5933 = vunpack.c.h.bf16 %v5521
    %v5934 = vunpack.c.l.bf16 %v5522
    %v5935 = vunpack.c.h.bf16 %v5522
    %v5936 = vunpack.c.l.bf16 %v5523
    %v5937 = vunpack.c.h.bf16 %v5523
    %v5938 = vunpack.c.l.bf16 %v5524
    %v5939 = vunpack.c.h.bf16 %v5524
    %v5940 = vunpack.c.l.bf16 %v5525
    %v5941 = vunpack.c.h.bf16 %v5525
    %v5942 = vunpack.c.l.bf16 %v5526
    %v5943 = vunpack.c.h.bf16 %v5526
    %v5944 = vunpack.c.l.bf16 %v5527
    %v5945 = vunpack.c.h.bf16 %v5527
    %v5946 = vunpack.c.l.bf16 %v5528
    %v5947 = vunpack.c.h.bf16 %v5528
    %v5948 = vunpack.c.l.bf16 %v5529
    %v5949 = vunpack.c.h.bf16 %v5529
    %v5950 = vunpack.c.l.bf16 %v5530
    %v5951 = vunpack.c.h.bf16 %v5530
    %v5952 = vunpack.c.l.bf16 %v5531
    %v5953 = vunpack.c.h.bf16 %v5531
    %v5954 = vunpack.c.l.bf16 %v5532
    %v5955 = vunpack.c.h.bf16 %v5532
    %v5956 = vunpack.c.l.bf16 %v5533
    %v5957 = vunpack.c.h.bf16 %v5533
    %v5958 = vunpack.c.l.bf16 %v5534
    %v5959 = vunpack.c.h.bf16 %v5534
    %v5960 = vunpack.c.l.bf16 %v5535
    %v5961 = vunpack.c.h.bf16 %v5535
    %v5962 = vunpack.c.l.bf16 %v5536
    %v5963 = vunpack.c.h.bf16 %v5536
    %v5964 = vunpack.c.l.bf16 %v5537
    %v5965 = vunpack.c.h.bf16 %v5537
    %v5966 = vunpack.c.l.bf16 %v5538
    %v5967 = vunpack.c.h.bf16 %v5538
    %v5968 = vunpack.c.l.bf16 %v5539
    %v5969 = vunpack.c.h.bf16 %v5539
    %v5970 = vunpack.c.l.bf16 %v5540
    %v5971 = vunpack.c.h.bf16 %v5540
    %v5972 = vunpack.c.l.bf16 %v5541
    %v5973 = vunpack.c.h.bf16 %v5541
    %v5974 = vunpack.c.l.bf16 %v5542
    %v5975 = vunpack.c.h.bf16 %v5542
    %v5976 = vunpack.c.l.bf16 %v5543
    %v5977 = vunpack.c.h.bf16 %v5543
    %v5978 = vunpack.c.l.bf16 %v5544
    %v5979 = vunpack.c.h.bf16 %v5544
    %v5980 = vunpack.c.l.bf16 %v5545
    %v5981 = vunpack.c.h.bf16 %v5545
    %v5982 = vunpack.c.l.bf16 %v5546
    %v5983 = vunpack.c.h.bf16 %v5546
    %v5984 = vunpack.c.l.bf16 %v5547
    %v5985 = vunpack.c.h.bf16 %v5547
    %v5986 = vunpack.c.l.bf16 %v5548
    %v5987 = vunpack.c.h.bf16 %v5548
    %v5988 = vunpack.c.l.bf16 %v5549
    %v5989 = vunpack.c.h.bf16 %v5549
    %v5990 = vunpack.c.l.bf16 %v5550
    %v5991 = vunpack.c.h.bf16 %v5550
    %v5992 = vunpack.c.l.bf16 %v5551
    %v5993 = vunpack.c.h.bf16 %v5551
    %v5994 = vunpack.c.l.bf16 %v5552
    %v5995 = vunpack.c.h.bf16 %v5552
    %v5996 = vunpack.c.l.bf16 %v5553
    %v5997 = vunpack.c.h.bf16 %v5553
    %v5998 = vunpack.c.l.bf16 %v5554
    %v5999 = vunpack.c.h.bf16 %v5554
    %v6000 = vunpack.c.l.bf16 %v5555
    %v6001 = vunpack.c.h.bf16 %v5555
    %v6002 = vunpack.c.l.bf16 %v5556
    %v6003 = vunpack.c.h.bf16 %v5556
    %v6004 = vunpack.c.l.bf16 %v5557
    %v6005 = vunpack.c.h.bf16 %v5557
    %v6006 = vunpack.c.l.bf16 %v5558
    %v6007 = vunpack.c.h.bf16 %v5558
    %v6008 = vunpack.c.l.bf16 %v5559
    %v6009 = vunpack.c.h.bf16 %v5559
    %v6010 = vunpack.c.l.bf16 %v5560
    %v6011 = vunpack.c.h.bf16 %v5560
    %v6012 = vunpack.c.l.bf16 %v5561
    %v6013 = vunpack.c.h.bf16 %v5561
    %v6014 = vunpack.c.l.bf16 %v5562
    %v6015 = vunpack.c.h.bf16 %v5562
    %v6016 = vunpack.c.l.bf16 %v5563
    %v6017 = vunpack.c.h.bf16 %v5563
    %v6018 = vunpack.c.l.bf16 %v5564
    %v6019 = vunpack.c.h.bf16 %v5564
    %v6020 = vunpack.c.l.bf16 %v5565
    %v6021 = vunpack.c.h.bf16 %v5565
    %v6022 = vunpack.c.l.bf16 %v5566
    %v6023 = vunpack.c.h.bf16 %v5566
    %v6024 = vunpack.c.l.bf16 %v5567
    %v6025 = vunpack.c.h.bf16 %v5567
    %v6026 = vunpack.c.l.bf16 %v5568
    %v6027 = vunpack.c.h.bf16 %v5568
    %v6028 = vunpack.c.l.bf16 %v5569
    %v6029 = vunpack.c.h.bf16 %v5569
    %v6030 = vunpack.c.l.bf16 %v5570
    %v6031 = vunpack.c.h.bf16 %v5570
    %v6032 = vunpack.c.l.bf16 %v5571
    %v6033 = vunpack.c.h.bf16 %v5571
    %v6034 = vunpack.c.l.bf16 %v5572
    %v6035 = vunpack.c.h.bf16 %v5572
    %v6036 = vunpack.c.l.bf16 %v5573
    %v6037 = vunpack.c.h.bf16 %v5573
    %v6038 = vunpack.c.l.bf16 %v5574
    %v6039 = vunpack.c.h.bf16 %v5574
    %v6040 = vunpack.c.l.bf16 %v5575
    %v6041 = vunpack.c.h.bf16 %v5575
    %v6042 = vunpack.c.l.bf16 %v5576
    %v6043 = vunpack.c.h.bf16 %v5576
    %v6044 = vunpack.c.l.bf16 %v5577
    %v6045 = vunpack.c.h.bf16 %v5577
    %v6046 = vunpack.c.l.bf16 %v5578
    %v6047 = vunpack.c.h.bf16 %v5578
    %v6048 = vunpack.c.l.bf16 %v5579
    %v6049 = vunpack.c.h.bf16 %v5579
    %v6050 = vunpack.c.l.bf16 %v5580
    %v6051 = vunpack.c.h.bf16 %v5580
    %v6052 = vunpack.c.l.bf16 %v5581
    %v6053 = vunpack.c.h.bf16 %v5581
    %v6054 = vunpack.c.l.bf16 %v5582
    %v6055 = vunpack.c.h.bf16 %v5582
    %v6056 = vunpack.c.l.bf16 %v5583
    %v6057 = vunpack.c.h.bf16 %v5583
    %v6058 = vunpack.c.l.bf16 %v5584
    %v6059 = vunpack.c.h.bf16 %v5584
    %v6060 = vunpack.c.l.bf16 %v5585
    %v6061 = vunpack.c.h.bf16 %v5585
    %v6062 = vunpack.c.l.bf16 %v5586
    %v6063 = vunpack.c.h.bf16 %v5586
    %v6064 = vunpack.c.l.bf16 %v5587
    %v6065 = vunpack.c.h.bf16 %v5587
    %v6066 = vunpack.c.l.bf16 %v5588
    %v6067 = vunpack.c.h.bf16 %v5588
    %v6068 = vunpack.c.l.bf16 %v5589
    %v6069 = vunpack.c.h.bf16 %v5589
    %v6070 = vunpack.c.l.bf16 %v5590
    %v6071 = vunpack.c.h.bf16 %v5590
    %v6072 = vunpack.c.l.bf16 %v5591
    %v6073 = vunpack.c.h.bf16 %v5591
    %v6074 = vunpack.c.l.bf16 %v5592
    %v6075 = vunpack.c.h.bf16 %v5592
    %v6076 = vunpack.c.l.bf16 %v5593
    %v6077 = vunpack.c.h.bf16 %v5593
    %v6078 = vunpack.c.l.bf16 %v5594
    %v6079 = vunpack.c.h.bf16 %v5594
    %v6080 = vunpack.c.l.bf16 %v5595
    %v6081 = vunpack.c.h.bf16 %v5595
    %v6082 = vunpack.c.l.bf16 %v5596
    %v6083 = vunpack.c.h.bf16 %v5596
    %v6084 = vunpack.c.l.bf16 %v5597
    %v6085 = vunpack.c.h.bf16 %v5597
    %v6086 = vunpack.c.l.bf16 %v5598
    %v6087 = vunpack.c.h.bf16 %v5598
    %v6088 = vunpack.c.l.bf16 %v5599
    %v6089 = vunpack.c.h.bf16 %v5599
    %v6090 = vunpack.c.l.bf16 %v5600
    %v6091 = vunpack.c.h.bf16 %v5600
    %v6092 = vunpack.c.l.bf16 %v5601
    %v6093 = vunpack.c.h.bf16 %v5601
    %v6094 = vunpack.c.l.bf16 %v5602
    %v6095 = vunpack.c.h.bf16 %v5602
    %v6096 = vunpack.c.l.bf16 %v5603
    %v6097 = vunpack.c.h.bf16 %v5603
    %v6098 = vunpack.c.l.bf16 %v5604
    %v6099 = vunpack.c.h.bf16 %v5604
    %v6100 = vunpack.c.l.bf16 %v5605
    %v6101 = vunpack.c.h.bf16 %v5605
    %v6102 = vunpack.c.l.bf16 %v5606
    %v6103 = vunpack.c.h.bf16 %v5606
    %v6104 = vunpack.c.l.bf16 %v5607
    %v6105 = vunpack.c.h.bf16 %v5607
    %v6106 = vunpack.c.l.bf16 %v5608
    %v6107 = vunpack.c.h.bf16 %v5608
    %v6108 = vunpack.c.l.bf16 %v5609
    %v6109 = vunpack.c.h.bf16 %v5609
    %v6110 = vunpack.c.l.bf16 %v5610
    %v6111 = vunpack.c.h.bf16 %v5610
    %v6112 = vunpack.c.l.bf16 %v5611
    %v6113 = vunpack.c.h.bf16 %v5611
    %v6114 = vunpack.c.l.bf16 %v5612
    %v6115 = vunpack.c.h.bf16 %v5612
    %v6116 = vunpack.c.l.bf16 %v5613
    %v6117 = vunpack.c.h.bf16 %v5613
    %v6118 = vunpack.c.l.bf16 %v5614
    %v6119 = vunpack.c.h.bf16 %v5614
    %v6120 = vunpack.c.l.bf16 %v5615
    %v6121 = vunpack.c.h.bf16 %v5615
    %v6122 = vunpack.c.l.bf16 %v5616
    %v6123 = vunpack.c.h.bf16 %v5616
    %v6124 = vunpack.c.l.bf16 %v5617
    %v6125 = vunpack.c.h.bf16 %v5617
    %v6126 = vunpack.c.l.bf16 %v5618
    %v6127 = vunpack.c.h.bf16 %v5618
    %v6128 = vunpack.c.l.bf16 %v5619
    %v6129 = vunpack.c.h.bf16 %v5619
    %v6130 = vunpack.c.l.bf16 %v5620
    %v6131 = vunpack.c.h.bf16 %v5620
    %v6132 = vunpack.c.l.bf16 %v5621
    %v6133 = vunpack.c.h.bf16 %v5621
    %v6134 = vmax.f32 %v5622, 0.0
    %v6135 = vmax.f32 %v5623, 0.0
    %v6136 = vmax.f32 %v5624, 0.0
    %v6137 = vmax.f32 %v5625, 0.0
    %v6138 = vmax.f32 %v5626, 0.0
    %v6139 = vmax.f32 %v5627, 0.0
    %v6140 = vmax.f32 %v5628, 0.0
    %v6141 = vmax.f32 %v5629, 0.0
    %v6142 = vmax.f32 %v5630, 0.0
    %v6143 = vmax.f32 %v5631, 0.0
    %v6144 = vmax.f32 %v5632, 0.0
    %v6145 = vmax.f32 %v5633, 0.0
    %v6146 = vmax.f32 %v5634, 0.0
    %v6147 = vmax.f32 %v5635, 0.0
    %v6148 = vmax.f32 %v5636, 0.0
    %v6149 = vmax.f32 %v5637, 0.0
    %v6150 = vmax.f32 %v5638, 0.0
    %v6151 = vmax.f32 %v5639, 0.0
    %v6152 = vmax.f32 %v5640, 0.0
    %v6153 = vmax.f32 %v5641, 0.0
    %v6154 = vmax.f32 %v5642, 0.0
    %v6155 = vmax.f32 %v5643, 0.0
    %v6156 = vmax.f32 %v5644, 0.0
    %v6157 = vmax.f32 %v5645, 0.0
    %v6158 = vmax.f32 %v5646, 0.0
    %v6159 = vmax.f32 %v5647, 0.0
    %v6160 = vmax.f32 %v5648, 0.0
    %v6161 = vmax.f32 %v5649, 0.0
    %v6162 = vmax.f32 %v5650, 0.0
    %v6163 = vmax.f32 %v5651, 0.0
    %v6164 = vmax.f32 %v5652, 0.0
    %v6165 = vmax.f32 %v5653, 0.0
    %v6166 = vmax.f32 %v5654, 0.0
    %v6167 = vmax.f32 %v5655, 0.0
    %v6168 = vmax.f32 %v5656, 0.0
    %v6169 = vmax.f32 %v5657, 0.0
    %v6170 = vmax.f32 %v5658, 0.0
    %v6171 = vmax.f32 %v5659, 0.0
    %v6172 = vmax.f32 %v5660, 0.0
    %v6173 = vmax.f32 %v5661, 0.0
    %v6174 = vmax.f32 %v5662, 0.0
    %v6175 = vmax.f32 %v5663, 0.0
    %v6176 = vmax.f32 %v5664, 0.0
    %v6177 = vmax.f32 %v5665, 0.0
    %v6178 = vmax.f32 %v5666, 0.0
    %v6179 = vmax.f32 %v5667, 0.0
    %v6180 = vmax.f32 %v5668, 0.0
    %v6181 = vmax.f32 %v5669, 0.0
    %v6182 = vmax.f32 %v5670, 0.0
    %v6183 = vmax.f32 %v5671, 0.0
    %v6184 = vmax.f32 %v5672, 0.0
    %v6185 = vmax.f32 %v5673, 0.0
    %v6186 = vmax.f32 %v5674, 0.0
    %v6187 = vmax.f32 %v5675, 0.0
    %v6188 = vmax.f32 %v5676, 0.0
    %v6189 = vmax.f32 %v5677, 0.0
    %v6190 = vmax.f32 %v5678, 0.0
    %v6191 = vmax.f32 %v5679, 0.0
    %v6192 = vmax.f32 %v5680, 0.0
    %v6193 = vmax.f32 %v5681, 0.0
    %v6194 = vmax.f32 %v5682, 0.0
    %v6195 = vmax.f32 %v5683, 0.0
    %v6196 = vmax.f32 %v5684, 0.0
    %v6197 = vmax.f32 %v5685, 0.0
    %v6198 = vmax.f32 %v5686, 0.0
    %v6199 = vmax.f32 %v5687, 0.0
    %v6200 = vmax.f32 %v5688, 0.0
    %v6201 = vmax.f32 %v5689, 0.0
    %v6202 = vmax.f32 %v5690, 0.0
    %v6203 = vmax.f32 %v5691, 0.0
    %v6204 = vmax.f32 %v5692, 0.0
    %v6205 = vmax.f32 %v5693, 0.0
    %v6206 = vmax.f32 %v5694, 0.0
    %v6207 = vmax.f32 %v5695, 0.0
    %v6208 = vmax.f32 %v5696, 0.0
    %v6209 = vmax.f32 %v5697, 0.0
    %v6210 = vmax.f32 %v5698, 0.0
    %v6211 = vmax.f32 %v5699, 0.0
    %v6212 = vmax.f32 %v5700, 0.0
    %v6213 = vmax.f32 %v5701, 0.0
    %v6214 = vmax.f32 %v5702, 0.0
    %v6215 = vmax.f32 %v5703, 0.0
    %v6216 = vmax.f32 %v5704, 0.0
    %v6217 = vmax.f32 %v5705, 0.0
    %v6218 = vmax.f32 %v5706, 0.0
    %v6219 = vmax.f32 %v5707, 0.0
    %v6220 = vmax.f32 %v5708, 0.0
    %v6221 = vmax.f32 %v5709, 0.0
    %v6222 = vmax.f32 %v5710, 0.0
    %v6223 = vmax.f32 %v5711, 0.0
    %v6224 = vmax.f32 %v5712, 0.0
    %v6225 = vmax.f32 %v5713, 0.0
    %v6226 = vmax.f32 %v5714, 0.0
    %v6227 = vmax.f32 %v5715, 0.0
    %v6228 = vmax.f32 %v5716, 0.0
    %v6229 = vmax.f32 %v5717, 0.0
    %v6230 = vmax.f32 %v5718, 0.0
    %v6231 = vmax.f32 %v5719, 0.0
    %v6232 = vmax.f32 %v5720, 0.0
    %v6233 = vmax.f32 %v5721, 0.0
    %v6234 = vmax.f32 %v5722, 0.0
    %v6235 = vmax.f32 %v5723, 0.0
    %v6236 = vmax.f32 %v5724, 0.0
    %v6237 = vmax.f32 %v5725, 0.0
    %v6238 = vmax.f32 %v5726, 0.0
    %v6239 = vmax.f32 %v5727, 0.0
    %v6240 = vmax.f32 %v5728, 0.0
    %v6241 = vmax.f32 %v5729, 0.0
    %v6242 = vmax.f32 %v5730, 0.0
    %v6243 = vmax.f32 %v5731, 0.0
    %v6244 = vmax.f32 %v5732, 0.0
    %v6245 = vmax.f32 %v5733, 0.0
    %v6246 = vmax.f32 %v5734, 0.0
    %v6247 = vmax.f32 %v5735, 0.0
    %v6248 = vmax.f32 %v5736, 0.0
    %v6249 = vmax.f32 %v5737, 0.0
    %v6250 = vmax.f32 %v5738, 0.0
    %v6251 = vmax.f32 %v5739, 0.0
    %v6252 = vmax.f32 %v5740, 0.0
    %v6253 = vmax.f32 %v5741, 0.0
    %v6254 = vmax.f32 %v5742, 0.0
    %v6255 = vmax.f32 %v5743, 0.0
    %v6256 = vmax.f32 %v5744, 0.0
    %v6257 = vmax.f32 %v5745, 0.0
    %v6258 = vmax.f32 %v5746, 0.0
    %v6259 = vmax.f32 %v5747, 0.0
    %v6260 = vmax.f32 %v5748, 0.0
    %v6261 = vmax.f32 %v5749, 0.0
    %v6262 = vmax.f32 %v5750, 0.0
    %v6263 = vmax.f32 %v5751, 0.0
    %v6264 = vmax.f32 %v5752, 0.0
    %v6265 = vmax.f32 %v5753, 0.0
    %v6266 = vmax.f32 %v5754, 0.0
    %v6267 = vmax.f32 %v5755, 0.0
    %v6268 = vmax.f32 %v5756, 0.0
    %v6269 = vmax.f32 %v5757, 0.0
    %v6270 = vmax.f32 %v5758, 0.0
    %v6271 = vmax.f32 %v5759, 0.0
    %v6272 = vmax.f32 %v5760, 0.0
    %v6273 = vmax.f32 %v5761, 0.0
    %v6274 = vmax.f32 %v5762, 0.0
    %v6275 = vmax.f32 %v5763, 0.0
    %v6276 = vmax.f32 %v5764, 0.0
    %v6277 = vmax.f32 %v5765, 0.0
    %v6278 = vmax.f32 %v5766, 0.0
    %v6279 = vmax.f32 %v5767, 0.0
    %v6280 = vmax.f32 %v5768, 0.0
    %v6281 = vmax.f32 %v5769, 0.0
    %v6282 = vmax.f32 %v5770, 0.0
    %v6283 = vmax.f32 %v5771, 0.0
    %v6284 = vmax.f32 %v5772, 0.0
    %v6285 = vmax.f32 %v5773, 0.0
    %v6286 = vmax.f32 %v5774, 0.0
    %v6287 = vmax.f32 %v5775, 0.0
    %v6288 = vmax.f32 %v5776, 0.0
    %v6289 = vmax.f32 %v5777, 0.0
    %v6290 = vmax.f32 %v5778, 0.0
    %v6291 = vmax.f32 %v5779, 0.0
    %v6292 = vmax.f32 %v5780, 0.0
    %v6293 = vmax.f32 %v5781, 0.0
    %v6294 = vmax.f32 %v5782, 0.0
    %v6295 = vmax.f32 %v5783, 0.0
    %v6296 = vmax.f32 %v5784, 0.0
    %v6297 = vmax.f32 %v5785, 0.0
    %v6298 = vmax.f32 %v5786, 0.0
    %v6299 = vmax.f32 %v5787, 0.0
    %v6300 = vmax.f32 %v5788, 0.0
    %v6301 = vmax.f32 %v5789, 0.0
    %v6302 = vmax.f32 %v5790, 0.0
    %v6303 = vmax.f32 %v5791, 0.0
    %v6304 = vmax.f32 %v5792, 0.0
    %v6305 = vmax.f32 %v5793, 0.0
    %v6306 = vmax.f32 %v5794, 0.0
    %v6307 = vmax.f32 %v5795, 0.0
    %v6308 = vmax.f32 %v5796, 0.0
    %v6309 = vmax.f32 %v5797, 0.0
    %v6310 = vmax.f32 %v5798, 0.0
    %v6311 = vmax.f32 %v5799, 0.0
    %v6312 = vmax.f32 %v5800, 0.0
    %v6313 = vmax.f32 %v5801, 0.0
    %v6314 = vmax.f32 %v5802, 0.0
    %v6315 = vmax.f32 %v5803, 0.0
    %v6316 = vmax.f32 %v5804, 0.0
    %v6317 = vmax.f32 %v5805, 0.0
    %v6318 = vmax.f32 %v5806, 0.0
    %v6319 = vmax.f32 %v5807, 0.0
    %v6320 = vmax.f32 %v5808, 0.0
    %v6321 = vmax.f32 %v5809, 0.0
    %v6322 = vmax.f32 %v5810, 0.0
    %v6323 = vmax.f32 %v5811, 0.0
    %v6324 = vmax.f32 %v5812, 0.0
    %v6325 = vmax.f32 %v5813, 0.0
    %v6326 = vmax.f32 %v5814, 0.0
    %v6327 = vmax.f32 %v5815, 0.0
    %v6328 = vmax.f32 %v5816, 0.0
    %v6329 = vmax.f32 %v5817, 0.0
    %v6330 = vmax.f32 %v5818, 0.0
    %v6331 = vmax.f32 %v5819, 0.0
    %v6332 = vmax.f32 %v5820, 0.0
    %v6333 = vmax.f32 %v5821, 0.0
    %v6334 = vmax.f32 %v5822, 0.0
    %v6335 = vmax.f32 %v5823, 0.0
    %v6336 = vmax.f32 %v5824, 0.0
    %v6337 = vmax.f32 %v5825, 0.0
    %v6338 = vmax.f32 %v5826, 0.0
    %v6339 = vmax.f32 %v5827, 0.0
    %v6340 = vmax.f32 %v5828, 0.0
    %v6341 = vmax.f32 %v5829, 0.0
    %v6342 = vmax.f32 %v5830, 0.0
    %v6343 = vmax.f32 %v5831, 0.0
    %v6344 = vmax.f32 %v5832, 0.0
    %v6345 = vmax.f32 %v5833, 0.0
    %v6346 = vmax.f32 %v5834, 0.0
    %v6347 = vmax.f32 %v5835, 0.0
    %v6348 = vmax.f32 %v5836, 0.0
    %v6349 = vmax.f32 %v5837, 0.0
    %v6350 = vmax.f32 %v5838, 0.0
    %v6351 = vmax.f32 %v5839, 0.0
    %v6352 = vmax.f32 %v5840, 0.0
    %v6353 = vmax.f32 %v5841, 0.0
    %v6354 = vmax.f32 %v5842, 0.0
    %v6355 = vmax.f32 %v5843, 0.0
    %v6356 = vmax.f32 %v5844, 0.0
    %v6357 = vmax.f32 %v5845, 0.0
    %v6358 = vmax.f32 %v5846, 0.0
    %v6359 = vmax.f32 %v5847, 0.0
    %v6360 = vmax.f32 %v5848, 0.0
    %v6361 = vmax.f32 %v5849, 0.0
    %v6362 = vmax.f32 %v5850, 0.0
    %v6363 = vmax.f32 %v5851, 0.0
    %v6364 = vmax.f32 %v5852, 0.0
    %v6365 = vmax.f32 %v5853, 0.0
    %v6366 = vmax.f32 %v5854, 0.0
    %v6367 = vmax.f32 %v5855, 0.0
    %v6368 = vmax.f32 %v5856, 0.0
    %v6369 = vmax.f32 %v5857, 0.0
    %v6370 = vmax.f32 %v5858, 0.0
    %v6371 = vmax.f32 %v5859, 0.0
    %v6372 = vmax.f32 %v5860, 0.0
    %v6373 = vmax.f32 %v5861, 0.0
    %v6374 = vmax.f32 %v5862, 0.0
    %v6375 = vmax.f32 %v5863, 0.0
    %v6376 = vmax.f32 %v5864, 0.0
    %v6377 = vmax.f32 %v5865, 0.0
    %v6378 = vmax.f32 %v5866, 0.0
    %v6379 = vmax.f32 %v5867, 0.0
    %v6380 = vmax.f32 %v5868, 0.0
    %v6381 = vmax.f32 %v5869, 0.0
    %v6382 = vmax.f32 %v5870, 0.0
    %v6383 = vmax.f32 %v5871, 0.0
    %v6384 = vmax.f32 %v5872, 0.0
    %v6385 = vmax.f32 %v5873, 0.0
    %v6386 = vmax.f32 %v5874, 0.0
    %v6387 = vmax.f32 %v5875, 0.0
    %v6388 = vmax.f32 %v5876, 0.0
    %v6389 = vmax.f32 %v5877, 0.0
    %v6390 = vmax.f32 %v5878, 0.0
    %v6391 = vmax.f32 %v5879, 0.0
    %v6392 = vmax.f32 %v5880, 0.0
    %v6393 = vmax.f32 %v5881, 0.0
    %v6394 = vmax.f32 %v5882, 0.0
    %v6395 = vmax.f32 %v5883, 0.0
    %v6396 = vmax.f32 %v5884, 0.0
    %v6397 = vmax.f32 %v5885, 0.0
    %v6398 = vmax.f32 %v5886, 0.0
    %v6399 = vmax.f32 %v5887, 0.0
    %v6400 = vmax.f32 %v5888, 0.0
    %v6401 = vmax.f32 %v5889, 0.0
    %v6402 = vmax.f32 %v5890, 0.0
    %v6403 = vmax.f32 %v5891, 0.0
    %v6404 = vmax.f32 %v5892, 0.0
    %v6405 = vmax.f32 %v5893, 0.0
    %v6406 = vmax.f32 %v5894, 0.0
    %v6407 = vmax.f32 %v5895, 0.0
    %v6408 = vmax.f32 %v5896, 0.0
    %v6409 = vmax.f32 %v5897, 0.0
    %v6410 = vmax.f32 %v5898, 0.0
    %v6411 = vmax.f32 %v5899, 0.0
    %v6412 = vmax.f32 %v5900, 0.0
    %v6413 = vmax.f32 %v5901, 0.0
    %v6414 = vmax.f32 %v5902, 0.0
    %v6415 = vmax.f32 %v5903, 0.0
    %v6416 = vmax.f32 %v5904, 0.0
    %v6417 = vmax.f32 %v5905, 0.0
    %v6418 = vmax.f32 %v5906, 0.0
    %v6419 = vmax.f32 %v5907, 0.0
    %v6420 = vmax.f32 %v5908, 0.0
    %v6421 = vmax.f32 %v5909, 0.0
    %v6422 = vmax.f32 %v5910, 0.0
    %v6423 = vmax.f32 %v5911, 0.0
    %v6424 = vmax.f32 %v5912, 0.0
    %v6425 = vmax.f32 %v5913, 0.0
    %v6426 = vmax.f32 %v5914, 0.0
    %v6427 = vmax.f32 %v5915, 0.0
    %v6428 = vmax.f32 %v5916, 0.0
    %v6429 = vmax.f32 %v5917, 0.0
    %v6430 = vmax.f32 %v5918, 0.0
    %v6431 = vmax.f32 %v5919, 0.0
    %v6432 = vmax.f32 %v5920, 0.0
    %v6433 = vmax.f32 %v5921, 0.0
    %v6434 = vmax.f32 %v5922, 0.0
    %v6435 = vmax.f32 %v5923, 0.0
    %v6436 = vmax.f32 %v5924, 0.0
    %v6437 = vmax.f32 %v5925, 0.0
    %v6438 = vmax.f32 %v5926, 0.0
    %v6439 = vmax.f32 %v5927, 0.0
    %v6440 = vmax.f32 %v5928, 0.0
    %v6441 = vmax.f32 %v5929, 0.0
    %v6442 = vmax.f32 %v5930, 0.0
    %v6443 = vmax.f32 %v5931, 0.0
    %v6444 = vmax.f32 %v5932, 0.0
    %v6445 = vmax.f32 %v5933, 0.0
    %v6446 = vmax.f32 %v5934, 0.0
    %v6447 = vmax.f32 %v5935, 0.0
    %v6448 = vmax.f32 %v5936, 0.0
    %v6449 = vmax.f32 %v5937, 0.0
    %v6450 = vmax.f32 %v5938, 0.0
    %v6451 = vmax.f32 %v5939, 0.0
    %v6452 = vmax.f32 %v5940, 0.0
    %v6453 = vmax.f32 %v5941, 0.0
    %v6454 = vmax.f32 %v5942, 0.0
    %v6455 = vmax.f32 %v5943, 0.0
    %v6456 = vmax.f32 %v5944, 0.0
    %v6457 = vmax.f32 %v5945, 0.0
    %v6458 = vmax.f32 %v5946, 0.0
    %v6459 = vmax.f32 %v5947, 0.0
    %v6460 = vmax.f32 %v5948, 0.0
    %v6461 = vmax.f32 %v5949, 0.0
    %v6462 = vmax.f32 %v5950, 0.0
    %v6463 = vmax.f32 %v5951, 0.0
    %v6464 = vmax.f32 %v5952, 0.0
    %v6465 = vmax.f32 %v5953, 0.0
    %v6466 = vmax.f32 %v5954, 0.0
    %v6467 = vmax.f32 %v5955, 0.0
    %v6468 = vmax.f32 %v5956, 0.0
    %v6469 = vmax.f32 %v5957, 0.0
    %v6470 = vmax.f32 %v5958, 0.0
    %v6471 = vmax.f32 %v5959, 0.0
    %v6472 = vmax.f32 %v5960, 0.0
    %v6473 = vmax.f32 %v5961, 0.0
    %v6474 = vmax.f32 %v5962, 0.0
    %v6475 = vmax.f32 %v5963, 0.0
    %v6476 = vmax.f32 %v5964, 0.0
    %v6477 = vmax.f32 %v5965, 0.0
    %v6478 = vmax.f32 %v5966, 0.0
    %v6479 = vmax.f32 %v5967, 0.0
    %v6480 = vmax.f32 %v5968, 0.0
    %v6481 = vmax.f32 %v5969, 0.0
    %v6482 = vmax.f32 %v5970, 0.0
    %v6483 = vmax.f32 %v5971, 0.0
    %v6484 = vmax.f32 %v5972, 0.0
    %v6485 = vmax.f32 %v5973, 0.0
    %v6486 = vmax.f32 %v5974, 0.0
    %v6487 = vmax.f32 %v5975, 0.0
    %v6488 = vmax.f32 %v5976, 0.0
    %v6489 = vmax.f32 %v5977, 0.0
    %v6490 = vmax.f32 %v5978, 0.0
    %v6491 = vmax.f32 %v5979, 0.0
    %v6492 = vmax.f32 %v5980, 0.0
    %v6493 = vmax.f32 %v5981, 0.0
    %v6494 = vmax.f32 %v5982, 0.0
    %v6495 = vmax.f32 %v5983, 0.0
    %v6496 = vmax.f32 %v5984, 0.0
    %v6497 = vmax.f32 %v5985, 0.0
    %v6498 = vmax.f32 %v5986, 0.0
    %v6499 = vmax.f32 %v5987, 0.0
    %v6500 = vmax.f32 %v5988, 0.0
    %v6501 = vmax.f32 %v5989, 0.0
    %v6502 = vmax.f32 %v5990, 0.0
    %v6503 = vmax.f32 %v5991, 0.0
    %v6504 = vmax.f32 %v5992, 0.0
    %v6505 = vmax.f32 %v5993, 0.0
    %v6506 = vmax.f32 %v5994, 0.0
    %v6507 = vmax.f32 %v5995, 0.0
    %v6508 = vmax.f32 %v5996, 0.0
    %v6509 = vmax.f32 %v5997, 0.0
    %v6510 = vmax.f32 %v5998, 0.0
    %v6511 = vmax.f32 %v5999, 0.0
    %v6512 = vmax.f32 %v6000, 0.0
    %v6513 = vmax.f32 %v6001, 0.0
    %v6514 = vmax.f32 %v6002, 0.0
    %v6515 = vmax.f32 %v6003, 0.0
    %v6516 = vmax.f32 %v6004, 0.0
    %v6517 = vmax.f32 %v6005, 0.0
    %v6518 = vmax.f32 %v6006, 0.0
    %v6519 = vmax.f32 %v6007, 0.0
    %v6520 = vmax.f32 %v6008, 0.0
    %v6521 = vmax.f32 %v6009, 0.0
    %v6522 = vmax.f32 %v6010, 0.0
    %v6523 = vmax.f32 %v6011, 0.0
    %v6524 = vmax.f32 %v6012, 0.0
    %v6525 = vmax.f32 %v6013, 0.0
    %v6526 = vmax.f32 %v6014, 0.0
    %v6527 = vmax.f32 %v6015, 0.0
    %v6528 = vmax.f32 %v6016, 0.0
    %v6529 = vmax.f32 %v6017, 0.0
    %v6530 = vmax.f32 %v6018, 0.0
    %v6531 = vmax.f32 %v6019, 0.0
    %v6532 = vmax.f32 %v6020, 0.0
    %v6533 = vmax.f32 %v6021, 0.0
    %v6534 = vmax.f32 %v6022, 0.0
    %v6535 = vmax.f32 %v6023, 0.0
    %v6536 = vmax.f32 %v6024, 0.0
    %v6537 = vmax.f32 %v6025, 0.0
    %v6538 = vmax.f32 %v6026, 0.0
    %v6539 = vmax.f32 %v6027, 0.0
    %v6540 = vmax.f32 %v6028, 0.0
    %v6541 = vmax.f32 %v6029, 0.0
    %v6542 = vmax.f32 %v6030, 0.0
    %v6543 = vmax.f32 %v6031, 0.0
    %v6544 = vmax.f32 %v6032, 0.0
    %v6545 = vmax.f32 %v6033, 0.0
    %v6546 = vmax.f32 %v6034, 0.0
    %v6547 = vmax.f32 %v6035, 0.0
    %v6548 = vmax.f32 %v6036, 0.0
    %v6549 = vmax.f32 %v6037, 0.0
    %v6550 = vmax.f32 %v6038, 0.0
    %v6551 = vmax.f32 %v6039, 0.0
    %v6552 = vmax.f32 %v6040, 0.0
    %v6553 = vmax.f32 %v6041, 0.0
    %v6554 = vmax.f32 %v6042, 0.0
    %v6555 = vmax.f32 %v6043, 0.0
    %v6556 = vmax.f32 %v6044, 0.0
    %v6557 = vmax.f32 %v6045, 0.0
    %v6558 = vmax.f32 %v6046, 0.0
    %v6559 = vmax.f32 %v6047, 0.0
    %v6560 = vmax.f32 %v6048, 0.0
    %v6561 = vmax.f32 %v6049, 0.0
    %v6562 = vmax.f32 %v6050, 0.0
    %v6563 = vmax.f32 %v6051, 0.0
    %v6564 = vmax.f32 %v6052, 0.0
    %v6565 = vmax.f32 %v6053, 0.0
    %v6566 = vmax.f32 %v6054, 0.0
    %v6567 = vmax.f32 %v6055, 0.0
    %v6568 = vmax.f32 %v6056, 0.0
    %v6569 = vmax.f32 %v6057, 0.0
    %v6570 = vmax.f32 %v6058, 0.0
    %v6571 = vmax.f32 %v6059, 0.0
    %v6572 = vmax.f32 %v6060, 0.0
    %v6573 = vmax.f32 %v6061, 0.0
    %v6574 = vmax.f32 %v6062, 0.0
    %v6575 = vmax.f32 %v6063, 0.0
    %v6576 = vmax.f32 %v6064, 0.0
    %v6577 = vmax.f32 %v6065, 0.0
    %v6578 = vmax.f32 %v6066, 0.0
    %v6579 = vmax.f32 %v6067, 0.0
    %v6580 = vmax.f32 %v6068, 0.0
    %v6581 = vmax.f32 %v6069, 0.0
    %v6582 = vmax.f32 %v6070, 0.0
    %v6583 = vmax.f32 %v6071, 0.0
    %v6584 = vmax.f32 %v6072, 0.0
    %v6585 = vmax.f32 %v6073, 0.0
    %v6586 = vmax.f32 %v6074, 0.0
    %v6587 = vmax.f32 %v6075, 0.0
    %v6588 = vmax.f32 %v6076, 0.0
    %v6589 = vmax.f32 %v6077, 0.0
    %v6590 = vmax.f32 %v6078, 0.0
    %v6591 = vmax.f32 %v6079, 0.0
    %v6592 = vmax.f32 %v6080, 0.0
    %v6593 = vmax.f32 %v6081, 0.0
    %v6594 = vmax.f32 %v6082, 0.0
    %v6595 = vmax.f32 %v6083, 0.0
    %v6596 = vmax.f32 %v6084, 0.0
    %v6597 = vmax.f32 %v6085, 0.0
    %v6598 = vmax.f32 %v6086, 0.0
    %v6599 = vmax.f32 %v6087, 0.0
    %v6600 = vmax.f32 %v6088, 0.0
    %v6601 = vmax.f32 %v6089, 0.0
    %v6602 = vmax.f32 %v6090, 0.0
    %v6603 = vmax.f32 %v6091, 0.0
    %v6604 = vmax.f32 %v6092, 0.0
    %v6605 = vmax.f32 %v6093, 0.0
    %v6606 = vmax.f32 %v6094, 0.0
    %v6607 = vmax.f32 %v6095, 0.0
    %v6608 = vmax.f32 %v6096, 0.0
    %v6609 = vmax.f32 %v6097, 0.0
    %v6610 = vmax.f32 %v6098, 0.0
    %v6611 = vmax.f32 %v6099, 0.0
    %v6612 = vmax.f32 %v6100, 0.0
    %v6613 = vmax.f32 %v6101, 0.0
    %v6614 = vmax.f32 %v6102, 0.0
    %v6615 = vmax.f32 %v6103, 0.0
    %v6616 = vmax.f32 %v6104, 0.0
    %v6617 = vmax.f32 %v6105, 0.0
    %v6618 = vmax.f32 %v6106, 0.0
    %v6619 = vmax.f32 %v6107, 0.0
    %v6620 = vmax.f32 %v6108, 0.0
    %v6621 = vmax.f32 %v6109, 0.0
    %v6622 = vmax.f32 %v6110, 0.0
    %v6623 = vmax.f32 %v6111, 0.0
    %v6624 = vmax.f32 %v6112, 0.0
    %v6625 = vmax.f32 %v6113, 0.0
    %v6626 = vmax.f32 %v6114, 0.0
    %v6627 = vmax.f32 %v6115, 0.0
    %v6628 = vmax.f32 %v6116, 0.0
    %v6629 = vmax.f32 %v6117, 0.0
    %v6630 = vmax.f32 %v6118, 0.0
    %v6631 = vmax.f32 %v6119, 0.0
    %v6632 = vmax.f32 %v6120, 0.0
    %v6633 = vmax.f32 %v6121, 0.0
    %v6634 = vmax.f32 %v6122, 0.0
    %v6635 = vmax.f32 %v6123, 0.0
    %v6636 = vmax.f32 %v6124, 0.0
    %v6637 = vmax.f32 %v6125, 0.0
    %v6638 = vmax.f32 %v6126, 0.0
    %v6639 = vmax.f32 %v6127, 0.0
    %v6640 = vmax.f32 %v6128, 0.0
    %v6641 = vmax.f32 %v6129, 0.0
    %v6642 = vmax.f32 %v6130, 0.0
    %v6643 = vmax.f32 %v6131, 0.0
    %v6644 = vmax.f32 %v6132, 0.0
    %v6645 = vmax.f32 %v6133, 0.0
    %v6646 = vpack.c.bf16 %v6198, %v6134
    %v6647 = vpack.c.bf16 %v6199, %v6135
    %v6648 = vpack.c.bf16 %v6200, %v6136
    %v6649 = vpack.c.bf16 %v6201, %v6137
    %v6650 = vpack.c.bf16 %v6202, %v6138
    %v6651 = vpack.c.bf16 %v6203, %v6139
    %v6652 = vpack.c.bf16 %v6204, %v6140
    %v6653 = vpack.c.bf16 %v6205, %v6141
    %v6654 = vpack.c.bf16 %v6206, %v6142
    %v6655 = vpack.c.bf16 %v6207, %v6143
    %v6656 = vpack.c.bf16 %v6208, %v6144
    %v6657 = vpack.c.bf16 %v6209, %v6145
    %v6658 = vpack.c.bf16 %v6210, %v6146
    %v6659 = vpack.c.bf16 %v6211, %v6147
    %v6660 = vpack.c.bf16 %v6212, %v6148
    %v6661 = vpack.c.bf16 %v6213, %v6149
    %v6662 = vpack.c.bf16 %v6214, %v6150
    %v6663 = vpack.c.bf16 %v6215, %v6151
    %v6664 = vpack.c.bf16 %v6216, %v6152
    %v6665 = vpack.c.bf16 %v6217, %v6153
    %v6666 = vpack.c.bf16 %v6218, %v6154
    %v6667 = vpack.c.bf16 %v6219, %v6155
    %v6668 = vpack.c.bf16 %v6220, %v6156
    %v6669 = vpack.c.bf16 %v6221, %v6157
    %v6670 = vpack.c.bf16 %v6222, %v6158
    %v6671 = vpack.c.bf16 %v6223, %v6159
    %v6672 = vpack.c.bf16 %v6224, %v6160
    %v6673 = vpack.c.bf16 %v6225, %v6161
    %v6674 = vpack.c.bf16 %v6226, %v6162
    %v6675 = vpack.c.bf16 %v6227, %v6163
    %v6676 = vpack.c.bf16 %v6228, %v6164
    %v6677 = vpack.c.bf16 %v6229, %v6165
    %v6678 = vpack.c.bf16 %v6230, %v6166
    %v6679 = vpack.c.bf16 %v6231, %v6167
    %v6680 = vpack.c.bf16 %v6232, %v6168
    %v6681 = vpack.c.bf16 %v6233, %v6169
    %v6682 = vpack.c.bf16 %v6234, %v6170
    %v6683 = vpack.c.bf16 %v6235, %v6171
    %v6684 = vpack.c.bf16 %v6236, %v6172
    %v6685 = vpack.c.bf16 %v6237, %v6173
    %v6686 = vpack.c.bf16 %v6238, %v6174
    %v6687 = vpack.c.bf16 %v6239, %v6175
    %v6688 = vpack.c.bf16 %v6240, %v6176
    %v6689 = vpack.c.bf16 %v6241, %v6177
    %v6690 = vpack.c.bf16 %v6242, %v6178
    %v6691 = vpack.c.bf16 %v6243, %v6179
    %v6692 = vpack.c.bf16 %v6244, %v6180
    %v6693 = vpack.c.bf16 %v6245, %v6181
    %v6694 = vpack.c.bf16 %v6246, %v6182
    %v6695 = vpack.c.bf16 %v6247, %v6183
    %v6696 = vpack.c.bf16 %v6248, %v6184
    %v6697 = vpack.c.bf16 %v6249, %v6185
    %v6698 = vpack.c.bf16 %v6250, %v6186
    %v6699 = vpack.c.bf16 %v6251, %v6187
    %v6700 = vpack.c.bf16 %v6252, %v6188
    %v6701 = vpack.c.bf16 %v6253, %v6189
    %v6702 = vpack.c.bf16 %v6254, %v6190
    %v6703 = vpack.c.bf16 %v6255, %v6191
    %v6704 = vpack.c.bf16 %v6256, %v6192
    %v6705 = vpack.c.bf16 %v6257, %v6193
    %v6706 = vpack.c.bf16 %v6258, %v6194
    %v6707 = vpack.c.bf16 %v6259, %v6195
    %v6708 = vpack.c.bf16 %v6260, %v6196
    %v6709 = vpack.c.bf16 %v6261, %v6197
    %v6710 = vpack.c.bf16 %v6326, %v6262
    %v6711 = vpack.c.bf16 %v6327, %v6263
    %v6712 = vpack.c.bf16 %v6328, %v6264
    %v6713 = vpack.c.bf16 %v6329, %v6265
    %v6714 = vpack.c.bf16 %v6330, %v6266
    %v6715 = vpack.c.bf16 %v6331, %v6267
    %v6716 = vpack.c.bf16 %v6332, %v6268
    %v6717 = vpack.c.bf16 %v6333, %v6269
    %v6718 = vpack.c.bf16 %v6334, %v6270
    %v6719 = vpack.c.bf16 %v6335, %v6271
    %v6720 = vpack.c.bf16 %v6336, %v6272
    %v6721 = vpack.c.bf16 %v6337, %v6273
    %v6722 = vpack.c.bf16 %v6338, %v6274
    %v6723 = vpack.c.bf16 %v6339, %v6275
    %v6724 = vpack.c.bf16 %v6340, %v6276
    %v6725 = vpack.c.bf16 %v6341, %v6277
    %v6726 = vpack.c.bf16 %v6342, %v6278
    %v6727 = vpack.c.bf16 %v6343, %v6279
    %v6728 = vpack.c.bf16 %v6344, %v6280
    %v6729 = vpack.c.bf16 %v6345, %v6281
    %v6730 = vpack.c.bf16 %v6346, %v6282
    %v6731 = vpack.c.bf16 %v6347, %v6283
    %v6732 = vpack.c.bf16 %v6348, %v6284
    %v6733 = vpack.c.bf16 %v6349, %v6285
    %v6734 = vpack.c.bf16 %v6350, %v6286
    %v6735 = vpack.c.bf16 %v6351, %v6287
    %v6736 = vpack.c.bf16 %v6352, %v6288
    %v6737 = vpack.c.bf16 %v6353, %v6289
    %v6738 = vpack.c.bf16 %v6354, %v6290
    %v6739 = vpack.c.bf16 %v6355, %v6291
    %v6740 = vpack.c.bf16 %v6356, %v6292
    %v6741 = vpack.c.bf16 %v6357, %v6293
    %v6742 = vpack.c.bf16 %v6358, %v6294
    %v6743 = vpack.c.bf16 %v6359, %v6295
    %v6744 = vpack.c.bf16 %v6360, %v6296
    %v6745 = vpack.c.bf16 %v6361, %v6297
    %v6746 = vpack.c.bf16 %v6362, %v6298
    %v6747 = vpack.c.bf16 %v6363, %v6299
    %v6748 = vpack.c.bf16 %v6364, %v6300
    %v6749 = vpack.c.bf16 %v6365, %v6301
    %v6750 = vpack.c.bf16 %v6366, %v6302
    %v6751 = vpack.c.bf16 %v6367, %v6303
    %v6752 = vpack.c.bf16 %v6368, %v6304
    %v6753 = vpack.c.bf16 %v6369, %v6305
    %v6754 = vpack.c.bf16 %v6370, %v6306
    %v6755 = vpack.c.bf16 %v6371, %v6307
    %v6756 = vpack.c.bf16 %v6372, %v6308
    %v6757 = vpack.c.bf16 %v6373, %v6309
    %v6758 = vpack.c.bf16 %v6374, %v6310
    %v6759 = vpack.c.bf16 %v6375, %v6311
    %v6760 = vpack.c.bf16 %v6376, %v6312
    %v6761 = vpack.c.bf16 %v6377, %v6313
    %v6762 = vpack.c.bf16 %v6378, %v6314
    %v6763 = vpack.c.bf16 %v6379, %v6315
    %v6764 = vpack.c.bf16 %v6380, %v6316
    %v6765 = vpack.c.bf16 %v6381, %v6317
    %v6766 = vpack.c.bf16 %v6382, %v6318
    %v6767 = vpack.c.bf16 %v6383, %v6319
    %v6768 = vpack.c.bf16 %v6384, %v6320
    %v6769 = vpack.c.bf16 %v6385, %v6321
    %v6770 = vpack.c.bf16 %v6386, %v6322
    %v6771 = vpack.c.bf16 %v6387, %v6323
    %v6772 = vpack.c.bf16 %v6388, %v6324
    %v6773 = vpack.c.bf16 %v6389, %v6325
    %v6774 = vpack.c.bf16 %v6454, %v6390
    %v6775 = vpack.c.bf16 %v6455, %v6391
    %v6776 = vpack.c.bf16 %v6456, %v6392
    %v6777 = vpack.c.bf16 %v6457, %v6393
    %v6778 = vpack.c.bf16 %v6458, %v6394
    %v6779 = vpack.c.bf16 %v6459, %v6395
    %v6780 = vpack.c.bf16 %v6460, %v6396
    %v6781 = vpack.c.bf16 %v6461, %v6397
    %v6782 = vpack.c.bf16 %v6462, %v6398
    %v6783 = vpack.c.bf16 %v6463, %v6399
    %v6784 = vpack.c.bf16 %v6464, %v6400
    %v6785 = vpack.c.bf16 %v6465, %v6401
    %v6786 = vpack.c.bf16 %v6466, %v6402
    %v6787 = vpack.c.bf16 %v6467, %v6403
    %v6788 = vpack.c.bf16 %v6468, %v6404
    %v6789 = vpack.c.bf16 %v6469, %v6405
    %v6790 = vpack.c.bf16 %v6470, %v6406
    %v6791 = vpack.c.bf16 %v6471, %v6407
    %v6792 = vpack.c.bf16 %v6472, %v6408
    %v6793 = vpack.c.bf16 %v6473, %v6409
    %v6794 = vpack.c.bf16 %v6474, %v6410
    %v6795 = vpack.c.bf16 %v6475, %v6411
    %v6796 = vpack.c.bf16 %v6476, %v6412
    %v6797 = vpack.c.bf16 %v6477, %v6413
    %v6798 = vpack.c.bf16 %v6478, %v6414
    %v6799 = vpack.c.bf16 %v6479, %v6415
    %v6800 = vpack.c.bf16 %v6480, %v6416
    %v6801 = vpack.c.bf16 %v6481, %v6417
    %v6802 = vpack.c.bf16 %v6482, %v6418
    %v6803 = vpack.c.bf16 %v6483, %v6419
    %v6804 = vpack.c.bf16 %v6484, %v6420
    %v6805 = vpack.c.bf16 %v6485, %v6421
    %v6806 = vpack.c.bf16 %v6486, %v6422
    %v6807 = vpack.c.bf16 %v6487, %v6423
    %v6808 = vpack.c.bf16 %v6488, %v6424
    %v6809 = vpack.c.bf16 %v6489, %v6425
    %v6810 = vpack.c.bf16 %v6490, %v6426
    %v6811 = vpack.c.bf16 %v6491, %v6427
    %v6812 = vpack.c.bf16 %v6492, %v6428
    %v6813 = vpack.c.bf16 %v6493, %v6429
    %v6814 = vpack.c.bf16 %v6494, %v6430
    %v6815 = vpack.c.bf16 %v6495, %v6431
    %v6816 = vpack.c.bf16 %v6496, %v6432
    %v6817 = vpack.c.bf16 %v6497, %v6433
    %v6818 = vpack.c.bf16 %v6498, %v6434
    %v6819 = vpack.c.bf16 %v6499, %v6435
    %v6820 = vpack.c.bf16 %v6500, %v6436
    %v6821 = vpack.c.bf16 %v6501, %v6437
    %v6822 = vpack.c.bf16 %v6502, %v6438
    %v6823 = vpack.c.bf16 %v6503, %v6439
    %v6824 = vpack.c.bf16 %v6504, %v6440
    %v6825 = vpack.c.bf16 %v6505, %v6441
    %v6826 = vpack.c.bf16 %v6506, %v6442
    %v6827 = vpack.c.bf16 %v6507, %v6443
    %v6828 = vpack.c.bf16 %v6508, %v6444
    %v6829 = vpack.c.bf16 %v6509, %v6445
    %v6830 = vpack.c.bf16 %v6510, %v6446
    %v6831 = vpack.c.bf16 %v6511, %v6447
    %v6832 = vpack.c.bf16 %v6512, %v6448
    %v6833 = vpack.c.bf16 %v6513, %v6449
    %v6834 = vpack.c.bf16 %v6514, %v6450
    %v6835 = vpack.c.bf16 %v6515, %v6451
    %v6836 = vpack.c.bf16 %v6516, %v6452
    %v6837 = vpack.c.bf16 %v6517, %v6453
    %v6838 = vpack.c.bf16 %v6582, %v6518
    %v6839 = vpack.c.bf16 %v6583, %v6519
    %v6840 = vpack.c.bf16 %v6584, %v6520
    %v6841 = vpack.c.bf16 %v6585, %v6521
    %v6842 = vpack.c.bf16 %v6586, %v6522
    %v6843 = vpack.c.bf16 %v6587, %v6523
    %v6844 = vpack.c.bf16 %v6588, %v6524
    %v6845 = vpack.c.bf16 %v6589, %v6525
    %v6846 = vpack.c.bf16 %v6590, %v6526
    %v6847 = vpack.c.bf16 %v6591, %v6527
    %v6848 = vpack.c.bf16 %v6592, %v6528
    %v6849 = vpack.c.bf16 %v6593, %v6529
    %v6850 = vpack.c.bf16 %v6594, %v6530
    %v6851 = vpack.c.bf16 %v6595, %v6531
    %v6852 = vpack.c.bf16 %v6596, %v6532
    %v6853 = vpack.c.bf16 %v6597, %v6533
    %v6854 = vpack.c.bf16 %v6598, %v6534
    %v6855 = vpack.c.bf16 %v6599, %v6535
    %v6856 = vpack.c.bf16 %v6600, %v6536
    %v6857 = vpack.c.bf16 %v6601, %v6537
    %v6858 = vpack.c.bf16 %v6602, %v6538
    %v6859 = vpack.c.bf16 %v6603, %v6539
    %v6860 = vpack.c.bf16 %v6604, %v6540
    %v6861 = vpack.c.bf16 %v6605, %v6541
    %v6862 = vpack.c.bf16 %v6606, %v6542
    %v6863 = vpack.c.bf16 %v6607, %v6543
    %v6864 = vpack.c.bf16 %v6608, %v6544
    %v6865 = vpack.c.bf16 %v6609, %v6545
    %v6866 = vpack.c.bf16 %v6610, %v6546
    %v6867 = vpack.c.bf16 %v6611, %v6547
    %v6868 = vpack.c.bf16 %v6612, %v6548
    %v6869 = vpack.c.bf16 %v6613, %v6549
    %v6870 = vpack.c.bf16 %v6614, %v6550
    %v6871 = vpack.c.bf16 %v6615, %v6551
    %v6872 = vpack.c.bf16 %v6616, %v6552
    %v6873 = vpack.c.bf16 %v6617, %v6553
    %v6874 = vpack.c.bf16 %v6618, %v6554
    %v6875 = vpack.c.bf16 %v6619, %v6555
    %v6876 = vpack.c.bf16 %v6620, %v6556
    %v6877 = vpack.c.bf16 %v6621, %v6557
    %v6878 = vpack.c.bf16 %v6622, %v6558
    %v6879 = vpack.c.bf16 %v6623, %v6559
    %v6880 = vpack.c.bf16 %v6624, %v6560
    %v6881 = vpack.c.bf16 %v6625, %v6561
    %v6882 = vpack.c.bf16 %v6626, %v6562
    %v6883 = vpack.c.bf16 %v6627, %v6563
    %v6884 = vpack.c.bf16 %v6628, %v6564
    %v6885 = vpack.c.bf16 %v6629, %v6565
    %v6886 = vpack.c.bf16 %v6630, %v6566
    %v6887 = vpack.c.bf16 %v6631, %v6567
    %v6888 = vpack.c.bf16 %v6632, %v6568
    %v6889 = vpack.c.bf16 %v6633, %v6569
    %v6890 = vpack.c.bf16 %v6634, %v6570
    %v6891 = vpack.c.bf16 %v6635, %v6571
    %v6892 = vpack.c.bf16 %v6636, %v6572
    %v6893 = vpack.c.bf16 %v6637, %v6573
    %v6894 = vpack.c.bf16 %v6638, %v6574
    %v6895 = vpack.c.bf16 %v6639, %v6575
    %v6896 = vpack.c.bf16 %v6640, %v6576
    %v6897 = vpack.c.bf16 %v6641, %v6577
    %v6898 = vpack.c.bf16 %v6642, %v6578
    %v6899 = vpack.c.bf16 %v6643, %v6579
    %v6900 = vpack.c.bf16 %v6644, %v6580
    %v6901 = vpack.c.bf16 %v6645, %v6581
    %v6902 = vld [vmem:[%s3] sm:$0xf]
    %v6903 = vld [vmem:[%s3 + $0x4] sm:$0xf]
    %v6904 = vld [vmem:[%s3 + $0x8] sm:$0xf]
    %v6905 = vld [vmem:[%s3 + $0xc] sm:$0xf]
    %v6906 = vld [vmem:[%s3 + $0x10] sm:$0xf]
    %v6907 = vld [vmem:[%s3 + $0x14] sm:$0xf]
    %v6908 = vld [vmem:[%s3 + $0x18] sm:$0xf]
    %v6909 = vld [vmem:[%s3 + $0x1c] sm:$0xf]
    %v6910 = vld [vmem:[%s4] sm:$0xff]
    %v6911 = vld [vmem:[%s4 + $0x8] sm:$0xff]
    %v6912 = vld [vmem:[%s4 + $0x10] sm:$0xff]
    %v6913 = vld [vmem:[%s4 + $0x18] sm:$0xff]
    %v6914 = vld [vmem:[%s4 + $0x20] sm:$0xff]
    %v6915 = vld [vmem:[%s4 + $0x28] sm:$0xff]
    %v6916 = vld [vmem:[%s4 + $0x30] sm:$0xff]
    %v6917 = vld [vmem:[%s4 + $0x38] sm:$0xff]
    %6919 = vset.pattern.permute.xlu0 0
    %6920 = vperm.xlu0 %6919, %v6910
    %v6921 = vpop.permute.xlu0 %6920
    %6924 = vset.pattern.permute.xlu0 0
    %6925 = vperm.xlu0 %6924, %v6911
    %v6926 = vpop.permute.xlu0 %6925
    %6929 = vset.pattern.permute.xlu0 0
    %6930 = vperm.xlu0 %6929, %v6912
    %v6931 = vpop.permute.xlu0 %6930
    %6934 = vset.pattern.permute.xlu0 0
    %6935 = vperm.xlu0 %6934, %v6913
    %v6936 = vpop.permute.xlu0 %6935
    %6939 = vset.pattern.permute.xlu0 0
    %6940 = vperm.xlu0 %6939, %v6914
    %v6941 = vpop.permute.xlu0 %6940
    %6944 = vset.pattern.permute.xlu0 0
    %6945 = vperm.xlu0 %6944, %v6915
    %v6946 = vpop.permute.xlu0 %6945
    %6949 = vset.pattern.permute.xlu0 0
    %6950 = vperm.xlu0 %6949, %v6916
    %v6951 = vpop.permute.xlu0 %6950
    %6954 = vset.pattern.permute.xlu0 0
    %6955 = vperm.xlu0 %6954, %v6917
    %v6956 = vpop.permute.xlu0 %6955
    %v6966 = vunpack.c.l.b16 %v6902
    %v6967 = vunpack.c.l.b16 %v6903
    %v6968 = vunpack.c.l.b16 %v6904
    %v6969 = vunpack.c.l.b16 %v6905
    %v6970 = vunpack.c.l.b16 %v6906
    %v6971 = vunpack.c.l.b16 %v6907
    %v6972 = vunpack.c.l.b16 %v6908
    %v6973 = vunpack.c.l.b16 %v6909
    %v6974 = vpack.c.b16 %v6967, %v6966
    %v6975 = vpack.c.b16 %v6969, %v6968
    %v6976 = vpack.c.b16 %v6971, %v6970
    %v6977 = vpack.c.b16 %v6973, %v6972
    %vm6978 = vcmask 523264
    %v6980 = vsel %vm6978, %v6974, 0
    %v6983 = vsel %vm6978, %v6975, 0
    %v6986 = vsel %vm6978, %v6976, 0
    %v6989 = vsel %vm6978, %v6977, 0
    %6991 = vmatpush.bf16.msra.mxu0 0
    %6992 = vmatpush.bf16.msra.mxu0 0
    %6993 = vmatpush.bf16.msra.mxu0 0
    %6994 = vmatpush.bf16.msra.mxu0 0
    %6995 = vmatpush.bf16.msra.mxu0 %v6838
    %6996 = vmatpush.bf16.msra.mxu0 %v6774
    %6997 = vmatpush.bf16.msra.mxu0 %v6710
    %6998 = vmatpush.bf16.msra.mxu0 %v6646
    %6999 = vmatmul.bf16.gmra.mxu0 %v6980
    %v7000 = vpop.f32.mrf.mxu0
    %v7001 = vadd.f32 %v6921, %v7000
    %v7002 = vpop.f32.mrf.mxu0
    %v7003 = vadd.f32 %v6926, %v7002
    %7004 = vmatmul.bf16.gmra.mxu0 %v6983
    %v7005 = vpop.f32.mrf.mxu0
    %v7006 = vadd.f32 %v6931, %v7005
    %v7007 = vpop.f32.mrf.mxu0
    %v7008 = vadd.f32 %v6936, %v7007
    %7009 = vmatmul.bf16.gmra.mxu0 %v6986
    %v7010 = vpop.f32.mrf.mxu0
    %v7011 = vadd.f32 %v6941, %v7010
    %v7012 = vpop.f32.mrf.mxu0
    %v7013 = vadd.f32 %v6946, %v7012
    %7014 = vmatmul.bf16.gmra.mxu0 %v6989
    %v7015 = vpop.f32.mrf.mxu0
    %v7016 = vadd.f32 %v6951, %v7015
    %v7017 = vpop.f32.mrf.mxu0
    %v7018 = vadd.f32 %v6956, %v7017
    %7019 = vdwg.mxu0
    %7020 = vmatpush.bf16.msra.mxu0 0
    %7021 = vmatpush.bf16.msra.mxu0 0
    %7022 = vmatpush.bf16.msra.mxu0 0
    %7023 = vmatpush.bf16.msra.mxu0 0
    %7024 = vmatpush.bf16.msra.mxu0 %v6839
    %7025 = vmatpush.bf16.msra.mxu0 %v6775
    %7026 = vmatpush.bf16.msra.mxu0 %v6711
    %7027 = vmatpush.bf16.msra.mxu0 %v6647
    %7028 = vmatmul.bf16.gmra.mxu0 %v6980
    %v7029 = vpop.f32.mrf.mxu0
    %v7030 = vadd.f32 %v6921, %v7029
    %v7031 = vpop.f32.mrf.mxu0
    %v7032 = vadd.f32 %v6926, %v7031
    %7033 = vmatmul.bf16.gmra.mxu0 %v6983
    %v7034 = vpop.f32.mrf.mxu0
    %v7035 = vadd.f32 %v6931, %v7034
    %v7036 = vpop.f32.mrf.mxu0
    %v7037 = vadd.f32 %v6936, %v7036
    %7038 = vmatmul.bf16.gmra.mxu0 %v6986
    %v7039 = vpop.f32.mrf.mxu0
    %v7040 = vadd.f32 %v6941, %v7039
    %v7041 = vpop.f32.mrf.mxu0
    %v7042 = vadd.f32 %v6946, %v7041
    %7043 = vmatmul.bf16.gmra.mxu0 %v6989
    %v7044 = vpop.f32.mrf.mxu0
    %v7045 = vadd.f32 %v6951, %v7044
    %v7046 = vpop.f32.mrf.mxu0
    %v7047 = vadd.f32 %v6956, %v7046
    %7048 = vdwg.mxu0
    %7049 = vmatpush.bf16.msra.mxu0 0
    %7050 = vmatpush.bf16.msra.mxu0 0
    %7051 = vmatpush.bf16.msra.mxu0 0
    %7052 = vmatpush.bf16.msra.mxu0 0
    %7053 = vmatpush.bf16.msra.mxu0 %v6840
    %7054 = vmatpush.bf16.msra.mxu0 %v6776
    %7055 = vmatpush.bf16.msra.mxu0 %v6712
    %7056 = vmatpush.bf16.msra.mxu0 %v6648
    %7057 = vmatmul.bf16.gmra.mxu0 %v6980
    %v7058 = vpop.f32.mrf.mxu0
    %v7059 = vadd.f32 %v6921, %v7058
    %v7060 = vpop.f32.mrf.mxu0
    %v7061 = vadd.f32 %v6926, %v7060
    %7062 = vmatmul.bf16.gmra.mxu0 %v6983
    %v7063 = vpop.f32.mrf.mxu0
    %v7064 = vadd.f32 %v6931, %v7063
    %v7065 = vpop.f32.mrf.mxu0
    %v7066 = vadd.f32 %v6936, %v7065
    %7067 = vmatmul.bf16.gmra.mxu0 %v6986
    %v7068 = vpop.f32.mrf.mxu0
    %v7069 = vadd.f32 %v6941, %v7068
    %v7070 = vpop.f32.mrf.mxu0
    %v7071 = vadd.f32 %v6946, %v7070
    %7072 = vmatmul.bf16.gmra.mxu0 %v6989
    %v7073 = vpop.f32.mrf.mxu0
    %v7074 = vadd.f32 %v6951, %v7073
    %v7075 = vpop.f32.mrf.mxu0
    %v7076 = vadd.f32 %v6956, %v7075
    %7077 = vdwg.mxu0
    %7078 = vmatpush.bf16.msra.mxu0 0
    %7079 = vmatpush.bf16.msra.mxu0 0
    %7080 = vmatpush.bf16.msra.mxu0 0
    %7081 = vmatpush.bf16.msra.mxu0 0
    %7082 = vmatpush.bf16.msra.mxu0 %v6841
    %7083 = vmatpush.bf16.msra.mxu0 %v6777
    %7084 = vmatpush.bf16.msra.mxu0 %v6713
    %7085 = vmatpush.bf16.msra.mxu0 %v6649
    %7086 = vmatmul.bf16.gmra.mxu0 %v6980
    %v7087 = vpop.f32.mrf.mxu0
    %v7088 = vadd.f32 %v6921, %v7087
    %v7089 = vpop.f32.mrf.mxu0
    %v7090 = vadd.f32 %v6926, %v7089
    %7091 = vmatmul.bf16.gmra.mxu0 %v6983
    %v7092 = vpop.f32.mrf.mxu0
    %v7093 = vadd.f32 %v6931, %v7092
    %v7094 = vpop.f32.mrf.mxu0
    %v7095 = vadd.f32 %v6936, %v7094
    %7096 = vmatmul.bf16.gmra.mxu0 %v6986
    %v7097 = vpop.f32.mrf.mxu0
    %v7098 = vadd.f32 %v6941, %v7097
    %v7099 = vpop.f32.mrf.mxu0
    %v7100 = vadd.f32 %v6946, %v7099
    %7101 = vmatmul.bf16.gmra.mxu0 %v6989
    %v7102 = vpop.f32.mrf.mxu0
    %v7103 = vadd.f32 %v6951, %v7102
    %v7104 = vpop.f32.mrf.mxu0
    %v7105 = vadd.f32 %v6956, %v7104
    %7106 = vdwg.mxu0
    %7107 = vmatpush.bf16.msra.mxu0 0
    %7108 = vmatpush.bf16.msra.mxu0 0
    %7109 = vmatpush.bf16.msra.mxu0 0
    %7110 = vmatpush.bf16.msra.mxu0 0
    %7111 = vmatpush.bf16.msra.mxu0 %v6842
    %7112 = vmatpush.bf16.msra.mxu0 %v6778
    %7113 = vmatpush.bf16.msra.mxu0 %v6714
    %7114 = vmatpush.bf16.msra.mxu0 %v6650
    %7115 = vmatmul.bf16.gmra.mxu0 %v6980
    %v7116 = vpop.f32.mrf.mxu0
    %v7117 = vadd.f32 %v6921, %v7116
    %v7118 = vpop.f32.mrf.mxu0
    %v7119 = vadd.f32 %v6926, %v7118
    %7120 = vmatmul.bf16.gmra.mxu0 %v6983
    %v7121 = vpop.f32.mrf.mxu0
    %v7122 = vadd.f32 %v6931, %v7121
    %v7123 = vpop.f32.mrf.mxu0
    %v7124 = vadd.f32 %v6936, %v7123
    %7125 = vmatmul.bf16.gmra.mxu0 %v6986
    %v7126 = vpop.f32.mrf.mxu0
    %v7127 = vadd.f32 %v6941, %v7126
    %v7128 = vpop.f32.mrf.mxu0
    %v7129 = vadd.f32 %v6946, %v7128
    %7130 = vmatmul.bf16.gmra.mxu0 %v6989
    %v7131 = vpop.f32.mrf.mxu0
    %v7132 = vadd.f32 %v6951, %v7131
    %v7133 = vpop.f32.mrf.mxu0
    %v7134 = vadd.f32 %v6956, %v7133
    %7135 = vdwg.mxu0
    %7136 = vmatpush.bf16.msra.mxu0 0
    %7137 = vmatpush.bf16.msra.mxu0 0
    %7138 = vmatpush.bf16.msra.mxu0 0
    %7139 = vmatpush.bf16.msra.mxu0 0
    %7140 = vmatpush.bf16.msra.mxu0 %v6843
    %7141 = vmatpush.bf16.msra.mxu0 %v6779
    %7142 = vmatpush.bf16.msra.mxu0 %v6715
    %7143 = vmatpush.bf16.msra.mxu0 %v6651
    %7144 = vmatmul.bf16.gmra.mxu0 %v6980
    %v7145 = vpop.f32.mrf.mxu0
    %v7146 = vadd.f32 %v6921, %v7145
    %v7147 = vpop.f32.mrf.mxu0
    %v7148 = vadd.f32 %v6926, %v7147
    %7149 = vmatmul.bf16.gmra.mxu0 %v6983
    %v7150 = vpop.f32.mrf.mxu0
    %v7151 = vadd.f32 %v6931, %v7150
    %v7152 = vpop.f32.mrf.mxu0
    %v7153 = vadd.f32 %v6936, %v7152
    %7154 = vmatmul.bf16.gmra.mxu0 %v6986
    %v7155 = vpop.f32.mrf.mxu0
    %v7156 = vadd.f32 %v6941, %v7155
    %v7157 = vpop.f32.mrf.mxu0
    %v7158 = vadd.f32 %v6946, %v7157
    %7159 = vmatmul.bf16.gmra.mxu0 %v6989
    %v7160 = vpop.f32.mrf.mxu0
    %v7161 = vadd.f32 %v6951, %v7160
    %v7162 = vpop.f32.mrf.mxu0
    %v7163 = vadd.f32 %v6956, %v7162
    %7164 = vdwg.mxu0
    %7165 = vmatpush.bf16.msra.mxu0 0
    %7166 = vmatpush.bf16.msra.mxu0 0
    %7167 = vmatpush.bf16.msra.mxu0 0
    %7168 = vmatpush.bf16.msra.mxu0 0
    %7169 = vmatpush.bf16.msra.mxu0 %v6844
    %7170 = vmatpush.bf16.msra.mxu0 %v6780
    %7171 = vmatpush.bf16.msra.mxu0 %v6716
    %7172 = vmatpush.bf16.msra.mxu0 %v6652
    %7173 = vmatmul.bf16.gmra.mxu0 %v6980
    %v7174 = vpop.f32.mrf.mxu0
    %v7175 = vadd.f32 %v6921, %v7174
    %v7176 = vpop.f32.mrf.mxu0
    %v7177 = vadd.f32 %v6926, %v7176
    %7178 = vmatmul.bf16.gmra.mxu0 %v6983
    %v7179 = vpop.f32.mrf.mxu0
    %v7180 = vadd.f32 %v6931, %v7179
    %v7181 = vpop.f32.mrf.mxu0
    %v7182 = vadd.f32 %v6936, %v7181
    %7183 = vmatmul.bf16.gmra.mxu0 %v6986
    %v7184 = vpop.f32.mrf.mxu0
    %v7185 = vadd.f32 %v6941, %v7184
    %v7186 = vpop.f32.mrf.mxu0
    %v7187 = vadd.f32 %v6946, %v7186
    %7188 = vmatmul.bf16.gmra.mxu0 %v6989
    %v7189 = vpop.f32.mrf.mxu0
    %v7190 = vadd.f32 %v6951, %v7189
    %v7191 = vpop.f32.mrf.mxu0
    %v7192 = vadd.f32 %v6956, %v7191
    %7193 = vdwg.mxu0
    %7194 = vmatpush.bf16.msra.mxu0 0
    %7195 = vmatpush.bf16.msra.mxu0 0
    %7196 = vmatpush.bf16.msra.mxu0 0
    %7197 = vmatpush.bf16.msra.mxu0 0
    %7198 = vmatpush.bf16.msra.mxu0 %v6845
    %7199 = vmatpush.bf16.msra.mxu0 %v6781
    %7200 = vmatpush.bf16.msra.mxu0 %v6717
    %7201 = vmatpush.bf16.msra.mxu0 %v6653
    %7202 = vmatmul.bf16.gmra.mxu0 %v6980
    %v7203 = vpop.f32.mrf.mxu0
    %v7204 = vadd.f32 %v6921, %v7203
    %v7205 = vpop.f32.mrf.mxu0
    %v7206 = vadd.f32 %v6926, %v7205
    %7207 = vmatmul.bf16.gmra.mxu0 %v6983
    %v7208 = vpop.f32.mrf.mxu0
    %v7209 = vadd.f32 %v6931, %v7208
    %v7210 = vpop.f32.mrf.mxu0
    %v7211 = vadd.f32 %v6936, %v7210
    %7212 = vmatmul.bf16.gmra.mxu0 %v6986
    %v7213 = vpop.f32.mrf.mxu0
    %v7214 = vadd.f32 %v6941, %v7213
    %v7215 = vpop.f32.mrf.mxu0
    %v7216 = vadd.f32 %v6946, %v7215
    %7217 = vmatmul.bf16.gmra.mxu0 %v6989
    %v7218 = vpop.f32.mrf.mxu0
    %v7219 = vadd.f32 %v6951, %v7218
    %v7220 = vpop.f32.mrf.mxu0
    %v7221 = vadd.f32 %v6956, %v7220
    %7222 = vdwg.mxu0
    %7223 = vmatpush.bf16.msra.mxu0 0
    %7224 = vmatpush.bf16.msra.mxu0 0
    %7225 = vmatpush.bf16.msra.mxu0 0
    %7226 = vmatpush.bf16.msra.mxu0 0
    %7227 = vmatpush.bf16.msra.mxu0 %v6846
    %7228 = vmatpush.bf16.msra.mxu0 %v6782
    %7229 = vmatpush.bf16.msra.mxu0 %v6718
    %7230 = vmatpush.bf16.msra.mxu0 %v6654
    %7231 = vmatmul.bf16.gmra.mxu0 %v6980
    %v7232 = vpop.f32.mrf.mxu0
    %v7233 = vadd.f32 %v6921, %v7232
    %v7234 = vpop.f32.mrf.mxu0
    %v7235 = vadd.f32 %v6926, %v7234
    %7236 = vmatmul.bf16.gmra.mxu0 %v6983
    %v7237 = vpop.f32.mrf.mxu0
    %v7238 = vadd.f32 %v6931, %v7237
    %v7239 = vpop.f32.mrf.mxu0
    %v7240 = vadd.f32 %v6936, %v7239
    %7241 = vmatmul.bf16.gmra.mxu0 %v6986
    %v7242 = vpop.f32.mrf.mxu0
    %v7243 = vadd.f32 %v6941, %v7242
    %v7244 = vpop.f32.mrf.mxu0
    %v7245 = vadd.f32 %v6946, %v7244
    %7246 = vmatmul.bf16.gmra.mxu0 %v6989
    %v7247 = vpop.f32.mrf.mxu0
    %v7248 = vadd.f32 %v6951, %v7247
    %v7249 = vpop.f32.mrf.mxu0
    %v7250 = vadd.f32 %v6956, %v7249
    %7251 = vdwg.mxu0
    %7252 = vmatpush.bf16.msra.mxu0 0
    %7253 = vmatpush.bf16.msra.mxu0 0
    %7254 = vmatpush.bf16.msra.mxu0 0
    %7255 = vmatpush.bf16.msra.mxu0 0
    %7256 = vmatpush.bf16.msra.mxu0 %v6847
    %7257 = vmatpush.bf16.msra.mxu0 %v6783
    %7258 = vmatpush.bf16.msra.mxu0 %v6719
    %7259 = vmatpush.bf16.msra.mxu0 %v6655
    %7260 = vmatmul.bf16.gmra.mxu0 %v6980
    %v7261 = vpop.f32.mrf.mxu0
    %v7262 = vadd.f32 %v6921, %v7261
    %v7263 = vpop.f32.mrf.mxu0
    %v7264 = vadd.f32 %v6926, %v7263
    %7265 = vmatmul.bf16.gmra.mxu0 %v6983
    %v7266 = vpop.f32.mrf.mxu0
    %v7267 = vadd.f32 %v6931, %v7266
    %v7268 = vpop.f32.mrf.mxu0
    %v7269 = vadd.f32 %v6936, %v7268
    %7270 = vmatmul.bf16.gmra.mxu0 %v6986
    %v7271 = vpop.f32.mrf.mxu0
    %v7272 = vadd.f32 %v6941, %v7271
    %v7273 = vpop.f32.mrf.mxu0
    %v7274 = vadd.f32 %v6946, %v7273
    %7275 = vmatmul.bf16.gmra.mxu0 %v6989
    %v7276 = vpop.f32.mrf.mxu0
    %v7277 = vadd.f32 %v6951, %v7276
    %v7278 = vpop.f32.mrf.mxu0
    %v7279 = vadd.f32 %v6956, %v7278
    %7280 = vdwg.mxu0
    %7281 = vmatpush.bf16.msra.mxu0 0
    %7282 = vmatpush.bf16.msra.mxu0 0
    %7283 = vmatpush.bf16.msra.mxu0 0
    %7284 = vmatpush.bf16.msra.mxu0 0
    %7285 = vmatpush.bf16.msra.mxu0 %v6848
    %7286 = vmatpush.bf16.msra.mxu0 %v6784
    %7287 = vmatpush.bf16.msra.mxu0 %v6720
    %7288 = vmatpush.bf16.msra.mxu0 %v6656
    %7289 = vmatmul.bf16.gmra.mxu0 %v6980
    %v7290 = vpop.f32.mrf.mxu0
    %v7291 = vadd.f32 %v6921, %v7290
    %v7292 = vpop.f32.mrf.mxu0
    %v7293 = vadd.f32 %v6926, %v7292
    %7294 = vmatmul.bf16.gmra.mxu0 %v6983
    %v7295 = vpop.f32.mrf.mxu0
    %v7296 = vadd.f32 %v6931, %v7295
    %v7297 = vpop.f32.mrf.mxu0
    %v7298 = vadd.f32 %v6936, %v7297
    %7299 = vmatmul.bf16.gmra.mxu0 %v6986
    %v7300 = vpop.f32.mrf.mxu0
    %v7301 = vadd.f32 %v6941, %v7300
    %v7302 = vpop.f32.mrf.mxu0
    %v7303 = vadd.f32 %v6946, %v7302
    %7304 = vmatmul.bf16.gmra.mxu0 %v6989
    %v7305 = vpop.f32.mrf.mxu0
    %v7306 = vadd.f32 %v6951, %v7305
    %v7307 = vpop.f32.mrf.mxu0
    %v7308 = vadd.f32 %v6956, %v7307
    %7309 = vdwg.mxu0
    %7310 = vmatpush.bf16.msra.mxu0 0
    %7311 = vmatpush.bf16.msra.mxu0 0
    %7312 = vmatpush.bf16.msra.mxu0 0
    %7313 = vmatpush.bf16.msra.mxu0 0
    %7314 = vmatpush.bf16.msra.mxu0 %v6849
    %7315 = vmatpush.bf16.msra.mxu0 %v6785
    %7316 = vmatpush.bf16.msra.mxu0 %v6721
    %7317 = vmatpush.bf16.msra.mxu0 %v6657
    %7318 = vmatmul.bf16.gmra.mxu0 %v6980
    %v7319 = vpop.f32.mrf.mxu0
    %v7320 = vadd.f32 %v6921, %v7319
    %v7321 = vpop.f32.mrf.mxu0
    %v7322 = vadd.f32 %v6926, %v7321
    %7323 = vmatmul.bf16.gmra.mxu0 %v6983
    %v7324 = vpop.f32.mrf.mxu0
    %v7325 = vadd.f32 %v6931, %v7324
    %v7326 = vpop.f32.mrf.mxu0
    %v7327 = vadd.f32 %v6936, %v7326
    %7328 = vmatmul.bf16.gmra.mxu0 %v6986
    %v7329 = vpop.f32.mrf.mxu0
    %v7330 = vadd.f32 %v6941, %v7329
    %v7331 = vpop.f32.mrf.mxu0
    %v7332 = vadd.f32 %v6946, %v7331
    %7333 = vmatmul.bf16.gmra.mxu0 %v6989
    %v7334 = vpop.f32.mrf.mxu0
    %v7335 = vadd.f32 %v6951, %v7334
    %v7336 = vpop.f32.mrf.mxu0
    %v7337 = vadd.f32 %v6956, %v7336
    %7338 = vdwg.mxu0
    %7339 = vmatpush.bf16.msra.mxu0 0
    %7340 = vmatpush.bf16.msra.mxu0 0
    %7341 = vmatpush.bf16.msra.mxu0 0
    %7342 = vmatpush.bf16.msra.mxu0 0
    %7343 = vmatpush.bf16.msra.mxu0 %v6850
    %7344 = vmatpush.bf16.msra.mxu0 %v6786
    %7345 = vmatpush.bf16.msra.mxu0 %v6722
    %7346 = vmatpush.bf16.msra.mxu0 %v6658
    %7347 = vmatmul.bf16.gmra.mxu0 %v6980
    %v7348 = vpop.f32.mrf.mxu0
    %v7349 = vadd.f32 %v6921, %v7348
    %v7350 = vpop.f32.mrf.mxu0
    %v7351 = vadd.f32 %v6926, %v7350
    %7352 = vmatmul.bf16.gmra.mxu0 %v6983
    %v7353 = vpop.f32.mrf.mxu0
    %v7354 = vadd.f32 %v6931, %v7353
    %v7355 = vpop.f32.mrf.mxu0
    %v7356 = vadd.f32 %v6936, %v7355
    %7357 = vmatmul.bf16.gmra.mxu0 %v6986
    %v7358 = vpop.f32.mrf.mxu0
    %v7359 = vadd.f32 %v6941, %v7358
    %v7360 = vpop.f32.mrf.mxu0
    %v7361 = vadd.f32 %v6946, %v7360
    %7362 = vmatmul.bf16.gmra.mxu0 %v6989
    %v7363 = vpop.f32.mrf.mxu0
    %v7364 = vadd.f32 %v6951, %v7363
    %v7365 = vpop.f32.mrf.mxu0
    %v7366 = vadd.f32 %v6956, %v7365
    %7367 = vdwg.mxu0
    %7368 = vmatpush.bf16.msra.mxu0 0
    %7369 = vmatpush.bf16.msra.mxu0 0
    %7370 = vmatpush.bf16.msra.mxu0 0
    %7371 = vmatpush.bf16.msra.mxu0 0
    %7372 = vmatpush.bf16.msra.mxu0 %v6851
    %7373 = vmatpush.bf16.msra.mxu0 %v6787
    %7374 = vmatpush.bf16.msra.mxu0 %v6723
    %7375 = vmatpush.bf16.msra.mxu0 %v6659
    %7376 = vmatmul.bf16.gmra.mxu0 %v6980
    %v7377 = vpop.f32.mrf.mxu0
    %v7378 = vadd.f32 %v6921, %v7377
    %v7379 = vpop.f32.mrf.mxu0
    %v7380 = vadd.f32 %v6926, %v7379
    %7381 = vmatmul.bf16.gmra.mxu0 %v6983
    %v7382 = vpop.f32.mrf.mxu0
    %v7383 = vadd.f32 %v6931, %v7382
    %v7384 = vpop.f32.mrf.mxu0
    %v7385 = vadd.f32 %v6936, %v7384
    %7386 = vmatmul.bf16.gmra.mxu0 %v6986
    %v7387 = vpop.f32.mrf.mxu0
    %v7388 = vadd.f32 %v6941, %v7387
    %v7389 = vpop.f32.mrf.mxu0
    %v7390 = vadd.f32 %v6946, %v7389
    %7391 = vmatmul.bf16.gmra.mxu0 %v6989
    %v7392 = vpop.f32.mrf.mxu0
    %v7393 = vadd.f32 %v6951, %v7392
    %v7394 = vpop.f32.mrf.mxu0
    %v7395 = vadd.f32 %v6956, %v7394
    %7396 = vdwg.mxu0
    %7397 = vmatpush.bf16.msra.mxu0 0
    %7398 = vmatpush.bf16.msra.mxu0 0
    %7399 = vmatpush.bf16.msra.mxu0 0
    %7400 = vmatpush.bf16.msra.mxu0 0
    %7401 = vmatpush.bf16.msra.mxu0 %v6852
    %7402 = vmatpush.bf16.msra.mxu0 %v6788
    %7403 = vmatpush.bf16.msra.mxu0 %v6724
    %7404 = vmatpush.bf16.msra.mxu0 %v6660
    %7405 = vmatmul.bf16.gmra.mxu0 %v6980
    %v7406 = vpop.f32.mrf.mxu0
    %v7407 = vadd.f32 %v6921, %v7406
    %v7408 = vpop.f32.mrf.mxu0
    %v7409 = vadd.f32 %v6926, %v7408
    %7410 = vmatmul.bf16.gmra.mxu0 %v6983
    %v7411 = vpop.f32.mrf.mxu0
    %v7412 = vadd.f32 %v6931, %v7411
    %v7413 = vpop.f32.mrf.mxu0
    %v7414 = vadd.f32 %v6936, %v7413
    %7415 = vmatmul.bf16.gmra.mxu0 %v6986
    %v7416 = vpop.f32.mrf.mxu0
    %v7417 = vadd.f32 %v6941, %v7416
    %v7418 = vpop.f32.mrf.mxu0
    %v7419 = vadd.f32 %v6946, %v7418
    %7420 = vmatmul.bf16.gmra.mxu0 %v6989
    %v7421 = vpop.f32.mrf.mxu0
    %v7422 = vadd.f32 %v6951, %v7421
    %v7423 = vpop.f32.mrf.mxu0
    %v7424 = vadd.f32 %v6956, %v7423
    %7425 = vdwg.mxu0
    %7426 = vmatpush.bf16.msra.mxu0 0
    %7427 = vmatpush.bf16.msra.mxu0 0
    %7428 = vmatpush.bf16.msra.mxu0 0
    %7429 = vmatpush.bf16.msra.mxu0 0
    %7430 = vmatpush.bf16.msra.mxu0 %v6853
    %7431 = vmatpush.bf16.msra.mxu0 %v6789
    %7432 = vmatpush.bf16.msra.mxu0 %v6725
    %7433 = vmatpush.bf16.msra.mxu0 %v6661
    %7434 = vmatmul.bf16.gmra.mxu0 %v6980
    %v7435 = vpop.f32.mrf.mxu0
    %v7436 = vadd.f32 %v6921, %v7435
    %v7437 = vpop.f32.mrf.mxu0
    %v7438 = vadd.f32 %v6926, %v7437
    %7439 = vmatmul.bf16.gmra.mxu0 %v6983
    %v7440 = vpop.f32.mrf.mxu0
    %v7441 = vadd.f32 %v6931, %v7440
    %v7442 = vpop.f32.mrf.mxu0
    %v7443 = vadd.f32 %v6936, %v7442
    %7444 = vmatmul.bf16.gmra.mxu0 %v6986
    %v7445 = vpop.f32.mrf.mxu0
    %v7446 = vadd.f32 %v6941, %v7445
    %v7447 = vpop.f32.mrf.mxu0
    %v7448 = vadd.f32 %v6946, %v7447
    %7449 = vmatmul.bf16.gmra.mxu0 %v6989
    %v7450 = vpop.f32.mrf.mxu0
    %v7451 = vadd.f32 %v6951, %v7450
    %v7452 = vpop.f32.mrf.mxu0
    %v7453 = vadd.f32 %v6956, %v7452
    %7454 = vdwg.mxu0
    %7455 = vmatpush.bf16.msra.mxu0 0
    %7456 = vmatpush.bf16.msra.mxu0 0
    %7457 = vmatpush.bf16.msra.mxu0 0
    %7458 = vmatpush.bf16.msra.mxu0 0
    %7459 = vmatpush.bf16.msra.mxu0 %v6854
    %7460 = vmatpush.bf16.msra.mxu0 %v6790
    %7461 = vmatpush.bf16.msra.mxu0 %v6726
    %7462 = vmatpush.bf16.msra.mxu0 %v6662
    %7463 = vmatmul.bf16.gmra.mxu0 %v6980
    %v7464 = vpop.f32.mrf.mxu0
    %v7465 = vadd.f32 %v6921, %v7464
    %v7466 = vpop.f32.mrf.mxu0
    %v7467 = vadd.f32 %v6926, %v7466
    %7468 = vmatmul.bf16.gmra.mxu0 %v6983
    %v7469 = vpop.f32.mrf.mxu0
    %v7470 = vadd.f32 %v6931, %v7469
    %v7471 = vpop.f32.mrf.mxu0
    %v7472 = vadd.f32 %v6936, %v7471
    %7473 = vmatmul.bf16.gmra.mxu0 %v6986
    %v7474 = vpop.f32.mrf.mxu0
    %v7475 = vadd.f32 %v6941, %v7474
    %v7476 = vpop.f32.mrf.mxu0
    %v7477 = vadd.f32 %v6946, %v7476
    %7478 = vmatmul.bf16.gmra.mxu0 %v6989
    %v7479 = vpop.f32.mrf.mxu0
    %v7480 = vadd.f32 %v6951, %v7479
    %v7481 = vpop.f32.mrf.mxu0
    %v7482 = vadd.f32 %v6956, %v7481
    %7483 = vdwg.mxu0
    %7484 = vmatpush.bf16.msra.mxu0 0
    %7485 = vmatpush.bf16.msra.mxu0 0
    %7486 = vmatpush.bf16.msra.mxu0 0
    %7487 = vmatpush.bf16.msra.mxu0 0
    %7488 = vmatpush.bf16.msra.mxu0 %v6855
    %7489 = vmatpush.bf16.msra.mxu0 %v6791
    %7490 = vmatpush.bf16.msra.mxu0 %v6727
    %7491 = vmatpush.bf16.msra.mxu0 %v6663
    %7492 = vmatmul.bf16.gmra.mxu0 %v6980
    %v7493 = vpop.f32.mrf.mxu0
    %v7494 = vadd.f32 %v6921, %v7493
    %v7495 = vpop.f32.mrf.mxu0
    %v7496 = vadd.f32 %v6926, %v7495
    %7497 = vmatmul.bf16.gmra.mxu0 %v6983
    %v7498 = vpop.f32.mrf.mxu0
    %v7499 = vadd.f32 %v6931, %v7498
    %v7500 = vpop.f32.mrf.mxu0
    %v7501 = vadd.f32 %v6936, %v7500
    %7502 = vmatmul.bf16.gmra.mxu0 %v6986
    %v7503 = vpop.f32.mrf.mxu0
    %v7504 = vadd.f32 %v6941, %v7503
    %v7505 = vpop.f32.mrf.mxu0
    %v7506 = vadd.f32 %v6946, %v7505
    %7507 = vmatmul.bf16.gmra.mxu0 %v6989
    %v7508 = vpop.f32.mrf.mxu0
    %v7509 = vadd.f32 %v6951, %v7508
    %v7510 = vpop.f32.mrf.mxu0
    %v7511 = vadd.f32 %v6956, %v7510
    %7512 = vdwg.mxu0
    %7513 = vmatpush.bf16.msra.mxu0 0
    %7514 = vmatpush.bf16.msra.mxu0 0
    %7515 = vmatpush.bf16.msra.mxu0 0
    %7516 = vmatpush.bf16.msra.mxu0 0
    %7517 = vmatpush.bf16.msra.mxu0 %v6856
    %7518 = vmatpush.bf16.msra.mxu0 %v6792
    %7519 = vmatpush.bf16.msra.mxu0 %v6728
    %7520 = vmatpush.bf16.msra.mxu0 %v6664
    %7521 = vmatmul.bf16.gmra.mxu0 %v6980
    %v7522 = vpop.f32.mrf.mxu0
    %v7523 = vadd.f32 %v6921, %v7522
    %v7524 = vpop.f32.mrf.mxu0
    %v7525 = vadd.f32 %v6926, %v7524
    %7526 = vmatmul.bf16.gmra.mxu0 %v6983
    %v7527 = vpop.f32.mrf.mxu0
    %v7528 = vadd.f32 %v6931, %v7527
    %v7529 = vpop.f32.mrf.mxu0
    %v7530 = vadd.f32 %v6936, %v7529
    %7531 = vmatmul.bf16.gmra.mxu0 %v6986
    %v7532 = vpop.f32.mrf.mxu0
    %v7533 = vadd.f32 %v6941, %v7532
    %v7534 = vpop.f32.mrf.mxu0
    %v7535 = vadd.f32 %v6946, %v7534
    %7536 = vmatmul.bf16.gmra.mxu0 %v6989
    %v7537 = vpop.f32.mrf.mxu0
    %v7538 = vadd.f32 %v6951, %v7537
    %v7539 = vpop.f32.mrf.mxu0
    %v7540 = vadd.f32 %v6956, %v7539
    %7541 = vdwg.mxu0
    %7542 = vmatpush.bf16.msra.mxu0 0
    %7543 = vmatpush.bf16.msra.mxu0 0
    %7544 = vmatpush.bf16.msra.mxu0 0
    %7545 = vmatpush.bf16.msra.mxu0 0
    %7546 = vmatpush.bf16.msra.mxu0 %v6857
    %7547 = vmatpush.bf16.msra.mxu0 %v6793
    %7548 = vmatpush.bf16.msra.mxu0 %v6729
    %7549 = vmatpush.bf16.msra.mxu0 %v6665
    %7550 = vmatmul.bf16.gmra.mxu0 %v6980
    %v7551 = vpop.f32.mrf.mxu0
    %v7552 = vadd.f32 %v6921, %v7551
    %v7553 = vpop.f32.mrf.mxu0
    %v7554 = vadd.f32 %v6926, %v7553
    %7555 = vmatmul.bf16.gmra.mxu0 %v6983
    %v7556 = vpop.f32.mrf.mxu0
    %v7557 = vadd.f32 %v6931, %v7556
    %v7558 = vpop.f32.mrf.mxu0
    %v7559 = vadd.f32 %v6936, %v7558
    %7560 = vmatmul.bf16.gmra.mxu0 %v6986
    %v7561 = vpop.f32.mrf.mxu0
    %v7562 = vadd.f32 %v6941, %v7561
    %v7563 = vpop.f32.mrf.mxu0
    %v7564 = vadd.f32 %v6946, %v7563
    %7565 = vmatmul.bf16.gmra.mxu0 %v6989
    %v7566 = vpop.f32.mrf.mxu0
    %v7567 = vadd.f32 %v6951, %v7566
    %v7568 = vpop.f32.mrf.mxu0
    %v7569 = vadd.f32 %v6956, %v7568
    %7570 = vdwg.mxu0
    %7571 = vmatpush.bf16.msra.mxu0 0
    %7572 = vmatpush.bf16.msra.mxu0 0
    %7573 = vmatpush.bf16.msra.mxu0 0
    %7574 = vmatpush.bf16.msra.mxu0 0
    %7575 = vmatpush.bf16.msra.mxu0 %v6858
    %7576 = vmatpush.bf16.msra.mxu0 %v6794
    %7577 = vmatpush.bf16.msra.mxu0 %v6730
    %7578 = vmatpush.bf16.msra.mxu0 %v6666
    %7579 = vmatmul.bf16.gmra.mxu0 %v6980
    %v7580 = vpop.f32.mrf.mxu0
    %v7581 = vadd.f32 %v6921, %v7580
    %v7582 = vpop.f32.mrf.mxu0
    %v7583 = vadd.f32 %v6926, %v7582
    %7584 = vmatmul.bf16.gmra.mxu0 %v6983
    %v7585 = vpop.f32.mrf.mxu0
    %v7586 = vadd.f32 %v6931, %v7585
    %v7587 = vpop.f32.mrf.mxu0
    %v7588 = vadd.f32 %v6936, %v7587
    %7589 = vmatmul.bf16.gmra.mxu0 %v6986
    %v7590 = vpop.f32.mrf.mxu0
    %v7591 = vadd.f32 %v6941, %v7590
    %v7592 = vpop.f32.mrf.mxu0
    %v7593 = vadd.f32 %v6946, %v7592
    %7594 = vmatmul.bf16.gmra.mxu0 %v6989
    %v7595 = vpop.f32.mrf.mxu0
    %v7596 = vadd.f32 %v6951, %v7595
    %v7597 = vpop.f32.mrf.mxu0
    %v7598 = vadd.f32 %v6956, %v7597
    %7599 = vdwg.mxu0
    %7600 = vmatpush.bf16.msra.mxu0 0
    %7601 = vmatpush.bf16.msra.mxu0 0
    %7602 = vmatpush.bf16.msra.mxu0 0
    %7603 = vmatpush.bf16.msra.mxu0 0
    %7604 = vmatpush.bf16.msra.mxu0 %v6859
    %7605 = vmatpush.bf16.msra.mxu0 %v6795
    %7606 = vmatpush.bf16.msra.mxu0 %v6731
    %7607 = vmatpush.bf16.msra.mxu0 %v6667
    %7608 = vmatmul.bf16.gmra.mxu0 %v6980
    %v7609 = vpop.f32.mrf.mxu0
    %v7610 = vadd.f32 %v6921, %v7609
    %v7611 = vpop.f32.mrf.mxu0
    %v7612 = vadd.f32 %v6926, %v7611
    %7613 = vmatmul.bf16.gmra.mxu0 %v6983
    %v7614 = vpop.f32.mrf.mxu0
    %v7615 = vadd.f32 %v6931, %v7614
    %v7616 = vpop.f32.mrf.mxu0
    %v7617 = vadd.f32 %v6936, %v7616
    %7618 = vmatmul.bf16.gmra.mxu0 %v6986
    %v7619 = vpop.f32.mrf.mxu0
    %v7620 = vadd.f32 %v6941, %v7619
    %v7621 = vpop.f32.mrf.mxu0
    %v7622 = vadd.f32 %v6946, %v7621
    %7623 = vmatmul.bf16.gmra.mxu0 %v6989
    %v7624 = vpop.f32.mrf.mxu0
    %v7625 = vadd.f32 %v6951, %v7624
    %v7626 = vpop.f32.mrf.mxu0
    %v7627 = vadd.f32 %v6956, %v7626
    %7628 = vdwg.mxu0
    %7629 = vmatpush.bf16.msra.mxu0 0
    %7630 = vmatpush.bf16.msra.mxu0 0
    %7631 = vmatpush.bf16.msra.mxu0 0
    %7632 = vmatpush.bf16.msra.mxu0 0
    %7633 = vmatpush.bf16.msra.mxu0 %v6860
    %7634 = vmatpush.bf16.msra.mxu0 %v6796
    %7635 = vmatpush.bf16.msra.mxu0 %v6732
    %7636 = vmatpush.bf16.msra.mxu0 %v6668
    %7637 = vmatmul.bf16.gmra.mxu0 %v6980
    %v7638 = vpop.f32.mrf.mxu0
    %v7639 = vadd.f32 %v6921, %v7638
    %v7640 = vpop.f32.mrf.mxu0
    %v7641 = vadd.f32 %v6926, %v7640
    %7642 = vmatmul.bf16.gmra.mxu0 %v6983
    %v7643 = vpop.f32.mrf.mxu0
    %v7644 = vadd.f32 %v6931, %v7643
    %v7645 = vpop.f32.mrf.mxu0
    %v7646 = vadd.f32 %v6936, %v7645
    %7647 = vmatmul.bf16.gmra.mxu0 %v6986
    %v7648 = vpop.f32.mrf.mxu0
    %v7649 = vadd.f32 %v6941, %v7648
    %v7650 = vpop.f32.mrf.mxu0
    %v7651 = vadd.f32 %v6946, %v7650
    %7652 = vmatmul.bf16.gmra.mxu0 %v6989
    %v7653 = vpop.f32.mrf.mxu0
    %v7654 = vadd.f32 %v6951, %v7653
    %v7655 = vpop.f32.mrf.mxu0
    %v7656 = vadd.f32 %v6956, %v7655
    %7657 = vdwg.mxu0
    %7658 = vmatpush.bf16.msra.mxu0 0
    %7659 = vmatpush.bf16.msra.mxu0 0
    %7660 = vmatpush.bf16.msra.mxu0 0
    %7661 = vmatpush.bf16.msra.mxu0 0
    %7662 = vmatpush.bf16.msra.mxu0 %v6861
    %7663 = vmatpush.bf16.msra.mxu0 %v6797
    %7664 = vmatpush.bf16.msra.mxu0 %v6733
    %7665 = vmatpush.bf16.msra.mxu0 %v6669
    %7666 = vmatmul.bf16.gmra.mxu0 %v6980
    %v7667 = vpop.f32.mrf.mxu0
    %v7668 = vadd.f32 %v6921, %v7667
    %v7669 = vpop.f32.mrf.mxu0
    %v7670 = vadd.f32 %v6926, %v7669
    %7671 = vmatmul.bf16.gmra.mxu0 %v6983
    %v7672 = vpop.f32.mrf.mxu0
    %v7673 = vadd.f32 %v6931, %v7672
    %v7674 = vpop.f32.mrf.mxu0
    %v7675 = vadd.f32 %v6936, %v7674
    %7676 = vmatmul.bf16.gmra.mxu0 %v6986
    %v7677 = vpop.f32.mrf.mxu0
    %v7678 = vadd.f32 %v6941, %v7677
    %v7679 = vpop.f32.mrf.mxu0
    %v7680 = vadd.f32 %v6946, %v7679
    %7681 = vmatmul.bf16.gmra.mxu0 %v6989
    %v7682 = vpop.f32.mrf.mxu0
    %v7683 = vadd.f32 %v6951, %v7682
    %v7684 = vpop.f32.mrf.mxu0
    %v7685 = vadd.f32 %v6956, %v7684
    %7686 = vdwg.mxu0
    %7687 = vmatpush.bf16.msra.mxu0 0
    %7688 = vmatpush.bf16.msra.mxu0 0
    %7689 = vmatpush.bf16.msra.mxu0 0
    %7690 = vmatpush.bf16.msra.mxu0 0
    %7691 = vmatpush.bf16.msra.mxu0 %v6862
    %7692 = vmatpush.bf16.msra.mxu0 %v6798
    %7693 = vmatpush.bf16.msra.mxu0 %v6734
    %7694 = vmatpush.bf16.msra.mxu0 %v6670
    %7695 = vmatmul.bf16.gmra.mxu0 %v6980
    %v7696 = vpop.f32.mrf.mxu0
    %v7697 = vadd.f32 %v6921, %v7696
    %v7698 = vpop.f32.mrf.mxu0
    %v7699 = vadd.f32 %v6926, %v7698
    %7700 = vmatmul.bf16.gmra.mxu0 %v6983
    %v7701 = vpop.f32.mrf.mxu0
    %v7702 = vadd.f32 %v6931, %v7701
    %v7703 = vpop.f32.mrf.mxu0
    %v7704 = vadd.f32 %v6936, %v7703
    %7705 = vmatmul.bf16.gmra.mxu0 %v6986
    %v7706 = vpop.f32.mrf.mxu0
    %v7707 = vadd.f32 %v6941, %v7706
    %v7708 = vpop.f32.mrf.mxu0
    %v7709 = vadd.f32 %v6946, %v7708
    %7710 = vmatmul.bf16.gmra.mxu0 %v6989
    %v7711 = vpop.f32.mrf.mxu0
    %v7712 = vadd.f32 %v6951, %v7711
    %v7713 = vpop.f32.mrf.mxu0
    %v7714 = vadd.f32 %v6956, %v7713
    %7715 = vdwg.mxu0
    %7716 = vmatpush.bf16.msra.mxu0 0
    %7717 = vmatpush.bf16.msra.mxu0 0
    %7718 = vmatpush.bf16.msra.mxu0 0
    %7719 = vmatpush.bf16.msra.mxu0 0
    %7720 = vmatpush.bf16.msra.mxu0 %v6863
    %7721 = vmatpush.bf16.msra.mxu0 %v6799
    %7722 = vmatpush.bf16.msra.mxu0 %v6735
    %7723 = vmatpush.bf16.msra.mxu0 %v6671
    %7724 = vmatmul.bf16.gmra.mxu0 %v6980
    %v7725 = vpop.f32.mrf.mxu0
    %v7726 = vadd.f32 %v6921, %v7725
    %v7727 = vpop.f32.mrf.mxu0
    %v7728 = vadd.f32 %v6926, %v7727
    %7729 = vmatmul.bf16.gmra.mxu0 %v6983
    %v7730 = vpop.f32.mrf.mxu0
    %v7731 = vadd.f32 %v6931, %v7730
    %v7732 = vpop.f32.mrf.mxu0
    %v7733 = vadd.f32 %v6936, %v7732
    %7734 = vmatmul.bf16.gmra.mxu0 %v6986
    %v7735 = vpop.f32.mrf.mxu0
    %v7736 = vadd.f32 %v6941, %v7735
    %v7737 = vpop.f32.mrf.mxu0
    %v7738 = vadd.f32 %v6946, %v7737
    %7739 = vmatmul.bf16.gmra.mxu0 %v6989
    %v7740 = vpop.f32.mrf.mxu0
    %v7741 = vadd.f32 %v6951, %v7740
    %v7742 = vpop.f32.mrf.mxu0
    %v7743 = vadd.f32 %v6956, %v7742
    %7744 = vdwg.mxu0
    %7745 = vmatpush.bf16.msra.mxu0 0
    %7746 = vmatpush.bf16.msra.mxu0 0
    %7747 = vmatpush.bf16.msra.mxu0 0
    %7748 = vmatpush.bf16.msra.mxu0 0
    %7749 = vmatpush.bf16.msra.mxu0 %v6864
    %7750 = vmatpush.bf16.msra.mxu0 %v6800
    %7751 = vmatpush.bf16.msra.mxu0 %v6736
    %7752 = vmatpush.bf16.msra.mxu0 %v6672
    %7753 = vmatmul.bf16.gmra.mxu0 %v6980
    %v7754 = vpop.f32.mrf.mxu0
    %v7755 = vadd.f32 %v6921, %v7754
    %v7756 = vpop.f32.mrf.mxu0
    %v7757 = vadd.f32 %v6926, %v7756
    %7758 = vmatmul.bf16.gmra.mxu0 %v6983
    %v7759 = vpop.f32.mrf.mxu0
    %v7760 = vadd.f32 %v6931, %v7759
    %v7761 = vpop.f32.mrf.mxu0
    %v7762 = vadd.f32 %v6936, %v7761
    %7763 = vmatmul.bf16.gmra.mxu0 %v6986
    %v7764 = vpop.f32.mrf.mxu0
    %v7765 = vadd.f32 %v6941, %v7764
    %v7766 = vpop.f32.mrf.mxu0
    %v7767 = vadd.f32 %v6946, %v7766
    %7768 = vmatmul.bf16.gmra.mxu0 %v6989
    %v7769 = vpop.f32.mrf.mxu0
    %v7770 = vadd.f32 %v6951, %v7769
    %v7771 = vpop.f32.mrf.mxu0
    %v7772 = vadd.f32 %v6956, %v7771
    %7773 = vdwg.mxu0
    %7774 = vmatpush.bf16.msra.mxu0 0
    %7775 = vmatpush.bf16.msra.mxu0 0
    %7776 = vmatpush.bf16.msra.mxu0 0
    %7777 = vmatpush.bf16.msra.mxu0 0
    %7778 = vmatpush.bf16.msra.mxu0 %v6865
    %7779 = vmatpush.bf16.msra.mxu0 %v6801
    %7780 = vmatpush.bf16.msra.mxu0 %v6737
    %7781 = vmatpush.bf16.msra.mxu0 %v6673
    %7782 = vmatmul.bf16.gmra.mxu0 %v6980
    %v7783 = vpop.f32.mrf.mxu0
    %v7784 = vadd.f32 %v6921, %v7783
    %v7785 = vpop.f32.mrf.mxu0
    %v7786 = vadd.f32 %v6926, %v7785
    %7787 = vmatmul.bf16.gmra.mxu0 %v6983
    %v7788 = vpop.f32.mrf.mxu0
    %v7789 = vadd.f32 %v6931, %v7788
    %v7790 = vpop.f32.mrf.mxu0
    %v7791 = vadd.f32 %v6936, %v7790
    %7792 = vmatmul.bf16.gmra.mxu0 %v6986
    %v7793 = vpop.f32.mrf.mxu0
    %v7794 = vadd.f32 %v6941, %v7793
    %v7795 = vpop.f32.mrf.mxu0
    %v7796 = vadd.f32 %v6946, %v7795
    %7797 = vmatmul.bf16.gmra.mxu0 %v6989
    %v7798 = vpop.f32.mrf.mxu0
    %v7799 = vadd.f32 %v6951, %v7798
    %v7800 = vpop.f32.mrf.mxu0
    %v7801 = vadd.f32 %v6956, %v7800
    %7802 = vdwg.mxu0
    %7803 = vmatpush.bf16.msra.mxu0 0
    %7804 = vmatpush.bf16.msra.mxu0 0
    %7805 = vmatpush.bf16.msra.mxu0 0
    %7806 = vmatpush.bf16.msra.mxu0 0
    %7807 = vmatpush.bf16.msra.mxu0 %v6866
    %7808 = vmatpush.bf16.msra.mxu0 %v6802
    %7809 = vmatpush.bf16.msra.mxu0 %v6738
    %7810 = vmatpush.bf16.msra.mxu0 %v6674
    %7811 = vmatmul.bf16.gmra.mxu0 %v6980
    %v7812 = vpop.f32.mrf.mxu0
    %v7813 = vadd.f32 %v6921, %v7812
    %v7814 = vpop.f32.mrf.mxu0
    %v7815 = vadd.f32 %v6926, %v7814
    %7816 = vmatmul.bf16.gmra.mxu0 %v6983
    %v7817 = vpop.f32.mrf.mxu0
    %v7818 = vadd.f32 %v6931, %v7817
    %v7819 = vpop.f32.mrf.mxu0
    %v7820 = vadd.f32 %v6936, %v7819
    %7821 = vmatmul.bf16.gmra.mxu0 %v6986
    %v7822 = vpop.f32.mrf.mxu0
    %v7823 = vadd.f32 %v6941, %v7822
    %v7824 = vpop.f32.mrf.mxu0
    %v7825 = vadd.f32 %v6946, %v7824
    %7826 = vmatmul.bf16.gmra.mxu0 %v6989
    %v7827 = vpop.f32.mrf.mxu0
    %v7828 = vadd.f32 %v6951, %v7827
    %v7829 = vpop.f32.mrf.mxu0
    %v7830 = vadd.f32 %v6956, %v7829
    %7831 = vdwg.mxu0
    %7832 = vmatpush.bf16.msra.mxu0 0
    %7833 = vmatpush.bf16.msra.mxu0 0
    %7834 = vmatpush.bf16.msra.mxu0 0
    %7835 = vmatpush.bf16.msra.mxu0 0
    %7836 = vmatpush.bf16.msra.mxu0 %v6867
    %7837 = vmatpush.bf16.msra.mxu0 %v6803
    %7838 = vmatpush.bf16.msra.mxu0 %v6739
    %7839 = vmatpush.bf16.msra.mxu0 %v6675
    %7840 = vmatmul.bf16.gmra.mxu0 %v6980
    %v7841 = vpop.f32.mrf.mxu0
    %v7842 = vadd.f32 %v6921, %v7841
    %v7843 = vpop.f32.mrf.mxu0
    %v7844 = vadd.f32 %v6926, %v7843
    %7845 = vmatmul.bf16.gmra.mxu0 %v6983
    %v7846 = vpop.f32.mrf.mxu0
    %v7847 = vadd.f32 %v6931, %v7846
    %v7848 = vpop.f32.mrf.mxu0
    %v7849 = vadd.f32 %v6936, %v7848
    %7850 = vmatmul.bf16.gmra.mxu0 %v6986
    %v7851 = vpop.f32.mrf.mxu0
    %v7852 = vadd.f32 %v6941, %v7851
    %v7853 = vpop.f32.mrf.mxu0
    %v7854 = vadd.f32 %v6946, %v7853
    %7855 = vmatmul.bf16.gmra.mxu0 %v6989
    %v7856 = vpop.f32.mrf.mxu0
    %v7857 = vadd.f32 %v6951, %v7856
    %v7858 = vpop.f32.mrf.mxu0
    %v7859 = vadd.f32 %v6956, %v7858
    %7860 = vdwg.mxu0
    %7861 = vmatpush.bf16.msra.mxu0 0
    %7862 = vmatpush.bf16.msra.mxu0 0
    %7863 = vmatpush.bf16.msra.mxu0 0
    %7864 = vmatpush.bf16.msra.mxu0 0
    %7865 = vmatpush.bf16.msra.mxu0 %v6868
    %7866 = vmatpush.bf16.msra.mxu0 %v6804
    %7867 = vmatpush.bf16.msra.mxu0 %v6740
    %7868 = vmatpush.bf16.msra.mxu0 %v6676
    %7869 = vmatmul.bf16.gmra.mxu0 %v6980
    %v7870 = vpop.f32.mrf.mxu0
    %v7871 = vadd.f32 %v6921, %v7870
    %v7872 = vpop.f32.mrf.mxu0
    %v7873 = vadd.f32 %v6926, %v7872
    %7874 = vmatmul.bf16.gmra.mxu0 %v6983
    %v7875 = vpop.f32.mrf.mxu0
    %v7876 = vadd.f32 %v6931, %v7875
    %v7877 = vpop.f32.mrf.mxu0
    %v7878 = vadd.f32 %v6936, %v7877
    %7879 = vmatmul.bf16.gmra.mxu0 %v6986
    %v7880 = vpop.f32.mrf.mxu0
    %v7881 = vadd.f32 %v6941, %v7880
    %v7882 = vpop.f32.mrf.mxu0
    %v7883 = vadd.f32 %v6946, %v7882
    %7884 = vmatmul.bf16.gmra.mxu0 %v6989
    %v7885 = vpop.f32.mrf.mxu0
    %v7886 = vadd.f32 %v6951, %v7885
    %v7887 = vpop.f32.mrf.mxu0
    %v7888 = vadd.f32 %v6956, %v7887
    %7889 = vdwg.mxu0
    %7890 = vmatpush.bf16.msra.mxu0 0
    %7891 = vmatpush.bf16.msra.mxu0 0
    %7892 = vmatpush.bf16.msra.mxu0 0
    %7893 = vmatpush.bf16.msra.mxu0 0
    %7894 = vmatpush.bf16.msra.mxu0 %v6869
    %7895 = vmatpush.bf16.msra.mxu0 %v6805
    %7896 = vmatpush.bf16.msra.mxu0 %v6741
    %7897 = vmatpush.bf16.msra.mxu0 %v6677
    %7898 = vmatmul.bf16.gmra.mxu0 %v6980
    %v7899 = vpop.f32.mrf.mxu0
    %v7900 = vadd.f32 %v6921, %v7899
    %v7901 = vpop.f32.mrf.mxu0
    %v7902 = vadd.f32 %v6926, %v7901
    %7903 = vmatmul.bf16.gmra.mxu0 %v6983
    %v7904 = vpop.f32.mrf.mxu0
    %v7905 = vadd.f32 %v6931, %v7904
    %v7906 = vpop.f32.mrf.mxu0
    %v7907 = vadd.f32 %v6936, %v7906
    %7908 = vmatmul.bf16.gmra.mxu0 %v6986
    %v7909 = vpop.f32.mrf.mxu0
    %v7910 = vadd.f32 %v6941, %v7909
    %v7911 = vpop.f32.mrf.mxu0
    %v7912 = vadd.f32 %v6946, %v7911
    %7913 = vmatmul.bf16.gmra.mxu0 %v6989
    %v7914 = vpop.f32.mrf.mxu0
    %v7915 = vadd.f32 %v6951, %v7914
    %v7916 = vpop.f32.mrf.mxu0
    %v7917 = vadd.f32 %v6956, %v7916
    %7918 = vdwg.mxu0
    %7919 = vmatpush.bf16.msra.mxu0 0
    %7920 = vmatpush.bf16.msra.mxu0 0
    %7921 = vmatpush.bf16.msra.mxu0 0
    %7922 = vmatpush.bf16.msra.mxu0 0
    %7923 = vmatpush.bf16.msra.mxu0 %v6870
    %7924 = vmatpush.bf16.msra.mxu0 %v6806
    %7925 = vmatpush.bf16.msra.mxu0 %v6742
    %7926 = vmatpush.bf16.msra.mxu0 %v6678
    %7927 = vmatmul.bf16.gmra.mxu0 %v6980
    %v7928 = vpop.f32.mrf.mxu0
    %v7929 = vadd.f32 %v6921, %v7928
    %v7930 = vpop.f32.mrf.mxu0
    %v7931 = vadd.f32 %v6926, %v7930
    %7932 = vmatmul.bf16.gmra.mxu0 %v6983
    %v7933 = vpop.f32.mrf.mxu0
    %v7934 = vadd.f32 %v6931, %v7933
    %v7935 = vpop.f32.mrf.mxu0
    %v7936 = vadd.f32 %v6936, %v7935
    %7937 = vmatmul.bf16.gmra.mxu0 %v6986
    %v7938 = vpop.f32.mrf.mxu0
    %v7939 = vadd.f32 %v6941, %v7938
    %v7940 = vpop.f32.mrf.mxu0
    %v7941 = vadd.f32 %v6946, %v7940
    %7942 = vmatmul.bf16.gmra.mxu0 %v6989
    %v7943 = vpop.f32.mrf.mxu0
    %v7944 = vadd.f32 %v6951, %v7943
    %v7945 = vpop.f32.mrf.mxu0
    %v7946 = vadd.f32 %v6956, %v7945
    %7947 = vdwg.mxu0
    %7948 = vmatpush.bf16.msra.mxu0 0
    %7949 = vmatpush.bf16.msra.mxu0 0
    %7950 = vmatpush.bf16.msra.mxu0 0
    %7951 = vmatpush.bf16.msra.mxu0 0
    %7952 = vmatpush.bf16.msra.mxu0 %v6871
    %7953 = vmatpush.bf16.msra.mxu0 %v6807
    %7954 = vmatpush.bf16.msra.mxu0 %v6743
    %7955 = vmatpush.bf16.msra.mxu0 %v6679
    %7956 = vmatmul.bf16.gmra.mxu0 %v6980
    %v7957 = vpop.f32.mrf.mxu0
    %v7958 = vadd.f32 %v6921, %v7957
    %v7959 = vpop.f32.mrf.mxu0
    %v7960 = vadd.f32 %v6926, %v7959
    %7961 = vmatmul.bf16.gmra.mxu0 %v6983
    %v7962 = vpop.f32.mrf.mxu0
    %v7963 = vadd.f32 %v6931, %v7962
    %v7964 = vpop.f32.mrf.mxu0
    %v7965 = vadd.f32 %v6936, %v7964
    %7966 = vmatmul.bf16.gmra.mxu0 %v6986
    %v7967 = vpop.f32.mrf.mxu0
    %v7968 = vadd.f32 %v6941, %v7967
    %v7969 = vpop.f32.mrf.mxu0
    %v7970 = vadd.f32 %v6946, %v7969
    %7971 = vmatmul.bf16.gmra.mxu0 %v6989
    %v7972 = vpop.f32.mrf.mxu0
    %v7973 = vadd.f32 %v6951, %v7972
    %v7974 = vpop.f32.mrf.mxu0
    %v7975 = vadd.f32 %v6956, %v7974
    %7976 = vdwg.mxu0
    %7977 = vmatpush.bf16.msra.mxu0 0
    %7978 = vmatpush.bf16.msra.mxu0 0
    %7979 = vmatpush.bf16.msra.mxu0 0
    %7980 = vmatpush.bf16.msra.mxu0 0
    %7981 = vmatpush.bf16.msra.mxu0 %v6872
    %7982 = vmatpush.bf16.msra.mxu0 %v6808
    %7983 = vmatpush.bf16.msra.mxu0 %v6744
    %7984 = vmatpush.bf16.msra.mxu0 %v6680
    %7985 = vmatmul.bf16.gmra.mxu0 %v6980
    %v7986 = vpop.f32.mrf.mxu0
    %v7987 = vadd.f32 %v6921, %v7986
    %v7988 = vpop.f32.mrf.mxu0
    %v7989 = vadd.f32 %v6926, %v7988
    %7990 = vmatmul.bf16.gmra.mxu0 %v6983
    %v7991 = vpop.f32.mrf.mxu0
    %v7992 = vadd.f32 %v6931, %v7991
    %v7993 = vpop.f32.mrf.mxu0
    %v7994 = vadd.f32 %v6936, %v7993
    %7995 = vmatmul.bf16.gmra.mxu0 %v6986
    %v7996 = vpop.f32.mrf.mxu0
    %v7997 = vadd.f32 %v6941, %v7996
    %v7998 = vpop.f32.mrf.mxu0
    %v7999 = vadd.f32 %v6946, %v7998
    %8000 = vmatmul.bf16.gmra.mxu0 %v6989
    %v8001 = vpop.f32.mrf.mxu0
    %v8002 = vadd.f32 %v6951, %v8001
    %v8003 = vpop.f32.mrf.mxu0
    %v8004 = vadd.f32 %v6956, %v8003
    %8005 = vdwg.mxu0
    %8006 = vmatpush.bf16.msra.mxu0 0
    %8007 = vmatpush.bf16.msra.mxu0 0
    %8008 = vmatpush.bf16.msra.mxu0 0
    %8009 = vmatpush.bf16.msra.mxu0 0
    %8010 = vmatpush.bf16.msra.mxu0 %v6873
    %8011 = vmatpush.bf16.msra.mxu0 %v6809
    %8012 = vmatpush.bf16.msra.mxu0 %v6745
    %8013 = vmatpush.bf16.msra.mxu0 %v6681
    %8014 = vmatmul.bf16.gmra.mxu0 %v6980
    %v8015 = vpop.f32.mrf.mxu0
    %v8016 = vadd.f32 %v6921, %v8015
    %v8017 = vpop.f32.mrf.mxu0
    %v8018 = vadd.f32 %v6926, %v8017
    %8019 = vmatmul.bf16.gmra.mxu0 %v6983
    %v8020 = vpop.f32.mrf.mxu0
    %v8021 = vadd.f32 %v6931, %v8020
    %v8022 = vpop.f32.mrf.mxu0
    %v8023 = vadd.f32 %v6936, %v8022
    %8024 = vmatmul.bf16.gmra.mxu0 %v6986
    %v8025 = vpop.f32.mrf.mxu0
    %v8026 = vadd.f32 %v6941, %v8025
    %v8027 = vpop.f32.mrf.mxu0
    %v8028 = vadd.f32 %v6946, %v8027
    %8029 = vmatmul.bf16.gmra.mxu0 %v6989
    %v8030 = vpop.f32.mrf.mxu0
    %v8031 = vadd.f32 %v6951, %v8030
    %v8032 = vpop.f32.mrf.mxu0
    %v8033 = vadd.f32 %v6956, %v8032
    %8034 = vdwg.mxu0
    %8035 = vmatpush.bf16.msra.mxu0 0
    %8036 = vmatpush.bf16.msra.mxu0 0
    %8037 = vmatpush.bf16.msra.mxu0 0
    %8038 = vmatpush.bf16.msra.mxu0 0
    %8039 = vmatpush.bf16.msra.mxu0 %v6874
    %8040 = vmatpush.bf16.msra.mxu0 %v6810
    %8041 = vmatpush.bf16.msra.mxu0 %v6746
    %8042 = vmatpush.bf16.msra.mxu0 %v6682
    %8043 = vmatmul.bf16.gmra.mxu0 %v6980
    %v8044 = vpop.f32.mrf.mxu0
    %v8045 = vadd.f32 %v6921, %v8044
    %v8046 = vpop.f32.mrf.mxu0
    %v8047 = vadd.f32 %v6926, %v8046
    %8048 = vmatmul.bf16.gmra.mxu0 %v6983
    %v8049 = vpop.f32.mrf.mxu0
    %v8050 = vadd.f32 %v6931, %v8049
    %v8051 = vpop.f32.mrf.mxu0
    %v8052 = vadd.f32 %v6936, %v8051
    %8053 = vmatmul.bf16.gmra.mxu0 %v6986
    %v8054 = vpop.f32.mrf.mxu0
    %v8055 = vadd.f32 %v6941, %v8054
    %v8056 = vpop.f32.mrf.mxu0
    %v8057 = vadd.f32 %v6946, %v8056
    %8058 = vmatmul.bf16.gmra.mxu0 %v6989
    %v8059 = vpop.f32.mrf.mxu0
    %v8060 = vadd.f32 %v6951, %v8059
    %v8061 = vpop.f32.mrf.mxu0
    %v8062 = vadd.f32 %v6956, %v8061
    %8063 = vdwg.mxu0
    %8064 = vmatpush.bf16.msra.mxu0 0
    %8065 = vmatpush.bf16.msra.mxu0 0
    %8066 = vmatpush.bf16.msra.mxu0 0
    %8067 = vmatpush.bf16.msra.mxu0 0
    %8068 = vmatpush.bf16.msra.mxu0 %v6875
    %8069 = vmatpush.bf16.msra.mxu0 %v6811
    %8070 = vmatpush.bf16.msra.mxu0 %v6747
    %8071 = vmatpush.bf16.msra.mxu0 %v6683
    %8072 = vmatmul.bf16.gmra.mxu0 %v6980
    %v8073 = vpop.f32.mrf.mxu0
    %v8074 = vadd.f32 %v6921, %v8073
    %v8075 = vpop.f32.mrf.mxu0
    %v8076 = vadd.f32 %v6926, %v8075
    %8077 = vmatmul.bf16.gmra.mxu0 %v6983
    %v8078 = vpop.f32.mrf.mxu0
    %v8079 = vadd.f32 %v6931, %v8078
    %v8080 = vpop.f32.mrf.mxu0
    %v8081 = vadd.f32 %v6936, %v8080
    %8082 = vmatmul.bf16.gmra.mxu0 %v6986
    %v8083 = vpop.f32.mrf.mxu0
    %v8084 = vadd.f32 %v6941, %v8083
    %v8085 = vpop.f32.mrf.mxu0
    %v8086 = vadd.f32 %v6946, %v8085
    %8087 = vmatmul.bf16.gmra.mxu0 %v6989
    %v8088 = vpop.f32.mrf.mxu0
    %v8089 = vadd.f32 %v6951, %v8088
    %v8090 = vpop.f32.mrf.mxu0
    %v8091 = vadd.f32 %v6956, %v8090
    %8092 = vdwg.mxu0
    %8093 = vmatpush.bf16.msra.mxu0 0
    %8094 = vmatpush.bf16.msra.mxu0 0
    %8095 = vmatpush.bf16.msra.mxu0 0
    %8096 = vmatpush.bf16.msra.mxu0 0
    %8097 = vmatpush.bf16.msra.mxu0 %v6876
    %8098 = vmatpush.bf16.msra.mxu0 %v6812
    %8099 = vmatpush.bf16.msra.mxu0 %v6748
    %8100 = vmatpush.bf16.msra.mxu0 %v6684
    %8101 = vmatmul.bf16.gmra.mxu0 %v6980
    %v8102 = vpop.f32.mrf.mxu0
    %v8103 = vadd.f32 %v6921, %v8102
    %v8104 = vpop.f32.mrf.mxu0
    %v8105 = vadd.f32 %v6926, %v8104
    %8106 = vmatmul.bf16.gmra.mxu0 %v6983
    %v8107 = vpop.f32.mrf.mxu0
    %v8108 = vadd.f32 %v6931, %v8107
    %v8109 = vpop.f32.mrf.mxu0
    %v8110 = vadd.f32 %v6936, %v8109
    %8111 = vmatmul.bf16.gmra.mxu0 %v6986
    %v8112 = vpop.f32.mrf.mxu0
    %v8113 = vadd.f32 %v6941, %v8112
    %v8114 = vpop.f32.mrf.mxu0
    %v8115 = vadd.f32 %v6946, %v8114
    %8116 = vmatmul.bf16.gmra.mxu0 %v6989
    %v8117 = vpop.f32.mrf.mxu0
    %v8118 = vadd.f32 %v6951, %v8117
    %v8119 = vpop.f32.mrf.mxu0
    %v8120 = vadd.f32 %v6956, %v8119
    %8121 = vdwg.mxu0
    %8122 = vmatpush.bf16.msra.mxu0 0
    %8123 = vmatpush.bf16.msra.mxu0 0
    %8124 = vmatpush.bf16.msra.mxu0 0
    %8125 = vmatpush.bf16.msra.mxu0 0
    %8126 = vmatpush.bf16.msra.mxu0 %v6877
    %8127 = vmatpush.bf16.msra.mxu0 %v6813
    %8128 = vmatpush.bf16.msra.mxu0 %v6749
    %8129 = vmatpush.bf16.msra.mxu0 %v6685
    %8130 = vmatmul.bf16.gmra.mxu0 %v6980
    %v8131 = vpop.f32.mrf.mxu0
    %v8132 = vadd.f32 %v6921, %v8131
    %v8133 = vpop.f32.mrf.mxu0
    %v8134 = vadd.f32 %v6926, %v8133
    %8135 = vmatmul.bf16.gmra.mxu0 %v6983
    %v8136 = vpop.f32.mrf.mxu0
    %v8137 = vadd.f32 %v6931, %v8136
    %v8138 = vpop.f32.mrf.mxu0
    %v8139 = vadd.f32 %v6936, %v8138
    %8140 = vmatmul.bf16.gmra.mxu0 %v6986
    %v8141 = vpop.f32.mrf.mxu0
    %v8142 = vadd.f32 %v6941, %v8141
    %v8143 = vpop.f32.mrf.mxu0
    %v8144 = vadd.f32 %v6946, %v8143
    %8145 = vmatmul.bf16.gmra.mxu0 %v6989
    %v8146 = vpop.f32.mrf.mxu0
    %v8147 = vadd.f32 %v6951, %v8146
    %v8148 = vpop.f32.mrf.mxu0
    %v8149 = vadd.f32 %v6956, %v8148
    %8150 = vdwg.mxu0
    %8151 = vmatpush.bf16.msra.mxu0 0
    %8152 = vmatpush.bf16.msra.mxu0 0
    %8153 = vmatpush.bf16.msra.mxu0 0
    %8154 = vmatpush.bf16.msra.mxu0 0
    %8155 = vmatpush.bf16.msra.mxu0 %v6878
    %8156 = vmatpush.bf16.msra.mxu0 %v6814
    %8157 = vmatpush.bf16.msra.mxu0 %v6750
    %8158 = vmatpush.bf16.msra.mxu0 %v6686
    %8159 = vmatmul.bf16.gmra.mxu0 %v6980
    %v8160 = vpop.f32.mrf.mxu0
    %v8161 = vadd.f32 %v6921, %v8160
    %v8162 = vpop.f32.mrf.mxu0
    %v8163 = vadd.f32 %v6926, %v8162
    %8164 = vmatmul.bf16.gmra.mxu0 %v6983
    %v8165 = vpop.f32.mrf.mxu0
    %v8166 = vadd.f32 %v6931, %v8165
    %v8167 = vpop.f32.mrf.mxu0
    %v8168 = vadd.f32 %v6936, %v8167
    %8169 = vmatmul.bf16.gmra.mxu0 %v6986
    %v8170 = vpop.f32.mrf.mxu0
    %v8171 = vadd.f32 %v6941, %v8170
    %v8172 = vpop.f32.mrf.mxu0
    %v8173 = vadd.f32 %v6946, %v8172
    %8174 = vmatmul.bf16.gmra.mxu0 %v6989
    %v8175 = vpop.f32.mrf.mxu0
    %v8176 = vadd.f32 %v6951, %v8175
    %v8177 = vpop.f32.mrf.mxu0
    %v8178 = vadd.f32 %v6956, %v8177
    %8179 = vdwg.mxu0
    %8180 = vmatpush.bf16.msra.mxu0 0
    %8181 = vmatpush.bf16.msra.mxu0 0
    %8182 = vmatpush.bf16.msra.mxu0 0
    %8183 = vmatpush.bf16.msra.mxu0 0
    %8184 = vmatpush.bf16.msra.mxu0 %v6879
    %8185 = vmatpush.bf16.msra.mxu0 %v6815
    %8186 = vmatpush.bf16.msra.mxu0 %v6751
    %8187 = vmatpush.bf16.msra.mxu0 %v6687
    %8188 = vmatmul.bf16.gmra.mxu0 %v6980
    %v8189 = vpop.f32.mrf.mxu0
    %v8190 = vadd.f32 %v6921, %v8189
    %v8191 = vpop.f32.mrf.mxu0
    %v8192 = vadd.f32 %v6926, %v8191
    %8193 = vmatmul.bf16.gmra.mxu0 %v6983
    %v8194 = vpop.f32.mrf.mxu0
    %v8195 = vadd.f32 %v6931, %v8194
    %v8196 = vpop.f32.mrf.mxu0
    %v8197 = vadd.f32 %v6936, %v8196
    %8198 = vmatmul.bf16.gmra.mxu0 %v6986
    %v8199 = vpop.f32.mrf.mxu0
    %v8200 = vadd.f32 %v6941, %v8199
    %v8201 = vpop.f32.mrf.mxu0
    %v8202 = vadd.f32 %v6946, %v8201
    %8203 = vmatmul.bf16.gmra.mxu0 %v6989
    %v8204 = vpop.f32.mrf.mxu0
    %v8205 = vadd.f32 %v6951, %v8204
    %v8206 = vpop.f32.mrf.mxu0
    %v8207 = vadd.f32 %v6956, %v8206
    %8208 = vdwg.mxu0
    %8209 = vmatpush.bf16.msra.mxu0 0
    %8210 = vmatpush.bf16.msra.mxu0 0
    %8211 = vmatpush.bf16.msra.mxu0 0
    %8212 = vmatpush.bf16.msra.mxu0 0
    %8213 = vmatpush.bf16.msra.mxu0 %v6880
    %8214 = vmatpush.bf16.msra.mxu0 %v6816
    %8215 = vmatpush.bf16.msra.mxu0 %v6752
    %8216 = vmatpush.bf16.msra.mxu0 %v6688
    %8217 = vmatmul.bf16.gmra.mxu0 %v6980
    %v8218 = vpop.f32.mrf.mxu0
    %v8219 = vadd.f32 %v6921, %v8218
    %v8220 = vpop.f32.mrf.mxu0
    %v8221 = vadd.f32 %v6926, %v8220
    %8222 = vmatmul.bf16.gmra.mxu0 %v6983
    %v8223 = vpop.f32.mrf.mxu0
    %v8224 = vadd.f32 %v6931, %v8223
    %v8225 = vpop.f32.mrf.mxu0
    %v8226 = vadd.f32 %v6936, %v8225
    %8227 = vmatmul.bf16.gmra.mxu0 %v6986
    %v8228 = vpop.f32.mrf.mxu0
    %v8229 = vadd.f32 %v6941, %v8228
    %v8230 = vpop.f32.mrf.mxu0
    %v8231 = vadd.f32 %v6946, %v8230
    %8232 = vmatmul.bf16.gmra.mxu0 %v6989
    %v8233 = vpop.f32.mrf.mxu0
    %v8234 = vadd.f32 %v6951, %v8233
    %v8235 = vpop.f32.mrf.mxu0
    %v8236 = vadd.f32 %v6956, %v8235
    %8237 = vdwg.mxu0
    %8238 = vmatpush.bf16.msra.mxu0 0
    %8239 = vmatpush.bf16.msra.mxu0 0
    %8240 = vmatpush.bf16.msra.mxu0 0
    %8241 = vmatpush.bf16.msra.mxu0 0
    %8242 = vmatpush.bf16.msra.mxu0 %v6881
    %8243 = vmatpush.bf16.msra.mxu0 %v6817
    %8244 = vmatpush.bf16.msra.mxu0 %v6753
    %8245 = vmatpush.bf16.msra.mxu0 %v6689
    %8246 = vmatmul.bf16.gmra.mxu0 %v6980
    %v8247 = vpop.f32.mrf.mxu0
    %v8248 = vadd.f32 %v6921, %v8247
    %v8249 = vpop.f32.mrf.mxu0
    %v8250 = vadd.f32 %v6926, %v8249
    %8251 = vmatmul.bf16.gmra.mxu0 %v6983
    %v8252 = vpop.f32.mrf.mxu0
    %v8253 = vadd.f32 %v6931, %v8252
    %v8254 = vpop.f32.mrf.mxu0
    %v8255 = vadd.f32 %v6936, %v8254
    %8256 = vmatmul.bf16.gmra.mxu0 %v6986
    %v8257 = vpop.f32.mrf.mxu0
    %v8258 = vadd.f32 %v6941, %v8257
    %v8259 = vpop.f32.mrf.mxu0
    %v8260 = vadd.f32 %v6946, %v8259
    %8261 = vmatmul.bf16.gmra.mxu0 %v6989
    %v8262 = vpop.f32.mrf.mxu0
    %v8263 = vadd.f32 %v6951, %v8262
    %v8264 = vpop.f32.mrf.mxu0
    %v8265 = vadd.f32 %v6956, %v8264
    %8266 = vdwg.mxu0
    %8267 = vmatpush.bf16.msra.mxu0 0
    %8268 = vmatpush.bf16.msra.mxu0 0
    %8269 = vmatpush.bf16.msra.mxu0 0
    %8270 = vmatpush.bf16.msra.mxu0 0
    %8271 = vmatpush.bf16.msra.mxu0 %v6882
    %8272 = vmatpush.bf16.msra.mxu0 %v6818
    %8273 = vmatpush.bf16.msra.mxu0 %v6754
    %8274 = vmatpush.bf16.msra.mxu0 %v6690
    %8275 = vmatmul.bf16.gmra.mxu0 %v6980
    %v8276 = vpop.f32.mrf.mxu0
    %v8277 = vadd.f32 %v6921, %v8276
    %v8278 = vpop.f32.mrf.mxu0
    %v8279 = vadd.f32 %v6926, %v8278
    %8280 = vmatmul.bf16.gmra.mxu0 %v6983
    %v8281 = vpop.f32.mrf.mxu0
    %v8282 = vadd.f32 %v6931, %v8281
    %v8283 = vpop.f32.mrf.mxu0
    %v8284 = vadd.f32 %v6936, %v8283
    %8285 = vmatmul.bf16.gmra.mxu0 %v6986
    %v8286 = vpop.f32.mrf.mxu0
    %v8287 = vadd.f32 %v6941, %v8286
    %v8288 = vpop.f32.mrf.mxu0
    %v8289 = vadd.f32 %v6946, %v8288
    %8290 = vmatmul.bf16.gmra.mxu0 %v6989
    %v8291 = vpop.f32.mrf.mxu0
    %v8292 = vadd.f32 %v6951, %v8291
    %v8293 = vpop.f32.mrf.mxu0
    %v8294 = vadd.f32 %v6956, %v8293
    %8295 = vdwg.mxu0
    %8296 = vmatpush.bf16.msra.mxu0 0
    %8297 = vmatpush.bf16.msra.mxu0 0
    %8298 = vmatpush.bf16.msra.mxu0 0
    %8299 = vmatpush.bf16.msra.mxu0 0
    %8300 = vmatpush.bf16.msra.mxu0 %v6883
    %8301 = vmatpush.bf16.msra.mxu0 %v6819
    %8302 = vmatpush.bf16.msra.mxu0 %v6755
    %8303 = vmatpush.bf16.msra.mxu0 %v6691
    %8304 = vmatmul.bf16.gmra.mxu0 %v6980
    %v8305 = vpop.f32.mrf.mxu0
    %v8306 = vadd.f32 %v6921, %v8305
    %v8307 = vpop.f32.mrf.mxu0
    %v8308 = vadd.f32 %v6926, %v8307
    %8309 = vmatmul.bf16.gmra.mxu0 %v6983
    %v8310 = vpop.f32.mrf.mxu0
    %v8311 = vadd.f32 %v6931, %v8310
    %v8312 = vpop.f32.mrf.mxu0
    %v8313 = vadd.f32 %v6936, %v8312
    %8314 = vmatmul.bf16.gmra.mxu0 %v6986
    %v8315 = vpop.f32.mrf.mxu0
    %v8316 = vadd.f32 %v6941, %v8315
    %v8317 = vpop.f32.mrf.mxu0
    %v8318 = vadd.f32 %v6946, %v8317
    %8319 = vmatmul.bf16.gmra.mxu0 %v6989
    %v8320 = vpop.f32.mrf.mxu0
    %v8321 = vadd.f32 %v6951, %v8320
    %v8322 = vpop.f32.mrf.mxu0
    %v8323 = vadd.f32 %v6956, %v8322
    %8324 = vdwg.mxu0
    %8325 = vmatpush.bf16.msra.mxu0 0
    %8326 = vmatpush.bf16.msra.mxu0 0
    %8327 = vmatpush.bf16.msra.mxu0 0
    %8328 = vmatpush.bf16.msra.mxu0 0
    %8329 = vmatpush.bf16.msra.mxu0 %v6884
    %8330 = vmatpush.bf16.msra.mxu0 %v6820
    %8331 = vmatpush.bf16.msra.mxu0 %v6756
    %8332 = vmatpush.bf16.msra.mxu0 %v6692
    %8333 = vmatmul.bf16.gmra.mxu0 %v6980
    %v8334 = vpop.f32.mrf.mxu0
    %v8335 = vadd.f32 %v6921, %v8334
    %v8336 = vpop.f32.mrf.mxu0
    %v8337 = vadd.f32 %v6926, %v8336
    %8338 = vmatmul.bf16.gmra.mxu0 %v6983
    %v8339 = vpop.f32.mrf.mxu0
    %v8340 = vadd.f32 %v6931, %v8339
    %v8341 = vpop.f32.mrf.mxu0
    %v8342 = vadd.f32 %v6936, %v8341
    %8343 = vmatmul.bf16.gmra.mxu0 %v6986
    %v8344 = vpop.f32.mrf.mxu0
    %v8345 = vadd.f32 %v6941, %v8344
    %v8346 = vpop.f32.mrf.mxu0
    %v8347 = vadd.f32 %v6946, %v8346
    %8348 = vmatmul.bf16.gmra.mxu0 %v6989
    %v8349 = vpop.f32.mrf.mxu0
    %v8350 = vadd.f32 %v6951, %v8349
    %v8351 = vpop.f32.mrf.mxu0
    %v8352 = vadd.f32 %v6956, %v8351
    %8353 = vdwg.mxu0
    %8354 = vmatpush.bf16.msra.mxu0 0
    %8355 = vmatpush.bf16.msra.mxu0 0
    %8356 = vmatpush.bf16.msra.mxu0 0
    %8357 = vmatpush.bf16.msra.mxu0 0
    %8358 = vmatpush.bf16.msra.mxu0 %v6885
    %8359 = vmatpush.bf16.msra.mxu0 %v6821
    %8360 = vmatpush.bf16.msra.mxu0 %v6757
    %8361 = vmatpush.bf16.msra.mxu0 %v6693
    %8362 = vmatmul.bf16.gmra.mxu0 %v6980
    %v8363 = vpop.f32.mrf.mxu0
    %v8364 = vadd.f32 %v6921, %v8363
    %v8365 = vpop.f32.mrf.mxu0
    %v8366 = vadd.f32 %v6926, %v8365
    %8367 = vmatmul.bf16.gmra.mxu0 %v6983
    %v8368 = vpop.f32.mrf.mxu0
    %v8369 = vadd.f32 %v6931, %v8368
    %v8370 = vpop.f32.mrf.mxu0
    %v8371 = vadd.f32 %v6936, %v8370
    %8372 = vmatmul.bf16.gmra.mxu0 %v6986
    %v8373 = vpop.f32.mrf.mxu0
    %v8374 = vadd.f32 %v6941, %v8373
    %v8375 = vpop.f32.mrf.mxu0
    %v8376 = vadd.f32 %v6946, %v8375
    %8377 = vmatmul.bf16.gmra.mxu0 %v6989
    %v8378 = vpop.f32.mrf.mxu0
    %v8379 = vadd.f32 %v6951, %v8378
    %v8380 = vpop.f32.mrf.mxu0
    %v8381 = vadd.f32 %v6956, %v8380
    %8382 = vdwg.mxu0
    %8383 = vmatpush.bf16.msra.mxu0 0
    %8384 = vmatpush.bf16.msra.mxu0 0
    %8385 = vmatpush.bf16.msra.mxu0 0
    %8386 = vmatpush.bf16.msra.mxu0 0
    %8387 = vmatpush.bf16.msra.mxu0 %v6886
    %8388 = vmatpush.bf16.msra.mxu0 %v6822
    %8389 = vmatpush.bf16.msra.mxu0 %v6758
    %8390 = vmatpush.bf16.msra.mxu0 %v6694
    %8391 = vmatmul.bf16.gmra.mxu0 %v6980
    %v8392 = vpop.f32.mrf.mxu0
    %v8393 = vadd.f32 %v6921, %v8392
    %v8394 = vpop.f32.mrf.mxu0
    %v8395 = vadd.f32 %v6926, %v8394
    %8396 = vmatmul.bf16.gmra.mxu0 %v6983
    %v8397 = vpop.f32.mrf.mxu0
    %v8398 = vadd.f32 %v6931, %v8397
    %v8399 = vpop.f32.mrf.mxu0
    %v8400 = vadd.f32 %v6936, %v8399
    %8401 = vmatmul.bf16.gmra.mxu0 %v6986
    %v8402 = vpop.f32.mrf.mxu0
    %v8403 = vadd.f32 %v6941, %v8402
    %v8404 = vpop.f32.mrf.mxu0
    %v8405 = vadd.f32 %v6946, %v8404
    %8406 = vmatmul.bf16.gmra.mxu0 %v6989
    %v8407 = vpop.f32.mrf.mxu0
    %v8408 = vadd.f32 %v6951, %v8407
    %v8409 = vpop.f32.mrf.mxu0
    %v8410 = vadd.f32 %v6956, %v8409
    %8411 = vdwg.mxu0
    %8412 = vmatpush.bf16.msra.mxu0 0
    %8413 = vmatpush.bf16.msra.mxu0 0
    %8414 = vmatpush.bf16.msra.mxu0 0
    %8415 = vmatpush.bf16.msra.mxu0 0
    %8416 = vmatpush.bf16.msra.mxu0 %v6887
    %8417 = vmatpush.bf16.msra.mxu0 %v6823
    %8418 = vmatpush.bf16.msra.mxu0 %v6759
    %8419 = vmatpush.bf16.msra.mxu0 %v6695
    %8420 = vmatmul.bf16.gmra.mxu0 %v6980
    %v8421 = vpop.f32.mrf.mxu0
    %v8422 = vadd.f32 %v6921, %v8421
    %v8423 = vpop.f32.mrf.mxu0
    %v8424 = vadd.f32 %v6926, %v8423
    %8425 = vmatmul.bf16.gmra.mxu0 %v6983
    %v8426 = vpop.f32.mrf.mxu0
    %v8427 = vadd.f32 %v6931, %v8426
    %v8428 = vpop.f32.mrf.mxu0
    %v8429 = vadd.f32 %v6936, %v8428
    %8430 = vmatmul.bf16.gmra.mxu0 %v6986
    %v8431 = vpop.f32.mrf.mxu0
    %v8432 = vadd.f32 %v6941, %v8431
    %v8433 = vpop.f32.mrf.mxu0
    %v8434 = vadd.f32 %v6946, %v8433
    %8435 = vmatmul.bf16.gmra.mxu0 %v6989
    %v8436 = vpop.f32.mrf.mxu0
    %v8437 = vadd.f32 %v6951, %v8436
    %v8438 = vpop.f32.mrf.mxu0
    %v8439 = vadd.f32 %v6956, %v8438
    %8440 = vdwg.mxu0
    %8441 = vmatpush.bf16.msra.mxu0 0
    %8442 = vmatpush.bf16.msra.mxu0 0
    %8443 = vmatpush.bf16.msra.mxu0 0
    %8444 = vmatpush.bf16.msra.mxu0 0
    %8445 = vmatpush.bf16.msra.mxu0 %v6888
    %8446 = vmatpush.bf16.msra.mxu0 %v6824
    %8447 = vmatpush.bf16.msra.mxu0 %v6760
    %8448 = vmatpush.bf16.msra.mxu0 %v6696
    %8449 = vmatmul.bf16.gmra.mxu0 %v6980
    %v8450 = vpop.f32.mrf.mxu0
    %v8451 = vadd.f32 %v6921, %v8450
    %v8452 = vpop.f32.mrf.mxu0
    %v8453 = vadd.f32 %v6926, %v8452
    %8454 = vmatmul.bf16.gmra.mxu0 %v6983
    %v8455 = vpop.f32.mrf.mxu0
    %v8456 = vadd.f32 %v6931, %v8455
    %v8457 = vpop.f32.mrf.mxu0
    %v8458 = vadd.f32 %v6936, %v8457
    %8459 = vmatmul.bf16.gmra.mxu0 %v6986
    %v8460 = vpop.f32.mrf.mxu0
    %v8461 = vadd.f32 %v6941, %v8460
    %v8462 = vpop.f32.mrf.mxu0
    %v8463 = vadd.f32 %v6946, %v8462
    %8464 = vmatmul.bf16.gmra.mxu0 %v6989
    %v8465 = vpop.f32.mrf.mxu0
    %v8466 = vadd.f32 %v6951, %v8465
    %v8467 = vpop.f32.mrf.mxu0
    %v8468 = vadd.f32 %v6956, %v8467
    %8469 = vdwg.mxu0
    %8470 = vmatpush.bf16.msra.mxu0 0
    %8471 = vmatpush.bf16.msra.mxu0 0
    %8472 = vmatpush.bf16.msra.mxu0 0
    %8473 = vmatpush.bf16.msra.mxu0 0
    %8474 = vmatpush.bf16.msra.mxu0 %v6889
    %8475 = vmatpush.bf16.msra.mxu0 %v6825
    %8476 = vmatpush.bf16.msra.mxu0 %v6761
    %8477 = vmatpush.bf16.msra.mxu0 %v6697
    %8478 = vmatmul.bf16.gmra.mxu0 %v6980
    %v8479 = vpop.f32.mrf.mxu0
    %v8480 = vadd.f32 %v6921, %v8479
    %v8481 = vpop.f32.mrf.mxu0
    %v8482 = vadd.f32 %v6926, %v8481
    %8483 = vmatmul.bf16.gmra.mxu0 %v6983
    %v8484 = vpop.f32.mrf.mxu0
    %v8485 = vadd.f32 %v6931, %v8484
    %v8486 = vpop.f32.mrf.mxu0
    %v8487 = vadd.f32 %v6936, %v8486
    %8488 = vmatmul.bf16.gmra.mxu0 %v6986
    %v8489 = vpop.f32.mrf.mxu0
    %v8490 = vadd.f32 %v6941, %v8489
    %v8491 = vpop.f32.mrf.mxu0
    %v8492 = vadd.f32 %v6946, %v8491
    %8493 = vmatmul.bf16.gmra.mxu0 %v6989
    %v8494 = vpop.f32.mrf.mxu0
    %v8495 = vadd.f32 %v6951, %v8494
    %v8496 = vpop.f32.mrf.mxu0
    %v8497 = vadd.f32 %v6956, %v8496
    %8498 = vdwg.mxu0
    %8499 = vmatpush.bf16.msra.mxu0 0
    %8500 = vmatpush.bf16.msra.mxu0 0
    %8501 = vmatpush.bf16.msra.mxu0 0
    %8502 = vmatpush.bf16.msra.mxu0 0
    %8503 = vmatpush.bf16.msra.mxu0 %v6890
    %8504 = vmatpush.bf16.msra.mxu0 %v6826
    %8505 = vmatpush.bf16.msra.mxu0 %v6762
    %8506 = vmatpush.bf16.msra.mxu0 %v6698
    %8507 = vmatmul.bf16.gmra.mxu0 %v6980
    %v8508 = vpop.f32.mrf.mxu0
    %v8509 = vadd.f32 %v6921, %v8508
    %v8510 = vpop.f32.mrf.mxu0
    %v8511 = vadd.f32 %v6926, %v8510
    %8512 = vmatmul.bf16.gmra.mxu0 %v6983
    %v8513 = vpop.f32.mrf.mxu0
    %v8514 = vadd.f32 %v6931, %v8513
    %v8515 = vpop.f32.mrf.mxu0
    %v8516 = vadd.f32 %v6936, %v8515
    %8517 = vmatmul.bf16.gmra.mxu0 %v6986
    %v8518 = vpop.f32.mrf.mxu0
    %v8519 = vadd.f32 %v6941, %v8518
    %v8520 = vpop.f32.mrf.mxu0
    %v8521 = vadd.f32 %v6946, %v8520
    %8522 = vmatmul.bf16.gmra.mxu0 %v6989
    %v8523 = vpop.f32.mrf.mxu0
    %v8524 = vadd.f32 %v6951, %v8523
    %v8525 = vpop.f32.mrf.mxu0
    %v8526 = vadd.f32 %v6956, %v8525
    %8527 = vdwg.mxu0
    %8528 = vmatpush.bf16.msra.mxu0 0
    %8529 = vmatpush.bf16.msra.mxu0 0
    %8530 = vmatpush.bf16.msra.mxu0 0
    %8531 = vmatpush.bf16.msra.mxu0 0
    %8532 = vmatpush.bf16.msra.mxu0 %v6891
    %8533 = vmatpush.bf16.msra.mxu0 %v6827
    %8534 = vmatpush.bf16.msra.mxu0 %v6763
    %8535 = vmatpush.bf16.msra.mxu0 %v6699
    %8536 = vmatmul.bf16.gmra.mxu0 %v6980
    %v8537 = vpop.f32.mrf.mxu0
    %v8538 = vadd.f32 %v6921, %v8537
    %v8539 = vpop.f32.mrf.mxu0
    %v8540 = vadd.f32 %v6926, %v8539
    %8541 = vmatmul.bf16.gmra.mxu0 %v6983
    %v8542 = vpop.f32.mrf.mxu0
    %v8543 = vadd.f32 %v6931, %v8542
    %v8544 = vpop.f32.mrf.mxu0
    %v8545 = vadd.f32 %v6936, %v8544
    %8546 = vmatmul.bf16.gmra.mxu0 %v6986
    %v8547 = vpop.f32.mrf.mxu0
    %v8548 = vadd.f32 %v6941, %v8547
    %v8549 = vpop.f32.mrf.mxu0
    %v8550 = vadd.f32 %v6946, %v8549
    %8551 = vmatmul.bf16.gmra.mxu0 %v6989
    %v8552 = vpop.f32.mrf.mxu0
    %v8553 = vadd.f32 %v6951, %v8552
    %v8554 = vpop.f32.mrf.mxu0
    %v8555 = vadd.f32 %v6956, %v8554
    %8556 = vdwg.mxu0
    %8557 = vmatpush.bf16.msra.mxu0 0
    %8558 = vmatpush.bf16.msra.mxu0 0
    %8559 = vmatpush.bf16.msra.mxu0 0
    %8560 = vmatpush.bf16.msra.mxu0 0
    %8561 = vmatpush.bf16.msra.mxu0 %v6892
    %8562 = vmatpush.bf16.msra.mxu0 %v6828
    %8563 = vmatpush.bf16.msra.mxu0 %v6764
    %8564 = vmatpush.bf16.msra.mxu0 %v6700
    %8565 = vmatmul.bf16.gmra.mxu0 %v6980
    %v8566 = vpop.f32.mrf.mxu0
    %v8567 = vadd.f32 %v6921, %v8566
    %v8568 = vpop.f32.mrf.mxu0
    %v8569 = vadd.f32 %v6926, %v8568
    %8570 = vmatmul.bf16.gmra.mxu0 %v6983
    %v8571 = vpop.f32.mrf.mxu0
    %v8572 = vadd.f32 %v6931, %v8571
    %v8573 = vpop.f32.mrf.mxu0
    %v8574 = vadd.f32 %v6936, %v8573
    %8575 = vmatmul.bf16.gmra.mxu0 %v6986
    %v8576 = vpop.f32.mrf.mxu0
    %v8577 = vadd.f32 %v6941, %v8576
    %v8578 = vpop.f32.mrf.mxu0
    %v8579 = vadd.f32 %v6946, %v8578
    %8580 = vmatmul.bf16.gmra.mxu0 %v6989
    %v8581 = vpop.f32.mrf.mxu0
    %v8582 = vadd.f32 %v6951, %v8581
    %v8583 = vpop.f32.mrf.mxu0
    %v8584 = vadd.f32 %v6956, %v8583
    %8585 = vdwg.mxu0
    %8586 = vmatpush.bf16.msra.mxu0 0
    %8587 = vmatpush.bf16.msra.mxu0 0
    %8588 = vmatpush.bf16.msra.mxu0 0
    %8589 = vmatpush.bf16.msra.mxu0 0
    %8590 = vmatpush.bf16.msra.mxu0 %v6893
    %8591 = vmatpush.bf16.msra.mxu0 %v6829
    %8592 = vmatpush.bf16.msra.mxu0 %v6765
    %8593 = vmatpush.bf16.msra.mxu0 %v6701
    %8594 = vmatmul.bf16.gmra.mxu0 %v6980
    %v8595 = vpop.f32.mrf.mxu0
    %v8596 = vadd.f32 %v6921, %v8595
    %v8597 = vpop.f32.mrf.mxu0
    %v8598 = vadd.f32 %v6926, %v8597
    %8599 = vmatmul.bf16.gmra.mxu0 %v6983
    %v8600 = vpop.f32.mrf.mxu0
    %v8601 = vadd.f32 %v6931, %v8600
    %v8602 = vpop.f32.mrf.mxu0
    %v8603 = vadd.f32 %v6936, %v8602
    %8604 = vmatmul.bf16.gmra.mxu0 %v6986
    %v8605 = vpop.f32.mrf.mxu0
    %v8606 = vadd.f32 %v6941, %v8605
    %v8607 = vpop.f32.mrf.mxu0
    %v8608 = vadd.f32 %v6946, %v8607
    %8609 = vmatmul.bf16.gmra.mxu0 %v6989
    %v8610 = vpop.f32.mrf.mxu0
    %v8611 = vadd.f32 %v6951, %v8610
    %v8612 = vpop.f32.mrf.mxu0
    %v8613 = vadd.f32 %v6956, %v8612
    %8614 = vdwg.mxu0
    %8615 = vmatpush.bf16.msra.mxu0 0
    %8616 = vmatpush.bf16.msra.mxu0 0
    %8617 = vmatpush.bf16.msra.mxu0 0
    %8618 = vmatpush.bf16.msra.mxu0 0
    %8619 = vmatpush.bf16.msra.mxu0 %v6894
    %8620 = vmatpush.bf16.msra.mxu0 %v6830
    %8621 = vmatpush.bf16.msra.mxu0 %v6766
    %8622 = vmatpush.bf16.msra.mxu0 %v6702
    %8623 = vmatmul.bf16.gmra.mxu0 %v6980
    %v8624 = vpop.f32.mrf.mxu0
    %v8625 = vadd.f32 %v6921, %v8624
    %v8626 = vpop.f32.mrf.mxu0
    %v8627 = vadd.f32 %v6926, %v8626
    %8628 = vmatmul.bf16.gmra.mxu0 %v6983
    %v8629 = vpop.f32.mrf.mxu0
    %v8630 = vadd.f32 %v6931, %v8629
    %v8631 = vpop.f32.mrf.mxu0
    %v8632 = vadd.f32 %v6936, %v8631
    %8633 = vmatmul.bf16.gmra.mxu0 %v6986
    %v8634 = vpop.f32.mrf.mxu0
    %v8635 = vadd.f32 %v6941, %v8634
    %v8636 = vpop.f32.mrf.mxu0
    %v8637 = vadd.f32 %v6946, %v8636
    %8638 = vmatmul.bf16.gmra.mxu0 %v6989
    %v8639 = vpop.f32.mrf.mxu0
    %v8640 = vadd.f32 %v6951, %v8639
    %v8641 = vpop.f32.mrf.mxu0
    %v8642 = vadd.f32 %v6956, %v8641
    %8643 = vdwg.mxu0
    %8644 = vmatpush.bf16.msra.mxu0 0
    %8645 = vmatpush.bf16.msra.mxu0 0
    %8646 = vmatpush.bf16.msra.mxu0 0
    %8647 = vmatpush.bf16.msra.mxu0 0
    %8648 = vmatpush.bf16.msra.mxu0 %v6895
    %8649 = vmatpush.bf16.msra.mxu0 %v6831
    %8650 = vmatpush.bf16.msra.mxu0 %v6767
    %8651 = vmatpush.bf16.msra.mxu0 %v6703
    %8652 = vmatmul.bf16.gmra.mxu0 %v6980
    %v8653 = vpop.f32.mrf.mxu0
    %v8654 = vadd.f32 %v6921, %v8653
    %v8655 = vpop.f32.mrf.mxu0
    %v8656 = vadd.f32 %v6926, %v8655
    %8657 = vmatmul.bf16.gmra.mxu0 %v6983
    %v8658 = vpop.f32.mrf.mxu0
    %v8659 = vadd.f32 %v6931, %v8658
    %v8660 = vpop.f32.mrf.mxu0
    %v8661 = vadd.f32 %v6936, %v8660
    %8662 = vmatmul.bf16.gmra.mxu0 %v6986
    %v8663 = vpop.f32.mrf.mxu0
    %v8664 = vadd.f32 %v6941, %v8663
    %v8665 = vpop.f32.mrf.mxu0
    %v8666 = vadd.f32 %v6946, %v8665
    %8667 = vmatmul.bf16.gmra.mxu0 %v6989
    %v8668 = vpop.f32.mrf.mxu0
    %v8669 = vadd.f32 %v6951, %v8668
    %v8670 = vpop.f32.mrf.mxu0
    %v8671 = vadd.f32 %v6956, %v8670
    %8672 = vdwg.mxu0
    %8673 = vmatpush.bf16.msra.mxu0 0
    %8674 = vmatpush.bf16.msra.mxu0 0
    %8675 = vmatpush.bf16.msra.mxu0 0
    %8676 = vmatpush.bf16.msra.mxu0 0
    %8677 = vmatpush.bf16.msra.mxu0 %v6896
    %8678 = vmatpush.bf16.msra.mxu0 %v6832
    %8679 = vmatpush.bf16.msra.mxu0 %v6768
    %8680 = vmatpush.bf16.msra.mxu0 %v6704
    %8681 = vmatmul.bf16.gmra.mxu0 %v6980
    %v8682 = vpop.f32.mrf.mxu0
    %v8683 = vadd.f32 %v6921, %v8682
    %v8684 = vpop.f32.mrf.mxu0
    %v8685 = vadd.f32 %v6926, %v8684
    %8686 = vmatmul.bf16.gmra.mxu0 %v6983
    %v8687 = vpop.f32.mrf.mxu0
    %v8688 = vadd.f32 %v6931, %v8687
    %v8689 = vpop.f32.mrf.mxu0
    %v8690 = vadd.f32 %v6936, %v8689
    %8691 = vmatmul.bf16.gmra.mxu0 %v6986
    %v8692 = vpop.f32.mrf.mxu0
    %v8693 = vadd.f32 %v6941, %v8692
    %v8694 = vpop.f32.mrf.mxu0
    %v8695 = vadd.f32 %v6946, %v8694
    %8696 = vmatmul.bf16.gmra.mxu0 %v6989
    %v8697 = vpop.f32.mrf.mxu0
    %v8698 = vadd.f32 %v6951, %v8697
    %v8699 = vpop.f32.mrf.mxu0
    %v8700 = vadd.f32 %v6956, %v8699
    %8701 = vdwg.mxu0
    %8702 = vmatpush.bf16.msra.mxu0 0
    %8703 = vmatpush.bf16.msra.mxu0 0
    %8704 = vmatpush.bf16.msra.mxu0 0
    %8705 = vmatpush.bf16.msra.mxu0 0
    %8706 = vmatpush.bf16.msra.mxu0 %v6897
    %8707 = vmatpush.bf16.msra.mxu0 %v6833
    %8708 = vmatpush.bf16.msra.mxu0 %v6769
    %8709 = vmatpush.bf16.msra.mxu0 %v6705
    %8710 = vmatmul.bf16.gmra.mxu0 %v6980
    %v8711 = vpop.f32.mrf.mxu0
    %v8712 = vadd.f32 %v6921, %v8711
    %v8713 = vpop.f32.mrf.mxu0
    %v8714 = vadd.f32 %v6926, %v8713
    %8715 = vmatmul.bf16.gmra.mxu0 %v6983
    %v8716 = vpop.f32.mrf.mxu0
    %v8717 = vadd.f32 %v6931, %v8716
    %v8718 = vpop.f32.mrf.mxu0
    %v8719 = vadd.f32 %v6936, %v8718
    %8720 = vmatmul.bf16.gmra.mxu0 %v6986
    %v8721 = vpop.f32.mrf.mxu0
    %v8722 = vadd.f32 %v6941, %v8721
    %v8723 = vpop.f32.mrf.mxu0
    %v8724 = vadd.f32 %v6946, %v8723
    %8725 = vmatmul.bf16.gmra.mxu0 %v6989
    %v8726 = vpop.f32.mrf.mxu0
    %v8727 = vadd.f32 %v6951, %v8726
    %v8728 = vpop.f32.mrf.mxu0
    %v8729 = vadd.f32 %v6956, %v8728
    %8730 = vdwg.mxu0
    %8731 = vmatpush.bf16.msra.mxu0 0
    %8732 = vmatpush.bf16.msra.mxu0 0
    %8733 = vmatpush.bf16.msra.mxu0 0
    %8734 = vmatpush.bf16.msra.mxu0 0
    %8735 = vmatpush.bf16.msra.mxu0 %v6898
    %8736 = vmatpush.bf16.msra.mxu0 %v6834
    %8737 = vmatpush.bf16.msra.mxu0 %v6770
    %8738 = vmatpush.bf16.msra.mxu0 %v6706
    %8739 = vmatmul.bf16.gmra.mxu0 %v6980
    %v8740 = vpop.f32.mrf.mxu0
    %v8741 = vadd.f32 %v6921, %v8740
    %v8742 = vpop.f32.mrf.mxu0
    %v8743 = vadd.f32 %v6926, %v8742
    %8744 = vmatmul.bf16.gmra.mxu0 %v6983
    %v8745 = vpop.f32.mrf.mxu0
    %v8746 = vadd.f32 %v6931, %v8745
    %v8747 = vpop.f32.mrf.mxu0
    %v8748 = vadd.f32 %v6936, %v8747
    %8749 = vmatmul.bf16.gmra.mxu0 %v6986
    %v8750 = vpop.f32.mrf.mxu0
    %v8751 = vadd.f32 %v6941, %v8750
    %v8752 = vpop.f32.mrf.mxu0
    %v8753 = vadd.f32 %v6946, %v8752
    %8754 = vmatmul.bf16.gmra.mxu0 %v6989
    %v8755 = vpop.f32.mrf.mxu0
    %v8756 = vadd.f32 %v6951, %v8755
    %v8757 = vpop.f32.mrf.mxu0
    %v8758 = vadd.f32 %v6956, %v8757
    %8759 = vdwg.mxu0
    %8760 = vmatpush.bf16.msra.mxu0 0
    %8761 = vmatpush.bf16.msra.mxu0 0
    %8762 = vmatpush.bf16.msra.mxu0 0
    %8763 = vmatpush.bf16.msra.mxu0 0
    %8764 = vmatpush.bf16.msra.mxu0 %v6899
    %8765 = vmatpush.bf16.msra.mxu0 %v6835
    %8766 = vmatpush.bf16.msra.mxu0 %v6771
    %8767 = vmatpush.bf16.msra.mxu0 %v6707
    %8768 = vmatmul.bf16.gmra.mxu0 %v6980
    %v8769 = vpop.f32.mrf.mxu0
    %v8770 = vadd.f32 %v6921, %v8769
    %v8771 = vpop.f32.mrf.mxu0
    %v8772 = vadd.f32 %v6926, %v8771
    %8773 = vmatmul.bf16.gmra.mxu0 %v6983
    %v8774 = vpop.f32.mrf.mxu0
    %v8775 = vadd.f32 %v6931, %v8774
    %v8776 = vpop.f32.mrf.mxu0
    %v8777 = vadd.f32 %v6936, %v8776
    %8778 = vmatmul.bf16.gmra.mxu0 %v6986
    %v8779 = vpop.f32.mrf.mxu0
    %v8780 = vadd.f32 %v6941, %v8779
    %v8781 = vpop.f32.mrf.mxu0
    %v8782 = vadd.f32 %v6946, %v8781
    %8783 = vmatmul.bf16.gmra.mxu0 %v6989
    %v8784 = vpop.f32.mrf.mxu0
    %v8785 = vadd.f32 %v6951, %v8784
    %v8786 = vpop.f32.mrf.mxu0
    %v8787 = vadd.f32 %v6956, %v8786
    %8788 = vdwg.mxu0
    %8789 = vmatpush.bf16.msra.mxu0 0
    %8790 = vmatpush.bf16.msra.mxu0 0
    %8791 = vmatpush.bf16.msra.mxu0 0
    %8792 = vmatpush.bf16.msra.mxu0 0
    %8793 = vmatpush.bf16.msra.mxu0 %v6900
    %8794 = vmatpush.bf16.msra.mxu0 %v6836
    %8795 = vmatpush.bf16.msra.mxu0 %v6772
    %8796 = vmatpush.bf16.msra.mxu0 %v6708
    %8797 = vmatmul.bf16.gmra.mxu0 %v6980
    %v8798 = vpop.f32.mrf.mxu0
    %v8799 = vadd.f32 %v6921, %v8798
    %v8800 = vpop.f32.mrf.mxu0
    %v8801 = vadd.f32 %v6926, %v8800
    %8802 = vmatmul.bf16.gmra.mxu0 %v6983
    %v8803 = vpop.f32.mrf.mxu0
    %v8804 = vadd.f32 %v6931, %v8803
    %v8805 = vpop.f32.mrf.mxu0
    %v8806 = vadd.f32 %v6936, %v8805
    %8807 = vmatmul.bf16.gmra.mxu0 %v6986
    %v8808 = vpop.f32.mrf.mxu0
    %v8809 = vadd.f32 %v6941, %v8808
    %v8810 = vpop.f32.mrf.mxu0
    %v8811 = vadd.f32 %v6946, %v8810
    %8812 = vmatmul.bf16.gmra.mxu0 %v6989
    %v8813 = vpop.f32.mrf.mxu0
    %v8814 = vadd.f32 %v6951, %v8813
    %v8815 = vpop.f32.mrf.mxu0
    %v8816 = vadd.f32 %v6956, %v8815
    %8817 = vdwg.mxu0
    %8818 = vmatpush.bf16.msra.mxu0 0
    %8819 = vmatpush.bf16.msra.mxu0 0
    %8820 = vmatpush.bf16.msra.mxu0 0
    %8821 = vmatpush.bf16.msra.mxu0 0
    %8822 = vmatpush.bf16.msra.mxu0 %v6901
    %8823 = vmatpush.bf16.msra.mxu0 %v6837
    %8824 = vmatpush.bf16.msra.mxu0 %v6773
    %8825 = vmatpush.bf16.msra.mxu0 %v6709
    %8826 = vmatmul.bf16.gmra.mxu0 %v6980
    %v8827 = vpop.f32.mrf.mxu0
    %v8828 = vadd.f32 %v6921, %v8827
    %v8829 = vpop.f32.mrf.mxu0
    %v8830 = vadd.f32 %v6926, %v8829
    %8831 = vmatmul.bf16.gmra.mxu0 %v6983
    %v8832 = vpop.f32.mrf.mxu0
    %v8833 = vadd.f32 %v6931, %v8832
    %v8834 = vpop.f32.mrf.mxu0
    %v8835 = vadd.f32 %v6936, %v8834
    %8836 = vmatmul.bf16.gmra.mxu0 %v6986
    %v8837 = vpop.f32.mrf.mxu0
    %v8838 = vadd.f32 %v6941, %v8837
    %v8839 = vpop.f32.mrf.mxu0
    %v8840 = vadd.f32 %v6946, %v8839
    %8841 = vmatmul.bf16.gmra.mxu0 %v6989
    %v8842 = vpop.f32.mrf.mxu0
    %v8843 = vadd.f32 %v6951, %v8842
    %v8844 = vpop.f32.mrf.mxu0
    %v8845 = vadd.f32 %v6956, %v8844
    %8846 = vdwg.mxu0
    %v8847 = vmax.f32 %v7001, 0.0
    %v8848 = vmax.f32 %v7030, 0.0
    %v8849 = vmax.f32 %v7059, 0.0
    %v8850 = vmax.f32 %v7088, 0.0
    %v8851 = vmax.f32 %v7117, 0.0
    %v8852 = vmax.f32 %v7146, 0.0
    %v8853 = vmax.f32 %v7175, 0.0
    %v8854 = vmax.f32 %v7204, 0.0
    %v8855 = vmax.f32 %v7233, 0.0
    %v8856 = vmax.f32 %v7262, 0.0
    %v8857 = vmax.f32 %v7291, 0.0
    %v8858 = vmax.f32 %v7320, 0.0
    %v8859 = vmax.f32 %v7349, 0.0
    %v8860 = vmax.f32 %v7378, 0.0
    %v8861 = vmax.f32 %v7407, 0.0
    %v8862 = vmax.f32 %v7436, 0.0
    %v8863 = vmax.f32 %v7465, 0.0
    %v8864 = vmax.f32 %v7494, 0.0
    %v8865 = vmax.f32 %v7523, 0.0
    %v8866 = vmax.f32 %v7552, 0.0
    %v8867 = vmax.f32 %v7581, 0.0
    %v8868 = vmax.f32 %v7610, 0.0
    %v8869 = vmax.f32 %v7639, 0.0
    %v8870 = vmax.f32 %v7668, 0.0
    %v8871 = vmax.f32 %v7697, 0.0
    %v8872 = vmax.f32 %v7726, 0.0
    %v8873 = vmax.f32 %v7755, 0.0
    %v8874 = vmax.f32 %v7784, 0.0
    %v8875 = vmax.f32 %v7813, 0.0
    %v8876 = vmax.f32 %v7842, 0.0
    %v8877 = vmax.f32 %v7871, 0.0
    %v8878 = vmax.f32 %v7900, 0.0
    %v8879 = vmax.f32 %v7929, 0.0
    %v8880 = vmax.f32 %v7958, 0.0
    %v8881 = vmax.f32 %v7987, 0.0
    %v8882 = vmax.f32 %v8016, 0.0
    %v8883 = vmax.f32 %v8045, 0.0
    %v8884 = vmax.f32 %v8074, 0.0
    %v8885 = vmax.f32 %v8103, 0.0
    %v8886 = vmax.f32 %v8132, 0.0
    %v8887 = vmax.f32 %v8161, 0.0
    %v8888 = vmax.f32 %v8190, 0.0
    %v8889 = vmax.f32 %v8219, 0.0
    %v8890 = vmax.f32 %v8248, 0.0
    %v8891 = vmax.f32 %v8277, 0.0
    %v8892 = vmax.f32 %v8306, 0.0
    %v8893 = vmax.f32 %v8335, 0.0
    %v8894 = vmax.f32 %v8364, 0.0
    %v8895 = vmax.f32 %v8393, 0.0
    %v8896 = vmax.f32 %v8422, 0.0
    %v8897 = vmax.f32 %v8451, 0.0
    %v8898 = vmax.f32 %v8480, 0.0
    %v8899 = vmax.f32 %v8509, 0.0
    %v8900 = vmax.f32 %v8538, 0.0
    %v8901 = vmax.f32 %v8567, 0.0
    %v8902 = vmax.f32 %v8596, 0.0
    %v8903 = vmax.f32 %v8625, 0.0
    %v8904 = vmax.f32 %v8654, 0.0
    %v8905 = vmax.f32 %v8683, 0.0
    %v8906 = vmax.f32 %v8712, 0.0
    %v8907 = vmax.f32 %v8741, 0.0
    %v8908 = vmax.f32 %v8770, 0.0
    %v8909 = vmax.f32 %v8799, 0.0
    %v8910 = vmax.f32 %v8828, 0.0
    %v8911 = vmax.f32 %v7003, 0.0
    %v8912 = vmax.f32 %v7032, 0.0
    %v8913 = vmax.f32 %v7061, 0.0
    %v8914 = vmax.f32 %v7090, 0.0
    %v8915 = vmax.f32 %v7119, 0.0
    %v8916 = vmax.f32 %v7148, 0.0
    %v8917 = vmax.f32 %v7177, 0.0
    %v8918 = vmax.f32 %v7206, 0.0
    %v8919 = vmax.f32 %v7235, 0.0
    %v8920 = vmax.f32 %v7264, 0.0
    %v8921 = vmax.f32 %v7293, 0.0
    %v8922 = vmax.f32 %v7322, 0.0
    %v8923 = vmax.f32 %v7351, 0.0
    %v8924 = vmax.f32 %v7380, 0.0
    %v8925 = vmax.f32 %v7409, 0.0
    %v8926 = vmax.f32 %v7438, 0.0
    %v8927 = vmax.f32 %v7467, 0.0
    %v8928 = vmax.f32 %v7496, 0.0
    %v8929 = vmax.f32 %v7525, 0.0
    %v8930 = vmax.f32 %v7554, 0.0
    %v8931 = vmax.f32 %v7583, 0.0
    %v8932 = vmax.f32 %v7612, 0.0
    %v8933 = vmax.f32 %v7641, 0.0
    %v8934 = vmax.f32 %v7670, 0.0
    %v8935 = vmax.f32 %v7699, 0.0
    %v8936 = vmax.f32 %v7728, 0.0
    %v8937 = vmax.f32 %v7757, 0.0
    %v8938 = vmax.f32 %v7786, 0.0
    %v8939 = vmax.f32 %v7815, 0.0
    %v8940 = vmax.f32 %v7844, 0.0
    %v8941 = vmax.f32 %v7873, 0.0
    %v8942 = vmax.f32 %v7902, 0.0
    %v8943 = vmax.f32 %v7931, 0.0
    %v8944 = vmax.f32 %v7960, 0.0
    %v8945 = vmax.f32 %v7989, 0.0
    %v8946 = vmax.f32 %v8018, 0.0
    %v8947 = vmax.f32 %v8047, 0.0
    %v8948 = vmax.f32 %v8076, 0.0
    %v8949 = vmax.f32 %v8105, 0.0
    %v8950 = vmax.f32 %v8134, 0.0
    %v8951 = vmax.f32 %v8163, 0.0
    %v8952 = vmax.f32 %v8192, 0.0
    %v8953 = vmax.f32 %v8221, 0.0
    %v8954 = vmax.f32 %v8250, 0.0
    %v8955 = vmax.f32 %v8279, 0.0
    %v8956 = vmax.f32 %v8308, 0.0
    %v8957 = vmax.f32 %v8337, 0.0
    %v8958 = vmax.f32 %v8366, 0.0
    %v8959 = vmax.f32 %v8395, 0.0
    %v8960 = vmax.f32 %v8424, 0.0
    %v8961 = vmax.f32 %v8453, 0.0
    %v8962 = vmax.f32 %v8482, 0.0
    %v8963 = vmax.f32 %v8511, 0.0
    %v8964 = vmax.f32 %v8540, 0.0
    %v8965 = vmax.f32 %v8569, 0.0
    %v8966 = vmax.f32 %v8598, 0.0
    %v8967 = vmax.f32 %v8627, 0.0
    %v8968 = vmax.f32 %v8656, 0.0
    %v8969 = vmax.f32 %v8685, 0.0
    %v8970 = vmax.f32 %v8714, 0.0
    %v8971 = vmax.f32 %v8743, 0.0
    %v8972 = vmax.f32 %v8772, 0.0
    %v8973 = vmax.f32 %v8801, 0.0
    %v8974 = vmax.f32 %v8830, 0.0
    %v8975 = vmax.f32 %v7006, 0.0
    %v8976 = vmax.f32 %v7035, 0.0
    %v8977 = vmax.f32 %v7064, 0.0
    %v8978 = vmax.f32 %v7093, 0.0
    %v8979 = vmax.f32 %v7122, 0.0
    %v8980 = vmax.f32 %v7151, 0.0
    %v8981 = vmax.f32 %v7180, 0.0
    %v8982 = vmax.f32 %v7209, 0.0
    %v8983 = vmax.f32 %v7238, 0.0
    %v8984 = vmax.f32 %v7267, 0.0
    %v8985 = vmax.f32 %v7296, 0.0
    %v8986 = vmax.f32 %v7325, 0.0
    %v8987 = vmax.f32 %v7354, 0.0
    %v8988 = vmax.f32 %v7383, 0.0
    %v8989 = vmax.f32 %v7412, 0.0
    %v8990 = vmax.f32 %v7441, 0.0
    %v8991 = vmax.f32 %v7470, 0.0
    %v8992 = vmax.f32 %v7499, 0.0
    %v8993 = vmax.f32 %v7528, 0.0
    %v8994 = vmax.f32 %v7557, 0.0
    %v8995 = vmax.f32 %v7586, 0.0
    %v8996 = vmax.f32 %v7615, 0.0
    %v8997 = vmax.f32 %v7644, 0.0
    %v8998 = vmax.f32 %v7673, 0.0
    %v8999 = vmax.f32 %v7702, 0.0
    %v9000 = vmax.f32 %v7731, 0.0
    %v9001 = vmax.f32 %v7760, 0.0
    %v9002 = vmax.f32 %v7789, 0.0
    %v9003 = vmax.f32 %v7818, 0.0
    %v9004 = vmax.f32 %v7847, 0.0
    %v9005 = vmax.f32 %v7876, 0.0
    %v9006 = vmax.f32 %v7905, 0.0
    %v9007 = vmax.f32 %v7934, 0.0
    %v9008 = vmax.f32 %v7963, 0.0
    %v9009 = vmax.f32 %v7992, 0.0
    %v9010 = vmax.f32 %v8021, 0.0
    %v9011 = vmax.f32 %v8050, 0.0
    %v9012 = vmax.f32 %v8079, 0.0
    %v9013 = vmax.f32 %v8108, 0.0
    %v9014 = vmax.f32 %v8137, 0.0
    %v9015 = vmax.f32 %v8166, 0.0
    %v9016 = vmax.f32 %v8195, 0.0
    %v9017 = vmax.f32 %v8224, 0.0
    %v9018 = vmax.f32 %v8253, 0.0
    %v9019 = vmax.f32 %v8282, 0.0
    %v9020 = vmax.f32 %v8311, 0.0
    %v9021 = vmax.f32 %v8340, 0.0
    %v9022 = vmax.f32 %v8369, 0.0
    %v9023 = vmax.f32 %v8398, 0.0
    %v9024 = vmax.f32 %v8427, 0.0
    %v9025 = vmax.f32 %v8456, 0.0
    %v9026 = vmax.f32 %v8485, 0.0
    %v9027 = vmax.f32 %v8514, 0.0
    %v9028 = vmax.f32 %v8543, 0.0
    %v9029 = vmax.f32 %v8572, 0.0
    %v9030 = vmax.f32 %v8601, 0.0
    %v9031 = vmax.f32 %v8630, 0.0
    %v9032 = vmax.f32 %v8659, 0.0
    %v9033 = vmax.f32 %v8688, 0.0
    %v9034 = vmax.f32 %v8717, 0.0
    %v9035 = vmax.f32 %v8746, 0.0
    %v9036 = vmax.f32 %v8775, 0.0
    %v9037 = vmax.f32 %v8804, 0.0
    %v9038 = vmax.f32 %v8833, 0.0
    %v9039 = vmax.f32 %v7008, 0.0
    %v9040 = vmax.f32 %v7037, 0.0
    %v9041 = vmax.f32 %v7066, 0.0
    %v9042 = vmax.f32 %v7095, 0.0
    %v9043 = vmax.f32 %v7124, 0.0
    %v9044 = vmax.f32 %v7153, 0.0
    %v9045 = vmax.f32 %v7182, 0.0
    %v9046 = vmax.f32 %v7211, 0.0
    %v9047 = vmax.f32 %v7240, 0.0
    %v9048 = vmax.f32 %v7269, 0.0
    %v9049 = vmax.f32 %v7298, 0.0
    %v9050 = vmax.f32 %v7327, 0.0
    %v9051 = vmax.f32 %v7356, 0.0
    %v9052 = vmax.f32 %v7385, 0.0
    %v9053 = vmax.f32 %v7414, 0.0
    %v9054 = vmax.f32 %v7443, 0.0
    %v9055 = vmax.f32 %v7472, 0.0
    %v9056 = vmax.f32 %v7501, 0.0
    %v9057 = vmax.f32 %v7530, 0.0
    %v9058 = vmax.f32 %v7559, 0.0
    %v9059 = vmax.f32 %v7588, 0.0
    %v9060 = vmax.f32 %v7617, 0.0
    %v9061 = vmax.f32 %v7646, 0.0
    %v9062 = vmax.f32 %v7675, 0.0
    %v9063 = vmax.f32 %v7704, 0.0
    %v9064 = vmax.f32 %v7733, 0.0
    %v9065 = vmax.f32 %v7762, 0.0
    %v9066 = vmax.f32 %v7791, 0.0
    %v9067 = vmax.f32 %v7820, 0.0
    %v9068 = vmax.f32 %v7849, 0.0
    %v9069 = vmax.f32 %v7878, 0.0
    %v9070 = vmax.f32 %v7907, 0.0
    %v9071 = vmax.f32 %v7936, 0.0
    %v9072 = vmax.f32 %v7965, 0.0
    %v9073 = vmax.f32 %v7994, 0.0
    %v9074 = vmax.f32 %v8023, 0.0
    %v9075 = vmax.f32 %v8052, 0.0
    %v9076 = vmax.f32 %v8081, 0.0
    %v9077 = vmax.f32 %v8110, 0.0
    %v9078 = vmax.f32 %v8139, 0.0
    %v9079 = vmax.f32 %v8168, 0.0
    %v9080 = vmax.f32 %v8197, 0.0
    %v9081 = vmax.f32 %v8226, 0.0
    %v9082 = vmax.f32 %v8255, 0.0
    %v9083 = vmax.f32 %v8284, 0.0
    %v9084 = vmax.f32 %v8313, 0.0
    %v9085 = vmax.f32 %v8342, 0.0
    %v9086 = vmax.f32 %v8371, 0.0
    %v9087 = vmax.f32 %v8400, 0.0
    %v9088 = vmax.f32 %v8429, 0.0
    %v9089 = vmax.f32 %v8458, 0.0
    %v9090 = vmax.f32 %v8487, 0.0
    %v9091 = vmax.f32 %v8516, 0.0
    %v9092 = vmax.f32 %v8545, 0.0
    %v9093 = vmax.f32 %v8574, 0.0
    %v9094 = vmax.f32 %v8603, 0.0
    %v9095 = vmax.f32 %v8632, 0.0
    %v9096 = vmax.f32 %v8661, 0.0
    %v9097 = vmax.f32 %v8690, 0.0
    %v9098 = vmax.f32 %v8719, 0.0
    %v9099 = vmax.f32 %v8748, 0.0
    %v9100 = vmax.f32 %v8777, 0.0
    %v9101 = vmax.f32 %v8806, 0.0
    %v9102 = vmax.f32 %v8835, 0.0
    %v9103 = vmax.f32 %v7011, 0.0
    %v9104 = vmax.f32 %v7040, 0.0
    %v9105 = vmax.f32 %v7069, 0.0
    %v9106 = vmax.f32 %v7098, 0.0
    %v9107 = vmax.f32 %v7127, 0.0
    %v9108 = vmax.f32 %v7156, 0.0
    %v9109 = vmax.f32 %v7185, 0.0
    %v9110 = vmax.f32 %v7214, 0.0
    %v9111 = vmax.f32 %v7243, 0.0
    %v9112 = vmax.f32 %v7272, 0.0
    %v9113 = vmax.f32 %v7301, 0.0
    %v9114 = vmax.f32 %v7330, 0.0
    %v9115 = vmax.f32 %v7359, 0.0
    %v9116 = vmax.f32 %v7388, 0.0
    %v9117 = vmax.f32 %v7417, 0.0
    %v9118 = vmax.f32 %v7446, 0.0
    %v9119 = vmax.f32 %v7475, 0.0
    %v9120 = vmax.f32 %v7504, 0.0
    %v9121 = vmax.f32 %v7533, 0.0
    %v9122 = vmax.f32 %v7562, 0.0
    %v9123 = vmax.f32 %v7591, 0.0
    %v9124 = vmax.f32 %v7620, 0.0
    %v9125 = vmax.f32 %v7649, 0.0
    %v9126 = vmax.f32 %v7678, 0.0
    %v9127 = vmax.f32 %v7707, 0.0
    %v9128 = vmax.f32 %v7736, 0.0
    %v9129 = vmax.f32 %v7765, 0.0
    %v9130 = vmax.f32 %v7794, 0.0
    %v9131 = vmax.f32 %v7823, 0.0
    %v9132 = vmax.f32 %v7852, 0.0
    %v9133 = vmax.f32 %v7881, 0.0
    %v9134 = vmax.f32 %v7910, 0.0
    %v9135 = vmax.f32 %v7939, 0.0
    %v9136 = vmax.f32 %v7968, 0.0
    %v9137 = vmax.f32 %v7997, 0.0
    %v9138 = vmax.f32 %v8026, 0.0
    %v9139 = vmax.f32 %v8055, 0.0
    %v9140 = vmax.f32 %v8084, 0.0
    %v9141 = vmax.f32 %v8113, 0.0
    %v9142 = vmax.f32 %v8142, 0.0
    %v9143 = vmax.f32 %v8171, 0.0
    %v9144 = vmax.f32 %v8200, 0.0
    %v9145 = vmax.f32 %v8229, 0.0
    %v9146 = vmax.f32 %v8258, 0.0
    %v9147 = vmax.f32 %v8287, 0.0
    %v9148 = vmax.f32 %v8316, 0.0
    %v9149 = vmax.f32 %v8345, 0.0
    %v9150 = vmax.f32 %v8374, 0.0
    %v9151 = vmax.f32 %v8403, 0.0
    %v9152 = vmax.f32 %v8432, 0.0
    %v9153 = vmax.f32 %v8461, 0.0
    %v9154 = vmax.f32 %v8490, 0.0
    %v9155 = vmax.f32 %v8519, 0.0
    %v9156 = vmax.f32 %v8548, 0.0
    %v9157 = vmax.f32 %v8577, 0.0
    %v9158 = vmax.f32 %v8606, 0.0
    %v9159 = vmax.f32 %v8635, 0.0
    %v9160 = vmax.f32 %v8664, 0.0
    %v9161 = vmax.f32 %v8693, 0.0
    %v9162 = vmax.f32 %v8722, 0.0
    %v9163 = vmax.f32 %v8751, 0.0
    %v9164 = vmax.f32 %v8780, 0.0
    %v9165 = vmax.f32 %v8809, 0.0
    %v9166 = vmax.f32 %v8838, 0.0
    %v9167 = vmax.f32 %v7013, 0.0
    %v9168 = vmax.f32 %v7042, 0.0
    %v9169 = vmax.f32 %v7071, 0.0
    %v9170 = vmax.f32 %v7100, 0.0
    %v9171 = vmax.f32 %v7129, 0.0
    %v9172 = vmax.f32 %v7158, 0.0
    %v9173 = vmax.f32 %v7187, 0.0
    %v9174 = vmax.f32 %v7216, 0.0
    %v9175 = vmax.f32 %v7245, 0.0
    %v9176 = vmax.f32 %v7274, 0.0
    %v9177 = vmax.f32 %v7303, 0.0
    %v9178 = vmax.f32 %v7332, 0.0
    %v9179 = vmax.f32 %v7361, 0.0
    %v9180 = vmax.f32 %v7390, 0.0
    %v9181 = vmax.f32 %v7419, 0.0
    %v9182 = vmax.f32 %v7448, 0.0
    %v9183 = vmax.f32 %v7477, 0.0
    %v9184 = vmax.f32 %v7506, 0.0
    %v9185 = vmax.f32 %v7535, 0.0
    %v9186 = vmax.f32 %v7564, 0.0
    %v9187 = vmax.f32 %v7593, 0.0
    %v9188 = vmax.f32 %v7622, 0.0
    %v9189 = vmax.f32 %v7651, 0.0
    %v9190 = vmax.f32 %v7680, 0.0
    %v9191 = vmax.f32 %v7709, 0.0
    %v9192 = vmax.f32 %v7738, 0.0
    %v9193 = vmax.f32 %v7767, 0.0
    %v9194 = vmax.f32 %v7796, 0.0
    %v9195 = vmax.f32 %v7825, 0.0
    %v9196 = vmax.f32 %v7854, 0.0
    %v9197 = vmax.f32 %v7883, 0.0
    %v9198 = vmax.f32 %v7912, 0.0
    %v9199 = vmax.f32 %v7941, 0.0
    %v9200 = vmax.f32 %v7970, 0.0
    %v9201 = vmax.f32 %v7999, 0.0
    %v9202 = vmax.f32 %v8028, 0.0
    %v9203 = vmax.f32 %v8057, 0.0
    %v9204 = vmax.f32 %v8086, 0.0
    %v9205 = vmax.f32 %v8115, 0.0
    %v9206 = vmax.f32 %v8144, 0.0
    %v9207 = vmax.f32 %v8173, 0.0
    %v9208 = vmax.f32 %v8202, 0.0
    %v9209 = vmax.f32 %v8231, 0.0
    %v9210 = vmax.f32 %v8260, 0.0
    %v9211 = vmax.f32 %v8289, 0.0
    %v9212 = vmax.f32 %v8318, 0.0
    %v9213 = vmax.f32 %v8347, 0.0
    %v9214 = vmax.f32 %v8376, 0.0
    %v9215 = vmax.f32 %v8405, 0.0
    %v9216 = vmax.f32 %v8434, 0.0
    %v9217 = vmax.f32 %v8463, 0.0
    %v9218 = vmax.f32 %v8492, 0.0
    %v9219 = vmax.f32 %v8521, 0.0
    %v9220 = vmax.f32 %v8550, 0.0
    %v9221 = vmax.f32 %v8579, 0.0
    %v9222 = vmax.f32 %v8608, 0.0
    %v9223 = vmax.f32 %v8637, 0.0
    %v9224 = vmax.f32 %v8666, 0.0
    %v9225 = vmax.f32 %v8695, 0.0
    %v9226 = vmax.f32 %v8724, 0.0
    %v9227 = vmax.f32 %v8753, 0.0
    %v9228 = vmax.f32 %v8782, 0.0
    %v9229 = vmax.f32 %v8811, 0.0
    %v9230 = vmax.f32 %v8840, 0.0
    %v9231 = vmax.f32 %v7016, 0.0
    %v9232 = vmax.f32 %v7045, 0.0
    %v9233 = vmax.f32 %v7074, 0.0
    %v9234 = vmax.f32 %v7103, 0.0
    %v9235 = vmax.f32 %v7132, 0.0
    %v9236 = vmax.f32 %v7161, 0.0
    %v9237 = vmax.f32 %v7190, 0.0
    %v9238 = vmax.f32 %v7219, 0.0
    %v9239 = vmax.f32 %v7248, 0.0
    %v9240 = vmax.f32 %v7277, 0.0
    %v9241 = vmax.f32 %v7306, 0.0
    %v9242 = vmax.f32 %v7335, 0.0
    %v9243 = vmax.f32 %v7364, 0.0
    %v9244 = vmax.f32 %v7393, 0.0
    %v9245 = vmax.f32 %v7422, 0.0
    %v9246 = vmax.f32 %v7451, 0.0
    %v9247 = vmax.f32 %v7480, 0.0
    %v9248 = vmax.f32 %v7509, 0.0
    %v9249 = vmax.f32 %v7538, 0.0
    %v9250 = vmax.f32 %v7567, 0.0
    %v9251 = vmax.f32 %v7596, 0.0
    %v9252 = vmax.f32 %v7625, 0.0
    %v9253 = vmax.f32 %v7654, 0.0
    %v9254 = vmax.f32 %v7683, 0.0
    %v9255 = vmax.f32 %v7712, 0.0
    %v9256 = vmax.f32 %v7741, 0.0
    %v9257 = vmax.f32 %v7770, 0.0
    %v9258 = vmax.f32 %v7799, 0.0
    %v9259 = vmax.f32 %v7828, 0.0
    %v9260 = vmax.f32 %v7857, 0.0
    %v9261 = vmax.f32 %v7886, 0.0
    %v9262 = vmax.f32 %v7915, 0.0
    %v9263 = vmax.f32 %v7944, 0.0
    %v9264 = vmax.f32 %v7973, 0.0
    %v9265 = vmax.f32 %v8002, 0.0
    %v9266 = vmax.f32 %v8031, 0.0
    %v9267 = vmax.f32 %v8060, 0.0
    %v9268 = vmax.f32 %v8089, 0.0
    %v9269 = vmax.f32 %v8118, 0.0
    %v9270 = vmax.f32 %v8147, 0.0
    %v9271 = vmax.f32 %v8176, 0.0
    %v9272 = vmax.f32 %v8205, 0.0
    %v9273 = vmax.f32 %v8234, 0.0
    %v9274 = vmax.f32 %v8263, 0.0
    %v9275 = vmax.f32 %v8292, 0.0
    %v9276 = vmax.f32 %v8321, 0.0
    %v9277 = vmax.f32 %v8350, 0.0
    %v9278 = vmax.f32 %v8379, 0.0
    %v9279 = vmax.f32 %v8408, 0.0
    %v9280 = vmax.f32 %v8437, 0.0
    %v9281 = vmax.f32 %v8466, 0.0
    %v9282 = vmax.f32 %v8495, 0.0
    %v9283 = vmax.f32 %v8524, 0.0
    %v9284 = vmax.f32 %v8553, 0.0
    %v9285 = vmax.f32 %v8582, 0.0
    %v9286 = vmax.f32 %v8611, 0.0
    %v9287 = vmax.f32 %v8640, 0.0
    %v9288 = vmax.f32 %v8669, 0.0
    %v9289 = vmax.f32 %v8698, 0.0
    %v9290 = vmax.f32 %v8727, 0.0
    %v9291 = vmax.f32 %v8756, 0.0
    %v9292 = vmax.f32 %v8785, 0.0
    %v9293 = vmax.f32 %v8814, 0.0
    %v9294 = vmax.f32 %v8843, 0.0
    %v9295 = vmax.f32 %v7018, 0.0
    %v9296 = vmax.f32 %v7047, 0.0
    %v9297 = vmax.f32 %v7076, 0.0
    %v9298 = vmax.f32 %v7105, 0.0
    %v9299 = vmax.f32 %v7134, 0.0
    %v9300 = vmax.f32 %v7163, 0.0
    %v9301 = vmax.f32 %v7192, 0.0
    %v9302 = vmax.f32 %v7221, 0.0
    %v9303 = vmax.f32 %v7250, 0.0
    %v9304 = vmax.f32 %v7279, 0.0
    %v9305 = vmax.f32 %v7308, 0.0
    %v9306 = vmax.f32 %v7337, 0.0
    %v9307 = vmax.f32 %v7366, 0.0
    %v9308 = vmax.f32 %v7395, 0.0
    %v9309 = vmax.f32 %v7424, 0.0
    %v9310 = vmax.f32 %v7453, 0.0
    %v9311 = vmax.f32 %v7482, 0.0
    %v9312 = vmax.f32 %v7511, 0.0
    %v9313 = vmax.f32 %v7540, 0.0
    %v9314 = vmax.f32 %v7569, 0.0
    %v9315 = vmax.f32 %v7598, 0.0
    %v9316 = vmax.f32 %v7627, 0.0
    %v9317 = vmax.f32 %v7656, 0.0
    %v9318 = vmax.f32 %v7685, 0.0
    %v9319 = vmax.f32 %v7714, 0.0
    %v9320 = vmax.f32 %v7743, 0.0
    %v9321 = vmax.f32 %v7772, 0.0
    %v9322 = vmax.f32 %v7801, 0.0
    %v9323 = vmax.f32 %v7830, 0.0
    %v9324 = vmax.f32 %v7859, 0.0
    %v9325 = vmax.f32 %v7888, 0.0
    %v9326 = vmax.f32 %v7917, 0.0
    %v9327 = vmax.f32 %v7946, 0.0
    %v9328 = vmax.f32 %v7975, 0.0
    %v9329 = vmax.f32 %v8004, 0.0
    %v9330 = vmax.f32 %v8033, 0.0
    %v9331 = vmax.f32 %v8062, 0.0
    %v9332 = vmax.f32 %v8091, 0.0
    %v9333 = vmax.f32 %v8120, 0.0
    %v9334 = vmax.f32 %v8149, 0.0
    %v9335 = vmax.f32 %v8178, 0.0
    %v9336 = vmax.f32 %v8207, 0.0
    %v9337 = vmax.f32 %v8236, 0.0
    %v9338 = vmax.f32 %v8265, 0.0
    %v9339 = vmax.f32 %v8294, 0.0
    %v9340 = vmax.f32 %v8323, 0.0
    %v9341 = vmax.f32 %v8352, 0.0
    %v9342 = vmax.f32 %v8381, 0.0
    %v9343 = vmax.f32 %v8410, 0.0
    %v9344 = vmax.f32 %v8439, 0.0
    %v9345 = vmax.f32 %v8468, 0.0
    %v9346 = vmax.f32 %v8497, 0.0
    %v9347 = vmax.f32 %v8526, 0.0
    %v9348 = vmax.f32 %v8555, 0.0
    %v9349 = vmax.f32 %v8584, 0.0
    %v9350 = vmax.f32 %v8613, 0.0
    %v9351 = vmax.f32 %v8642, 0.0
    %v9352 = vmax.f32 %v8671, 0.0
    %v9353 = vmax.f32 %v8700, 0.0
    %v9354 = vmax.f32 %v8729, 0.0
    %v9355 = vmax.f32 %v8758, 0.0
    %v9356 = vmax.f32 %v8787, 0.0
    %v9357 = vmax.f32 %v8816, 0.0
    %v9358 = vmax.f32 %v8845, 0.0
    %v9359 = vld [vmem:[%s5] sm:$0xff]
    %v9360 = vld [vmem:[%s5 + $0x8] sm:$0xff]
    %v9361 = vld [vmem:[%s5 + $0x10] sm:$0xff]
    %v9362 = vld [vmem:[%s5 + $0x18] sm:$0xff]
    %v9363 = vld [vmem:[%s5 + $0x20] sm:$0xff]
    %v9364 = vld [vmem:[%s5 + $0x28] sm:$0xff]
    %v9365 = vld [vmem:[%s5 + $0x30] sm:$0xff]
    %v9366 = vld [vmem:[%s5 + $0x38] sm:$0xff]
    %9368 = vset.pattern.permute.xlu0 0
    %9369 = vperm.xlu0 %9368, %v9359
    %v9370 = vpop.permute.xlu0 %9369
    %9373 = vset.pattern.permute.xlu0 0
    %9374 = vperm.xlu0 %9373, %v9360
    %v9375 = vpop.permute.xlu0 %9374
    %9378 = vset.pattern.permute.xlu0 0
    %9379 = vperm.xlu0 %9378, %v9361
    %v9380 = vpop.permute.xlu0 %9379
    %9383 = vset.pattern.permute.xlu0 0
    %9384 = vperm.xlu0 %9383, %v9362
    %v9385 = vpop.permute.xlu0 %9384
    %9388 = vset.pattern.permute.xlu0 0
    %9389 = vperm.xlu0 %9388, %v9363
    %v9390 = vpop.permute.xlu0 %9389
    %9393 = vset.pattern.permute.xlu0 0
    %9394 = vperm.xlu0 %9393, %v9364
    %v9395 = vpop.permute.xlu0 %9394
    %9398 = vset.pattern.permute.xlu0 0
    %9399 = vperm.xlu0 %9398, %v9365
    %v9400 = vpop.permute.xlu0 %9399
    %9403 = vset.pattern.permute.xlu0 0
    %9404 = vperm.xlu0 %9403, %v9366
    %v9405 = vpop.permute.xlu0 %9404
    %v9407 = vmul.f32 %v9370, %v8847
    %v9408 = vmul.f32 %v9370, %v8848
    %v9409 = vmul.f32 %v9370, %v8849
    %v9410 = vmul.f32 %v9370, %v8850
    %v9411 = vmul.f32 %v9370, %v8851
    %v9412 = vmul.f32 %v9370, %v8852
    %v9413 = vmul.f32 %v9370, %v8853
    %v9414 = vmul.f32 %v9370, %v8854
    %v9415 = vmul.f32 %v9370, %v8855
    %v9416 = vmul.f32 %v9370, %v8856
    %v9417 = vmul.f32 %v9370, %v8857
    %v9418 = vmul.f32 %v9370, %v8858
    %v9419 = vmul.f32 %v9370, %v8859
    %v9420 = vmul.f32 %v9370, %v8860
    %v9421 = vmul.f32 %v9370, %v8861
    %v9422 = vmul.f32 %v9370, %v8862
    %v9423 = vmul.f32 %v9370, %v8863
    %v9424 = vmul.f32 %v9370, %v8864
    %v9425 = vmul.f32 %v9370, %v8865
    %v9426 = vmul.f32 %v9370, %v8866
    %v9427 = vmul.f32 %v9370, %v8867
    %v9428 = vmul.f32 %v9370, %v8868
    %v9429 = vmul.f32 %v9370, %v8869
    %v9430 = vmul.f32 %v9370, %v8870
    %v9431 = vmul.f32 %v9370, %v8871
    %v9432 = vmul.f32 %v9370, %v8872
    %v9433 = vmul.f32 %v9370, %v8873
    %v9434 = vmul.f32 %v9370, %v8874
    %v9435 = vmul.f32 %v9370, %v8875
    %v9436 = vmul.f32 %v9370, %v8876
    %v9437 = vmul.f32 %v9370, %v8877
    %v9438 = vmul.f32 %v9370, %v8878
    %v9439 = vmul.f32 %v9370, %v8879
    %v9440 = vmul.f32 %v9370, %v8880
    %v9441 = vmul.f32 %v9370, %v8881
    %v9442 = vmul.f32 %v9370, %v8882
    %v9443 = vmul.f32 %v9370, %v8883
    %v9444 = vmul.f32 %v9370, %v8884
    %v9445 = vmul.f32 %v9370, %v8885
    %v9446 = vmul.f32 %v9370, %v8886
    %v9447 = vmul.f32 %v9370, %v8887
    %v9448 = vmul.f32 %v9370, %v8888
    %v9449 = vmul.f32 %v9370, %v8889
    %v9450 = vmul.f32 %v9370, %v8890
    %v9451 = vmul.f32 %v9370, %v8891
    %v9452 = vmul.f32 %v9370, %v8892
    %v9453 = vmul.f32 %v9370, %v8893
    %v9454 = vmul.f32 %v9370, %v8894
    %v9455 = vmul.f32 %v9370, %v8895
    %v9456 = vmul.f32 %v9370, %v8896
    %v9457 = vmul.f32 %v9370, %v8897
    %v9458 = vmul.f32 %v9370, %v8898
    %v9459 = vmul.f32 %v9370, %v8899
    %v9460 = vmul.f32 %v9370, %v8900
    %v9461 = vmul.f32 %v9370, %v8901
    %v9462 = vmul.f32 %v9370, %v8902
    %v9463 = vmul.f32 %v9370, %v8903
    %v9464 = vmul.f32 %v9370, %v8904
    %v9465 = vmul.f32 %v9370, %v8905
    %v9466 = vmul.f32 %v9370, %v8906
    %v9467 = vmul.f32 %v9370, %v8907
    %v9468 = vmul.f32 %v9370, %v8908
    %v9469 = vmul.f32 %v9370, %v8909
    %v9470 = vmul.f32 %v9370, %v8910
    %v9471 = vmul.f32 %v9375, %v8911
    %v9472 = vmul.f32 %v9375, %v8912
    %v9473 = vmul.f32 %v9375, %v8913
    %v9474 = vmul.f32 %v9375, %v8914
    %v9475 = vmul.f32 %v9375, %v8915
    %v9476 = vmul.f32 %v9375, %v8916
    %v9477 = vmul.f32 %v9375, %v8917
    %v9478 = vmul.f32 %v9375, %v8918
    %v9479 = vmul.f32 %v9375, %v8919
    %v9480 = vmul.f32 %v9375, %v8920
    %v9481 = vmul.f32 %v9375, %v8921
    %v9482 = vmul.f32 %v9375, %v8922
    %v9483 = vmul.f32 %v9375, %v8923
    %v9484 = vmul.f32 %v9375, %v8924
    %v9485 = vmul.f32 %v9375, %v8925
    %v9486 = vmul.f32 %v9375, %v8926
    %v9487 = vmul.f32 %v9375, %v8927
    %v9488 = vmul.f32 %v9375, %v8928
    %v9489 = vmul.f32 %v9375, %v8929
    %v9490 = vmul.f32 %v9375, %v8930
    %v9491 = vmul.f32 %v9375, %v8931
    %v9492 = vmul.f32 %v9375, %v8932
    %v9493 = vmul.f32 %v9375, %v8933
    %v9494 = vmul.f32 %v9375, %v8934
    %v9495 = vmul.f32 %v9375, %v8935
    %v9496 = vmul.f32 %v9375, %v8936
    %v9497 = vmul.f32 %v9375, %v8937
    %v9498 = vmul.f32 %v9375, %v8938
    %v9499 = vmul.f32 %v9375, %v8939
    %v9500 = vmul.f32 %v9375, %v8940
    %v9501 = vmul.f32 %v9375, %v8941
    %v9502 = vmul.f32 %v9375, %v8942
    %v9503 = vmul.f32 %v9375, %v8943
    %v9504 = vmul.f32 %v9375, %v8944
    %v9505 = vmul.f32 %v9375, %v8945
    %v9506 = vmul.f32 %v9375, %v8946
    %v9507 = vmul.f32 %v9375, %v8947
    %v9508 = vmul.f32 %v9375, %v8948
    %v9509 = vmul.f32 %v9375, %v8949
    %v9510 = vmul.f32 %v9375, %v8950
    %v9511 = vmul.f32 %v9375, %v8951
    %v9512 = vmul.f32 %v9375, %v8952
    %v9513 = vmul.f32 %v9375, %v8953
    %v9514 = vmul.f32 %v9375, %v8954
    %v9515 = vmul.f32 %v9375, %v8955
    %v9516 = vmul.f32 %v9375, %v8956
    %v9517 = vmul.f32 %v9375, %v8957
    %v9518 = vmul.f32 %v9375, %v8958
    %v9519 = vmul.f32 %v9375, %v8959
    %v9520 = vmul.f32 %v9375, %v8960
    %v9521 = vmul.f32 %v9375, %v8961
    %v9522 = vmul.f32 %v9375, %v8962
    %v9523 = vmul.f32 %v9375, %v8963
    %v9524 = vmul.f32 %v9375, %v8964
    %v9525 = vmul.f32 %v9375, %v8965
    %v9526 = vmul.f32 %v9375, %v8966
    %v9527 = vmul.f32 %v9375, %v8967
    %v9528 = vmul.f32 %v9375, %v8968
    %v9529 = vmul.f32 %v9375, %v8969
    %v9530 = vmul.f32 %v9375, %v8970
    %v9531 = vmul.f32 %v9375, %v8971
    %v9532 = vmul.f32 %v9375, %v8972
    %v9533 = vmul.f32 %v9375, %v8973
    %v9534 = vmul.f32 %v9375, %v8974
    %v9535 = vmul.f32 %v9380, %v8975
    %v9536 = vmul.f32 %v9380, %v8976
    %v9537 = vmul.f32 %v9380, %v8977
    %v9538 = vmul.f32 %v9380, %v8978
    %v9539 = vmul.f32 %v9380, %v8979
    %v9540 = vmul.f32 %v9380, %v8980
    %v9541 = vmul.f32 %v9380, %v8981
    %v9542 = vmul.f32 %v9380, %v8982
    %v9543 = vmul.f32 %v9380, %v8983
    %v9544 = vmul.f32 %v9380, %v8984
    %v9545 = vmul.f32 %v9380, %v8985
    %v9546 = vmul.f32 %v9380, %v8986
    %v9547 = vmul.f32 %v9380, %v8987
    %v9548 = vmul.f32 %v9380, %v8988
    %v9549 = vmul.f32 %v9380, %v8989
    %v9550 = vmul.f32 %v9380, %v8990
    %v9551 = vmul.f32 %v9380, %v8991
    %v9552 = vmul.f32 %v9380, %v8992
    %v9553 = vmul.f32 %v9380, %v8993
    %v9554 = vmul.f32 %v9380, %v8994
    %v9555 = vmul.f32 %v9380, %v8995
    %v9556 = vmul.f32 %v9380, %v8996
    %v9557 = vmul.f32 %v9380, %v8997
    %v9558 = vmul.f32 %v9380, %v8998
    %v9559 = vmul.f32 %v9380, %v8999
    %v9560 = vmul.f32 %v9380, %v9000
    %v9561 = vmul.f32 %v9380, %v9001
    %v9562 = vmul.f32 %v9380, %v9002
    %v9563 = vmul.f32 %v9380, %v9003
    %v9564 = vmul.f32 %v9380, %v9004
    %v9565 = vmul.f32 %v9380, %v9005
    %v9566 = vmul.f32 %v9380, %v9006
    %v9567 = vmul.f32 %v9380, %v9007
    %v9568 = vmul.f32 %v9380, %v9008
    %v9569 = vmul.f32 %v9380, %v9009
    %v9570 = vmul.f32 %v9380, %v9010
    %v9571 = vmul.f32 %v9380, %v9011
    %v9572 = vmul.f32 %v9380, %v9012
    %v9573 = vmul.f32 %v9380, %v9013
    %v9574 = vmul.f32 %v9380, %v9014
    %v9575 = vmul.f32 %v9380, %v9015
    %v9576 = vmul.f32 %v9380, %v9016
    %v9577 = vmul.f32 %v9380, %v9017
    %v9578 = vmul.f32 %v9380, %v9018
    %v9579 = vmul.f32 %v9380, %v9019
    %v9580 = vmul.f32 %v9380, %v9020
    %v9581 = vmul.f32 %v9380, %v9021
    %v9582 = vmul.f32 %v9380, %v9022
    %v9583 = vmul.f32 %v9380, %v9023
    %v9584 = vmul.f32 %v9380, %v9024
    %v9585 = vmul.f32 %v9380, %v9025
    %v9586 = vmul.f32 %v9380, %v9026
    %v9587 = vmul.f32 %v9380, %v9027
    %v9588 = vmul.f32 %v9380, %v9028
    %v9589 = vmul.f32 %v9380, %v9029
    %v9590 = vmul.f32 %v9380, %v9030
    %v9591 = vmul.f32 %v9380, %v9031
    %v9592 = vmul.f32 %v9380, %v9032
    %v9593 = vmul.f32 %v9380, %v9033
    %v9594 = vmul.f32 %v9380, %v9034
    %v9595 = vmul.f32 %v9380, %v9035
    %v9596 = vmul.f32 %v9380, %v9036
    %v9597 = vmul.f32 %v9380, %v9037
    %v9598 = vmul.f32 %v9380, %v9038
    %v9599 = vmul.f32 %v9385, %v9039
    %v9600 = vmul.f32 %v9385, %v9040
    %v9601 = vmul.f32 %v9385, %v9041
    %v9602 = vmul.f32 %v9385, %v9042
    %v9603 = vmul.f32 %v9385, %v9043
    %v9604 = vmul.f32 %v9385, %v9044
    %v9605 = vmul.f32 %v9385, %v9045
    %v9606 = vmul.f32 %v9385, %v9046
    %v9607 = vmul.f32 %v9385, %v9047
    %v9608 = vmul.f32 %v9385, %v9048
    %v9609 = vmul.f32 %v9385, %v9049
    %v9610 = vmul.f32 %v9385, %v9050
    %v9611 = vmul.f32 %v9385, %v9051
    %v9612 = vmul.f32 %v9385, %v9052
    %v9613 = vmul.f32 %v9385, %v9053
    %v9614 = vmul.f32 %v9385, %v9054
    %v9615 = vmul.f32 %v9385, %v9055
    %v9616 = vmul.f32 %v9385, %v9056
    %v9617 = vmul.f32 %v9385, %v9057
    %v9618 = vmul.f32 %v9385, %v9058
    %v9619 = vmul.f32 %v9385, %v9059
    %v9620 = vmul.f32 %v9385, %v9060
    %v9621 = vmul.f32 %v9385, %v9061
    %v9622 = vmul.f32 %v9385, %v9062
    %v9623 = vmul.f32 %v9385, %v9063
    %v9624 = vmul.f32 %v9385, %v9064
    %v9625 = vmul.f32 %v9385, %v9065
    %v9626 = vmul.f32 %v9385, %v9066
    %v9627 = vmul.f32 %v9385, %v9067
    %v9628 = vmul.f32 %v9385, %v9068
    %v9629 = vmul.f32 %v9385, %v9069
    %v9630 = vmul.f32 %v9385, %v9070
    %v9631 = vmul.f32 %v9385, %v9071
    %v9632 = vmul.f32 %v9385, %v9072
    %v9633 = vmul.f32 %v9385, %v9073
    %v9634 = vmul.f32 %v9385, %v9074
    %v9635 = vmul.f32 %v9385, %v9075
    %v9636 = vmul.f32 %v9385, %v9076
    %v9637 = vmul.f32 %v9385, %v9077
    %v9638 = vmul.f32 %v9385, %v9078
    %v9639 = vmul.f32 %v9385, %v9079
    %v9640 = vmul.f32 %v9385, %v9080
    %v9641 = vmul.f32 %v9385, %v9081
    %v9642 = vmul.f32 %v9385, %v9082
    %v9643 = vmul.f32 %v9385, %v9083
    %v9644 = vmul.f32 %v9385, %v9084
    %v9645 = vmul.f32 %v9385, %v9085
    %v9646 = vmul.f32 %v9385, %v9086
    %v9647 = vmul.f32 %v9385, %v9087
    %v9648 = vmul.f32 %v9385, %v9088
    %v9649 = vmul.f32 %v9385, %v9089
    %v9650 = vmul.f32 %v9385, %v9090
    %v9651 = vmul.f32 %v9385, %v9091
    %v9652 = vmul.f32 %v9385, %v9092
    %v9653 = vmul.f32 %v9385, %v9093
    %v9654 = vmul.f32 %v9385, %v9094
    %v9655 = vmul.f32 %v9385, %v9095
    %v9656 = vmul.f32 %v9385, %v9096
    %v9657 = vmul.f32 %v9385, %v9097
    %v9658 = vmul.f32 %v9385, %v9098
    %v9659 = vmul.f32 %v9385, %v9099
    %v9660 = vmul.f32 %v9385, %v9100
    %v9661 = vmul.f32 %v9385, %v9101
    %v9662 = vmul.f32 %v9385, %v9102
    %v9663 = vmul.f32 %v9390, %v9103
    %v9664 = vmul.f32 %v9390, %v9104
    %v9665 = vmul.f32 %v9390, %v9105
    %v9666 = vmul.f32 %v9390, %v9106
    %v9667 = vmul.f32 %v9390, %v9107
    %v9668 = vmul.f32 %v9390, %v9108
    %v9669 = vmul.f32 %v9390, %v9109
    %v9670 = vmul.f32 %v9390, %v9110
    %v9671 = vmul.f32 %v9390, %v9111
    %v9672 = vmul.f32 %v9390, %v9112
    %v9673 = vmul.f32 %v9390, %v9113
    %v9674 = vmul.f32 %v9390, %v9114
    %v9675 = vmul.f32 %v9390, %v9115
    %v9676 = vmul.f32 %v9390, %v9116
    %v9677 = vmul.f32 %v9390, %v9117
    %v9678 = vmul.f32 %v9390, %v9118
    %v9679 = vmul.f32 %v9390, %v9119
    %v9680 = vmul.f32 %v9390, %v9120
    %v9681 = vmul.f32 %v9390, %v9121
    %v9682 = vmul.f32 %v9390, %v9122
    %v9683 = vmul.f32 %v9390, %v9123
    %v9684 = vmul.f32 %v9390, %v9124
    %v9685 = vmul.f32 %v9390, %v9125
    %v9686 = vmul.f32 %v9390, %v9126
    %v9687 = vmul.f32 %v9390, %v9127
    %v9688 = vmul.f32 %v9390, %v9128
    %v9689 = vmul.f32 %v9390, %v9129
    %v9690 = vmul.f32 %v9390, %v9130
    %v9691 = vmul.f32 %v9390, %v9131
    %v9692 = vmul.f32 %v9390, %v9132
    %v9693 = vmul.f32 %v9390, %v9133
    %v9694 = vmul.f32 %v9390, %v9134
    %v9695 = vmul.f32 %v9390, %v9135
    %v9696 = vmul.f32 %v9390, %v9136
    %v9697 = vmul.f32 %v9390, %v9137
    %v9698 = vmul.f32 %v9390, %v9138
    %v9699 = vmul.f32 %v9390, %v9139
    %v9700 = vmul.f32 %v9390, %v9140
    %v9701 = vmul.f32 %v9390, %v9141
    %v9702 = vmul.f32 %v9390, %v9142
    %v9703 = vmul.f32 %v9390, %v9143
    %v9704 = vmul.f32 %v9390, %v9144
    %v9705 = vmul.f32 %v9390, %v9145
    %v9706 = vmul.f32 %v9390, %v9146
    %v9707 = vmul.f32 %v9390, %v9147
    %v9708 = vmul.f32 %v9390, %v9148
    %v9709 = vmul.f32 %v9390, %v9149
    %v9710 = vmul.f32 %v9390, %v9150
    %v9711 = vmul.f32 %v9390, %v9151
    %v9712 = vmul.f32 %v9390, %v9152
    %v9713 = vmul.f32 %v9390, %v9153
    %v9714 = vmul.f32 %v9390, %v9154
    %v9715 = vmul.f32 %v9390, %v9155
    %v9716 = vmul.f32 %v9390, %v9156
    %v9717 = vmul.f32 %v9390, %v9157
    %v9718 = vmul.f32 %v9390, %v9158
    %v9719 = vmul.f32 %v9390, %v9159
    %v9720 = vmul.f32 %v9390, %v9160
    %v9721 = vmul.f32 %v9390, %v9161
    %v9722 = vmul.f32 %v9390, %v9162
    %v9723 = vmul.f32 %v9390, %v9163
    %v9724 = vmul.f32 %v9390, %v9164
    %v9725 = vmul.f32 %v9390, %v9165
    %v9726 = vmul.f32 %v9390, %v9166
    %v9727 = vmul.f32 %v9395, %v9167
    %v9728 = vmul.f32 %v9395, %v9168
    %v9729 = vmul.f32 %v9395, %v9169
    %v9730 = vmul.f32 %v9395, %v9170
    %v9731 = vmul.f32 %v9395, %v9171
    %v9732 = vmul.f32 %v9395, %v9172
    %v9733 = vmul.f32 %v9395, %v9173
    %v9734 = vmul.f32 %v9395, %v9174
    %v9735 = vmul.f32 %v9395, %v9175
    %v9736 = vmul.f32 %v9395, %v9176
    %v9737 = vmul.f32 %v9395, %v9177
    %v9738 = vmul.f32 %v9395, %v9178
    %v9739 = vmul.f32 %v9395, %v9179
    %v9740 = vmul.f32 %v9395, %v9180
    %v9741 = vmul.f32 %v9395, %v9181
    %v9742 = vmul.f32 %v9395, %v9182
    %v9743 = vmul.f32 %v9395, %v9183
    %v9744 = vmul.f32 %v9395, %v9184
    %v9745 = vmul.f32 %v9395, %v9185
    %v9746 = vmul.f32 %v9395, %v9186
    %v9747 = vmul.f32 %v9395, %v9187
    %v9748 = vmul.f32 %v9395, %v9188
    %v9749 = vmul.f32 %v9395, %v9189
    %v9750 = vmul.f32 %v9395, %v9190
    %v9751 = vmul.f32 %v9395, %v9191
    %v9752 = vmul.f32 %v9395, %v9192
    %v9753 = vmul.f32 %v9395, %v9193
    %v9754 = vmul.f32 %v9395, %v9194
    %v9755 = vmul.f32 %v9395, %v9195
    %v9756 = vmul.f32 %v9395, %v9196
    %v9757 = vmul.f32 %v9395, %v9197
    %v9758 = vmul.f32 %v9395, %v9198
    %v9759 = vmul.f32 %v9395, %v9199
    %v9760 = vmul.f32 %v9395, %v9200
    %v9761 = vmul.f32 %v9395, %v9201
    %v9762 = vmul.f32 %v9395, %v9202
    %v9763 = vmul.f32 %v9395, %v9203
    %v9764 = vmul.f32 %v9395, %v9204
    %v9765 = vmul.f32 %v9395, %v9205
    %v9766 = vmul.f32 %v9395, %v9206
    %v9767 = vmul.f32 %v9395, %v9207
    %v9768 = vmul.f32 %v9395, %v9208
    %v9769 = vmul.f32 %v9395, %v9209
    %v9770 = vmul.f32 %v9395, %v9210
    %v9771 = vmul.f32 %v9395, %v9211
    %v9772 = vmul.f32 %v9395, %v9212
    %v9773 = vmul.f32 %v9395, %v9213
    %v9774 = vmul.f32 %v9395, %v9214
    %v9775 = vmul.f32 %v9395, %v9215
    %v9776 = vmul.f32 %v9395, %v9216
    %v9777 = vmul.f32 %v9395, %v9217
    %v9778 = vmul.f32 %v9395, %v9218
    %v9779 = vmul.f32 %v9395, %v9219
    %v9780 = vmul.f32 %v9395, %v9220
    %v9781 = vmul.f32 %v9395, %v9221
    %v9782 = vmul.f32 %v9395, %v9222
    %v9783 = vmul.f32 %v9395, %v9223
    %v9784 = vmul.f32 %v9395, %v9224
    %v9785 = vmul.f32 %v9395, %v9225
    %v9786 = vmul.f32 %v9395, %v9226
    %v9787 = vmul.f32 %v9395, %v9227
    %v9788 = vmul.f32 %v9395, %v9228
    %v9789 = vmul.f32 %v9395, %v9229
    %v9790 = vmul.f32 %v9395, %v9230
    %v9791 = vmul.f32 %v9400, %v9231
    %v9792 = vmul.f32 %v9400, %v9232
    %v9793 = vmul.f32 %v9400, %v9233
    %v9794 = vmul.f32 %v9400, %v9234
    %v9795 = vmul.f32 %v9400, %v9235
    %v9796 = vmul.f32 %v9400, %v9236
    %v9797 = vmul.f32 %v9400, %v9237
    %v9798 = vmul.f32 %v9400, %v9238
    %v9799 = vmul.f32 %v9400, %v9239
    %v9800 = vmul.f32 %v9400, %v9240
    %v9801 = vmul.f32 %v9400, %v9241
    %v9802 = vmul.f32 %v9400, %v9242
    %v9803 = vmul.f32 %v9400, %v9243
    %v9804 = vmul.f32 %v9400, %v9244
    %v9805 = vmul.f32 %v9400, %v9245
    %v9806 = vmul.f32 %v9400, %v9246
    %v9807 = vmul.f32 %v9400, %v9247
    %v9808 = vmul.f32 %v9400, %v9248
    %v9809 = vmul.f32 %v9400, %v9249
    %v9810 = vmul.f32 %v9400, %v9250
    %v9811 = vmul.f32 %v9400, %v9251
    %v9812 = vmul.f32 %v9400, %v9252
    %v9813 = vmul.f32 %v9400, %v9253
    %v9814 = vmul.f32 %v9400, %v9254
    %v9815 = vmul.f32 %v9400, %v9255
    %v9816 = vmul.f32 %v9400, %v9256
    %v9817 = vmul.f32 %v9400, %v9257
    %v9818 = vmul.f32 %v9400, %v9258
    %v9819 = vmul.f32 %v9400, %v9259
    %v9820 = vmul.f32 %v9400, %v9260
    %v9821 = vmul.f32 %v9400, %v9261
    %v9822 = vmul.f32 %v9400, %v9262
    %v9823 = vmul.f32 %v9400, %v9263
    %v9824 = vmul.f32 %v9400, %v9264
    %v9825 = vmul.f32 %v9400, %v9265
    %v9826 = vmul.f32 %v9400, %v9266
    %v9827 = vmul.f32 %v9400, %v9267
    %v9828 = vmul.f32 %v9400, %v9268
    %v9829 = vmul.f32 %v9400, %v9269
    %v9830 = vmul.f32 %v9400, %v9270
    %v9831 = vmul.f32 %v9400, %v9271
    %v9832 = vmul.f32 %v9400, %v9272
    %v9833 = vmul.f32 %v9400, %v9273
    %v9834 = vmul.f32 %v9400, %v9274
    %v9835 = vmul.f32 %v9400, %v9275
    %v9836 = vmul.f32 %v9400, %v9276
    %v9837 = vmul.f32 %v9400, %v9277
    %v9838 = vmul.f32 %v9400, %v9278
    %v9839 = vmul.f32 %v9400, %v9279
    %v9840 = vmul.f32 %v9400, %v9280
    %v9841 = vmul.f32 %v9400, %v9281
    %v9842 = vmul.f32 %v9400, %v9282
    %v9843 = vmul.f32 %v9400, %v9283
    %v9844 = vmul.f32 %v9400, %v9284
    %v9845 = vmul.f32 %v9400, %v9285
    %v9846 = vmul.f32 %v9400, %v9286
    %v9847 = vmul.f32 %v9400, %v9287
    %v9848 = vmul.f32 %v9400, %v9288
    %v9849 = vmul.f32 %v9400, %v9289
    %v9850 = vmul.f32 %v9400, %v9290
    %v9851 = vmul.f32 %v9400, %v9291
    %v9852 = vmul.f32 %v9400, %v9292
    %v9853 = vmul.f32 %v9400, %v9293
    %v9854 = vmul.f32 %v9400, %v9294
    %v9855 = vmul.f32 %v9405, %v9295
    %v9856 = vmul.f32 %v9405, %v9296
    %v9857 = vmul.f32 %v9405, %v9297
    %v9858 = vmul.f32 %v9405, %v9298
    %v9859 = vmul.f32 %v9405, %v9299
    %v9860 = vmul.f32 %v9405, %v9300
    %v9861 = vmul.f32 %v9405, %v9301
    %v9862 = vmul.f32 %v9405, %v9302
    %v9863 = vmul.f32 %v9405, %v9303
    %v9864 = vmul.f32 %v9405, %v9304
    %v9865 = vmul.f32 %v9405, %v9305
    %v9866 = vmul.f32 %v9405, %v9306
    %v9867 = vmul.f32 %v9405, %v9307
    %v9868 = vmul.f32 %v9405, %v9308
    %v9869 = vmul.f32 %v9405, %v9309
    %v9870 = vmul.f32 %v9405, %v9310
    %v9871 = vmul.f32 %v9405, %v9311
    %v9872 = vmul.f32 %v9405, %v9312
    %v9873 = vmul.f32 %v9405, %v9313
    %v9874 = vmul.f32 %v9405, %v9314
    %v9875 = vmul.f32 %v9405, %v9315
    %v9876 = vmul.f32 %v9405, %v9316
    %v9877 = vmul.f32 %v9405, %v9317
    %v9878 = vmul.f32 %v9405, %v9318
    %v9879 = vmul.f32 %v9405, %v9319
    %v9880 = vmul.f32 %v9405, %v9320
    %v9881 = vmul.f32 %v9405, %v9321
    %v9882 = vmul.f32 %v9405, %v9322
    %v9883 = vmul.f32 %v9405, %v9323
    %v9884 = vmul.f32 %v9405, %v9324
    %v9885 = vmul.f32 %v9405, %v9325
    %v9886 = vmul.f32 %v9405, %v9326
    %v9887 = vmul.f32 %v9405, %v9327
    %v9888 = vmul.f32 %v9405, %v9328
    %v9889 = vmul.f32 %v9405, %v9329
    %v9890 = vmul.f32 %v9405, %v9330
    %v9891 = vmul.f32 %v9405, %v9331
    %v9892 = vmul.f32 %v9405, %v9332
    %v9893 = vmul.f32 %v9405, %v9333
    %v9894 = vmul.f32 %v9405, %v9334
    %v9895 = vmul.f32 %v9405, %v9335
    %v9896 = vmul.f32 %v9405, %v9336
    %v9897 = vmul.f32 %v9405, %v9337
    %v9898 = vmul.f32 %v9405, %v9338
    %v9899 = vmul.f32 %v9405, %v9339
    %v9900 = vmul.f32 %v9405, %v9340
    %v9901 = vmul.f32 %v9405, %v9341
    %v9902 = vmul.f32 %v9405, %v9342
    %v9903 = vmul.f32 %v9405, %v9343
    %v9904 = vmul.f32 %v9405, %v9344
    %v9905 = vmul.f32 %v9405, %v9345
    %v9906 = vmul.f32 %v9405, %v9346
    %v9907 = vmul.f32 %v9405, %v9347
    %v9908 = vmul.f32 %v9405, %v9348
    %v9909 = vmul.f32 %v9405, %v9349
    %v9910 = vmul.f32 %v9405, %v9350
    %v9911 = vmul.f32 %v9405, %v9351
    %v9912 = vmul.f32 %v9405, %v9352
    %v9913 = vmul.f32 %v9405, %v9353
    %v9914 = vmul.f32 %v9405, %v9354
    %v9915 = vmul.f32 %v9405, %v9355
    %v9916 = vmul.f32 %v9405, %v9356
    %v9917 = vmul.f32 %v9405, %v9357
    %v9918 = vmul.f32 %v9405, %v9358
    %v9919 = vadd.f32 %v9407, %v9471
    %v9920 = vadd.f32 %v9919, %v9535
    %v9921 = vadd.f32 %v9920, %v9599
    %v9922 = vadd.f32 %v9921, %v9663
    %v9923 = vadd.f32 %v9922, %v9727
    %v9924 = vadd.f32 %v9923, %v9791
    %v9925 = vadd.f32 %v9924, %v9855
    %v9926 = vrot.slane %v9925, 4
    %v9927 = vadd.f32 %v9925, %v9926
    %v9928 = vrot.slane %v9927, 2
    %v9929 = vadd.f32 %v9927, %v9928
    %v9930 = vrot.slane %v9929, 1
    %v9931 = vadd.f32 %v9929, %v9930
    %v9932 = vadd.f32 %v9408, %v9472
    %v9933 = vadd.f32 %v9932, %v9536
    %v9934 = vadd.f32 %v9933, %v9600
    %v9935 = vadd.f32 %v9934, %v9664
    %v9936 = vadd.f32 %v9935, %v9728
    %v9937 = vadd.f32 %v9936, %v9792
    %v9938 = vadd.f32 %v9937, %v9856
    %v9939 = vrot.slane %v9938, 4
    %v9940 = vadd.f32 %v9938, %v9939
    %v9941 = vrot.slane %v9940, 2
    %v9942 = vadd.f32 %v9940, %v9941
    %v9943 = vrot.slane %v9942, 1
    %v9944 = vadd.f32 %v9942, %v9943
    %v9945 = vadd.f32 %v9409, %v9473
    %v9946 = vadd.f32 %v9945, %v9537
    %v9947 = vadd.f32 %v9946, %v9601
    %v9948 = vadd.f32 %v9947, %v9665
    %v9949 = vadd.f32 %v9948, %v9729
    %v9950 = vadd.f32 %v9949, %v9793
    %v9951 = vadd.f32 %v9950, %v9857
    %v9952 = vrot.slane %v9951, 4
    %v9953 = vadd.f32 %v9951, %v9952
    %v9954 = vrot.slane %v9953, 2
    %v9955 = vadd.f32 %v9953, %v9954
    %v9956 = vrot.slane %v9955, 1
    %v9957 = vadd.f32 %v9955, %v9956
    %v9958 = vadd.f32 %v9410, %v9474
    %v9959 = vadd.f32 %v9958, %v9538
    %v9960 = vadd.f32 %v9959, %v9602
    %v9961 = vadd.f32 %v9960, %v9666
    %v9962 = vadd.f32 %v9961, %v9730
    %v9963 = vadd.f32 %v9962, %v9794
    %v9964 = vadd.f32 %v9963, %v9858
    %v9965 = vrot.slane %v9964, 4
    %v9966 = vadd.f32 %v9964, %v9965
    %v9967 = vrot.slane %v9966, 2
    %v9968 = vadd.f32 %v9966, %v9967
    %v9969 = vrot.slane %v9968, 1
    %v9970 = vadd.f32 %v9968, %v9969
    %v9971 = vadd.f32 %v9411, %v9475
    %v9972 = vadd.f32 %v9971, %v9539
    %v9973 = vadd.f32 %v9972, %v9603
    %v9974 = vadd.f32 %v9973, %v9667
    %v9975 = vadd.f32 %v9974, %v9731
    %v9976 = vadd.f32 %v9975, %v9795
    %v9977 = vadd.f32 %v9976, %v9859
    %v9978 = vrot.slane %v9977, 4
    %v9979 = vadd.f32 %v9977, %v9978
    %v9980 = vrot.slane %v9979, 2
    %v9981 = vadd.f32 %v9979, %v9980
    %v9982 = vrot.slane %v9981, 1
    %v9983 = vadd.f32 %v9981, %v9982
    %v9984 = vadd.f32 %v9412, %v9476
    %v9985 = vadd.f32 %v9984, %v9540
    %v9986 = vadd.f32 %v9985, %v9604
    %v9987 = vadd.f32 %v9986, %v9668
    %v9988 = vadd.f32 %v9987, %v9732
    %v9989 = vadd.f32 %v9988, %v9796
    %v9990 = vadd.f32 %v9989, %v9860
    %v9991 = vrot.slane %v9990, 4
    %v9992 = vadd.f32 %v9990, %v9991
    %v9993 = vrot.slane %v9992, 2
    %v9994 = vadd.f32 %v9992, %v9993
    %v9995 = vrot.slane %v9994, 1
    %v9996 = vadd.f32 %v9994, %v9995
    %v9997 = vadd.f32 %v9413, %v9477
    %v9998 = vadd.f32 %v9997, %v9541
    %v9999 = vadd.f32 %v9998, %v9605
    %v10000 = vadd.f32 %v9999, %v9669
    %v10001 = vadd.f32 %v10000, %v9733
    %v10002 = vadd.f32 %v10001, %v9797
    %v10003 = vadd.f32 %v10002, %v9861
    %v10004 = vrot.slane %v10003, 4
    %v10005 = vadd.f32 %v10003, %v10004
    %v10006 = vrot.slane %v10005, 2
    %v10007 = vadd.f32 %v10005, %v10006
    %v10008 = vrot.slane %v10007, 1
    %v10009 = vadd.f32 %v10007, %v10008
    %v10010 = vadd.f32 %v9414, %v9478
    %v10011 = vadd.f32 %v10010, %v9542
    %v10012 = vadd.f32 %v10011, %v9606
    %v10013 = vadd.f32 %v10012, %v9670
    %v10014 = vadd.f32 %v10013, %v9734
    %v10015 = vadd.f32 %v10014, %v9798
    %v10016 = vadd.f32 %v10015, %v9862
    %v10017 = vrot.slane %v10016, 4
    %v10018 = vadd.f32 %v10016, %v10017
    %v10019 = vrot.slane %v10018, 2
    %v10020 = vadd.f32 %v10018, %v10019
    %v10021 = vrot.slane %v10020, 1
    %v10022 = vadd.f32 %v10020, %v10021
    %v10023 = vadd.f32 %v9415, %v9479
    %v10024 = vadd.f32 %v10023, %v9543
    %v10025 = vadd.f32 %v10024, %v9607
    %v10026 = vadd.f32 %v10025, %v9671
    %v10027 = vadd.f32 %v10026, %v9735
    %v10028 = vadd.f32 %v10027, %v9799
    %v10029 = vadd.f32 %v10028, %v9863
    %v10030 = vrot.slane %v10029, 4
    %v10031 = vadd.f32 %v10029, %v10030
    %v10032 = vrot.slane %v10031, 2
    %v10033 = vadd.f32 %v10031, %v10032
    %v10034 = vrot.slane %v10033, 1
    %v10035 = vadd.f32 %v10033, %v10034
    %v10036 = vadd.f32 %v9416, %v9480
    %v10037 = vadd.f32 %v10036, %v9544
    %v10038 = vadd.f32 %v10037, %v9608
    %v10039 = vadd.f32 %v10038, %v9672
    %v10040 = vadd.f32 %v10039, %v9736
    %v10041 = vadd.f32 %v10040, %v9800
    %v10042 = vadd.f32 %v10041, %v9864
    %v10043 = vrot.slane %v10042, 4
    %v10044 = vadd.f32 %v10042, %v10043
    %v10045 = vrot.slane %v10044, 2
    %v10046 = vadd.f32 %v10044, %v10045
    %v10047 = vrot.slane %v10046, 1
    %v10048 = vadd.f32 %v10046, %v10047
    %v10049 = vadd.f32 %v9417, %v9481
    %v10050 = vadd.f32 %v10049, %v9545
    %v10051 = vadd.f32 %v10050, %v9609
    %v10052 = vadd.f32 %v10051, %v9673
    %v10053 = vadd.f32 %v10052, %v9737
    %v10054 = vadd.f32 %v10053, %v9801
    %v10055 = vadd.f32 %v10054, %v9865
    %v10056 = vrot.slane %v10055, 4
    %v10057 = vadd.f32 %v10055, %v10056
    %v10058 = vrot.slane %v10057, 2
    %v10059 = vadd.f32 %v10057, %v10058
    %v10060 = vrot.slane %v10059, 1
    %v10061 = vadd.f32 %v10059, %v10060
    %v10062 = vadd.f32 %v9418, %v9482
    %v10063 = vadd.f32 %v10062, %v9546
    %v10064 = vadd.f32 %v10063, %v9610
    %v10065 = vadd.f32 %v10064, %v9674
    %v10066 = vadd.f32 %v10065, %v9738
    %v10067 = vadd.f32 %v10066, %v9802
    %v10068 = vadd.f32 %v10067, %v9866
    %v10069 = vrot.slane %v10068, 4
    %v10070 = vadd.f32 %v10068, %v10069
    %v10071 = vrot.slane %v10070, 2
    %v10072 = vadd.f32 %v10070, %v10071
    %v10073 = vrot.slane %v10072, 1
    %v10074 = vadd.f32 %v10072, %v10073
    %v10075 = vadd.f32 %v9419, %v9483
    %v10076 = vadd.f32 %v10075, %v9547
    %v10077 = vadd.f32 %v10076, %v9611
    %v10078 = vadd.f32 %v10077, %v9675
    %v10079 = vadd.f32 %v10078, %v9739
    %v10080 = vadd.f32 %v10079, %v9803
    %v10081 = vadd.f32 %v10080, %v9867
    %v10082 = vrot.slane %v10081, 4
    %v10083 = vadd.f32 %v10081, %v10082
    %v10084 = vrot.slane %v10083, 2
    %v10085 = vadd.f32 %v10083, %v10084
    %v10086 = vrot.slane %v10085, 1
    %v10087 = vadd.f32 %v10085, %v10086
    %v10088 = vadd.f32 %v9420, %v9484
    %v10089 = vadd.f32 %v10088, %v9548
    %v10090 = vadd.f32 %v10089, %v9612
    %v10091 = vadd.f32 %v10090, %v9676
    %v10092 = vadd.f32 %v10091, %v9740
    %v10093 = vadd.f32 %v10092, %v9804
    %v10094 = vadd.f32 %v10093, %v9868
    %v10095 = vrot.slane %v10094, 4
    %v10096 = vadd.f32 %v10094, %v10095
    %v10097 = vrot.slane %v10096, 2
    %v10098 = vadd.f32 %v10096, %v10097
    %v10099 = vrot.slane %v10098, 1
    %v10100 = vadd.f32 %v10098, %v10099
    %v10101 = vadd.f32 %v9421, %v9485
    %v10102 = vadd.f32 %v10101, %v9549
    %v10103 = vadd.f32 %v10102, %v9613
    %v10104 = vadd.f32 %v10103, %v9677
    %v10105 = vadd.f32 %v10104, %v9741
    %v10106 = vadd.f32 %v10105, %v9805
    %v10107 = vadd.f32 %v10106, %v9869
    %v10108 = vrot.slane %v10107, 4
    %v10109 = vadd.f32 %v10107, %v10108
    %v10110 = vrot.slane %v10109, 2
    %v10111 = vadd.f32 %v10109, %v10110
    %v10112 = vrot.slane %v10111, 1
    %v10113 = vadd.f32 %v10111, %v10112
    %v10114 = vadd.f32 %v9422, %v9486
    %v10115 = vadd.f32 %v10114, %v9550
    %v10116 = vadd.f32 %v10115, %v9614
    %v10117 = vadd.f32 %v10116, %v9678
    %v10118 = vadd.f32 %v10117, %v9742
    %v10119 = vadd.f32 %v10118, %v9806
    %v10120 = vadd.f32 %v10119, %v9870
    %v10121 = vrot.slane %v10120, 4
    %v10122 = vadd.f32 %v10120, %v10121
    %v10123 = vrot.slane %v10122, 2
    %v10124 = vadd.f32 %v10122, %v10123
    %v10125 = vrot.slane %v10124, 1
    %v10126 = vadd.f32 %v10124, %v10125
    %v10127 = vadd.f32 %v9423, %v9487
    %v10128 = vadd.f32 %v10127, %v9551
    %v10129 = vadd.f32 %v10128, %v9615
    %v10130 = vadd.f32 %v10129, %v9679
    %v10131 = vadd.f32 %v10130, %v9743
    %v10132 = vadd.f32 %v10131, %v9807
    %v10133 = vadd.f32 %v10132, %v9871
    %v10134 = vrot.slane %v10133, 4
    %v10135 = vadd.f32 %v10133, %v10134
    %v10136 = vrot.slane %v10135, 2
    %v10137 = vadd.f32 %v10135, %v10136
    %v10138 = vrot.slane %v10137, 1
    %v10139 = vadd.f32 %v10137, %v10138
    %v10140 = vadd.f32 %v9424, %v9488
    %v10141 = vadd.f32 %v10140, %v9552
    %v10142 = vadd.f32 %v10141, %v9616
    %v10143 = vadd.f32 %v10142, %v9680
    %v10144 = vadd.f32 %v10143, %v9744
    %v10145 = vadd.f32 %v10144, %v9808
    %v10146 = vadd.f32 %v10145, %v9872
    %v10147 = vrot.slane %v10146, 4
    %v10148 = vadd.f32 %v10146, %v10147
    %v10149 = vrot.slane %v10148, 2
    %v10150 = vadd.f32 %v10148, %v10149
    %v10151 = vrot.slane %v10150, 1
    %v10152 = vadd.f32 %v10150, %v10151
    %v10153 = vadd.f32 %v9425, %v9489
    %v10154 = vadd.f32 %v10153, %v9553
    %v10155 = vadd.f32 %v10154, %v9617
    %v10156 = vadd.f32 %v10155, %v9681
    %v10157 = vadd.f32 %v10156, %v9745
    %v10158 = vadd.f32 %v10157, %v9809
    %v10159 = vadd.f32 %v10158, %v9873
    %v10160 = vrot.slane %v10159, 4
    %v10161 = vadd.f32 %v10159, %v10160
    %v10162 = vrot.slane %v10161, 2
    %v10163 = vadd.f32 %v10161, %v10162
    %v10164 = vrot.slane %v10163, 1
    %v10165 = vadd.f32 %v10163, %v10164
    %v10166 = vadd.f32 %v9426, %v9490
    %v10167 = vadd.f32 %v10166, %v9554
    %v10168 = vadd.f32 %v10167, %v9618
    %v10169 = vadd.f32 %v10168, %v9682
    %v10170 = vadd.f32 %v10169, %v9746
    %v10171 = vadd.f32 %v10170, %v9810
    %v10172 = vadd.f32 %v10171, %v9874
    %v10173 = vrot.slane %v10172, 4
    %v10174 = vadd.f32 %v10172, %v10173
    %v10175 = vrot.slane %v10174, 2
    %v10176 = vadd.f32 %v10174, %v10175
    %v10177 = vrot.slane %v10176, 1
    %v10178 = vadd.f32 %v10176, %v10177
    %v10179 = vadd.f32 %v9427, %v9491
    %v10180 = vadd.f32 %v10179, %v9555
    %v10181 = vadd.f32 %v10180, %v9619
    %v10182 = vadd.f32 %v10181, %v9683
    %v10183 = vadd.f32 %v10182, %v9747
    %v10184 = vadd.f32 %v10183, %v9811
    %v10185 = vadd.f32 %v10184, %v9875
    %v10186 = vrot.slane %v10185, 4
    %v10187 = vadd.f32 %v10185, %v10186
    %v10188 = vrot.slane %v10187, 2
    %v10189 = vadd.f32 %v10187, %v10188
    %v10190 = vrot.slane %v10189, 1
    %v10191 = vadd.f32 %v10189, %v10190
    %v10192 = vadd.f32 %v9428, %v9492
    %v10193 = vadd.f32 %v10192, %v9556
    %v10194 = vadd.f32 %v10193, %v9620
    %v10195 = vadd.f32 %v10194, %v9684
    %v10196 = vadd.f32 %v10195, %v9748
    %v10197 = vadd.f32 %v10196, %v9812
    %v10198 = vadd.f32 %v10197, %v9876
    %v10199 = vrot.slane %v10198, 4
    %v10200 = vadd.f32 %v10198, %v10199
    %v10201 = vrot.slane %v10200, 2
    %v10202 = vadd.f32 %v10200, %v10201
    %v10203 = vrot.slane %v10202, 1
    %v10204 = vadd.f32 %v10202, %v10203
    %v10205 = vadd.f32 %v9429, %v9493
    %v10206 = vadd.f32 %v10205, %v9557
    %v10207 = vadd.f32 %v10206, %v9621
    %v10208 = vadd.f32 %v10207, %v9685
    %v10209 = vadd.f32 %v10208, %v9749
    %v10210 = vadd.f32 %v10209, %v9813
    %v10211 = vadd.f32 %v10210, %v9877
    %v10212 = vrot.slane %v10211, 4
    %v10213 = vadd.f32 %v10211, %v10212
    %v10214 = vrot.slane %v10213, 2
    %v10215 = vadd.f32 %v10213, %v10214
    %v10216 = vrot.slane %v10215, 1
    %v10217 = vadd.f32 %v10215, %v10216
    %v10218 = vadd.f32 %v9430, %v9494
    %v10219 = vadd.f32 %v10218, %v9558
    %v10220 = vadd.f32 %v10219, %v9622
    %v10221 = vadd.f32 %v10220, %v9686
    %v10222 = vadd.f32 %v10221, %v9750
    %v10223 = vadd.f32 %v10222, %v9814
    %v10224 = vadd.f32 %v10223, %v9878
    %v10225 = vrot.slane %v10224, 4
    %v10226 = vadd.f32 %v10224, %v10225
    %v10227 = vrot.slane %v10226, 2
    %v10228 = vadd.f32 %v10226, %v10227
    %v10229 = vrot.slane %v10228, 1
    %v10230 = vadd.f32 %v10228, %v10229
    %v10231 = vadd.f32 %v9431, %v9495
    %v10232 = vadd.f32 %v10231, %v9559
    %v10233 = vadd.f32 %v10232, %v9623
    %v10234 = vadd.f32 %v10233, %v9687
    %v10235 = vadd.f32 %v10234, %v9751
    %v10236 = vadd.f32 %v10235, %v9815
    %v10237 = vadd.f32 %v10236, %v9879
    %v10238 = vrot.slane %v10237, 4
    %v10239 = vadd.f32 %v10237, %v10238
    %v10240 = vrot.slane %v10239, 2
    %v10241 = vadd.f32 %v10239, %v10240
    %v10242 = vrot.slane %v10241, 1
    %v10243 = vadd.f32 %v10241, %v10242
    %v10244 = vadd.f32 %v9432, %v9496
    %v10245 = vadd.f32 %v10244, %v9560
    %v10246 = vadd.f32 %v10245, %v9624
    %v10247 = vadd.f32 %v10246, %v9688
    %v10248 = vadd.f32 %v10247, %v9752
    %v10249 = vadd.f32 %v10248, %v9816
    %v10250 = vadd.f32 %v10249, %v9880
    %v10251 = vrot.slane %v10250, 4
    %v10252 = vadd.f32 %v10250, %v10251
    %v10253 = vrot.slane %v10252, 2
    %v10254 = vadd.f32 %v10252, %v10253
    %v10255 = vrot.slane %v10254, 1
    %v10256 = vadd.f32 %v10254, %v10255
    %v10257 = vadd.f32 %v9433, %v9497
    %v10258 = vadd.f32 %v10257, %v9561
    %v10259 = vadd.f32 %v10258, %v9625
    %v10260 = vadd.f32 %v10259, %v9689
    %v10261 = vadd.f32 %v10260, %v9753
    %v10262 = vadd.f32 %v10261, %v9817
    %v10263 = vadd.f32 %v10262, %v9881
    %v10264 = vrot.slane %v10263, 4
    %v10265 = vadd.f32 %v10263, %v10264
    %v10266 = vrot.slane %v10265, 2
    %v10267 = vadd.f32 %v10265, %v10266
    %v10268 = vrot.slane %v10267, 1
    %v10269 = vadd.f32 %v10267, %v10268
    %v10270 = vadd.f32 %v9434, %v9498
    %v10271 = vadd.f32 %v10270, %v9562
    %v10272 = vadd.f32 %v10271, %v9626
    %v10273 = vadd.f32 %v10272, %v9690
    %v10274 = vadd.f32 %v10273, %v9754
    %v10275 = vadd.f32 %v10274, %v9818
    %v10276 = vadd.f32 %v10275, %v9882
    %v10277 = vrot.slane %v10276, 4
    %v10278 = vadd.f32 %v10276, %v10277
    %v10279 = vrot.slane %v10278, 2
    %v10280 = vadd.f32 %v10278, %v10279
    %v10281 = vrot.slane %v10280, 1
    %v10282 = vadd.f32 %v10280, %v10281
    %v10283 = vadd.f32 %v9435, %v9499
    %v10284 = vadd.f32 %v10283, %v9563
    %v10285 = vadd.f32 %v10284, %v9627
    %v10286 = vadd.f32 %v10285, %v9691
    %v10287 = vadd.f32 %v10286, %v9755
    %v10288 = vadd.f32 %v10287, %v9819
    %v10289 = vadd.f32 %v10288, %v9883
    %v10290 = vrot.slane %v10289, 4
    %v10291 = vadd.f32 %v10289, %v10290
    %v10292 = vrot.slane %v10291, 2
    %v10293 = vadd.f32 %v10291, %v10292
    %v10294 = vrot.slane %v10293, 1
    %v10295 = vadd.f32 %v10293, %v10294
    %v10296 = vadd.f32 %v9436, %v9500
    %v10297 = vadd.f32 %v10296, %v9564
    %v10298 = vadd.f32 %v10297, %v9628
    %v10299 = vadd.f32 %v10298, %v9692
    %v10300 = vadd.f32 %v10299, %v9756
    %v10301 = vadd.f32 %v10300, %v9820
    %v10302 = vadd.f32 %v10301, %v9884
    %v10303 = vrot.slane %v10302, 4
    %v10304 = vadd.f32 %v10302, %v10303
    %v10305 = vrot.slane %v10304, 2
    %v10306 = vadd.f32 %v10304, %v10305
    %v10307 = vrot.slane %v10306, 1
    %v10308 = vadd.f32 %v10306, %v10307
    %v10309 = vadd.f32 %v9437, %v9501
    %v10310 = vadd.f32 %v10309, %v9565
    %v10311 = vadd.f32 %v10310, %v9629
    %v10312 = vadd.f32 %v10311, %v9693
    %v10313 = vadd.f32 %v10312, %v9757
    %v10314 = vadd.f32 %v10313, %v9821
    %v10315 = vadd.f32 %v10314, %v9885
    %v10316 = vrot.slane %v10315, 4
    %v10317 = vadd.f32 %v10315, %v10316
    %v10318 = vrot.slane %v10317, 2
    %v10319 = vadd.f32 %v10317, %v10318
    %v10320 = vrot.slane %v10319, 1
    %v10321 = vadd.f32 %v10319, %v10320
    %v10322 = vadd.f32 %v9438, %v9502
    %v10323 = vadd.f32 %v10322, %v9566
    %v10324 = vadd.f32 %v10323, %v9630
    %v10325 = vadd.f32 %v10324, %v9694
    %v10326 = vadd.f32 %v10325, %v9758
    %v10327 = vadd.f32 %v10326, %v9822
    %v10328 = vadd.f32 %v10327, %v9886
    %v10329 = vrot.slane %v10328, 4
    %v10330 = vadd.f32 %v10328, %v10329
    %v10331 = vrot.slane %v10330, 2
    %v10332 = vadd.f32 %v10330, %v10331
    %v10333 = vrot.slane %v10332, 1
    %v10334 = vadd.f32 %v10332, %v10333
    %v10335 = vadd.f32 %v9439, %v9503
    %v10336 = vadd.f32 %v10335, %v9567
    %v10337 = vadd.f32 %v10336, %v9631
    %v10338 = vadd.f32 %v10337, %v9695
    %v10339 = vadd.f32 %v10338, %v9759
    %v10340 = vadd.f32 %v10339, %v9823
    %v10341 = vadd.f32 %v10340, %v9887
    %v10342 = vrot.slane %v10341, 4
    %v10343 = vadd.f32 %v10341, %v10342
    %v10344 = vrot.slane %v10343, 2
    %v10345 = vadd.f32 %v10343, %v10344
    %v10346 = vrot.slane %v10345, 1
    %v10347 = vadd.f32 %v10345, %v10346
    %v10348 = vadd.f32 %v9440, %v9504
    %v10349 = vadd.f32 %v10348, %v9568
    %v10350 = vadd.f32 %v10349, %v9632
    %v10351 = vadd.f32 %v10350, %v9696
    %v10352 = vadd.f32 %v10351, %v9760
    %v10353 = vadd.f32 %v10352, %v9824
    %v10354 = vadd.f32 %v10353, %v9888
    %v10355 = vrot.slane %v10354, 4
    %v10356 = vadd.f32 %v10354, %v10355
    %v10357 = vrot.slane %v10356, 2
    %v10358 = vadd.f32 %v10356, %v10357
    %v10359 = vrot.slane %v10358, 1
    %v10360 = vadd.f32 %v10358, %v10359
    %v10361 = vadd.f32 %v9441, %v9505
    %v10362 = vadd.f32 %v10361, %v9569
    %v10363 = vadd.f32 %v10362, %v9633
    %v10364 = vadd.f32 %v10363, %v9697
    %v10365 = vadd.f32 %v10364, %v9761
    %v10366 = vadd.f32 %v10365, %v9825
    %v10367 = vadd.f32 %v10366, %v9889
    %v10368 = vrot.slane %v10367, 4
    %v10369 = vadd.f32 %v10367, %v10368
    %v10370 = vrot.slane %v10369, 2
    %v10371 = vadd.f32 %v10369, %v10370
    %v10372 = vrot.slane %v10371, 1
    %v10373 = vadd.f32 %v10371, %v10372
    %v10374 = vadd.f32 %v9442, %v9506
    %v10375 = vadd.f32 %v10374, %v9570
    %v10376 = vadd.f32 %v10375, %v9634
    %v10377 = vadd.f32 %v10376, %v9698
    %v10378 = vadd.f32 %v10377, %v9762
    %v10379 = vadd.f32 %v10378, %v9826
    %v10380 = vadd.f32 %v10379, %v9890
    %v10381 = vrot.slane %v10380, 4
    %v10382 = vadd.f32 %v10380, %v10381
    %v10383 = vrot.slane %v10382, 2
    %v10384 = vadd.f32 %v10382, %v10383
    %v10385 = vrot.slane %v10384, 1
    %v10386 = vadd.f32 %v10384, %v10385
    %v10387 = vadd.f32 %v9443, %v9507
    %v10388 = vadd.f32 %v10387, %v9571
    %v10389 = vadd.f32 %v10388, %v9635
    %v10390 = vadd.f32 %v10389, %v9699
    %v10391 = vadd.f32 %v10390, %v9763
    %v10392 = vadd.f32 %v10391, %v9827
    %v10393 = vadd.f32 %v10392, %v9891
    %v10394 = vrot.slane %v10393, 4
    %v10395 = vadd.f32 %v10393, %v10394
    %v10396 = vrot.slane %v10395, 2
    %v10397 = vadd.f32 %v10395, %v10396
    %v10398 = vrot.slane %v10397, 1
    %v10399 = vadd.f32 %v10397, %v10398
    %v10400 = vadd.f32 %v9444, %v9508
    %v10401 = vadd.f32 %v10400, %v9572
    %v10402 = vadd.f32 %v10401, %v9636
    %v10403 = vadd.f32 %v10402, %v9700
    %v10404 = vadd.f32 %v10403, %v9764
    %v10405 = vadd.f32 %v10404, %v9828
    %v10406 = vadd.f32 %v10405, %v9892
    %v10407 = vrot.slane %v10406, 4
    %v10408 = vadd.f32 %v10406, %v10407
    %v10409 = vrot.slane %v10408, 2
    %v10410 = vadd.f32 %v10408, %v10409
    %v10411 = vrot.slane %v10410, 1
    %v10412 = vadd.f32 %v10410, %v10411
    %v10413 = vadd.f32 %v9445, %v9509
    %v10414 = vadd.f32 %v10413, %v9573
    %v10415 = vadd.f32 %v10414, %v9637
    %v10416 = vadd.f32 %v10415, %v9701
    %v10417 = vadd.f32 %v10416, %v9765
    %v10418 = vadd.f32 %v10417, %v9829
    %v10419 = vadd.f32 %v10418, %v9893
    %v10420 = vrot.slane %v10419, 4
    %v10421 = vadd.f32 %v10419, %v10420
    %v10422 = vrot.slane %v10421, 2
    %v10423 = vadd.f32 %v10421, %v10422
    %v10424 = vrot.slane %v10423, 1
    %v10425 = vadd.f32 %v10423, %v10424
    %v10426 = vadd.f32 %v9446, %v9510
    %v10427 = vadd.f32 %v10426, %v9574
    %v10428 = vadd.f32 %v10427, %v9638
    %v10429 = vadd.f32 %v10428, %v9702
    %v10430 = vadd.f32 %v10429, %v9766
    %v10431 = vadd.f32 %v10430, %v9830
    %v10432 = vadd.f32 %v10431, %v9894
    %v10433 = vrot.slane %v10432, 4
    %v10434 = vadd.f32 %v10432, %v10433
    %v10435 = vrot.slane %v10434, 2
    %v10436 = vadd.f32 %v10434, %v10435
    %v10437 = vrot.slane %v10436, 1
    %v10438 = vadd.f32 %v10436, %v10437
    %v10439 = vadd.f32 %v9447, %v9511
    %v10440 = vadd.f32 %v10439, %v9575
    %v10441 = vadd.f32 %v10440, %v9639
    %v10442 = vadd.f32 %v10441, %v9703
    %v10443 = vadd.f32 %v10442, %v9767
    %v10444 = vadd.f32 %v10443, %v9831
    %v10445 = vadd.f32 %v10444, %v9895
    %v10446 = vrot.slane %v10445, 4
    %v10447 = vadd.f32 %v10445, %v10446
    %v10448 = vrot.slane %v10447, 2
    %v10449 = vadd.f32 %v10447, %v10448
    %v10450 = vrot.slane %v10449, 1
    %v10451 = vadd.f32 %v10449, %v10450
    %v10452 = vadd.f32 %v9448, %v9512
    %v10453 = vadd.f32 %v10452, %v9576
    %v10454 = vadd.f32 %v10453, %v9640
    %v10455 = vadd.f32 %v10454, %v9704
    %v10456 = vadd.f32 %v10455, %v9768
    %v10457 = vadd.f32 %v10456, %v9832
    %v10458 = vadd.f32 %v10457, %v9896
    %v10459 = vrot.slane %v10458, 4
    %v10460 = vadd.f32 %v10458, %v10459
    %v10461 = vrot.slane %v10460, 2
    %v10462 = vadd.f32 %v10460, %v10461
    %v10463 = vrot.slane %v10462, 1
    %v10464 = vadd.f32 %v10462, %v10463
    %v10465 = vadd.f32 %v9449, %v9513
    %v10466 = vadd.f32 %v10465, %v9577
    %v10467 = vadd.f32 %v10466, %v9641
    %v10468 = vadd.f32 %v10467, %v9705
    %v10469 = vadd.f32 %v10468, %v9769
    %v10470 = vadd.f32 %v10469, %v9833
    %v10471 = vadd.f32 %v10470, %v9897
    %v10472 = vrot.slane %v10471, 4
    %v10473 = vadd.f32 %v10471, %v10472
    %v10474 = vrot.slane %v10473, 2
    %v10475 = vadd.f32 %v10473, %v10474
    %v10476 = vrot.slane %v10475, 1
    %v10477 = vadd.f32 %v10475, %v10476
    %v10478 = vadd.f32 %v9450, %v9514
    %v10479 = vadd.f32 %v10478, %v9578
    %v10480 = vadd.f32 %v10479, %v9642
    %v10481 = vadd.f32 %v10480, %v9706
    %v10482 = vadd.f32 %v10481, %v9770
    %v10483 = vadd.f32 %v10482, %v9834
    %v10484 = vadd.f32 %v10483, %v9898
    %v10485 = vrot.slane %v10484, 4
    %v10486 = vadd.f32 %v10484, %v10485
    %v10487 = vrot.slane %v10486, 2
    %v10488 = vadd.f32 %v10486, %v10487
    %v10489 = vrot.slane %v10488, 1
    %v10490 = vadd.f32 %v10488, %v10489
    %v10491 = vadd.f32 %v9451, %v9515
    %v10492 = vadd.f32 %v10491, %v9579
    %v10493 = vadd.f32 %v10492, %v9643
    %v10494 = vadd.f32 %v10493, %v9707
    %v10495 = vadd.f32 %v10494, %v9771
    %v10496 = vadd.f32 %v10495, %v9835
    %v10497 = vadd.f32 %v10496, %v9899
    %v10498 = vrot.slane %v10497, 4
    %v10499 = vadd.f32 %v10497, %v10498
    %v10500 = vrot.slane %v10499, 2
    %v10501 = vadd.f32 %v10499, %v10500
    %v10502 = vrot.slane %v10501, 1
    %v10503 = vadd.f32 %v10501, %v10502
    %v10504 = vadd.f32 %v9452, %v9516
    %v10505 = vadd.f32 %v10504, %v9580
    %v10506 = vadd.f32 %v10505, %v9644
    %v10507 = vadd.f32 %v10506, %v9708
    %v10508 = vadd.f32 %v10507, %v9772
    %v10509 = vadd.f32 %v10508, %v9836
    %v10510 = vadd.f32 %v10509, %v9900
    %v10511 = vrot.slane %v10510, 4
    %v10512 = vadd.f32 %v10510, %v10511
    %v10513 = vrot.slane %v10512, 2
    %v10514 = vadd.f32 %v10512, %v10513
    %v10515 = vrot.slane %v10514, 1
    %v10516 = vadd.f32 %v10514, %v10515
    %v10517 = vadd.f32 %v9453, %v9517
    %v10518 = vadd.f32 %v10517, %v9581
    %v10519 = vadd.f32 %v10518, %v9645
    %v10520 = vadd.f32 %v10519, %v9709
    %v10521 = vadd.f32 %v10520, %v9773
    %v10522 = vadd.f32 %v10521, %v9837
    %v10523 = vadd.f32 %v10522, %v9901
    %v10524 = vrot.slane %v10523, 4
    %v10525 = vadd.f32 %v10523, %v10524
    %v10526 = vrot.slane %v10525, 2
    %v10527 = vadd.f32 %v10525, %v10526
    %v10528 = vrot.slane %v10527, 1
    %v10529 = vadd.f32 %v10527, %v10528
    %v10530 = vadd.f32 %v9454, %v9518
    %v10531 = vadd.f32 %v10530, %v9582
    %v10532 = vadd.f32 %v10531, %v9646
    %v10533 = vadd.f32 %v10532, %v9710
    %v10534 = vadd.f32 %v10533, %v9774
    %v10535 = vadd.f32 %v10534, %v9838
    %v10536 = vadd.f32 %v10535, %v9902
    %v10537 = vrot.slane %v10536, 4
    %v10538 = vadd.f32 %v10536, %v10537
    %v10539 = vrot.slane %v10538, 2
    %v10540 = vadd.f32 %v10538, %v10539
    %v10541 = vrot.slane %v10540, 1
    %v10542 = vadd.f32 %v10540, %v10541
    %v10543 = vadd.f32 %v9455, %v9519
    %v10544 = vadd.f32 %v10543, %v9583
    %v10545 = vadd.f32 %v10544, %v9647
    %v10546 = vadd.f32 %v10545, %v9711
    %v10547 = vadd.f32 %v10546, %v9775
    %v10548 = vadd.f32 %v10547, %v9839
    %v10549 = vadd.f32 %v10548, %v9903
    %v10550 = vrot.slane %v10549, 4
    %v10551 = vadd.f32 %v10549, %v10550
    %v10552 = vrot.slane %v10551, 2
    %v10553 = vadd.f32 %v10551, %v10552
    %v10554 = vrot.slane %v10553, 1
    %v10555 = vadd.f32 %v10553, %v10554
    %v10556 = vadd.f32 %v9456, %v9520
    %v10557 = vadd.f32 %v10556, %v9584
    %v10558 = vadd.f32 %v10557, %v9648
    %v10559 = vadd.f32 %v10558, %v9712
    %v10560 = vadd.f32 %v10559, %v9776
    %v10561 = vadd.f32 %v10560, %v9840
    %v10562 = vadd.f32 %v10561, %v9904
    %v10563 = vrot.slane %v10562, 4
    %v10564 = vadd.f32 %v10562, %v10563
    %v10565 = vrot.slane %v10564, 2
    %v10566 = vadd.f32 %v10564, %v10565
    %v10567 = vrot.slane %v10566, 1
    %v10568 = vadd.f32 %v10566, %v10567
    %v10569 = vadd.f32 %v9457, %v9521
    %v10570 = vadd.f32 %v10569, %v9585
    %v10571 = vadd.f32 %v10570, %v9649
    %v10572 = vadd.f32 %v10571, %v9713
    %v10573 = vadd.f32 %v10572, %v9777
    %v10574 = vadd.f32 %v10573, %v9841
    %v10575 = vadd.f32 %v10574, %v9905
    %v10576 = vrot.slane %v10575, 4
    %v10577 = vadd.f32 %v10575, %v10576
    %v10578 = vrot.slane %v10577, 2
    %v10579 = vadd.f32 %v10577, %v10578
    %v10580 = vrot.slane %v10579, 1
    %v10581 = vadd.f32 %v10579, %v10580
    %v10582 = vadd.f32 %v9458, %v9522
    %v10583 = vadd.f32 %v10582, %v9586
    %v10584 = vadd.f32 %v10583, %v9650
    %v10585 = vadd.f32 %v10584, %v9714
    %v10586 = vadd.f32 %v10585, %v9778
    %v10587 = vadd.f32 %v10586, %v9842
    %v10588 = vadd.f32 %v10587, %v9906
    %v10589 = vrot.slane %v10588, 4
    %v10590 = vadd.f32 %v10588, %v10589
    %v10591 = vrot.slane %v10590, 2
    %v10592 = vadd.f32 %v10590, %v10591
    %v10593 = vrot.slane %v10592, 1
    %v10594 = vadd.f32 %v10592, %v10593
    %v10595 = vadd.f32 %v9459, %v9523
    %v10596 = vadd.f32 %v10595, %v9587
    %v10597 = vadd.f32 %v10596, %v9651
    %v10598 = vadd.f32 %v10597, %v9715
    %v10599 = vadd.f32 %v10598, %v9779
    %v10600 = vadd.f32 %v10599, %v9843
    %v10601 = vadd.f32 %v10600, %v9907
    %v10602 = vrot.slane %v10601, 4
    %v10603 = vadd.f32 %v10601, %v10602
    %v10604 = vrot.slane %v10603, 2
    %v10605 = vadd.f32 %v10603, %v10604
    %v10606 = vrot.slane %v10605, 1
    %v10607 = vadd.f32 %v10605, %v10606
    %v10608 = vadd.f32 %v9460, %v9524
    %v10609 = vadd.f32 %v10608, %v9588
    %v10610 = vadd.f32 %v10609, %v9652
    %v10611 = vadd.f32 %v10610, %v9716
    %v10612 = vadd.f32 %v10611, %v9780
    %v10613 = vadd.f32 %v10612, %v9844
    %v10614 = vadd.f32 %v10613, %v9908
    %v10615 = vrot.slane %v10614, 4
    %v10616 = vadd.f32 %v10614, %v10615
    %v10617 = vrot.slane %v10616, 2
    %v10618 = vadd.f32 %v10616, %v10617
    %v10619 = vrot.slane %v10618, 1
    %v10620 = vadd.f32 %v10618, %v10619
    %v10621 = vadd.f32 %v9461, %v9525
    %v10622 = vadd.f32 %v10621, %v9589
    %v10623 = vadd.f32 %v10622, %v9653
    %v10624 = vadd.f32 %v10623, %v9717
    %v10625 = vadd.f32 %v10624, %v9781
    %v10626 = vadd.f32 %v10625, %v9845
    %v10627 = vadd.f32 %v10626, %v9909
    %v10628 = vrot.slane %v10627, 4
    %v10629 = vadd.f32 %v10627, %v10628
    %v10630 = vrot.slane %v10629, 2
    %v10631 = vadd.f32 %v10629, %v10630
    %v10632 = vrot.slane %v10631, 1
    %v10633 = vadd.f32 %v10631, %v10632
    %v10634 = vadd.f32 %v9462, %v9526
    %v10635 = vadd.f32 %v10634, %v9590
    %v10636 = vadd.f32 %v10635, %v9654
    %v10637 = vadd.f32 %v10636, %v9718
    %v10638 = vadd.f32 %v10637, %v9782
    %v10639 = vadd.f32 %v10638, %v9846
    %v10640 = vadd.f32 %v10639, %v9910
    %v10641 = vrot.slane %v10640, 4
    %v10642 = vadd.f32 %v10640, %v10641
    %v10643 = vrot.slane %v10642, 2
    %v10644 = vadd.f32 %v10642, %v10643
    %v10645 = vrot.slane %v10644, 1
    %v10646 = vadd.f32 %v10644, %v10645
    %v10647 = vadd.f32 %v9463, %v9527
    %v10648 = vadd.f32 %v10647, %v9591
    %v10649 = vadd.f32 %v10648, %v9655
    %v10650 = vadd.f32 %v10649, %v9719
    %v10651 = vadd.f32 %v10650, %v9783
    %v10652 = vadd.f32 %v10651, %v9847
    %v10653 = vadd.f32 %v10652, %v9911
    %v10654 = vrot.slane %v10653, 4
    %v10655 = vadd.f32 %v10653, %v10654
    %v10656 = vrot.slane %v10655, 2
    %v10657 = vadd.f32 %v10655, %v10656
    %v10658 = vrot.slane %v10657, 1
    %v10659 = vadd.f32 %v10657, %v10658
    %v10660 = vadd.f32 %v9464, %v9528
    %v10661 = vadd.f32 %v10660, %v9592
    %v10662 = vadd.f32 %v10661, %v9656
    %v10663 = vadd.f32 %v10662, %v9720
    %v10664 = vadd.f32 %v10663, %v9784
    %v10665 = vadd.f32 %v10664, %v9848
    %v10666 = vadd.f32 %v10665, %v9912
    %v10667 = vrot.slane %v10666, 4
    %v10668 = vadd.f32 %v10666, %v10667
    %v10669 = vrot.slane %v10668, 2
    %v10670 = vadd.f32 %v10668, %v10669
    %v10671 = vrot.slane %v10670, 1
    %v10672 = vadd.f32 %v10670, %v10671
    %v10673 = vadd.f32 %v9465, %v9529
    %v10674 = vadd.f32 %v10673, %v9593
    %v10675 = vadd.f32 %v10674, %v9657
    %v10676 = vadd.f32 %v10675, %v9721
    %v10677 = vadd.f32 %v10676, %v9785
    %v10678 = vadd.f32 %v10677, %v9849
    %v10679 = vadd.f32 %v10678, %v9913
    %v10680 = vrot.slane %v10679, 4
    %v10681 = vadd.f32 %v10679, %v10680
    %v10682 = vrot.slane %v10681, 2
    %v10683 = vadd.f32 %v10681, %v10682
    %v10684 = vrot.slane %v10683, 1
    %v10685 = vadd.f32 %v10683, %v10684
    %v10686 = vadd.f32 %v9466, %v9530
    %v10687 = vadd.f32 %v10686, %v9594
    %v10688 = vadd.f32 %v10687, %v9658
    %v10689 = vadd.f32 %v10688, %v9722
    %v10690 = vadd.f32 %v10689, %v9786
    %v10691 = vadd.f32 %v10690, %v9850
    %v10692 = vadd.f32 %v10691, %v9914
    %v10693 = vrot.slane %v10692, 4
    %v10694 = vadd.f32 %v10692, %v10693
    %v10695 = vrot.slane %v10694, 2
    %v10696 = vadd.f32 %v10694, %v10695
    %v10697 = vrot.slane %v10696, 1
    %v10698 = vadd.f32 %v10696, %v10697
    %v10699 = vadd.f32 %v9467, %v9531
    %v10700 = vadd.f32 %v10699, %v9595
    %v10701 = vadd.f32 %v10700, %v9659
    %v10702 = vadd.f32 %v10701, %v9723
    %v10703 = vadd.f32 %v10702, %v9787
    %v10704 = vadd.f32 %v10703, %v9851
    %v10705 = vadd.f32 %v10704, %v9915
    %v10706 = vrot.slane %v10705, 4
    %v10707 = vadd.f32 %v10705, %v10706
    %v10708 = vrot.slane %v10707, 2
    %v10709 = vadd.f32 %v10707, %v10708
    %v10710 = vrot.slane %v10709, 1
    %v10711 = vadd.f32 %v10709, %v10710
    %v10712 = vadd.f32 %v9468, %v9532
    %v10713 = vadd.f32 %v10712, %v9596
    %v10714 = vadd.f32 %v10713, %v9660
    %v10715 = vadd.f32 %v10714, %v9724
    %v10716 = vadd.f32 %v10715, %v9788
    %v10717 = vadd.f32 %v10716, %v9852
    %v10718 = vadd.f32 %v10717, %v9916
    %v10719 = vrot.slane %v10718, 4
    %v10720 = vadd.f32 %v10718, %v10719
    %v10721 = vrot.slane %v10720, 2
    %v10722 = vadd.f32 %v10720, %v10721
    %v10723 = vrot.slane %v10722, 1
    %v10724 = vadd.f32 %v10722, %v10723
    %v10725 = vadd.f32 %v9469, %v9533
    %v10726 = vadd.f32 %v10725, %v9597
    %v10727 = vadd.f32 %v10726, %v9661
    %v10728 = vadd.f32 %v10727, %v9725
    %v10729 = vadd.f32 %v10728, %v9789
    %v10730 = vadd.f32 %v10729, %v9853
    %v10731 = vadd.f32 %v10730, %v9917
    %v10732 = vrot.slane %v10731, 4
    %v10733 = vadd.f32 %v10731, %v10732
    %v10734 = vrot.slane %v10733, 2
    %v10735 = vadd.f32 %v10733, %v10734
    %v10736 = vrot.slane %v10735, 1
    %v10737 = vadd.f32 %v10735, %v10736
    %v10738 = vadd.f32 %v9470, %v9534
    %v10739 = vadd.f32 %v10738, %v9598
    %v10740 = vadd.f32 %v10739, %v9662
    %v10741 = vadd.f32 %v10740, %v9726
    %v10742 = vadd.f32 %v10741, %v9790
    %v10743 = vadd.f32 %v10742, %v9854
    %v10744 = vadd.f32 %v10743, %v9918
    %v10745 = vrot.slane %v10744, 4
    %v10746 = vadd.f32 %v10744, %v10745
    %v10747 = vrot.slane %v10746, 2
    %v10748 = vadd.f32 %v10746, %v10747
    %v10749 = vrot.slane %v10748, 1
    %v10750 = vadd.f32 %v10748, %v10749
    %v10751 = vld [vmem:[#allocation2] sm:$0x1]
    %10753 = vset.pattern.permute.xlu0 0
    %10754 = vperm.xlu0 %10753, %v10751
    %v10755 = vpop.permute.xlu0 %10754
    %v10757 = vperm.slane %v10755, 0
    %v10758 = vadd.f32 %v9931, %v10757
    %v10759 = vadd.f32 %v9944, %v10757
    %v10760 = vadd.f32 %v9957, %v10757
    %v10761 = vadd.f32 %v9970, %v10757
    %v10762 = vadd.f32 %v9983, %v10757
    %v10763 = vadd.f32 %v9996, %v10757
    %v10764 = vadd.f32 %v10009, %v10757
    %v10765 = vadd.f32 %v10022, %v10757
    %v10766 = vadd.f32 %v10035, %v10757
    %v10767 = vadd.f32 %v10048, %v10757
    %v10768 = vadd.f32 %v10061, %v10757
    %v10769 = vadd.f32 %v10074, %v10757
    %v10770 = vadd.f32 %v10087, %v10757
    %v10771 = vadd.f32 %v10100, %v10757
    %v10772 = vadd.f32 %v10113, %v10757
    %v10773 = vadd.f32 %v10126, %v10757
    %v10774 = vadd.f32 %v10139, %v10757
    %v10775 = vadd.f32 %v10152, %v10757
    %v10776 = vadd.f32 %v10165, %v10757
    %v10777 = vadd.f32 %v10178, %v10757
    %v10778 = vadd.f32 %v10191, %v10757
    %v10779 = vadd.f32 %v10204, %v10757
    %v10780 = vadd.f32 %v10217, %v10757
    %v10781 = vadd.f32 %v10230, %v10757
    %v10782 = vadd.f32 %v10243, %v10757
    %v10783 = vadd.f32 %v10256, %v10757
    %v10784 = vadd.f32 %v10269, %v10757
    %v10785 = vadd.f32 %v10282, %v10757
    %v10786 = vadd.f32 %v10295, %v10757
    %v10787 = vadd.f32 %v10308, %v10757
    %v10788 = vadd.f32 %v10321, %v10757
    %v10789 = vadd.f32 %v10334, %v10757
    %v10790 = vadd.f32 %v10347, %v10757
    %v10791 = vadd.f32 %v10360, %v10757
    %v10792 = vadd.f32 %v10373, %v10757
    %v10793 = vadd.f32 %v10386, %v10757
    %v10794 = vadd.f32 %v10399, %v10757
    %v10795 = vadd.f32 %v10412, %v10757
    %v10796 = vadd.f32 %v10425, %v10757
    %v10797 = vadd.f32 %v10438, %v10757
    %v10798 = vadd.f32 %v10451, %v10757
    %v10799 = vadd.f32 %v10464, %v10757
    %v10800 = vadd.f32 %v10477, %v10757
    %v10801 = vadd.f32 %v10490, %v10757
    %v10802 = vadd.f32 %v10503, %v10757
    %v10803 = vadd.f32 %v10516, %v10757
    %v10804 = vadd.f32 %v10529, %v10757
    %v10805 = vadd.f32 %v10542, %v10757
    %v10806 = vadd.f32 %v10555, %v10757
    %v10807 = vadd.f32 %v10568, %v10757
    %v10808 = vadd.f32 %v10581, %v10757
    %v10809 = vadd.f32 %v10594, %v10757
    %v10810 = vadd.f32 %v10607, %v10757
    %v10811 = vadd.f32 %v10620, %v10757
    %v10812 = vadd.f32 %v10633, %v10757
    %v10813 = vadd.f32 %v10646, %v10757
    %v10814 = vadd.f32 %v10659, %v10757
    %v10815 = vadd.f32 %v10672, %v10757
    %v10816 = vadd.f32 %v10685, %v10757
    %v10817 = vadd.f32 %v10698, %v10757
    %v10818 = vadd.f32 %v10711, %v10757
    %v10819 = vadd.f32 %v10724, %v10757
    %v10820 = vadd.f32 %v10737, %v10757
    %v10821 = vadd.f32 %v10750, %v10757
    %v10822 = vmax.f32 %v10758, -30.0
    %v10823 = vmax.f32 %v10759, -30.0
    %v10824 = vmax.f32 %v10760, -30.0
    %v10825 = vmax.f32 %v10761, -30.0
    %v10826 = vmax.f32 %v10762, -30.0
    %v10827 = vmax.f32 %v10763, -30.0
    %v10828 = vmax.f32 %v10764, -30.0
    %v10829 = vmax.f32 %v10765, -30.0
    %v10830 = vmax.f32 %v10766, -30.0
    %v10831 = vmax.f32 %v10767, -30.0
    %v10832 = vmax.f32 %v10768, -30.0
    %v10833 = vmax.f32 %v10769, -30.0
    %v10834 = vmax.f32 %v10770, -30.0
    %v10835 = vmax.f32 %v10771, -30.0
    %v10836 = vmax.f32 %v10772, -30.0
    %v10837 = vmax.f32 %v10773, -30.0
    %v10838 = vmax.f32 %v10774, -30.0
    %v10839 = vmax.f32 %v10775, -30.0
    %v10840 = vmax.f32 %v10776, -30.0
    %v10841 = vmax.f32 %v10777, -30.0
    %v10842 = vmax.f32 %v10778, -30.0
    %v10843 = vmax.f32 %v10779, -30.0
    %v10844 = vmax.f32 %v10780, -30.0
    %v10845 = vmax.f32 %v10781, -30.0
    %v10846 = vmax.f32 %v10782, -30.0
    %v10847 = vmax.f32 %v10783, -30.0
    %v10848 = vmax.f32 %v10784, -30.0
    %v10849 = vmax.f32 %v10785, -30.0
    %v10850 = vmax.f32 %v10786, -30.0
    %v10851 = vmax.f32 %v10787, -30.0
    %v10852 = vmax.f32 %v10788, -30.0
    %v10853 = vmax.f32 %v10789, -30.0
    %v10854 = vmax.f32 %v10790, -30.0
    %v10855 = vmax.f32 %v10791, -30.0
    %v10856 = vmax.f32 %v10792, -30.0
    %v10857 = vmax.f32 %v10793, -30.0
    %v10858 = vmax.f32 %v10794, -30.0
    %v10859 = vmax.f32 %v10795, -30.0
    %v10860 = vmax.f32 %v10796, -30.0
    %v10861 = vmax.f32 %v10797, -30.0
    %v10862 = vmax.f32 %v10798, -30.0
    %v10863 = vmax.f32 %v10799, -30.0
    %v10864 = vmax.f32 %v10800, -30.0
    %v10865 = vmax.f32 %v10801, -30.0
    %v10866 = vmax.f32 %v10802, -30.0
    %v10867 = vmax.f32 %v10803, -30.0
    %v10868 = vmax.f32 %v10804, -30.0
    %v10869 = vmax.f32 %v10805, -30.0
    %v10870 = vmax.f32 %v10806, -30.0
    %v10871 = vmax.f32 %v10807, -30.0
    %v10872 = vmax.f32 %v10808, -30.0
    %v10873 = vmax.f32 %v10809, -30.0
    %v10874 = vmax.f32 %v10810, -30.0
    %v10875 = vmax.f32 %v10811, -30.0
    %v10876 = vmax.f32 %v10812, -30.0
    %v10877 = vmax.f32 %v10813, -30.0
    %v10878 = vmax.f32 %v10814, -30.0
    %v10879 = vmax.f32 %v10815, -30.0
    %v10880 = vmax.f32 %v10816, -30.0
    %v10881 = vmax.f32 %v10817, -30.0
    %v10882 = vmax.f32 %v10818, -30.0
    %v10883 = vmax.f32 %v10819, -30.0
    %v10884 = vmax.f32 %v10820, -30.0
    %v10885 = vmax.f32 %v10821, -30.0
    %v10886 = vsub.f32 0.0, %v10822
    %v10887 = vsub.f32 0.0, %v10823
    %v10888 = vsub.f32 0.0, %v10824
    %v10889 = vsub.f32 0.0, %v10825
    %v10890 = vsub.f32 0.0, %v10826
    %v10891 = vsub.f32 0.0, %v10827
    %v10892 = vsub.f32 0.0, %v10828
    %v10893 = vsub.f32 0.0, %v10829
    %v10894 = vsub.f32 0.0, %v10830
    %v10895 = vsub.f32 0.0, %v10831
    %v10896 = vsub.f32 0.0, %v10832
    %v10897 = vsub.f32 0.0, %v10833
    %v10898 = vsub.f32 0.0, %v10834
    %v10899 = vsub.f32 0.0, %v10835
    %v10900 = vsub.f32 0.0, %v10836
    %v10901 = vsub.f32 0.0, %v10837
    %v10902 = vsub.f32 0.0, %v10838
    %v10903 = vsub.f32 0.0, %v10839
    %v10904 = vsub.f32 0.0, %v10840
    %v10905 = vsub.f32 0.0, %v10841
    %v10906 = vsub.f32 0.0, %v10842
    %v10907 = vsub.f32 0.0, %v10843
    %v10908 = vsub.f32 0.0, %v10844
    %v10909 = vsub.f32 0.0, %v10845
    %v10910 = vsub.f32 0.0, %v10846
    %v10911 = vsub.f32 0.0, %v10847
    %v10912 = vsub.f32 0.0, %v10848
    %v10913 = vsub.f32 0.0, %v10849
    %v10914 = vsub.f32 0.0, %v10850
    %v10915 = vsub.f32 0.0, %v10851
    %v10916 = vsub.f32 0.0, %v10852
    %v10917 = vsub.f32 0.0, %v10853
    %v10918 = vsub.f32 0.0, %v10854
    %v10919 = vsub.f32 0.0, %v10855
    %v10920 = vsub.f32 0.0, %v10856
    %v10921 = vsub.f32 0.0, %v10857
    %v10922 = vsub.f32 0.0, %v10858
    %v10923 = vsub.f32 0.0, %v10859
    %v10924 = vsub.f32 0.0, %v10860
    %v10925 = vsub.f32 0.0, %v10861
    %v10926 = vsub.f32 0.0, %v10862
    %v10927 = vsub.f32 0.0, %v10863
    %v10928 = vsub.f32 0.0, %v10864
    %v10929 = vsub.f32 0.0, %v10865
    %v10930 = vsub.f32 0.0, %v10866
    %v10931 = vsub.f32 0.0, %v10867
    %v10932 = vsub.f32 0.0, %v10868
    %v10933 = vsub.f32 0.0, %v10869
    %v10934 = vsub.f32 0.0, %v10870
    %v10935 = vsub.f32 0.0, %v10871
    %v10936 = vsub.f32 0.0, %v10872
    %v10937 = vsub.f32 0.0, %v10873
    %v10938 = vsub.f32 0.0, %v10874
    %v10939 = vsub.f32 0.0, %v10875
    %v10940 = vsub.f32 0.0, %v10876
    %v10941 = vsub.f32 0.0, %v10877
    %v10942 = vsub.f32 0.0, %v10878
    %v10943 = vsub.f32 0.0, %v10879
    %v10944 = vsub.f32 0.0, %v10880
    %v10945 = vsub.f32 0.0, %v10881
    %v10946 = vsub.f32 0.0, %v10882
    %v10947 = vsub.f32 0.0, %v10883
    %v10948 = vsub.f32 0.0, %v10884
    %v10949 = vsub.f32 0.0, %v10885
    %v10950 = vmul.f32 %v10886, 1.442695
    %v10951 = vpow.pop %v10950
    %v10952 = vmul.f32 %v10887, 1.442695
    %v10953 = vpow.pop %v10952
    %v10954 = vmul.f32 %v10888, 1.442695
    %v10955 = vpow.pop %v10954
    %v10956 = vmul.f32 %v10889, 1.442695
    %v10957 = vpow.pop %v10956
    %v10958 = vmul.f32 %v10890, 1.442695
    %v10959 = vpow.pop %v10958
    %v10960 = vmul.f32 %v10891, 1.442695
    %v10961 = vpow.pop %v10960
    %v10962 = vmul.f32 %v10892, 1.442695
    %v10963 = vpow.pop %v10962
    %v10964 = vmul.f32 %v10893, 1.442695
    %v10965 = vpow.pop %v10964
    %v10966 = vmul.f32 %v10894, 1.442695
    %v10967 = vpow.pop %v10966
    %v10968 = vmul.f32 %v10895, 1.442695
    %v10969 = vpow.pop %v10968
    %v10970 = vmul.f32 %v10896, 1.442695
    %v10971 = vpow.pop %v10970
    %v10972 = vmul.f32 %v10897, 1.442695
    %v10973 = vpow.pop %v10972
    %v10974 = vmul.f32 %v10898, 1.442695
    %v10975 = vpow.pop %v10974
    %v10976 = vmul.f32 %v10899, 1.442695
    %v10977 = vpow.pop %v10976
    %v10978 = vmul.f32 %v10900, 1.442695
    %v10979 = vpow.pop %v10978
    %v10980 = vmul.f32 %v10901, 1.442695
    %v10981 = vpow.pop %v10980
    %v10982 = vmul.f32 %v10902, 1.442695
    %v10983 = vpow.pop %v10982
    %v10984 = vmul.f32 %v10903, 1.442695
    %v10985 = vpow.pop %v10984
    %v10986 = vmul.f32 %v10904, 1.442695
    %v10987 = vpow.pop %v10986
    %v10988 = vmul.f32 %v10905, 1.442695
    %v10989 = vpow.pop %v10988
    %v10990 = vmul.f32 %v10906, 1.442695
    %v10991 = vpow.pop %v10990
    %v10992 = vmul.f32 %v10907, 1.442695
    %v10993 = vpow.pop %v10992
    %v10994 = vmul.f32 %v10908, 1.442695
    %v10995 = vpow.pop %v10994
    %v10996 = vmul.f32 %v10909, 1.442695
    %v10997 = vpow.pop %v10996
    %v10998 = vmul.f32 %v10910, 1.442695
    %v10999 = vpow.pop %v10998
    %v11000 = vmul.f32 %v10911, 1.442695
    %v11001 = vpow.pop %v11000
    %v11002 = vmul.f32 %v10912, 1.442695
    %v11003 = vpow.pop %v11002
    %v11004 = vmul.f32 %v10913, 1.442695
    %v11005 = vpow.pop %v11004
    %v11006 = vmul.f32 %v10914, 1.442695
    %v11007 = vpow.pop %v11006
    %v11008 = vmul.f32 %v10915, 1.442695
    %v11009 = vpow.pop %v11008
    %v11010 = vmul.f32 %v10916, 1.442695
    %v11011 = vpow.pop %v11010
    %v11012 = vmul.f32 %v10917, 1.442695
    %v11013 = vpow.pop %v11012
    %v11014 = vmul.f32 %v10918, 1.442695
    %v11015 = vpow.pop %v11014
    %v11016 = vmul.f32 %v10919, 1.442695
    %v11017 = vpow.pop %v11016
    %v11018 = vmul.f32 %v10920, 1.442695
    %v11019 = vpow.pop %v11018
    %v11020 = vmul.f32 %v10921, 1.442695
    %v11021 = vpow.pop %v11020
    %v11022 = vmul.f32 %v10922, 1.442695
    %v11023 = vpow.pop %v11022
    %v11024 = vmul.f32 %v10923, 1.442695
    %v11025 = vpow.pop %v11024
    %v11026 = vmul.f32 %v10924, 1.442695
    %v11027 = vpow.pop %v11026
    %v11028 = vmul.f32 %v10925, 1.442695
    %v11029 = vpow.pop %v11028
    %v11030 = vmul.f32 %v10926, 1.442695
    %v11031 = vpow.pop %v11030
    %v11032 = vmul.f32 %v10927, 1.442695
    %v11033 = vpow.pop %v11032
    %v11034 = vmul.f32 %v10928, 1.442695
    %v11035 = vpow.pop %v11034
    %v11036 = vmul.f32 %v10929, 1.442695
    %v11037 = vpow.pop %v11036
    %v11038 = vmul.f32 %v10930, 1.442695
    %v11039 = vpow.pop %v11038
    %v11040 = vmul.f32 %v10931, 1.442695
    %v11041 = vpow.pop %v11040
    %v11042 = vmul.f32 %v10932, 1.442695
    %v11043 = vpow.pop %v11042
    %v11044 = vmul.f32 %v10933, 1.442695
    %v11045 = vpow.pop %v11044
    %v11046 = vmul.f32 %v10934, 1.442695
    %v11047 = vpow.pop %v11046
    %v11048 = vmul.f32 %v10935, 1.442695
    %v11049 = vpow.pop %v11048
    %v11050 = vmul.f32 %v10936, 1.442695
    %v11051 = vpow.pop %v11050
    %v11052 = vmul.f32 %v10937, 1.442695
    %v11053 = vpow.pop %v11052
    %v11054 = vmul.f32 %v10938, 1.442695
    %v11055 = vpow.pop %v11054
    %v11056 = vmul.f32 %v10939, 1.442695
    %v11057 = vpow.pop %v11056
    %v11058 = vmul.f32 %v10940, 1.442695
    %v11059 = vpow.pop %v11058
    %v11060 = vmul.f32 %v10941, 1.442695
    %v11061 = vpow.pop %v11060
    %v11062 = vmul.f32 %v10942, 1.442695
    %v11063 = vpow.pop %v11062
    %v11064 = vmul.f32 %v10943, 1.442695
    %v11065 = vpow.pop %v11064
    %v11066 = vmul.f32 %v10944, 1.442695
    %v11067 = vpow.pop %v11066
    %v11068 = vmul.f32 %v10945, 1.442695
    %v11069 = vpow.pop %v11068
    %v11070 = vmul.f32 %v10946, 1.442695
    %v11071 = vpow.pop %v11070
    %v11072 = vmul.f32 %v10947, 1.442695
    %v11073 = vpow.pop %v11072
    %v11074 = vmul.f32 %v10948, 1.442695
    %v11075 = vpow.pop %v11074
    %v11076 = vmul.f32 %v10949, 1.442695
    %v11077 = vpow.pop %v11076
    %v11078 = vadd.f32 %v10951, 1.0
    %v11079 = vadd.f32 %v10953, 1.0
    %v11080 = vadd.f32 %v10955, 1.0
    %v11081 = vadd.f32 %v10957, 1.0
    %v11082 = vadd.f32 %v10959, 1.0
    %v11083 = vadd.f32 %v10961, 1.0
    %v11084 = vadd.f32 %v10963, 1.0
    %v11085 = vadd.f32 %v10965, 1.0
    %v11086 = vadd.f32 %v10967, 1.0
    %v11087 = vadd.f32 %v10969, 1.0
    %v11088 = vadd.f32 %v10971, 1.0
    %v11089 = vadd.f32 %v10973, 1.0
    %v11090 = vadd.f32 %v10975, 1.0
    %v11091 = vadd.f32 %v10977, 1.0
    %v11092 = vadd.f32 %v10979, 1.0
    %v11093 = vadd.f32 %v10981, 1.0
    %v11094 = vadd.f32 %v10983, 1.0
    %v11095 = vadd.f32 %v10985, 1.0
    %v11096 = vadd.f32 %v10987, 1.0
    %v11097 = vadd.f32 %v10989, 1.0
    %v11098 = vadd.f32 %v10991, 1.0
    %v11099 = vadd.f32 %v10993, 1.0
    %v11100 = vadd.f32 %v10995, 1.0
    %v11101 = vadd.f32 %v10997, 1.0
    %v11102 = vadd.f32 %v10999, 1.0
    %v11103 = vadd.f32 %v11001, 1.0
    %v11104 = vadd.f32 %v11003, 1.0
    %v11105 = vadd.f32 %v11005, 1.0
    %v11106 = vadd.f32 %v11007, 1.0
    %v11107 = vadd.f32 %v11009, 1.0
    %v11108 = vadd.f32 %v11011, 1.0
    %v11109 = vadd.f32 %v11013, 1.0
    %v11110 = vadd.f32 %v11015, 1.0
    %v11111 = vadd.f32 %v11017, 1.0
    %v11112 = vadd.f32 %v11019, 1.0
    %v11113 = vadd.f32 %v11021, 1.0
    %v11114 = vadd.f32 %v11023, 1.0
    %v11115 = vadd.f32 %v11025, 1.0
    %v11116 = vadd.f32 %v11027, 1.0
    %v11117 = vadd.f32 %v11029, 1.0
    %v11118 = vadd.f32 %v11031, 1.0
    %v11119 = vadd.f32 %v11033, 1.0
    %v11120 = vadd.f32 %v11035, 1.0
    %v11121 = vadd.f32 %v11037, 1.0
    %v11122 = vadd.f32 %v11039, 1.0
    %v11123 = vadd.f32 %v11041, 1.0
    %v11124 = vadd.f32 %v11043, 1.0
    %v11125 = vadd.f32 %v11045, 1.0
    %v11126 = vadd.f32 %v11047, 1.0
    %v11127 = vadd.f32 %v11049, 1.0
    %v11128 = vadd.f32 %v11051, 1.0
    %v11129 = vadd.f32 %v11053, 1.0
    %v11130 = vadd.f32 %v11055, 1.0
    %v11131 = vadd.f32 %v11057, 1.0
    %v11132 = vadd.f32 %v11059, 1.0
    %v11133 = vadd.f32 %v11061, 1.0
    %v11134 = vadd.f32 %v11063, 1.0
    %v11135 = vadd.f32 %v11065, 1.0
    %v11136 = vadd.f32 %v11067, 1.0
    %v11137 = vadd.f32 %v11069, 1.0
    %v11138 = vadd.f32 %v11071, 1.0
    %v11139 = vadd.f32 %v11073, 1.0
    %v11140 = vadd.f32 %v11075, 1.0
    %v11141 = vadd.f32 %v11077, 1.0
    %v11142 = vrcp.pop %v11078
    %v11143 = vrcp.pop %v11079
    %v11144 = vrcp.pop %v11080
    %v11145 = vrcp.pop %v11081
    %v11146 = vrcp.pop %v11082
    %v11147 = vrcp.pop %v11083
    %v11148 = vrcp.pop %v11084
    %v11149 = vrcp.pop %v11085
    %v11150 = vrcp.pop %v11086
    %v11151 = vrcp.pop %v11087
    %v11152 = vrcp.pop %v11088
    %v11153 = vrcp.pop %v11089
    %v11154 = vrcp.pop %v11090
    %v11155 = vrcp.pop %v11091
    %v11156 = vrcp.pop %v11092
    %v11157 = vrcp.pop %v11093
    %v11158 = vrcp.pop %v11094
    %v11159 = vrcp.pop %v11095
    %v11160 = vrcp.pop %v11096
    %v11161 = vrcp.pop %v11097
    %v11162 = vrcp.pop %v11098
    %v11163 = vrcp.pop %v11099
    %v11164 = vrcp.pop %v11100
    %v11165 = vrcp.pop %v11101
    %v11166 = vrcp.pop %v11102
    %v11167 = vrcp.pop %v11103
    %v11168 = vrcp.pop %v11104
    %v11169 = vrcp.pop %v11105
    %v11170 = vrcp.pop %v11106
    %v11171 = vrcp.pop %v11107
    %v11172 = vrcp.pop %v11108
    %v11173 = vrcp.pop %v11109
    %v11174 = vrcp.pop %v11110
    %v11175 = vrcp.pop %v11111
    %v11176 = vrcp.pop %v11112
    %v11177 = vrcp.pop %v11113
    %v11178 = vrcp.pop %v11114
    %v11179 = vrcp.pop %v11115
    %v11180 = vrcp.pop %v11116
    %v11181 = vrcp.pop %v11117
    %v11182 = vrcp.pop %v11118
    %v11183 = vrcp.pop %v11119
    %v11184 = vrcp.pop %v11120
    %v11185 = vrcp.pop %v11121
    %v11186 = vrcp.pop %v11122
    %v11187 = vrcp.pop %v11123
    %v11188 = vrcp.pop %v11124
    %v11189 = vrcp.pop %v11125
    %v11190 = vrcp.pop %v11126
    %v11191 = vrcp.pop %v11127
    %v11192 = vrcp.pop %v11128
    %v11193 = vrcp.pop %v11129
    %v11194 = vrcp.pop %v11130
    %v11195 = vrcp.pop %v11131
    %v11196 = vrcp.pop %v11132
    %v11197 = vrcp.pop %v11133
    %v11198 = vrcp.pop %v11134
    %v11199 = vrcp.pop %v11135
    %v11200 = vrcp.pop %v11136
    %v11201 = vrcp.pop %v11137
    %v11202 = vrcp.pop %v11138
    %v11203 = vrcp.pop %v11139
    %v11204 = vrcp.pop %v11140
    %v11205 = vrcp.pop %v11141
    %v11270 = vrot.slane %v11143, 7
    %v11271 = vrot.slane %v11144, 6
    %v11272 = vrot.slane %v11145, 5
    %v11273 = vrot.slane %v11146, 4
    %v11274 = vrot.slane %v11147, 3
    %v11275 = vrot.slane %v11148, 2
    %v11276 = vrot.slane %v11149, 1
    %v11277 = vrot.slane %v11151, 7
    %v11278 = vrot.slane %v11152, 6
    %v11279 = vrot.slane %v11153, 5
    %v11280 = vrot.slane %v11154, 4
    %v11281 = vrot.slane %v11155, 3
    %v11282 = vrot.slane %v11156, 2
    %v11283 = vrot.slane %v11157, 1
    %v11284 = vrot.slane %v11159, 7
    %v11285 = vrot.slane %v11160, 6
    %v11286 = vrot.slane %v11161, 5
    %v11287 = vrot.slane %v11162, 4
    %v11288 = vrot.slane %v11163, 3
    %v11289 = vrot.slane %v11164, 2
    %v11290 = vrot.slane %v11165, 1
    %v11291 = vrot.slane %v11167, 7
    %v11292 = vrot.slane %v11168, 6
    %v11293 = vrot.slane %v11169, 5
    %v11294 = vrot.slane %v11170, 4
    %v11295 = vrot.slane %v11171, 3
    %v11296 = vrot.slane %v11172, 2
    %v11297 = vrot.slane %v11173, 1
    %v11298 = vrot.slane %v11175, 7
    %v11299 = vrot.slane %v11176, 6
    %v11300 = vrot.slane %v11177, 5
    %v11301 = vrot.slane %v11178, 4
    %v11302 = vrot.slane %v11179, 3
    %v11303 = vrot.slane %v11180, 2
    %v11304 = vrot.slane %v11181, 1
    %v11305 = vrot.slane %v11183, 7
    %v11306 = vrot.slane %v11184, 6
    %v11307 = vrot.slane %v11185, 5
    %v11308 = vrot.slane %v11186, 4
    %v11309 = vrot.slane %v11187, 3
    %v11310 = vrot.slane %v11188, 2
    %v11311 = vrot.slane %v11189, 1
    %v11312 = vrot.slane %v11191, 7
    %v11313 = vrot.slane %v11192, 6
    %v11314 = vrot.slane %v11193, 5
    %v11315 = vrot.slane %v11194, 4
    %v11316 = vrot.slane %v11195, 3
    %v11317 = vrot.slane %v11196, 2
    %v11318 = vrot.slane %v11197, 1
    %v11319 = vrot.slane %v11199, 7
    %v11320 = vrot.slane %v11200, 6
    %v11321 = vrot.slane %v11201, 5
    %v11322 = vrot.slane %v11202, 4
    %v11323 = vrot.slane %v11203, 3
    %v11324 = vrot.slane %v11204, 2
    %v11325 = vrot.slane %v11205, 1
    %vm11326 = vcmask 1040384
    %v11327 = vsel %vm11326, %v11142, %v11270
    %vm11328 = vcmask 1042434
    %v11329 = vsel %vm11328, %v11271, %v11272
    %vm11330 = vcmask 1041408
    %v11331 = vsel %vm11330, %v11327, %v11329
    %vm11332 = vcmask 1044484
    %v11333 = vsel %vm11332, %v11273, %v11274
    %vm11334 = vcmask 1046534
    %v11335 = vsel %vm11334, %v11275, %v11276
    %vm11336 = vcmask 1045508
    %v11337 = vsel %vm11336, %v11333, %v11335
    %vm11338 = vcmask 1043456
    %v11339 = vsel %vm11338, %v11331, %v11337
    %v11340 = vsel %vm11326, %v11150, %v11277
    %v11341 = vsel %vm11328, %v11278, %v11279
    %v11342 = vsel %vm11330, %v11340, %v11341
    %v11343 = vsel %vm11332, %v11280, %v11281
    %v11344 = vsel %vm11334, %v11282, %v11283
    %v11345 = vsel %vm11336, %v11343, %v11344
    %v11346 = vsel %vm11338, %v11342, %v11345
    %v11347 = vsel %vm11326, %v11158, %v11284
    %v11348 = vsel %vm11328, %v11285, %v11286
    %v11349 = vsel %vm11330, %v11347, %v11348
    %v11350 = vsel %vm11332, %v11287, %v11288
    %v11351 = vsel %vm11334, %v11289, %v11290
    %v11352 = vsel %vm11336, %v11350, %v11351
    %v11353 = vsel %vm11338, %v11349, %v11352
    %v11354 = vsel %vm11326, %v11166, %v11291
    %v11355 = vsel %vm11328, %v11292, %v11293
    %v11356 = vsel %vm11330, %v11354, %v11355
    %v11357 = vsel %vm11332, %v11294, %v11295
    %v11358 = vsel %vm11334, %v11296, %v11297
    %v11359 = vsel %vm11336, %v11357, %v11358
    %v11360 = vsel %vm11338, %v11356, %v11359
    %v11361 = vsel %vm11326, %v11174, %v11298
    %v11362 = vsel %vm11328, %v11299, %v11300
    %v11363 = vsel %vm11330, %v11361, %v11362
    %v11364 = vsel %vm11332, %v11301, %v11302
    %v11365 = vsel %vm11334, %v11303, %v11304
    %v11366 = vsel %vm11336, %v11364, %v11365
    %v11367 = vsel %vm11338, %v11363, %v11366
    %v11368 = vsel %vm11326, %v11182, %v11305
    %v11369 = vsel %vm11328, %v11306, %v11307
    %v11370 = vsel %vm11330, %v11368, %v11369
    %v11371 = vsel %vm11332, %v11308, %v11309
    %v11372 = vsel %vm11334, %v11310, %v11311
    %v11373 = vsel %vm11336, %v11371, %v11372
    %v11374 = vsel %vm11338, %v11370, %v11373
    %v11375 = vsel %vm11326, %v11190, %v11312
    %v11376 = vsel %vm11328, %v11313, %v11314
    %v11377 = vsel %vm11330, %v11375, %v11376
    %v11378 = vsel %vm11332, %v11315, %v11316
    %v11379 = vsel %vm11334, %v11317, %v11318
    %v11380 = vsel %vm11336, %v11378, %v11379
    %v11381 = vsel %vm11338, %v11377, %v11380
    %v11382 = vsel %vm11326, %v11198, %v11319
    %v11383 = vsel %vm11328, %v11320, %v11321
    %v11384 = vsel %vm11330, %v11382, %v11383
    %v11385 = vsel %vm11332, %v11322, %v11323
    %v11386 = vsel %vm11334, %v11324, %v11325
    %v11387 = vsel %vm11336, %v11385, %v11386
    %v11388 = vsel %vm11338, %v11384, %v11387
    %11397 = vst [vmem:[#allocation3] sm:$0xff] %v11339
    %11398 = vst [vmem:[#allocation3 + $0x8] sm:$0xff] %v11346
    %11399 = vst [vmem:[#allocation3 + $0x10] sm:$0xff] %v11353
    %11400 = vst [vmem:[#allocation3 + $0x18] sm:$0xff] %v11360
    %11401 = vst [vmem:[#allocation3 + $0x20] sm:$0xff] %v11367
    %11402 = vst [vmem:[#allocation3 + $0x28] sm:$0xff] %v11374
    %11403 = vst [vmem:[#allocation3 + $0x30] sm:$0xff] %v11381
    %11404 = vst [vmem:[#allocation3 + $0x38] sm:$0xff] %v11388
    // Predicated region
    $region30: #{tpu_custom_call.1} parent=1 // pred_check
      _
    $region31: #{tpu_custom_call.1} parent=1 // pred_check_branch
      %11406 = sbr.rel (0) target = $region33
    $region32: #{tpu_custom_call.1} parent=1 // pred_region
      %11408 = vsyncadd [#allocation4], 0
      %s11410 = sshll.u32 [#allocation3], 4
      %s11411 = int_to_ptr.vmem [resolvable:$true] %s11410
      %s11412 = sshll.u32 %s7, 4
      %s11413 = int_to_ptr.hbm [resolvable:$true] %s11412
      %11415 = dma.vmem_to_hbm [thread:$0]  %s11411, 1024, %s11413, [#allocation4]
    $region33: #{tpu_custom_call.1} parent=1 // pred_fallthru
      _
    // Predicated region
    $region34: #{tpu_custom_call.1} parent=1 // pred_check
      _
    $region35: #{tpu_custom_call.1} parent=1 // pred_check_branch
      %11417 = sbr.rel (0) target = $region37
    $region36: #{tpu_custom_call.1} parent=1 // pred_region
      %11419 = dma.done [#allocation4], 1024
    $region37: #{tpu_custom_call.1} parent=1 // pred_fallthru
      _
    %11420 = vsyncpa [#allocation4], 1

</llo_original>
